<compile_context>
chip_gen: v6e
topology: v6e:2x2x1
jax: 0.10.0
libtpu: 0.0.40
codegen_flags: <defaults>
</compile_context>

<pallas_src>
import jax
import jax.numpy as jnp
import numpy as np
from jax.experimental import pallas as pl
from jax.experimental.pallas import tpu as pltpu

CLINICAL_DIM = 27
CLINICAL_PAD = 128          # pad 27 -> 128 lanes (zero rows of W1 keep this exact)
HIDDEN = 512
FEAT = 256
NUM_SCALES = 4
NUM_SLOTS = NUM_SCALES + 1  # 4 CT scales + 1 clinical slot (proj = Linear(5*256, 256))
LN_EPS = 1e-5
LANE = 128
DEFAULT_TILE_S = 1024       # spatial elements per streamed scale per grid step


def _make_kernel(meta):
    """meta: per-scale static tuple (S, tile, n_blk)."""

    def kernel(ct0, ct1, ct2, ct3, clin, w1, b1, gamma, beta, w2, b2, wp, bp,
               out_ref, *acc_refs):
        i = pl.program_id(1)                 # spatial reduction step (inner axis)
        last = pl.num_programs(1) - 1
        ct_refs = (ct0, ct1, ct2, ct3)

        @pl.when(i == 0)
        def _():
            for a in acc_refs:
                a[...] = jnp.zeros_like(a)

        # ---- steady state: slice-wise spatial-sum accumulation (VPU only) ----
        acc_idx = 0
        for s in range(NUM_SCALES):
            S, tile, n_blk = meta[s]
            if n_blk == 1:
                continue                      # resident scale: pooled in epilogue
            x_ref = ct_refs[s]
            acc_ref = acc_refs[acc_idx]
            acc_idx += 1
            rem = S - (n_blk - 1) * tile      # valid elements in the last block
            n_full = n_blk if rem == tile else n_blk - 1

            @pl.when(i < n_full)
            def _(x_ref=x_ref, acc_ref=acc_ref, tile=tile):
                for j in range(tile // LANE):
                    acc_ref[...] += x_ref[:, :, j * LANE:(j + 1) * LANE].astype(jnp.float32)

            if rem != tile:
                rem_full, rem_part = rem // LANE, rem % LANE

                @pl.when(i == n_blk - 1)
                def _(x_ref=x_ref, acc_ref=acc_ref,
                      rem_full=rem_full, rem_part=rem_part):
                    for j in range(rem_full):
                        acc_ref[...] += x_ref[:, :, j * LANE:(j + 1) * LANE].astype(jnp.float32)
                    if rem_part:
                        # edge-block lanes past `rem` are undefined -> select, not multiply
                        lane = jax.lax.broadcasted_iota(jnp.int32, (1, 1, LANE), 2)
                        xs = x_ref[:, :, rem_full * LANE:(rem_full + 1) * LANE].astype(jnp.float32)
                        acc_ref[...] += jnp.where(lane < rem_part, xs, 0.0)

        # ---- epilogue (once per batch row): reduce, clinical MLP, projection ----
        @pl.when(i == last)
        def _():
            pooled = []
            a_idx = 0
            for s in range(NUM_SCALES):
                S, tile, n_blk = meta[s]
                if n_blk > 1:
                    v = jnp.sum(acc_refs[a_idx][...], axis=-1)                      # (1, FEAT)
                    a_idx += 1
                else:
                    v = jnp.sum(ct_refs[s][...].astype(jnp.float32), axis=-1)       # (1, FEAT)
                pooled.append(v * (1.0 / S))          # AdaptiveAvgPool3d((1,1,1)) mean

            # clinical_enhancer: Linear -> LayerNorm -> ReLU -> Linear
            c = clin[0]                                                              # (1, CLINICAL_PAD)
            h = jnp.dot(c, w1[...], preferred_element_type=jnp.float32) + b1[...]    # (1, HIDDEN)
            mu = jnp.mean(h, axis=-1, keepdims=True)
            var = jnp.mean(jnp.square(h - mu), axis=-1, keepdims=True)
            h = (h - mu) * jax.lax.rsqrt(var + LN_EPS)
            h = h * gamma[...] + beta[...]
            h = jnp.maximum(h, 0.0)
            cli = jnp.dot(h, w2[...], preferred_element_type=jnp.float32) + b2[...]  # (1, FEAT)

            # proj: single fused [1, 5*FEAT] x [5*FEAT, FEAT] dot (wp is slot-major).
            feats = jnp.concatenate(pooled + [cli], axis=-1)                         # (1, 5*FEAT)
            out = jnp.dot(feats, wp[...], preferred_element_type=jnp.float32) + bp[...]
            out_ref[...] = out.reshape(out_ref.shape).astype(out_ref.dtype)

    return kernel


def multi_scale_fusion(ct_features, clinical, params, *, tile_s=DEFAULT_TILE_S):
    """ct_features: list of 4 NCDHW arrays [B, 256, D, H, W]; clinical: [B, 27].

    Returns [B, 1, 256] (matches the PyTorch module's output)."""
    assert len(ct_features) == NUM_SCALES
    assert tile_s % LANE == 0, "tile_s must be a multiple of 128"
    B = clinical.shape[0]
    assert clinical.shape[1] == CLINICAL_DIM

    # --- glue (no large copies): collapse spatial dims, keep native dtype [B,C,S] ---
    cts, meta, ct_bytes = [], [], 0
    for x in ct_features:
        b, c, d, h, w = x.shape
        assert b == B and c == FEAT
        S = d * h * w
        cts.append(x.reshape(b, c, S))                 # metadata-only reshape
        tile = tile_s if S >= tile_s else S            # full-dim block is always legal
        meta.append((S, tile, pl.cdiv(S, tile)))
        ct_bytes += int(x.size) * x.dtype.itemsize
    n_steps = max(m[2] for m in meta)

    # clinical vector / first-layer weight zero-padded 27 -> 128 lanes (exact).
    clin_p = jnp.zeros((B, 1, CLINICAL_PAD), jnp.float32).at[:, 0, :CLINICAL_DIM].set(
        clinical.astype(jnp.float32))
    w1_p = jnp.zeros((CLINICAL_PAD, HIDDEN), jnp.float32).at[:CLINICAL_DIM, :].set(
        params['w1'])

    # proj weight: PyTorch flatten index = c*5 + slot; reorder to slot-major rows.
    wp_sm = jnp.transpose(params['wp'].reshape(FEAT, NUM_SLOTS, FEAT),
                          (1, 0, 2)).reshape(NUM_SLOTS * FEAT, FEAT)

    args = (*cts, clin_p,
            w1_p, params['b1'].reshape(1, HIDDEN),
            params['gamma'].reshape(1, HIDDEN), params['beta'].reshape(1, HIDDEN),
            params['w2'], params['b2'].reshape(1, FEAT),
            wp_sm, params['bp'].reshape(1, FEAT))

    def _ct_spec(S, tile, n_blk):
        if n_blk > 1:
            idx = lambda b, i, n=n_blk: (b, 0, jnp.minimum(i, n - 1))
        else:
            idx = lambda b, i: (b, 0, 0)
        return pl.BlockSpec((1, FEAT, tile), idx)

    def _const(shape):
        """Constant-index spec: DMA'd once, VMEM-resident across the whole grid."""
        return pl.BlockSpec(shape, lambda b, i, _s=shape: (0,) * len(_s))

    in_specs = [_ct_spec(*m) for m in meta] + [
        pl.BlockSpec((1, 1, CLINICAL_PAD), lambda b, i: (b, 0, 0)),   # per-row clinical
        _const((CLINICAL_PAD, HIDDEN)), _const((1, HIDDEN)),
        _const((1, HIDDEN)), _const((1, HIDDEN)),
        _const((HIDDEN, FEAT)), _const((1, FEAT)),
        _const((NUM_SLOTS * FEAT, FEAT)), _const((1, FEAT)),
    ]

    scratch_shapes = [pltpu.VMEM((1, FEAT, LANE), jnp.float32)
                      for m in meta if m[2] > 1]

    # explicit scoped-VMEM budget: double-buffered CT blocks + weights + scratch
    vmem_bytes = sum(2 * FEAT * m[1] * x.dtype.itemsize for m, x in zip(meta, cts))
    weight_bytes = 4 * (CLINICAL_PAD * HIDDEN + HIDDEN * FEAT + NUM_SLOTS * FEAT * FEAT
                        + 3 * HIDDEN + 2 * FEAT + B * CLINICAL_PAD)
    vmem_bytes += 2 * weight_bytes + len(scratch_shapes) * FEAT * LANE * 4
    vmem_limit = int(min(max(2 * vmem_bytes, 32 << 20), 64 << 20))

    flops = 2 * B * (CLINICAL_PAD * HIDDEN + HIDDEN * FEAT + NUM_SLOTS * FEAT * FEAT)
    flops += B * FEAT * sum(m[0] for m in meta)          # pooling adds
    cost = pl.CostEstimate(flops=int(flops), transcendentals=0,
                           bytes_accessed=int(ct_bytes + weight_bytes + B * FEAT * 4))

    grid_spec = pltpu.PrefetchScalarGridSpec(
        num_scalar_prefetch=0,
        grid=(B, n_steps),                               # batch parallel, S reduction
        in_specs=in_specs,
        out_specs=pl.BlockSpec((1, 1, FEAT), lambda b, i: (b, 0, 0)),
        scratch_shapes=scratch_shapes)

    out = pl.pallas_call(
        _make_kernel(tuple(meta)),
        out_shape=jax.ShapeDtypeStruct((B, 1, FEAT), jnp.float32),
        grid_spec=grid_spec,
        cost_estimate=cost,
        compiler_params=pltpu.CompilerParams(
            dimension_semantics=("parallel", "arbitrary"),
            vmem_limit_bytes=vmem_limit),
    )(*args)
    return out                                           # [B, 1, 256]


def init_params(key):
    ks = jax.random.split(key, 8)
    return dict(
        w1=jax.random.normal(ks[0], (CLINICAL_DIM, HIDDEN), jnp.float32) * 0.05,
        b1=jax.random.normal(ks[1], (HIDDEN,), jnp.float32) * 0.01,
        gamma=1.0 + 0.1 * jax.random.normal(ks[2], (HIDDEN,), jnp.float32),
        beta=0.1 * jax.random.normal(ks[3], (HIDDEN,), jnp.float32),
        w2=jax.random.normal(ks[4], (HIDDEN, FEAT), jnp.float32) * 0.05,
        b2=jax.random.normal(ks[5], (FEAT,), jnp.float32) * 0.01,
        wp=jax.random.normal(ks[6], (NUM_SLOTS * FEAT, FEAT), jnp.float32) * 0.05,
        bp=jax.random.normal(ks[7], (FEAT,), jnp.float32) * 0.01,
    )


def reference(ct_features, clinical, p):
    """Pure-JAX replica of the PyTorch forward (for validation)."""
    pooled = [x.mean(axis=(2, 3, 4)) for x in ct_features]                 # each [B, 256]
    ct = jnp.stack(pooled, axis=2)                                         # [B, 256, 4]
    h = clinical @ p['w1'] + p['b1']
    mu = h.mean(-1, keepdims=True)
    var = ((h - mu) ** 2).mean(-1, keepdims=True)
    h = (h - mu) / jnp.sqrt(var + LN_EPS) * p['gamma'] + p['beta']
    h = jnp.maximum(h, 0.0)
    cli = h @ p['w2'] + p['b2']                                            # [B, 256]
    feats = jnp.concatenate([ct, cli[:, :, None]], axis=-1)                # [B, 256, 5]
    flat = feats.reshape(feats.shape[0], -1)                               # [B, 1280] (c*5+slot)
    out = flat @ p['wp'] + p['bp']
    return out[:, None, :]


if __name__ == "__main__":
    key = jax.random.PRNGKey(0)
    kp, kc, k0, k1, k2, k3 = jax.random.split(key, 6)
    params = init_params(kp)

    B = 2
    # Multi-scale CT feature maps, [B, 256, D, H, W].  Scale 0 (S=1344) exercises
    # the streamed path with a remainder block (1344 = 1024 + 2*128 + 64), i.e.
    # both full 128-lane slices and the masked partial slice; scales 1-3 exercise
    # the resident single-block epilogue path.
    scale_shapes = [(6, 14, 16), (4, 8, 8), (2, 4, 4), (1, 2, 2)]
    ct_f32 = [jax.random.normal(k, (B, FEAT) + s, jnp.float32)
              for k, s in zip((k0, k1, k2, k3), scale_shapes)]
    clinical = jax.random.normal(kc, (B, CLINICAL_DIM), jnp.float32)

    # --- f32 streaming path vs pure-JAX reference ---
    out = jax.block_until_ready(multi_scale_fusion(ct_f32, clinical, params))
    ref = jax.block_until_ready(reference(ct_f32, clinical, params))
    assert out.shape == (B, 1, FEAT), out.shape
    np.testing.assert_allclose(np.asarray(out), np.asarray(ref), rtol=1e-4, atol=1e-4)

    # --- native bf16 streaming path (half the HBM bytes); accumulation stays f32 ---
    ct_bf16 = [x.astype(jnp.bfloat16) for x in ct_f32]
    out_bf = jax.block_until_ready(multi_scale_fusion(ct_bf16, clinical, params))
    ref_bf = jax.block_until_ready(
        reference([x.astype(jnp.float32) for x in ct_bf16], clinical, params))
    np.testing.assert_allclose(np.asarray(out_bf), np.asarray(ref_bf),
                               rtol=2e-3, atol=2e-3)

    print("KERNEL_OK")
</pallas_src>

<mosaic_0001>
module attributes {stable_mosaic.version = 11 : i64} {
  func.func @kernel(%arg0: i32, %arg1: i32, %arg2: memref<1x256x1024xf32, #tpu.memory_space<vmem>>, %arg3: memref<1x256x256xf32, #tpu.memory_space<vmem>>, %arg4: memref<1x256x32xf32, #tpu.memory_space<vmem>>, %arg5: memref<1x256x4xf32, #tpu.memory_space<vmem>>, %arg6: memref<1x1x128xf32, #tpu.memory_space<vmem>>, %arg7: memref<128x512xf32, #tpu.memory_space<vmem>>, %arg8: memref<1x512xf32, #tpu.memory_space<vmem>>, %arg9: memref<1x512xf32, #tpu.memory_space<vmem>>, %arg10: memref<1x512xf32, #tpu.memory_space<vmem>>, %arg11: memref<512x256xf32, #tpu.memory_space<vmem>>, %arg12: memref<1x256xf32, #tpu.memory_space<vmem>>, %arg13: memref<1280x256xf32, #tpu.memory_space<vmem>>, %arg14: memref<1x256xf32, #tpu.memory_space<vmem>>, %arg15: memref<1x1x256xf32, #tpu.memory_space<vmem>>, %arg16: memref<1x256x128xf32, #tpu.memory_space<vmem>>) attributes {dimension_semantics = [#tpu.dimension_semantics<parallel>, #tpu.dimension_semantics<arbitrary>], iteration_bounds = array<i64: 2, 2>, scalar_prefetch = 0 : i64, scratch_operands = 1 : i64, tpu.core_type = #tpu.core_type<tc>, window_params = [{transform_indices = @transform_0, window_bounds = array<i64: 1, 256, 1024>}, {transform_indices = @transform_1, window_bounds = array<i64: 1, 256, 256>}, {transform_indices = @transform_2, window_bounds = array<i64: 1, 256, 32>}, {transform_indices = @transform_3, window_bounds = array<i64: 1, 256, 4>}, {transform_indices = @transform_4, window_bounds = array<i64: 1, 1, 128>}, {pipeline_mode = #tpu.pipeline_mode<synchronous>, transform_indices = @transform_5, window_bounds = array<i64: 128, 512>}, {pipeline_mode = #tpu.pipeline_mode<synchronous>, transform_indices = @transform_6, window_bounds = array<i64: 1, 512>}, {pipeline_mode = #tpu.pipeline_mode<synchronous>, transform_indices = @transform_7, window_bounds = array<i64: 1, 512>}, {pipeline_mode = #tpu.pipeline_mode<synchronous>, transform_indices = @transform_8, window_bounds = array<i64: 1, 512>}, {pipeline_mode = #tpu.pipeline_mode<synchronous>, transform_indices = @transform_9, window_bounds = array<i64: 512, 256>}, {pipeline_mode = #tpu.pipeline_mode<synchronous>, transform_indices = @transform_10, window_bounds = array<i64: 1, 256>}, {pipeline_mode = #tpu.pipeline_mode<synchronous>, transform_indices = @transform_11, window_bounds = array<i64: 1280, 256>}, {pipeline_mode = #tpu.pipeline_mode<synchronous>, transform_indices = @transform_12, window_bounds = array<i64: 1, 256>}, {transform_indices = @transform_13, window_bounds = array<i64: 1, 1, 256>}]} {
    %c0_i32 = arith.constant 0 : i32
    %0 = arith.cmpi eq, %arg1, %c0_i32 : i32
    %1 = arith.extui %0 : i1 to i32
    %c0_i32_0 = arith.constant 0 : i32
    %2 = arith.cmpi ne, %1, %c0_i32_0 : i32
    scf.if %2 {
      %cst = arith.constant 0.000000e+00 : f32
      %12 = vector.broadcast %cst : f32 to vector<1x256x128xf32>
      %c0 = arith.constant 0 : index
      %c0_6 = arith.constant 0 : index
      %c0_7 = arith.constant 0 : index
      %13 = vector.load %arg16[%c0, %c0_6, %c0_7] : memref<1x256x128xf32, #tpu.memory_space<vmem>>, vector<1x256x128xf32>
      tpu.vector_store %arg16[%c0, %c0_6, %c0_7], %12 {strides = array<i32>} : memref<1x256x128xf32, #tpu.memory_space<vmem>>, vector<1x256x128xf32>,
    } else {
    }
    %c1_i32 = arith.constant 1 : i32
    %3 = arith.cmpi slt, %arg1, %c1_i32 : i32
    %4 = arith.extui %3 : i1 to i32
    %c0_i32_1 = arith.constant 0 : i32
    %5 = arith.cmpi ne, %4, %c0_i32_1 : i32
    scf.if %5 {
      %c0 = arith.constant 0 : index
      %c0_6 = arith.constant 0 : index
      %c0_7 = arith.constant 0 : index
      %12 = vector.load %arg16[%c0, %c0_6, %c0_7] : memref<1x256x128xf32, #tpu.memory_space<vmem>>, vector<1x256x128xf32>
      %c0_8 = arith.constant 0 : index
      %c0_9 = arith.constant 0 : index
      %c0_10 = arith.constant 0 : index
      %13 = vector.load %arg2[%c0_8, %c0_9, %c0_10] : memref<1x256x1024xf32, #tpu.memory_space<vmem>>, vector<1x256x128xf32>
      %14 = arith.addf %12, %13 : vector<1x256x128xf32>
      %c0_11 = arith.constant 0 : index
      %c0_12 = arith.constant 0 : index
      %c0_13 = arith.constant 0 : index
      %15 = vector.load %arg16[%c0_11, %c0_12, %c0_13] : memref<1x256x128xf32, #tpu.memory_space<vmem>>, vector<1x256x128xf32>
      tpu.vector_store %arg16[%c0_11, %c0_12, %c0_13], %14 {strides = array<i32>} : memref<1x256x128xf32, #tpu.memory_space<vmem>>, vector<1x256x128xf32>,
      %c0_14 = arith.constant 0 : index
      %c0_15 = arith.constant 0 : index
      %c0_16 = arith.constant 0 : index
      %16 = vector.load %arg16[%c0_14, %c0_15, %c0_16] : memref<1x256x128xf32, #tpu.memory_space<vmem>>, vector<1x256x128xf32>
      %c0_17 = arith.constant 0 : index
      %c0_18 = arith.constant 0 : index
      %c128 = arith.constant 128 : index
      %17 = vector.load %arg2[%c0_17, %c0_18, %c128] : memref<1x256x1024xf32, #tpu.memory_space<vmem>>, vector<1x256x128xf32>
      %18 = arith.addf %16, %17 : vector<1x256x128xf32>
      %c0_19 = arith.constant 0 : index
      %c0_20 = arith.constant 0 : index
      %c0_21 = arith.constant 0 : index
      %19 = vector.load %arg16[%c0_19, %c0_20, %c0_21] : memref<1x256x128xf32, #tpu.memory_space<vmem>>, vector<1x256x128xf32>
      tpu.vector_store %arg16[%c0_19, %c0_20, %c0_21], %18 {strides = array<i32>} : memref<1x256x128xf32, #tpu.memory_space<vmem>>, vector<1x256x128xf32>,
      %c0_22 = arith.constant 0 : index
      %c0_23 = arith.constant 0 : index
      %c0_24 = arith.constant 0 : index
      %20 = vector.load %arg16[%c0_22, %c0_23, %c0_24] : memref<1x256x128xf32, #tpu.memory_space<vmem>>, vector<1x256x128xf32>
      %c0_25 = arith.constant 0 : index
      %c0_26 = arith.constant 0 : index
      %c256 = arith.constant 256 : index
      %21 = vector.load %arg2[%c0_25, %c0_26, %c256] : memref<1x256x1024xf32, #tpu.memory_space<vmem>>, vector<1x256x128xf32>
      %22 = arith.addf %20, %21 : vector<1x256x128xf32>
      %c0_27 = arith.constant 0 : index
      %c0_28 = arith.constant 0 : index
      %c0_29 = arith.constant 0 : index
      %23 = vector.load %arg16[%c0_27, %c0_28, %c0_29] : memref<1x256x128xf32, #tpu.memory_space<vmem>>, vector<1x256x128xf32>
      tpu.vector_store %arg16[%c0_27, %c0_28, %c0_29], %22 {strides = array<i32>} : memref<1x256x128xf32, #tpu.memory_space<vmem>>, vector<1x256x128xf32>,
      %c0_30 = arith.constant 0 : index
      %c0_31 = arith.constant 0 : index
      %c0_32 = arith.constant 0 : index
      %24 = vector.load %arg16[%c0_30, %c0_31, %c0_32] : memref<1x256x128xf32, #tpu.memory_space<vmem>>, vector<1x256x128xf32>
      %c0_33 = arith.constant 0 : index
      %c0_34 = arith.constant 0 : index
      %c384 = arith.constant 384 : index
      %25 = vector.load %arg2[%c0_33, %c0_34, %c384] : memref<1x256x1024xf32, #tpu.memory_space<vmem>>, vector<1x256x128xf32>
      %26 = arith.addf %24, %25 : vector<1x256x128xf32>
      %c0_35 = arith.constant 0 : index
      %c0_36 = arith.constant 0 : index
      %c0_37 = arith.constant 0 : index
      %27 = vector.load %arg16[%c0_35, %c0_36, %c0_37] : memref<1x256x128xf32, #tpu.memory_space<vmem>>, vector<1x256x128xf32>
      tpu.vector_store %arg16[%c0_35, %c0_36, %c0_37], %26 {strides = array<i32>} : memref<1x256x128xf32, #tpu.memory_space<vmem>>, vector<1x256x128xf32>,
      %c0_38 = arith.constant 0 : index
      %c0_39 = arith.constant 0 : index
      %c0_40 = arith.constant 0 : index
      %28 = vector.load %arg16[%c0_38, %c0_39, %c0_40] : memref<1x256x128xf32, #tpu.memory_space<vmem>>, vector<1x256x128xf32>
      %c0_41 = arith.constant 0 : index
      %c0_42 = arith.constant 0 : index
      %c512 = arith.constant 512 : index
      %29 = vector.load %arg2[%c0_41, %c0_42, %c512] : memref<1x256x1024xf32, #tpu.memory_space<vmem>>, vector<1x256x128xf32>
      %30 = arith.addf %28, %29 : vector<1x256x128xf32>
      %c0_43 = arith.constant 0 : index
      %c0_44 = arith.constant 0 : index
      %c0_45 = arith.constant 0 : index
      %31 = vector.load %arg16[%c0_43, %c0_44, %c0_45] : memref<1x256x128xf32, #tpu.memory_space<vmem>>, vector<1x256x128xf32>
      tpu.vector_store %arg16[%c0_43, %c0_44, %c0_45], %30 {strides = array<i32>} : memref<1x256x128xf32, #tpu.memory_space<vmem>>, vector<1x256x128xf32>,
      %c0_46 = arith.constant 0 : index
      %c0_47 = arith.constant 0 : index
      %c0_48 = arith.constant 0 : index
      %32 = vector.load %arg16[%c0_46, %c0_47, %c0_48] : memref<1x256x128xf32, #tpu.memory_space<vmem>>, vector<1x256x128xf32>
      %c0_49 = arith.constant 0 : index
      %c0_50 = arith.constant 0 : index
      %c640 = arith.constant 640 : index
      %33 = vector.load %arg2[%c0_49, %c0_50, %c640] : memref<1x256x1024xf32, #tpu.memory_space<vmem>>, vector<1x256x128xf32>
      %34 = arith.addf %32, %33 : vector<1x256x128xf32>
      %c0_51 = arith.constant 0 : index
      %c0_52 = arith.constant 0 : index
      %c0_53 = arith.constant 0 : index
      %35 = vector.load %arg16[%c0_51, %c0_52, %c0_53] : memref<1x256x128xf32, #tpu.memory_space<vmem>>, vector<1x256x128xf32>
      tpu.vector_store %arg16[%c0_51, %c0_52, %c0_53], %34 {strides = array<i32>} : memref<1x256x128xf32, #tpu.memory_space<vmem>>, vector<1x256x128xf32>,
      %c0_54 = arith.constant 0 : index
      %c0_55 = arith.constant 0 : index
      %c0_56 = arith.constant 0 : index
      %36 = vector.load %arg16[%c0_54, %c0_55, %c0_56] : memref<1x256x128xf32, #tpu.memory_space<vmem>>, vector<1x256x128xf32>
      %c0_57 = arith.constant 0 : index
      %c0_58 = arith.constant 0 : index
      %c768 = arith.constant 768 : index
      %37 = vector.load %arg2[%c0_57, %c0_58, %c768] : memref<1x256x1024xf32, #tpu.memory_space<vmem>>, vector<1x256x128xf32>
      %38 = arith.addf %36, %37 : vector<1x256x128xf32>
      %c0_59 = arith.constant 0 : index
      %c0_60 = arith.constant 0 : index
      %c0_61 = arith.constant 0 : index
      %39 = vector.load %arg16[%c0_59, %c0_60, %c0_61] : memref<1x256x128xf32, #tpu.memory_space<vmem>>, vector<1x256x128xf32>
      tpu.vector_store %arg16[%c0_59, %c0_60, %c0_61], %38 {strides = array<i32>} : memref<1x256x128xf32, #tpu.memory_space<vmem>>, vector<1x256x128xf32>,
      %c0_62 = arith.constant 0 : index
      %c0_63 = arith.constant 0 : index
      %c0_64 = arith.constant 0 : index
      %40 = vector.load %arg16[%c0_62, %c0_63, %c0_64] : memref<1x256x128xf32, #tpu.memory_space<vmem>>, vector<1x256x128xf32>
      %c0_65 = arith.constant 0 : index
      %c0_66 = arith.constant 0 : index
      %c896 = arith.constant 896 : index
      %41 = vector.load %arg2[%c0_65, %c0_66, %c896] : memref<1x256x1024xf32, #tpu.memory_space<vmem>>, vector<1x256x128xf32>
      %42 = arith.addf %40, %41 : vector<1x256x128xf32>
      %c0_67 = arith.constant 0 : index
      %c0_68 = arith.constant 0 : index
      %c0_69 = arith.constant 0 : index
      %43 = vector.load %arg16[%c0_67, %c0_68, %c0_69] : memref<1x256x128xf32, #tpu.memory_space<vmem>>, vector<1x256x128xf32>
      tpu.vector_store %arg16[%c0_67, %c0_68, %c0_69], %42 {strides = array<i32>} : memref<1x256x128xf32, #tpu.memory_space<vmem>>, vector<1x256x128xf32>,
    } else {
    }
    %c1_i32_2 = arith.constant 1 : i32
    %6 = arith.cmpi eq, %arg1, %c1_i32_2 : i32
    %7 = arith.extui %6 : i1 to i32
    %c0_i32_3 = arith.constant 0 : i32
    %8 = arith.cmpi ne, %7, %c0_i32_3 : i32
    scf.if %8 {
      %c0 = arith.constant 0 : index
      %c0_6 = arith.constant 0 : index
      %c0_7 = arith.constant 0 : index
      %12 = vector.load %arg16[%c0, %c0_6, %c0_7] : memref<1x256x128xf32, #tpu.memory_space<vmem>>, vector<1x256x128xf32>
      %c0_8 = arith.constant 0 : index
      %c0_9 = arith.constant 0 : index
      %c0_10 = arith.constant 0 : index
      %13 = vector.load %arg2[%c0_8, %c0_9, %c0_10] : memref<1x256x1024xf32, #tpu.memory_space<vmem>>, vector<1x256x128xf32>
      %14 = arith.addf %12, %13 : vector<1x256x128xf32>
      %c0_11 = arith.constant 0 : index
      %c0_12 = arith.constant 0 : index
      %c0_13 = arith.constant 0 : index
      %15 = vector.load %arg16[%c0_11, %c0_12, %c0_13] : memref<1x256x128xf32, #tpu.memory_space<vmem>>, vector<1x256x128xf32>
      tpu.vector_store %arg16[%c0_11, %c0_12, %c0_13], %14 {strides = array<i32>} : memref<1x256x128xf32, #tpu.memory_space<vmem>>, vector<1x256x128xf32>,
      %c0_14 = arith.constant 0 : index
      %c0_15 = arith.constant 0 : index
      %c0_16 = arith.constant 0 : index
      %16 = vector.load %arg16[%c0_14, %c0_15, %c0_16] : memref<1x256x128xf32, #tpu.memory_space<vmem>>, vector<1x256x128xf32>
      %c0_17 = arith.constant 0 : index
      %c0_18 = arith.constant 0 : index
      %c128 = arith.constant 128 : index
      %17 = vector.load %arg2[%c0_17, %c0_18, %c128] : memref<1x256x1024xf32, #tpu.memory_space<vmem>>, vector<1x256x128xf32>
      %18 = arith.addf %16, %17 : vector<1x256x128xf32>
      %c0_19 = arith.constant 0 : index
      %c0_20 = arith.constant 0 : index
      %c0_21 = arith.constant 0 : index
      %19 = vector.load %arg16[%c0_19, %c0_20, %c0_21] : memref<1x256x128xf32, #tpu.memory_space<vmem>>, vector<1x256x128xf32>
      tpu.vector_store %arg16[%c0_19, %c0_20, %c0_21], %18 {strides = array<i32>} : memref<1x256x128xf32, #tpu.memory_space<vmem>>, vector<1x256x128xf32>,
      %20 = tpu.iota {dimensions = array<i32: 2>} : vector<1x1x128xi32>
      %c0_22 = arith.constant 0 : index
      %c0_23 = arith.constant 0 : index
      %c256 = arith.constant 256 : index
      %21 = vector.load %arg2[%c0_22, %c0_23, %c256] : memref<1x256x1024xf32, #tpu.memory_space<vmem>>, vector<1x256x128xf32>
      %c0_24 = arith.constant 0 : index
      %c0_25 = arith.constant 0 : index
      %c0_26 = arith.constant 0 : index
      %22 = vector.load %arg16[%c0_24, %c0_25, %c0_26] : memref<1x256x128xf32, #tpu.memory_space<vmem>>, vector<1x256x128xf32>
      %c64_i32 = arith.constant 64 : i32
      %23 = vector.broadcast %c64_i32 : i32 to vector<1x1x128xi32>
      %24 = arith.cmpi slt, %20, %23 : vector<1x1x128xi32>
      %cst = arith.constant 0.000000e+00 : f32
      %25 = vector.shape_cast %24 : vector<1x1x128xi1> to vector<1x1x128xi1>
      %26 = vector.broadcast %25 : vector<1x1x128xi1> to vector<1x256x128xi1>
      %27 = vector.broadcast %cst : f32 to vector<1x256x128xf32>
      %28 = arith.select %26, %21, %27 : vector<1x256x128xi1>, vector<1x256x128xf32>
      %29 = arith.addf %22, %28 : vector<1x256x128xf32>
      %c0_27 = arith.constant 0 : index
      %c0_28 = arith.constant 0 : index
      %c0_29 = arith.constant 0 : index
      %30 = vector.load %arg16[%c0_27, %c0_28, %c0_29] : memref<1x256x128xf32, #tpu.memory_space<vmem>>, vector<1x256x128xf32>
      tpu.vector_store %arg16[%c0_27, %c0_28, %c0_29], %29 {strides = array<i32>} : memref<1x256x128xf32, #tpu.memory_space<vmem>>, vector<1x256x128xf32>,
    } else {
    }
    %c1_i32_4 = arith.constant 1 : i32
    %9 = arith.cmpi eq, %arg1, %c1_i32_4 : i32
    %10 = arith.extui %9 : i1 to i32
    %c0_i32_5 = arith.constant 0 : i32
    %11 = arith.cmpi ne, %10, %c0_i32_5 : i32
    scf.if %11 {
      %c0 = arith.constant 0 : index
      %c0_6 = arith.constant 0 : index
      %c0_7 = arith.constant 0 : index
      %12 = vector.load %arg16[%c0, %c0_6, %c0_7] : memref<1x256x128xf32, #tpu.memory_space<vmem>>, vector<1x256x128xf32>
      %cst = arith.constant dense<0.000000e+00> : vector<1x256xf32>
      %13 = vector.multi_reduction <add>, %12, %cst [2] : vector<1x256x128xf32> to vector<1x256xf32>
      %cst_8 = arith.constant 7.44047633E-4 : f32
      %14 = vector.broadcast %cst_8 : f32 to vector<1x256xf32>
      %15 = arith.mulf %13, %14 : vector<1x256xf32>
      %c0_9 = arith.constant 0 : index
      %c0_10 = arith.constant 0 : index
      %c0_11 = arith.constant 0 : index
      %16 = vector.load %arg3[%c0_9, %c0_10, %c0_11] : memref<1x256x256xf32, #tpu.memory_space<vmem>>, vector<1x256x256xf32>
      %cst_12 = arith.constant dense<0.000000e+00> : vector<1x256xf32>
      %17 = vector.multi_reduction <add>, %16, %cst_12 [2] : vector<1x256x256xf32> to vector<1x256xf32>
      %cst_13 = arith.constant 3.906250e-03 : f32
      %18 = vector.broadcast %cst_13 : f32 to vector<1x256xf32>
      %19 = arith.mulf %17, %18 : vector<1x256xf32>
      %c0_14 = arith.constant 0 : index
      %c0_15 = arith.constant 0 : index
      %c0_16 = arith.constant 0 : index
      %20 = vector.load %arg4[%c0_14, %c0_15, %c0_16] : memref<1x256x32xf32, #tpu.memory_space<vmem>>, vector<1x256x32xf32>
      %cst_17 = arith.constant dense<0.000000e+00> : vector<1x256xf32>
      %21 = vector.multi_reduction <add>, %20, %cst_17 [2] : vector<1x256x32xf32> to vector<1x256xf32>
      %cst_18 = arith.constant 3.125000e-02 : f32
      %22 = vector.broadcast %cst_18 : f32 to vector<1x256xf32>
      %23 = arith.mulf %21, %22 : vector<1x256xf32>
      %c0_19 = arith.constant 0 : index
      %c0_20 = arith.constant 0 : index
      %c0_21 = arith.constant 0 : index
      %24 = vector.load %arg5[%c0_19, %c0_20, %c0_21] : memref<1x256x4xf32, #tpu.memory_space<vmem>>, vector<1x256x4xf32>
      %cst_22 = arith.constant dense<0.000000e+00> : vector<1x256xf32>
      %25 = vector.multi_reduction <add>, %24, %cst_22 [2] : vector<1x256x4xf32> to vector<1x256xf32>
      %cst_23 = arith.constant 2.500000e-01 : f32
      %26 = vector.broadcast %cst_23 : f32 to vector<1x256xf32>
      %27 = arith.mulf %25, %26 : vector<1x256xf32>
      %c0_24 = arith.constant 0 : index
      %c0_25 = arith.constant 0 : index
      %c0_26 = arith.constant 0 : index
      %28 = vector.load %arg6[%c0_24, %c0_25, %c0_26] : memref<1x1x128xf32, #tpu.memory_space<vmem>>, vector<1x1x128xf32>
      %29 = vector.shape_cast %28 : vector<1x1x128xf32> to vector<1x128xf32>
      %c0_27 = arith.constant 0 : index
      %c0_28 = arith.constant 0 : index
      %30 = vector.load %arg7[%c0_27, %c0_28] : memref<128x512xf32, #tpu.memory_space<vmem>>, vector<128x512xf32>
      %cst_29 = arith.constant dense<0.000000e+00> : vector<1x512xf32>
      %31 = tpu.matmul %29, %30, %cst_29 {dimension_numbers = #tpu.dot_dimension_numbers<[1], [0], [0], [1], [0, 0, 1, 1], [], []>} : vector<1x128xf32>, vector<128x512xf32>, vector<1x512xf32> -> vector<1x512xf32>
      %c0_30 = arith.constant 0 : index
      %c0_31 = arith.constant 0 : index
      %32 = vector.load %arg8[%c0_30, %c0_31] : memref<1x512xf32, #tpu.memory_space<vmem>>, vector<1x512xf32>
      %33 = arith.addf %31, %32 : vector<1x512xf32>
      %cst_32 = arith.constant dense<0.000000e+00> : vector<1xf32>
      %34 = vector.multi_reduction <add>, %33, %cst_32 [1] : vector<1x512xf32> to vector<1xf32>
      %35 = vector.shape_cast %34 : vector<1xf32> to vector<1x1xf32>
      %cst_33 = arith.constant 5.120000e+02 : f32
      %36 = vector.broadcast %cst_33 : f32 to vector<1x1xf32>
      %37 = arith.divf %35, %36 : vector<1x1xf32>
      %38 = vector.broadcast %37 : vector<1x1xf32> to vector<1x512xf32>
      %39 = arith.subf %33, %38 : vector<1x512xf32>
      %40 = arith.mulf %39, %39 : vector<1x512xf32>
      %cst_34 = arith.constant dense<0.000000e+00> : vector<1xf32>
      %41 = vector.multi_reduction <add>, %40, %cst_34 [1] : vector<1x512xf32> to vector<1xf32>
      %42 = vector.shape_cast %41 : vector<1xf32> to vector<1x1xf32>
      %cst_35 = arith.constant 5.120000e+02 : f32
      %43 = vector.broadcast %cst_35 : f32 to vector<1x1xf32>
      %44 = arith.divf %42, %43 : vector<1x1xf32>
      %45 = vector.broadcast %37 : vector<1x1xf32> to vector<1x512xf32>
      %46 = arith.subf %33, %45 : vector<1x512xf32>
      %cst_36 = arith.constant 9.99999974E-6 : f32
      %47 = vector.broadcast %cst_36 : f32 to vector<1x1xf32>
      %48 = arith.addf %44, %47 : vector<1x1xf32>
      %49 = math.rsqrt %48 : vector<1x1xf32>
      %50 = vector.broadcast %49 : vector<1x1xf32> to vector<1x512xf32>
      %51 = arith.mulf %46, %50 : vector<1x512xf32>
      %c0_37 = arith.constant 0 : index
      %c0_38 = arith.constant 0 : index
      %52 = vector.load %arg9[%c0_37, %c0_38] : memref<1x512xf32, #tpu.memory_space<vmem>>, vector<1x512xf32>
      %53 = arith.mulf %51, %52 : vector<1x512xf32>
      %c0_39 = arith.constant 0 : index
      %c0_40 = arith.constant 0 : index
      %54 = vector.load %arg10[%c0_39, %c0_40] : memref<1x512xf32, #tpu.memory_space<vmem>>, vector<1x512xf32>
      %55 = arith.addf %53, %54 : vector<1x512xf32>
      %cst_41 = arith.constant 0.000000e+00 : f32
      %56 = vector.broadcast %cst_41 : f32 to vector<1x512xf32>
      %57 = arith.maximumf %55, %56 : vector<1x512xf32>
      %c0_42 = arith.constant 0 : index
      %c0_43 = arith.constant 0 : index
      %58 = vector.load %arg11[%c0_42, %c0_43] : memref<512x256xf32, #tpu.memory_space<vmem>>, vector<512x256xf32>
      %cst_44 = arith.constant dense<0.000000e+00> : vector<1x256xf32>
      %59 = tpu.matmul %57, %58, %cst_44 {dimension_numbers = #tpu.dot_dimension_numbers<[1], [0], [0], [1], [0, 0, 1, 1], [], []>} : vector<1x512xf32>, vector<512x256xf32>, vector<1x256xf32> -> vector<1x256xf32>
      %c0_45 = arith.constant 0 : index
      %c0_46 = arith.constant 0 : index
      %60 = vector.load %arg12[%c0_45, %c0_46] : memref<1x256xf32, #tpu.memory_space<vmem>>, vector<1x256xf32>
      %61 = arith.addf %59, %60 : vector<1x256xf32>
      %62 = tpu.concatenate %15, %19, %23, %27, %61 in 1 : vector<1x256xf32>, vector<1x256xf32>, vector<1x256xf32>, vector<1x256xf32>, vector<1x256xf32> -> vector<1x1280xf32>
      %c0_47 = arith.constant 0 : index
      %c0_48 = arith.constant 0 : index
      %63 = vector.load %arg13[%c0_47, %c0_48] : memref<1280x256xf32, #tpu.memory_space<vmem>>, vector<1280x256xf32>
      %cst_49 = arith.constant dense<0.000000e+00> : vector<1x256xf32>
      %64 = tpu.matmul %62, %63, %cst_49 {dimension_numbers = #tpu.dot_dimension_numbers<[1], [0], [0], [1], [0, 0, 1, 1], [], []>} : vector<1x1280xf32>, vector<1280x256xf32>, vector<1x256xf32> -> vector<1x256xf32>
      %c0_50 = arith.constant 0 : index
      %c0_51 = arith.constant 0 : index
      %65 = vector.load %arg14[%c0_50, %c0_51] : memref<1x256xf32, #tpu.memory_space<vmem>>, vector<1x256xf32>
      %66 = arith.addf %64, %65 : vector<1x256xf32>
      %67 = vector.shape_cast %66 : vector<1x256xf32> to vector<1x1x256xf32>
      %c0_52 = arith.constant 0 : index
      %c0_53 = arith.constant 0 : index
      %c0_54 = arith.constant 0 : index
      %68 = vector.load %arg15[%c0_52, %c0_53, %c0_54] : memref<1x1x256xf32, #tpu.memory_space<vmem>>, vector<1x1x256xf32>
      tpu.vector_store %arg15[%c0_52, %c0_53, %c0_54], %67 {strides = array<i32>} : memref<1x1x256xf32, #tpu.memory_space<vmem>>, vector<1x1x256xf32>,
    } else {
    }
    return
  }
  func.func @transform_0(%arg0: i32, %arg1: i32) -> (i32, i32, i32) {
    %c1_i32 = arith.constant 1 : i32
    %0 = arith.minsi %arg1, %c1_i32 : i32
    %c0_i32 = arith.constant 0 : i32
    %c0_i32_0 = arith.constant 0 : i32
    return %arg0, %c0_i32, %0 : i32, i32, i32
  }
  func.func @transform_1(%arg0: i32, %arg1: i32) -> (i32, i32, i32) {
    %c0_i32 = arith.constant 0 : i32
    %c0_i32_0 = arith.constant 0 : i32
    %c0_i32_1 = arith.constant 0 : i32
    return %arg0, %c0_i32, %c0_i32_0 : i32, i32, i32
  }
  func.func @transform_2(%arg0: i32, %arg1: i32) -> (i32, i32, i32) {
    %c0_i32 = arith.constant 0 : i32
    %c0_i32_0 = arith.constant 0 : i32
    %c0_i32_1 = arith.constant 0 : i32
    return %arg0, %c0_i32, %c0_i32_0 : i32, i32, i32
  }
  func.func @transform_3(%arg0: i32, %arg1: i32) -> (i32, i32, i32) {
    %c0_i32 = arith.constant 0 : i32
    %c0_i32_0 = arith.constant 0 : i32
    %c0_i32_1 = arith.constant 0 : i32
    return %arg0, %c0_i32, %c0_i32_0 : i32, i32, i32
  }
  func.func @transform_4(%arg0: i32, %arg1: i32) -> (i32, i32, i32) {
    %c0_i32 = arith.constant 0 : i32
    %c0_i32_0 = arith.constant 0 : i32
    %c0_i32_1 = arith.constant 0 : i32
    return %arg0, %c0_i32, %c0_i32_0 : i32, i32, i32
  }
  func.func @transform_5(%arg0: i32, %arg1: i32) -> (i32, i32) {
    %c0_i32 = arith.constant 0 : i32
    %c0_i32_0 = arith.constant 0 : i32
    %c0_i32_1 = arith.constant 0 : i32
    return %c0_i32, %c0_i32_0 : i32, i32
  }
  func.func @transform_6(%arg0: i32, %arg1: i32) -> (i32, i32) {
    %c0_i32 = arith.constant 0 : i32
    %c0_i32_0 = arith.constant 0 : i32
    %c0_i32_1 = arith.constant 0 : i32
    return %c0_i32, %c0_i32_0 : i32, i32
  }
  func.func @transform_7(%arg0: i32, %arg1: i32) -> (i32, i32) {
    %c0_i32 = arith.constant 0 : i32
    %c0_i32_0 = arith.constant 0 : i32
    %c0_i32_1 = arith.constant 0 : i32
    return %c0_i32, %c0_i32_0 : i32, i32
  }
  func.func @transform_8(%arg0: i32, %arg1: i32) -> (i32, i32) {
    %c0_i32 = arith.constant 0 : i32
    %c0_i32_0 = arith.constant 0 : i32
    %c0_i32_1 = arith.constant 0 : i32
    return %c0_i32, %c0_i32_0 : i32, i32
  }
  func.func @transform_9(%arg0: i32, %arg1: i32) -> (i32, i32) {
    %c0_i32 = arith.constant 0 : i32
    %c0_i32_0 = arith.constant 0 : i32
    %c0_i32_1 = arith.constant 0 : i32
    return %c0_i32, %c0_i32_0 : i32, i32
  }
  func.func @transform_10(%arg0: i32, %arg1: i32) -> (i32, i32) {
    %c0_i32 = arith.constant 0 : i32
    %c0_i32_0 = arith.constant 0 : i32
    %c0_i32_1 = arith.constant 0 : i32
    return %c0_i32, %c0_i32_0 : i32, i32
  }
  func.func @transform_11(%arg0: i32, %arg1: i32) -> (i32, i32) {
    %c0_i32 = arith.constant 0 : i32
    %c0_i32_0 = arith.constant 0 : i32
    %c0_i32_1 = arith.constant 0 : i32
    return %c0_i32, %c0_i32_0 : i32, i32
  }
  func.func @transform_12(%arg0: i32, %arg1: i32) -> (i32, i32) {
    %c0_i32 = arith.constant 0 : i32
    %c0_i32_0 = arith.constant 0 : i32
    %c0_i32_1 = arith.constant 0 : i32
    return %c0_i32, %c0_i32_0 : i32, i32
  }
  func.func @transform_13(%arg0: i32, %arg1: i32) -> (i32, i32, i32) {
    %c0_i32 = arith.constant 0 : i32
    %c0_i32_0 = arith.constant 0 : i32
    %c0_i32_1 = arith.constant 0 : i32
    return %arg0, %c0_i32, %c0_i32_0 : i32, i32, i32
  }
}

</mosaic_0001>

<llo_original>
// kernel: tpu_custom_call.1
$region0: #{tpu_custom_call.1}
  #allocation0 [shape = 'u32[]', space=smem, size = 0x4, offset = 0x4, fixed_abs, tag = 'smem constant byte address 0x4 - core index']
  #allocation1 [shape = 'u32[144,128]{1,0:T(1,128)}', space=vmem, size = 0x12000, scoped, tag = 'internal scratch']
  #allocation2 [shape = 'f32[1,256,128]{2,1,0:T(8,128)}', space=vmem, size = 0x20000, scoped, tag = 'scratch operand']
  %s0 = inlined_call_operand.vmem [shape: f32[2,256,1344], index: 0, kind: input, shape index: {}]
  %s1 = inlined_call_operand.vmem [shape: f32[2,256,256], index: 1, kind: input, shape index: {}]
  %s2 = inlined_call_operand.vmem [shape: f32[2,256,32], index: 2, kind: input, shape index: {}]
  %s3 = inlined_call_operand.vmem [shape: f32[2,256,4], index: 3, kind: input, shape index: {}]
  %s4 = inlined_call_operand.vmem [shape: f32[2,1,128], index: 4, kind: input, shape index: {}]
  %s5 = inlined_call_operand.vmem [shape: f32[128,512], index: 5, kind: input, shape index: {}]
  %s6 = inlined_call_operand.vmem [shape: f32[1,512], index: 6, kind: input, shape index: {}]
  %s7 = inlined_call_operand.vmem [shape: f32[1,512], index: 7, kind: input, shape index: {}]
  %s8 = inlined_call_operand.vmem [shape: f32[1,512], index: 8, kind: input, shape index: {}]
  %s9 = inlined_call_operand.vmem [shape: f32[512,256], index: 9, kind: input, shape index: {}]
  %s10 = inlined_call_operand.vmem [shape: f32[1,256], index: 10, kind: input, shape index: {}]
  %s11 = inlined_call_operand.vmem [shape: f32[1280,256], index: 11, kind: input, shape index: {}]
  %s12 = inlined_call_operand.vmem [shape: f32[1,256], index: 12, kind: input, shape index: {}]
  %s13 = inlined_call_operand.hbm [shape: f32[2,1,256], index: 13, kind: output, shape index: {}]
  %s14 = sld [smem:[#allocation0]]
  $region163: #{tpu_custom_call.1} parent=0
    _
  %s16 = ssub.s32 1, %s14
  %s17 = scalar_select 0, %s16, %s14
  $region1: #{tpu_custom_call.1} parent=0
    #allocation3 [shape = 'u8[2097152]{0}', space=vmem, size = 0x200000, scoped, tag = 'input window, operand 0']
    #allocation4 [shape = 'u8[2048]{0}', space=vmem, size = 0x800, scoped, tag = 'output window, operand 0']
    #allocation5 [shape = 's32[2]{0}', space=sflag, size = 0x8, scoped, tag = 'scoped memory for tpu_custom_call.1']
    %18 = vsyncpa [#allocation5], 0
    %s19 = scalar_lea.sflag [#allocation5], 1
    %20 = vsyncpa %s19, 0
    loop: start=0, step=1, limit=6
    $region2: #{tpu_custom_call.1} parent=1 // loop_pre_header
      _
    $region3: #{tpu_custom_call.1} parent=1 // loop_header
      %s22 = sphi 0, %s26
      %p23 = scmp.ge.s32.totalorder %s22, 6
      %s29 = sphi 0, %s41
      %s30 = sphi 0, %s37
      %s31 = sphi 0, %s29
      %s32 = sphi 0, %s30
      %s33 = sphi 0, %s31
      %s34 = sphi 0, %s32
      %s50 = sphi 0, %s52
      %s53 = sphi 0, %s50
      %s54 = sphi 0, %s53
      %s70 = sphi 0, %s54
      %s76 = sphi 0, %s78
      %s79 = sphi 0, %s76
      %s80 = sphi 0, %s79
      %s96 = sphi 0, %s80
      %s102 = sphi 0, %s104
      %s105 = sphi 0, %s102
      %s106 = sphi 0, %s105
      %s122 = sphi 0, %s106
      %s128 = sphi 0, %s130
      %s131 = sphi 0, %s128
      %s132 = sphi 0, %s131
      %s148 = sphi 0, %s132
      %s154 = sphi 0, %s156
      %s157 = sphi 0, %s154
      %s158 = sphi 0, %s157
      %s174 = sphi 0, %s158
      %s178 = sphi 0, %s178
      %s180 = sphi 0, %s178
      %s181 = sphi 0, %s180
      %s195 = sphi 0, %s181
      %s199 = sphi 0, %s199
      %s201 = sphi 0, %s199
      %s202 = sphi 0, %s201
      %s216 = sphi 0, %s202
      %s220 = sphi 0, %s220
      %s222 = sphi 0, %s220
      %s223 = sphi 0, %s222
      %s237 = sphi 0, %s223
      %s241 = sphi 0, %s241
      %s243 = sphi 0, %s241
      %s244 = sphi 0, %s243
      %s258 = sphi 0, %s244
      %s262 = sphi 0, %s262
      %s264 = sphi 0, %s262
      %s265 = sphi 0, %s264
      %s279 = sphi 0, %s265
      %s283 = sphi 0, %s283
      %s285 = sphi 0, %s283
      %s286 = sphi 0, %s285
      %s300 = sphi 0, %s286
      %s304 = sphi 0, %s304
      %s306 = sphi 0, %s304
      %s307 = sphi 0, %s306
      %s321 = sphi 0, %s307
      %s325 = sphi 0, %s325
      %s327 = sphi 0, %s325
      %s328 = sphi 0, %s327
      %s342 = sphi 0, %s328
      %s348 = sphi 0, %s350
      %s351 = sphi 0, %s348
      %s352 = sphi 0, %s351
      %s368 = sphi 0, %s352
    $region4: #{tpu_custom_call.1} parent=1 // loop_header_branch
      %25 = sbr.rel (%p23) target = $region8
    $region5: #{tpu_custom_call.1} parent=1 // loop_body
      %s27 = ssub.s32 %s22, 1
      %s28 = ssub.s32 %s22, 2
      %s35 = sadd.s32 1, %s30
      %p36 = scmp.ge.s32.totalorder %s35, 2
      %s37 = scalar_select %p36, 0, %s35
      %s38 = sadd.s32 1, %s29
      %s39 = scalar_select %p36, %s38, %s29
      %p40 = scmp.ge.s32.totalorder %s39, 2
      %s41 = scalar_select %p40, 0, %s39
      %p42 = scmp.lt.s32.totalorder %s30, 1
      %s43 = scalar_select %p42, %s30, 1
      %p44 = scmp.lt.s32.totalorder %s37, 1
      %s45 = scalar_select %p44, %s37, 1
      %s46 = ssub.s32 %s29, %s41
      %s47 = ssub.s32 %s43, %s45
      %s48 = sor.u32 %s46, %s47
      %p49 = scmp.eq.s32.totalorder %s48, 0
      %s51 = sadd.s32 %s50, 1
      %s52 = scalar_select %p49, %s50, %s51
      %p55 = pneg %p49
      %p56 = scmp.eq.s32.totalorder %s22, 3
      %p57 = por %p55, %p56
      %p58 = scmp.ne.s32.totalorder %s50, %s53
      %p59 = scmp.eq.s32.totalorder %s22, 0
      %p60 = por %p58, %p59
      %p61 = scmp.ne.s32.totalorder %s50, %s53
      %p62 = scmp.eq.s32.totalorder %s27, 3
      %p63 = por %p61, %p62
      %p64 = scmp.ne.s32.totalorder %s53, %s54
      %p65 = scmp.eq.s32.totalorder %s27, 0
      %p66 = por %p64, %p65
      %p67 = scmp.ne.s32.totalorder %s53, %s54
      %p68 = scmp.eq.s32.totalorder %s28, 3
      %p69 = por %p67, %p68
      %p71 = scmp.ne.s32.totalorder %s54, %s70
      %p72 = scmp.eq.s32.totalorder %s28, 0
      %p73 = por %p71, %p72
      %s74 = ssub.s32 %s29, %s41
      %p75 = scmp.eq.s32.totalorder %s74, 0
      %s77 = sadd.s32 %s76, 1
      %s78 = scalar_select %p75, %s76, %s77
      %p81 = pneg %p75
      %p82 = scmp.eq.s32.totalorder %s22, 3
      %p83 = por %p81, %p82
      %p84 = scmp.ne.s32.totalorder %s76, %s79
      %p85 = scmp.eq.s32.totalorder %s22, 0
      %p86 = por %p84, %p85
      %p87 = scmp.ne.s32.totalorder %s76, %s79
      %p88 = scmp.eq.s32.totalorder %s27, 3
      %p89 = por %p87, %p88
      %p90 = scmp.ne.s32.totalorder %s79, %s80
      %p91 = scmp.eq.s32.totalorder %s27, 0
      %p92 = por %p90, %p91
      %p93 = scmp.ne.s32.totalorder %s79, %s80
      %p94 = scmp.eq.s32.totalorder %s28, 3
      %p95 = por %p93, %p94
      %p97 = scmp.ne.s32.totalorder %s80, %s96
      %p98 = scmp.eq.s32.totalorder %s28, 0
      %p99 = por %p97, %p98
      %s100 = ssub.s32 %s29, %s41
      %p101 = scmp.eq.s32.totalorder %s100, 0
      %s103 = sadd.s32 %s102, 1
      %s104 = scalar_select %p101, %s102, %s103
      %p107 = pneg %p101
      %p108 = scmp.eq.s32.totalorder %s22, 3
      %p109 = por %p107, %p108
      %p110 = scmp.ne.s32.totalorder %s102, %s105
      %p111 = scmp.eq.s32.totalorder %s22, 0
      %p112 = por %p110, %p111
      %p113 = scmp.ne.s32.totalorder %s102, %s105
      %p114 = scmp.eq.s32.totalorder %s27, 3
      %p115 = por %p113, %p114
      %p116 = scmp.ne.s32.totalorder %s105, %s106
      %p117 = scmp.eq.s32.totalorder %s27, 0
      %p118 = por %p116, %p117
      %p119 = scmp.ne.s32.totalorder %s105, %s106
      %p120 = scmp.eq.s32.totalorder %s28, 3
      %p121 = por %p119, %p120
      %p123 = scmp.ne.s32.totalorder %s106, %s122
      %p124 = scmp.eq.s32.totalorder %s28, 0
      %p125 = por %p123, %p124
      %s126 = ssub.s32 %s29, %s41
      %p127 = scmp.eq.s32.totalorder %s126, 0
      %s129 = sadd.s32 %s128, 1
      %s130 = scalar_select %p127, %s128, %s129
      %p133 = pneg %p127
      %p134 = scmp.eq.s32.totalorder %s22, 3
      %p135 = por %p133, %p134
      %p136 = scmp.ne.s32.totalorder %s128, %s131
      %p137 = scmp.eq.s32.totalorder %s22, 0
      %p138 = por %p136, %p137
      %p139 = scmp.ne.s32.totalorder %s128, %s131
      %p140 = scmp.eq.s32.totalorder %s27, 3
      %p141 = por %p139, %p140
      %p142 = scmp.ne.s32.totalorder %s131, %s132
      %p143 = scmp.eq.s32.totalorder %s27, 0
      %p144 = por %p142, %p143
      %p145 = scmp.ne.s32.totalorder %s131, %s132
      %p146 = scmp.eq.s32.totalorder %s28, 3
      %p147 = por %p145, %p146
      %p149 = scmp.ne.s32.totalorder %s132, %s148
      %p150 = scmp.eq.s32.totalorder %s28, 0
      %p151 = por %p149, %p150
      %s152 = ssub.s32 %s29, %s41
      %p153 = scmp.eq.s32.totalorder %s152, 0
      %s155 = sadd.s32 %s154, 1
      %s156 = scalar_select %p153, %s154, %s155
      %p159 = pneg %p153
      %p160 = scmp.eq.s32.totalorder %s22, 3
      %p161 = por %p159, %p160
      %p162 = scmp.ne.s32.totalorder %s154, %s157
      %p163 = scmp.eq.s32.totalorder %s22, 0
      %p164 = por %p162, %p163
      %p165 = scmp.ne.s32.totalorder %s154, %s157
      %p166 = scmp.eq.s32.totalorder %s27, 3
      %p167 = por %p165, %p166
      %p168 = scmp.ne.s32.totalorder %s157, %s158
      %p169 = scmp.eq.s32.totalorder %s27, 0
      %p170 = por %p168, %p169
      %p171 = scmp.ne.s32.totalorder %s157, %s158
      %p172 = scmp.eq.s32.totalorder %s28, 3
      %p173 = por %p171, %p172
      %p175 = scmp.ne.s32.totalorder %s158, %s174
      %p176 = scmp.eq.s32.totalorder %s28, 0
      %p177 = por %p175, %p176
      %s179 = sadd.s32 %s178, 1
      %p182 = scmp.eq.s32.totalorder %s22, 3
      %p183 = scmp.ne.s32.totalorder %s178, %s180
      %p184 = scmp.eq.s32.totalorder %s22, 0
      %p185 = por %p183, %p184
      %p186 = scmp.ne.s32.totalorder %s178, %s180
      %p187 = scmp.eq.s32.totalorder %s27, 3
      %p188 = por %p186, %p187
      %p189 = scmp.ne.s32.totalorder %s180, %s181
      %p190 = scmp.eq.s32.totalorder %s27, 0
      %p191 = por %p189, %p190
      %p192 = scmp.ne.s32.totalorder %s180, %s181
      %p193 = scmp.eq.s32.totalorder %s28, 3
      %p194 = por %p192, %p193
      %p196 = scmp.ne.s32.totalorder %s181, %s195
      %p197 = scmp.eq.s32.totalorder %s28, 0
      %p198 = por %p196, %p197
      %s200 = sadd.s32 %s199, 1
      %p203 = scmp.eq.s32.totalorder %s22, 3
      %p204 = scmp.ne.s32.totalorder %s199, %s201
      %p205 = scmp.eq.s32.totalorder %s22, 0
      %p206 = por %p204, %p205
      %p207 = scmp.ne.s32.totalorder %s199, %s201
      %p208 = scmp.eq.s32.totalorder %s27, 3
      %p209 = por %p207, %p208
      %p210 = scmp.ne.s32.totalorder %s201, %s202
      %p211 = scmp.eq.s32.totalorder %s27, 0
      %p212 = por %p210, %p211
      %p213 = scmp.ne.s32.totalorder %s201, %s202
      %p214 = scmp.eq.s32.totalorder %s28, 3
      %p215 = por %p213, %p214
      %p217 = scmp.ne.s32.totalorder %s202, %s216
      %p218 = scmp.eq.s32.totalorder %s28, 0
      %p219 = por %p217, %p218
      %s221 = sadd.s32 %s220, 1
      %p224 = scmp.eq.s32.totalorder %s22, 3
      %p225 = scmp.ne.s32.totalorder %s220, %s222
      %p226 = scmp.eq.s32.totalorder %s22, 0
      %p227 = por %p225, %p226
      %p228 = scmp.ne.s32.totalorder %s220, %s222
      %p229 = scmp.eq.s32.totalorder %s27, 3
      %p230 = por %p228, %p229
      %p231 = scmp.ne.s32.totalorder %s222, %s223
      %p232 = scmp.eq.s32.totalorder %s27, 0
      %p233 = por %p231, %p232
      %p234 = scmp.ne.s32.totalorder %s222, %s223
      %p235 = scmp.eq.s32.totalorder %s28, 3
      %p236 = por %p234, %p235
      %p238 = scmp.ne.s32.totalorder %s223, %s237
      %p239 = scmp.eq.s32.totalorder %s28, 0
      %p240 = por %p238, %p239
      %s242 = sadd.s32 %s241, 1
      %p245 = scmp.eq.s32.totalorder %s22, 3
      %p246 = scmp.ne.s32.totalorder %s241, %s243
      %p247 = scmp.eq.s32.totalorder %s22, 0
      %p248 = por %p246, %p247
      %p249 = scmp.ne.s32.totalorder %s241, %s243
      %p250 = scmp.eq.s32.totalorder %s27, 3
      %p251 = por %p249, %p250
      %p252 = scmp.ne.s32.totalorder %s243, %s244
      %p253 = scmp.eq.s32.totalorder %s27, 0
      %p254 = por %p252, %p253
      %p255 = scmp.ne.s32.totalorder %s243, %s244
      %p256 = scmp.eq.s32.totalorder %s28, 3
      %p257 = por %p255, %p256
      %p259 = scmp.ne.s32.totalorder %s244, %s258
      %p260 = scmp.eq.s32.totalorder %s28, 0
      %p261 = por %p259, %p260
      %s263 = sadd.s32 %s262, 1
      %p266 = scmp.eq.s32.totalorder %s22, 3
      %p267 = scmp.ne.s32.totalorder %s262, %s264
      %p268 = scmp.eq.s32.totalorder %s22, 0
      %p269 = por %p267, %p268
      %p270 = scmp.ne.s32.totalorder %s262, %s264
      %p271 = scmp.eq.s32.totalorder %s27, 3
      %p272 = por %p270, %p271
      %p273 = scmp.ne.s32.totalorder %s264, %s265
      %p274 = scmp.eq.s32.totalorder %s27, 0
      %p275 = por %p273, %p274
      %p276 = scmp.ne.s32.totalorder %s264, %s265
      %p277 = scmp.eq.s32.totalorder %s28, 3
      %p278 = por %p276, %p277
      %p280 = scmp.ne.s32.totalorder %s265, %s279
      %p281 = scmp.eq.s32.totalorder %s28, 0
      %p282 = por %p280, %p281
      %s284 = sadd.s32 %s283, 1
      %p287 = scmp.eq.s32.totalorder %s22, 3
      %p288 = scmp.ne.s32.totalorder %s283, %s285
      %p289 = scmp.eq.s32.totalorder %s22, 0
      %p290 = por %p288, %p289
      %p291 = scmp.ne.s32.totalorder %s283, %s285
      %p292 = scmp.eq.s32.totalorder %s27, 3
      %p293 = por %p291, %p292
      %p294 = scmp.ne.s32.totalorder %s285, %s286
      %p295 = scmp.eq.s32.totalorder %s27, 0
      %p296 = por %p294, %p295
      %p297 = scmp.ne.s32.totalorder %s285, %s286
      %p298 = scmp.eq.s32.totalorder %s28, 3
      %p299 = por %p297, %p298
      %p301 = scmp.ne.s32.totalorder %s286, %s300
      %p302 = scmp.eq.s32.totalorder %s28, 0
      %p303 = por %p301, %p302
      %s305 = sadd.s32 %s304, 1
      %p308 = scmp.eq.s32.totalorder %s22, 3
      %p309 = scmp.ne.s32.totalorder %s304, %s306
      %p310 = scmp.eq.s32.totalorder %s22, 0
      %p311 = por %p309, %p310
      %p312 = scmp.ne.s32.totalorder %s304, %s306
      %p313 = scmp.eq.s32.totalorder %s27, 3
      %p314 = por %p312, %p313
      %p315 = scmp.ne.s32.totalorder %s306, %s307
      %p316 = scmp.eq.s32.totalorder %s27, 0
      %p317 = por %p315, %p316
      %p318 = scmp.ne.s32.totalorder %s306, %s307
      %p319 = scmp.eq.s32.totalorder %s28, 3
      %p320 = por %p318, %p319
      %p322 = scmp.ne.s32.totalorder %s307, %s321
      %p323 = scmp.eq.s32.totalorder %s28, 0
      %p324 = por %p322, %p323
      %s326 = sadd.s32 %s325, 1
      %p329 = scmp.eq.s32.totalorder %s22, 3
      %p330 = scmp.ne.s32.totalorder %s325, %s327
      %p331 = scmp.eq.s32.totalorder %s22, 0
      %p332 = por %p330, %p331
      %p333 = scmp.ne.s32.totalorder %s325, %s327
      %p334 = scmp.eq.s32.totalorder %s27, 3
      %p335 = por %p333, %p334
      %p336 = scmp.ne.s32.totalorder %s327, %s328
      %p337 = scmp.eq.s32.totalorder %s27, 0
      %p338 = por %p336, %p337
      %p339 = scmp.ne.s32.totalorder %s327, %s328
      %p340 = scmp.eq.s32.totalorder %s28, 3
      %p341 = por %p339, %p340
      %p343 = scmp.ne.s32.totalorder %s328, %s342
      %p344 = scmp.eq.s32.totalorder %s28, 0
      %p345 = por %p343, %p344
      %s346 = ssub.s32 %s29, %s41
      %p347 = scmp.eq.s32.totalorder %s346, 0
      %s349 = sadd.s32 %s348, 1
      %s350 = scalar_select %p347, %s348, %s349
      %p353 = pneg %p347
      %p354 = scmp.eq.s32.totalorder %s22, 3
      %p355 = por %p353, %p354
      %p356 = scmp.ne.s32.totalorder %s348, %s351
      %p357 = scmp.eq.s32.totalorder %s22, 0
      %p358 = por %p356, %p357
      %p359 = scmp.ne.s32.totalorder %s348, %s351
      %p360 = scmp.eq.s32.totalorder %s27, 3
      %p361 = por %p359, %p360
      %p362 = scmp.ne.s32.totalorder %s351, %s352
      %p363 = scmp.eq.s32.totalorder %s27, 0
      %p364 = por %p362, %p363
      %p365 = scmp.ne.s32.totalorder %s351, %s352
      %p366 = scmp.eq.s32.totalorder %s28, 3
      %p367 = por %p365, %p366
      %p369 = scmp.ne.s32.totalorder %s352, %s368
      %p370 = scmp.eq.s32.totalorder %s28, 0
      %p371 = por %p369, %p370
      %p372 = scmp.le.s32.totalorder 1, %s22
      %p373 = scmp.lt.s32.totalorder %s22, 5
      %p374 = pnand %p372, %p373
      %p375 = pneg %p374
      // Predicated region
      $region9: #{tpu_custom_call.1} parent=5 // pred_check
        _
      $region10: #{tpu_custom_call.1} parent=5 // pred_check_branch
        %377 = sbr.rel (%p374) target = $region12
      $region11: #{tpu_custom_call.1} parent=5 // pred_region
        %s378 = ssub.s32 %s22, 1
        // Predicated region
        $region13: #{tpu_custom_call.1} parent=11 // pred_check
          %p379 = pneg %p191
        $region14: #{tpu_custom_call.1} parent=11 // pred_check_branch
          %381 = sbr.rel (%p379) target = $region16
        $region15: #{tpu_custom_call.1} parent=11 // pred_region
          _
        $region16: #{tpu_custom_call.1} parent=11 // pred_fallthru
          _
        // Predicated region
        $region17: #{tpu_custom_call.1} parent=11 // pred_check
          %p382 = pneg %p212
        $region18: #{tpu_custom_call.1} parent=11 // pred_check_branch
          %384 = sbr.rel (%p382) target = $region20
        $region19: #{tpu_custom_call.1} parent=11 // pred_region
          _
        $region20: #{tpu_custom_call.1} parent=11 // pred_fallthru
          _
        // Predicated region
        $region21: #{tpu_custom_call.1} parent=11 // pred_check
          %p385 = pneg %p233
        $region22: #{tpu_custom_call.1} parent=11 // pred_check_branch
          %387 = sbr.rel (%p385) target = $region24
        $region23: #{tpu_custom_call.1} parent=11 // pred_region
          _
        $region24: #{tpu_custom_call.1} parent=11 // pred_fallthru
          _
        // Predicated region
        $region25: #{tpu_custom_call.1} parent=11 // pred_check
          %p388 = pneg %p254
        $region26: #{tpu_custom_call.1} parent=11 // pred_check_branch
          %390 = sbr.rel (%p388) target = $region28
        $region27: #{tpu_custom_call.1} parent=11 // pred_region
          _
        $region28: #{tpu_custom_call.1} parent=11 // pred_fallthru
          _
        // Predicated region
        $region29: #{tpu_custom_call.1} parent=11 // pred_check
          %p391 = pneg %p275
        $region30: #{tpu_custom_call.1} parent=11 // pred_check_branch
          %393 = sbr.rel (%p391) target = $region32
        $region31: #{tpu_custom_call.1} parent=11 // pred_region
          _
        $region32: #{tpu_custom_call.1} parent=11 // pred_fallthru
          _
        // Predicated region
        $region33: #{tpu_custom_call.1} parent=11 // pred_check
          %p394 = pneg %p296
        $region34: #{tpu_custom_call.1} parent=11 // pred_check_branch
          %396 = sbr.rel (%p394) target = $region36
        $region35: #{tpu_custom_call.1} parent=11 // pred_region
          _
        $region36: #{tpu_custom_call.1} parent=11 // pred_fallthru
          _
        // Predicated region
        $region37: #{tpu_custom_call.1} parent=11 // pred_check
          %p397 = pneg %p317
        $region38: #{tpu_custom_call.1} parent=11 // pred_check_branch
          %399 = sbr.rel (%p397) target = $region40
        $region39: #{tpu_custom_call.1} parent=11 // pred_region
          _
        $region40: #{tpu_custom_call.1} parent=11 // pred_fallthru
          _
        // Predicated region
        $region41: #{tpu_custom_call.1} parent=11 // pred_check
          %p400 = pneg %p338
        $region42: #{tpu_custom_call.1} parent=11 // pred_check_branch
          %402 = sbr.rel (%p400) target = $region44
        $region43: #{tpu_custom_call.1} parent=11 // pred_region
          _
        $region44: #{tpu_custom_call.1} parent=11 // pred_fallthru
          _
      $region12: #{tpu_custom_call.1} parent=5 // pred_fallthru
        _
      %p403 = scmp.lt.s32.totalorder %s22, 4
      // Predicated region
      $region45: #{tpu_custom_call.1} parent=5 // pred_check
        %p404 = pneg %p403
      $region46: #{tpu_custom_call.1} parent=5 // pred_check_branch
        %406 = sbr.rel (%p404) target = $region48
      $region47: #{tpu_custom_call.1} parent=5 // pred_region
        // Predicated region
        $region49: #{tpu_custom_call.1} parent=47 // pred_check
          %p407 = pneg %p60
        $region50: #{tpu_custom_call.1} parent=47 // pred_check_branch
          %409 = sbr.rel (%p407) target = $region52
        $region51: #{tpu_custom_call.1} parent=47 // pred_region
          %s410 = sand.u32 %s50, 1
          %s411 = sand.u32 %s50, 1
          %s412 = smul.addr %s411, 2048
          %s413 = scalar_lea.vmem [#allocation3], %s412
          %p414 = scmp.lt.s32.totalorder %s30, 1
          %s415 = scalar_select %p414, %s30, 1
          %s416 = smul.u32 8, %s415
          %s417 = ssub.s32 11, %s416
          %p418 = scmp.lt.s32.totalorder %s417, 8
          %s419 = scalar_select %p418, %s417, 8
          %s420 = smul.u32 4096, %s419
          %p421 = scmp.ne.s32.totalorder 0, %s420
          %s422 = smul.addr %s29, 352
          %s423 = sadd.s32 %s416, %s422
          %s424 = smul.addr %s423, 8
          %s425 = scalar_lea.vmem %s0, %s424
          %s426 = smul.u32 %s419, 8
          // Predicated region
          $region53: #{tpu_custom_call.1} parent=51 // pred_check
            %p427 = pneg %p421
          $region54: #{tpu_custom_call.1} parent=51 // pred_check_branch
            %429 = sbr.rel (%p427) target = $region56
          $region55: #{tpu_custom_call.1} parent=51 // pred_region
            %p430 = scmp.lt.u32.totalorder %s426, 8
            %p431 = pneg %p430
            // Predicated region
            $region57: #{tpu_custom_call.1} parent=55 // pred_check
              _
            $region58: #{tpu_custom_call.1} parent=55 // pred_check_branch
              %433 = sbr.rel (%p430) target = $region60
            $region59: #{tpu_custom_call.1} parent=55 // pred_region
              %s511 = sand.u32 %s426, 7
              %p512 = scmp.eq.s32.totalorder %s511, 0
              // Predicated region
              $region72: #{tpu_custom_call.1} parent=59 // pred_check
                %p513 = pneg %p512
              $region73: #{tpu_custom_call.1} parent=59 // pred_check_branch
                %515 = sbr.rel (%p513) target = $region75
              $region74: #{tpu_custom_call.1} parent=59 // pred_region
                %s516 = sshrl.u32 %s426, 3
                %s517 = sshrl.u32 %s516, 1
                // While loop
                $region76: #{tpu_custom_call.1} parent=74 // loop_pre_header
                  _
                $region77: #{tpu_custom_call.1} parent=74 // loop_header
                  %s521 = sphi 0, %s523
                  %p522 = scmp.ge.s32.totalorder %s521, %s517
                  %s526 = sphi 0, %s659
                  %s527 = sphi %s425, %s662
                  %s528 = sphi %s413, %s663
                $region78: #{tpu_custom_call.1} parent=74 // loop_header_branch
                  %525 = sbr.rel (%p522) target = $region82
                $region79: #{tpu_custom_call.1} parent=74 // loop_body
                  %v529 = vld [vmem:[%s527] sm:$0xff]
                  %530 = vst [vmem:[%s528] sm:$0xff] %v529
                  %v531 = vld [vmem:[%s527 + $0x8] sm:$0xff]
                  %532 = vst [vmem:[%s528 + $0x8] sm:$0xff] %v531
                  %v533 = vld [vmem:[%s527 + $0x58] sm:$0xff]
                  %534 = vst [vmem:[%s528 + $0x40] sm:$0xff] %v533
                  %v535 = vld [vmem:[%s527 + $0x60] sm:$0xff]
                  %536 = vst [vmem:[%s528 + $0x48] sm:$0xff] %v535
                  %v537 = vld [vmem:[%s527 + $0xb0] sm:$0xff]
                  %538 = vst [vmem:[%s528 + $0x80] sm:$0xff] %v537
                  %v539 = vld [vmem:[%s527 + $0xb8] sm:$0xff]
                  %540 = vst [vmem:[%s528 + $0x88] sm:$0xff] %v539
                  %v541 = vld [vmem:[%s527 + $0x108] sm:$0xff]
                  %542 = vst [vmem:[%s528 + $0xc0] sm:$0xff] %v541
                  %v543 = vld [vmem:[%s527 + $0x110] sm:$0xff]
                  %544 = vst [vmem:[%s528 + $0xc8] sm:$0xff] %v543
                  %v545 = vld [vmem:[%s527 + $0x160] sm:$0xff]
                  %546 = vst [vmem:[%s528 + $0x100] sm:$0xff] %v545
                  %v547 = vld [vmem:[%s527 + $0x168] sm:$0xff]
                  %548 = vst [vmem:[%s528 + $0x108] sm:$0xff] %v547
                  %v549 = vld [vmem:[%s527 + $0x1b8] sm:$0xff]
                  %550 = vst [vmem:[%s528 + $0x140] sm:$0xff] %v549
                  %v551 = vld [vmem:[%s527 + $0x1c0] sm:$0xff]
                  %552 = vst [vmem:[%s528 + $0x148] sm:$0xff] %v551
                  %v553 = vld [vmem:[%s527 + $0x210] sm:$0xff]
                  %554 = vst [vmem:[%s528 + $0x180] sm:$0xff] %v553
                  %v555 = vld [vmem:[%s527 + $0x218] sm:$0xff]
                  %556 = vst [vmem:[%s528 + $0x188] sm:$0xff] %v555
                  %v557 = vld [vmem:[%s527 + $0x268] sm:$0xff]
                  %558 = vst [vmem:[%s528 + $0x1c0] sm:$0xff] %v557
                  %v559 = vld [vmem:[%s527 + $0x270] sm:$0xff]
                  %560 = vst [vmem:[%s528 + $0x1c8] sm:$0xff] %v559
                  %v561 = vld [vmem:[%s527 + $0x2c0] sm:$0xff]
                  %562 = vst [vmem:[%s528 + $0x200] sm:$0xff] %v561
                  %v563 = vld [vmem:[%s527 + $0x2c8] sm:$0xff]
                  %564 = vst [vmem:[%s528 + $0x208] sm:$0xff] %v563
                  %v565 = vld [vmem:[%s527 + $0x318] sm:$0xff]
                  %566 = vst [vmem:[%s528 + $0x240] sm:$0xff] %v565
                  %v567 = vld [vmem:[%s527 + $0x320] sm:$0xff]
                  %568 = vst [vmem:[%s528 + $0x248] sm:$0xff] %v567
                  %v569 = vld [vmem:[%s527 + $0x370] sm:$0xff]
                  %570 = vst [vmem:[%s528 + $0x280] sm:$0xff] %v569
                  %v571 = vld [vmem:[%s527 + $0x378] sm:$0xff]
                  %572 = vst [vmem:[%s528 + $0x288] sm:$0xff] %v571
                  %v573 = vld [vmem:[%s527 + $0x3c8] sm:$0xff]
                  %574 = vst [vmem:[%s528 + $0x2c0] sm:$0xff] %v573
                  %v575 = vld [vmem:[%s527 + $0x3d0] sm:$0xff]
                  %576 = vst [vmem:[%s528 + $0x2c8] sm:$0xff] %v575
                  %v577 = vld [vmem:[%s527 + $0x420] sm:$0xff]
                  %578 = vst [vmem:[%s528 + $0x300] sm:$0xff] %v577
                  %v579 = vld [vmem:[%s527 + $0x428] sm:$0xff]
                  %580 = vst [vmem:[%s528 + $0x308] sm:$0xff] %v579
                  %v581 = vld [vmem:[%s527 + $0x478] sm:$0xff]
                  %582 = vst [vmem:[%s528 + $0x340] sm:$0xff] %v581
                  %v583 = vld [vmem:[%s527 + $0x480] sm:$0xff]
                  %584 = vst [vmem:[%s528 + $0x348] sm:$0xff] %v583
                  %v585 = vld [vmem:[%s527 + $0x4d0] sm:$0xff]
                  %586 = vst [vmem:[%s528 + $0x380] sm:$0xff] %v585
                  %v587 = vld [vmem:[%s527 + $0x4d8] sm:$0xff]
                  %588 = vst [vmem:[%s528 + $0x388] sm:$0xff] %v587
                  %v589 = vld [vmem:[%s527 + $0x528] sm:$0xff]
                  %590 = vst [vmem:[%s528 + $0x3c0] sm:$0xff] %v589
                  %v591 = vld [vmem:[%s527 + $0x530] sm:$0xff]
                  %592 = vst [vmem:[%s528 + $0x3c8] sm:$0xff] %v591
                  %v593 = vld [vmem:[%s527 + $0x580] sm:$0xff]
                  %594 = vst [vmem:[%s528 + $0x400] sm:$0xff] %v593
                  %v595 = vld [vmem:[%s527 + $0x588] sm:$0xff]
                  %596 = vst [vmem:[%s528 + $0x408] sm:$0xff] %v595
                  %v597 = vld [vmem:[%s527 + $0x5d8] sm:$0xff]
                  %598 = vst [vmem:[%s528 + $0x440] sm:$0xff] %v597
                  %v599 = vld [vmem:[%s527 + $0x5e0] sm:$0xff]
                  %600 = vst [vmem:[%s528 + $0x448] sm:$0xff] %v599
                  %v601 = vld [vmem:[%s527 + $0x630] sm:$0xff]
                  %602 = vst [vmem:[%s528 + $0x480] sm:$0xff] %v601
                  %v603 = vld [vmem:[%s527 + $0x638] sm:$0xff]
                  %604 = vst [vmem:[%s528 + $0x488] sm:$0xff] %v603
                  %v605 = vld [vmem:[%s527 + $0x688] sm:$0xff]
                  %606 = vst [vmem:[%s528 + $0x4c0] sm:$0xff] %v605
                  %v607 = vld [vmem:[%s527 + $0x690] sm:$0xff]
                  %608 = vst [vmem:[%s528 + $0x4c8] sm:$0xff] %v607
                  %v609 = vld [vmem:[%s527 + $0x6e0] sm:$0xff]
                  %610 = vst [vmem:[%s528 + $0x500] sm:$0xff] %v609
                  %v611 = vld [vmem:[%s527 + $0x6e8] sm:$0xff]
                  %612 = vst [vmem:[%s528 + $0x508] sm:$0xff] %v611
                  %v613 = vld [vmem:[%s527 + $0x738] sm:$0xff]
                  %614 = vst [vmem:[%s528 + $0x540] sm:$0xff] %v613
                  %v615 = vld [vmem:[%s527 + $0x740] sm:$0xff]
                  %616 = vst [vmem:[%s528 + $0x548] sm:$0xff] %v615
                  %v617 = vld [vmem:[%s527 + $0x790] sm:$0xff]
                  %618 = vst [vmem:[%s528 + $0x580] sm:$0xff] %v617
                  %v619 = vld [vmem:[%s527 + $0x798] sm:$0xff]
                  %620 = vst [vmem:[%s528 + $0x588] sm:$0xff] %v619
                  %v621 = vld [vmem:[%s527 + $0x7e8] sm:$0xff]
                  %622 = vst [vmem:[%s528 + $0x5c0] sm:$0xff] %v621
                  %v623 = vld [vmem:[%s527 + $0x7f0] sm:$0xff]
                  %624 = vst [vmem:[%s528 + $0x5c8] sm:$0xff] %v623
                  %v625 = vld [vmem:[%s527 + $0x840] sm:$0xff]
                  %626 = vst [vmem:[%s528 + $0x600] sm:$0xff] %v625
                  %v627 = vld [vmem:[%s527 + $0x848] sm:$0xff]
                  %628 = vst [vmem:[%s528 + $0x608] sm:$0xff] %v627
                  %v629 = vld [vmem:[%s527 + $0x898] sm:$0xff]
                  %630 = vst [vmem:[%s528 + $0x640] sm:$0xff] %v629
                  %v631 = vld [vmem:[%s527 + $0x8a0] sm:$0xff]
                  %632 = vst [vmem:[%s528 + $0x648] sm:$0xff] %v631
                  %v633 = vld [vmem:[%s527 + $0x8f0] sm:$0xff]
                  %634 = vst [vmem:[%s528 + $0x680] sm:$0xff] %v633
                  %v635 = vld [vmem:[%s527 + $0x8f8] sm:$0xff]
                  %636 = vst [vmem:[%s528 + $0x688] sm:$0xff] %v635
                  %v637 = vld [vmem:[%s527 + $0x948] sm:$0xff]
                  %638 = vst [vmem:[%s528 + $0x6c0] sm:$0xff] %v637
                  %v639 = vld [vmem:[%s527 + $0x950] sm:$0xff]
                  %640 = vst [vmem:[%s528 + $0x6c8] sm:$0xff] %v639
                  %v641 = vld [vmem:[%s527 + $0x9a0] sm:$0xff]
                  %642 = vst [vmem:[%s528 + $0x700] sm:$0xff] %v641
                  %v643 = vld [vmem:[%s527 + $0x9a8] sm:$0xff]
                  %644 = vst [vmem:[%s528 + $0x708] sm:$0xff] %v643
                  %v645 = vld [vmem:[%s527 + $0x9f8] sm:$0xff]
                  %646 = vst [vmem:[%s528 + $0x740] sm:$0xff] %v645
                  %v647 = vld [vmem:[%s527 + $0xa00] sm:$0xff]
                  %648 = vst [vmem:[%s528 + $0x748] sm:$0xff] %v647
                  %v649 = vld [vmem:[%s527 + $0xa50] sm:$0xff]
                  %650 = vst [vmem:[%s528 + $0x780] sm:$0xff] %v649
                  %v651 = vld [vmem:[%s527 + $0xa58] sm:$0xff]
                  %652 = vst [vmem:[%s528 + $0x788] sm:$0xff] %v651
                  %v653 = vld [vmem:[%s527 + $0xaa8] sm:$0xff]
                  %654 = vst [vmem:[%s528 + $0x7c0] sm:$0xff] %v653
                  %v655 = vld [vmem:[%s527 + $0xab0] sm:$0xff]
                  %656 = vst [vmem:[%s528 + $0x7c8] sm:$0xff] %v655
                  %s657 = sadd.s32 1, %s526
                  %p658 = scmp.ge.s32.totalorder %s657, %s517
                  %s659 = scalar_select %p658, 0, %s657
                  %s660 = smul.u32 %s659, 16
                  %s661 = smul.u32 %s659, 16
                  %s662 = scalar_lea.vmem %s425, %s660
                  %s663 = scalar_lea.vmem %s413, %s661 [#allocation3]
                $region80: #{tpu_custom_call.1} parent=74 // loop_footer
                  %s523 = sadd.s32 %s521, 1
                $region81: #{tpu_custom_call.1} parent=74 // loop_footer_branch
                  %520 = sbr.rel target = $region77
                $region82: #{tpu_custom_call.1} parent=74 // loop_exit
                  _
                %s664 = sshrl.u32 %s516, 1
                %s665 = sand.u32 %s516, 1
                %s666 = smul.u32 %s664, 2
                %s667 = smul.u32 128, %s666
                %s668 = sshra.s32 %s667, 4
                %s669 = scalar_lea.vmem %s425, %s668
                %s670 = smul.u32 128, %s666
                %s671 = sshra.s32 %s670, 4
                %s672 = scalar_lea.vmem %s413, %s671 [#allocation3]
                // While loop
                $region83: #{tpu_custom_call.1} parent=74 // loop_pre_header
                  _
                $region84: #{tpu_custom_call.1} parent=74 // loop_header
                  %s676 = sphi 0, %s678
                  %p677 = scmp.ge.s32.totalorder %s676, %s665
                  %s681 = sphi 0, %s750
                  %s682 = sphi %s669, %s753
                  %s683 = sphi %s672, %s754
                $region85: #{tpu_custom_call.1} parent=74 // loop_header_branch
                  %680 = sbr.rel (%p677) target = $region89
                $region86: #{tpu_custom_call.1} parent=74 // loop_body
                  %v684 = vld [vmem:[%s682] sm:$0xff]
                  %685 = vst [vmem:[%s683] sm:$0xff] %v684
                  %v686 = vld [vmem:[%s682 + $0x58] sm:$0xff]
                  %687 = vst [vmem:[%s683 + $0x40] sm:$0xff] %v686
                  %v688 = vld [vmem:[%s682 + $0xb0] sm:$0xff]
                  %689 = vst [vmem:[%s683 + $0x80] sm:$0xff] %v688
                  %v690 = vld [vmem:[%s682 + $0x108] sm:$0xff]
                  %691 = vst [vmem:[%s683 + $0xc0] sm:$0xff] %v690
                  %v692 = vld [vmem:[%s682 + $0x160] sm:$0xff]
                  %693 = vst [vmem:[%s683 + $0x100] sm:$0xff] %v692
                  %v694 = vld [vmem:[%s682 + $0x1b8] sm:$0xff]
                  %695 = vst [vmem:[%s683 + $0x140] sm:$0xff] %v694
                  %v696 = vld [vmem:[%s682 + $0x210] sm:$0xff]
                  %697 = vst [vmem:[%s683 + $0x180] sm:$0xff] %v696
                  %v698 = vld [vmem:[%s682 + $0x268] sm:$0xff]
                  %699 = vst [vmem:[%s683 + $0x1c0] sm:$0xff] %v698
                  %v700 = vld [vmem:[%s682 + $0x2c0] sm:$0xff]
                  %701 = vst [vmem:[%s683 + $0x200] sm:$0xff] %v700
                  %v702 = vld [vmem:[%s682 + $0x318] sm:$0xff]
                  %703 = vst [vmem:[%s683 + $0x240] sm:$0xff] %v702
                  %v704 = vld [vmem:[%s682 + $0x370] sm:$0xff]
                  %705 = vst [vmem:[%s683 + $0x280] sm:$0xff] %v704
                  %v706 = vld [vmem:[%s682 + $0x3c8] sm:$0xff]
                  %707 = vst [vmem:[%s683 + $0x2c0] sm:$0xff] %v706
                  %v708 = vld [vmem:[%s682 + $0x420] sm:$0xff]
                  %709 = vst [vmem:[%s683 + $0x300] sm:$0xff] %v708
                  %v710 = vld [vmem:[%s682 + $0x478] sm:$0xff]
                  %711 = vst [vmem:[%s683 + $0x340] sm:$0xff] %v710
                  %v712 = vld [vmem:[%s682 + $0x4d0] sm:$0xff]
                  %713 = vst [vmem:[%s683 + $0x380] sm:$0xff] %v712
                  %v714 = vld [vmem:[%s682 + $0x528] sm:$0xff]
                  %715 = vst [vmem:[%s683 + $0x3c0] sm:$0xff] %v714
                  %v716 = vld [vmem:[%s682 + $0x580] sm:$0xff]
                  %717 = vst [vmem:[%s683 + $0x400] sm:$0xff] %v716
                  %v718 = vld [vmem:[%s682 + $0x5d8] sm:$0xff]
                  %719 = vst [vmem:[%s683 + $0x440] sm:$0xff] %v718
                  %v720 = vld [vmem:[%s682 + $0x630] sm:$0xff]
                  %721 = vst [vmem:[%s683 + $0x480] sm:$0xff] %v720
                  %v722 = vld [vmem:[%s682 + $0x688] sm:$0xff]
                  %723 = vst [vmem:[%s683 + $0x4c0] sm:$0xff] %v722
                  %v724 = vld [vmem:[%s682 + $0x6e0] sm:$0xff]
                  %725 = vst [vmem:[%s683 + $0x500] sm:$0xff] %v724
                  %v726 = vld [vmem:[%s682 + $0x738] sm:$0xff]
                  %727 = vst [vmem:[%s683 + $0x540] sm:$0xff] %v726
                  %v728 = vld [vmem:[%s682 + $0x790] sm:$0xff]
                  %729 = vst [vmem:[%s683 + $0x580] sm:$0xff] %v728
                  %v730 = vld [vmem:[%s682 + $0x7e8] sm:$0xff]
                  %731 = vst [vmem:[%s683 + $0x5c0] sm:$0xff] %v730
                  %v732 = vld [vmem:[%s682 + $0x840] sm:$0xff]
                  %733 = vst [vmem:[%s683 + $0x600] sm:$0xff] %v732
                  %v734 = vld [vmem:[%s682 + $0x898] sm:$0xff]
                  %735 = vst [vmem:[%s683 + $0x640] sm:$0xff] %v734
                  %v736 = vld [vmem:[%s682 + $0x8f0] sm:$0xff]
                  %737 = vst [vmem:[%s683 + $0x680] sm:$0xff] %v736
                  %v738 = vld [vmem:[%s682 + $0x948] sm:$0xff]
                  %739 = vst [vmem:[%s683 + $0x6c0] sm:$0xff] %v738
                  %v740 = vld [vmem:[%s682 + $0x9a0] sm:$0xff]
                  %741 = vst [vmem:[%s683 + $0x700] sm:$0xff] %v740
                  %v742 = vld [vmem:[%s682 + $0x9f8] sm:$0xff]
                  %743 = vst [vmem:[%s683 + $0x740] sm:$0xff] %v742
                  %v744 = vld [vmem:[%s682 + $0xa50] sm:$0xff]
                  %745 = vst [vmem:[%s683 + $0x780] sm:$0xff] %v744
                  %v746 = vld [vmem:[%s682 + $0xaa8] sm:$0xff]
                  %747 = vst [vmem:[%s683 + $0x7c0] sm:$0xff] %v746
                  %s748 = sadd.s32 1, %s681
                  %p749 = scmp.ge.s32.totalorder %s748, %s665
                  %s750 = scalar_select %p749, 0, %s748
                  %s751 = smul.u32 %s750, 8
                  %s752 = smul.u32 %s750, 8
                  %s753 = scalar_lea.vmem %s669, %s751
                  %s754 = scalar_lea.vmem %s672, %s752 [#allocation3]
                $region87: #{tpu_custom_call.1} parent=74 // loop_footer
                  %s678 = sadd.s32 %s676, 1
                $region88: #{tpu_custom_call.1} parent=74 // loop_footer_branch
                  %675 = sbr.rel target = $region84
                $region89: #{tpu_custom_call.1} parent=74 // loop_exit
                  _
              $region75: #{tpu_custom_call.1} parent=59 // pred_fallthru
                _
              %p755 = pneg %p512
              // Predicated region
              $region90: #{tpu_custom_call.1} parent=59 // pred_check
                _
              $region91: #{tpu_custom_call.1} parent=59 // pred_check_branch
                %757 = sbr.rel (%p512) target = $region93
              $region92: #{tpu_custom_call.1} parent=59 // pred_region
                %s758 = sand.u32 %s426, 7
                %s759 = ssub.s32 %s426, %s758
                %s760 = scalar_lea.vmem %s425, %s759
                %s761 = ssub.s32 %s426, %s758
                %s762 = scalar_lea.vmem %s413, %s761 [#allocation3]
                %s763 = sshrl.u32 %s426, 3
                %s764 = sshrl.u32 %s763, 1
                // While loop
                $region94: #{tpu_custom_call.1} parent=92 // loop_pre_header
                  _
                $region95: #{tpu_custom_call.1} parent=92 // loop_header
                  %s768 = sphi 0, %s770
                  %p769 = scmp.ge.s32.totalorder %s768, %s764
                  %s773 = sphi 0, %s906
                  %s774 = sphi %s425, %s909
                  %s775 = sphi %s413, %s910
                $region96: #{tpu_custom_call.1} parent=92 // loop_header_branch
                  %772 = sbr.rel (%p769) target = $region100
                $region97: #{tpu_custom_call.1} parent=92 // loop_body
                  %v776 = vld [vmem:[%s774] sm:$0xff]
                  %777 = vst [vmem:[%s775] sm:$0xff] %v776
                  %v778 = vld [vmem:[%s774 + $0x8] sm:$0xff]
                  %779 = vst [vmem:[%s775 + $0x8] sm:$0xff] %v778
                  %v780 = vld [vmem:[%s774 + $0x58] sm:$0xff]
                  %781 = vst [vmem:[%s775 + $0x40] sm:$0xff] %v780
                  %v782 = vld [vmem:[%s774 + $0x60] sm:$0xff]
                  %783 = vst [vmem:[%s775 + $0x48] sm:$0xff] %v782
                  %v784 = vld [vmem:[%s774 + $0xb0] sm:$0xff]
                  %785 = vst [vmem:[%s775 + $0x80] sm:$0xff] %v784
                  %v786 = vld [vmem:[%s774 + $0xb8] sm:$0xff]
                  %787 = vst [vmem:[%s775 + $0x88] sm:$0xff] %v786
                  %v788 = vld [vmem:[%s774 + $0x108] sm:$0xff]
                  %789 = vst [vmem:[%s775 + $0xc0] sm:$0xff] %v788
                  %v790 = vld [vmem:[%s774 + $0x110] sm:$0xff]
                  %791 = vst [vmem:[%s775 + $0xc8] sm:$0xff] %v790
                  %v792 = vld [vmem:[%s774 + $0x160] sm:$0xff]
                  %793 = vst [vmem:[%s775 + $0x100] sm:$0xff] %v792
                  %v794 = vld [vmem:[%s774 + $0x168] sm:$0xff]
                  %795 = vst [vmem:[%s775 + $0x108] sm:$0xff] %v794
                  %v796 = vld [vmem:[%s774 + $0x1b8] sm:$0xff]
                  %797 = vst [vmem:[%s775 + $0x140] sm:$0xff] %v796
                  %v798 = vld [vmem:[%s774 + $0x1c0] sm:$0xff]
                  %799 = vst [vmem:[%s775 + $0x148] sm:$0xff] %v798
                  %v800 = vld [vmem:[%s774 + $0x210] sm:$0xff]
                  %801 = vst [vmem:[%s775 + $0x180] sm:$0xff] %v800
                  %v802 = vld [vmem:[%s774 + $0x218] sm:$0xff]
                  %803 = vst [vmem:[%s775 + $0x188] sm:$0xff] %v802
                  %v804 = vld [vmem:[%s774 + $0x268] sm:$0xff]
                  %805 = vst [vmem:[%s775 + $0x1c0] sm:$0xff] %v804
                  %v806 = vld [vmem:[%s774 + $0x270] sm:$0xff]
                  %807 = vst [vmem:[%s775 + $0x1c8] sm:$0xff] %v806
                  %v808 = vld [vmem:[%s774 + $0x2c0] sm:$0xff]
                  %809 = vst [vmem:[%s775 + $0x200] sm:$0xff] %v808
                  %v810 = vld [vmem:[%s774 + $0x2c8] sm:$0xff]
                  %811 = vst [vmem:[%s775 + $0x208] sm:$0xff] %v810
                  %v812 = vld [vmem:[%s774 + $0x318] sm:$0xff]
                  %813 = vst [vmem:[%s775 + $0x240] sm:$0xff] %v812
                  %v814 = vld [vmem:[%s774 + $0x320] sm:$0xff]
                  %815 = vst [vmem:[%s775 + $0x248] sm:$0xff] %v814
                  %v816 = vld [vmem:[%s774 + $0x370] sm:$0xff]
                  %817 = vst [vmem:[%s775 + $0x280] sm:$0xff] %v816
                  %v818 = vld [vmem:[%s774 + $0x378] sm:$0xff]
                  %819 = vst [vmem:[%s775 + $0x288] sm:$0xff] %v818
                  %v820 = vld [vmem:[%s774 + $0x3c8] sm:$0xff]
                  %821 = vst [vmem:[%s775 + $0x2c0] sm:$0xff] %v820
                  %v822 = vld [vmem:[%s774 + $0x3d0] sm:$0xff]
                  %823 = vst [vmem:[%s775 + $0x2c8] sm:$0xff] %v822
                  %v824 = vld [vmem:[%s774 + $0x420] sm:$0xff]
                  %825 = vst [vmem:[%s775 + $0x300] sm:$0xff] %v824
                  %v826 = vld [vmem:[%s774 + $0x428] sm:$0xff]
                  %827 = vst [vmem:[%s775 + $0x308] sm:$0xff] %v826
                  %v828 = vld [vmem:[%s774 + $0x478] sm:$0xff]
                  %829 = vst [vmem:[%s775 + $0x340] sm:$0xff] %v828
                  %v830 = vld [vmem:[%s774 + $0x480] sm:$0xff]
                  %831 = vst [vmem:[%s775 + $0x348] sm:$0xff] %v830
                  %v832 = vld [vmem:[%s774 + $0x4d0] sm:$0xff]
                  %833 = vst [vmem:[%s775 + $0x380] sm:$0xff] %v832
                  %v834 = vld [vmem:[%s774 + $0x4d8] sm:$0xff]
                  %835 = vst [vmem:[%s775 + $0x388] sm:$0xff] %v834
                  %v836 = vld [vmem:[%s774 + $0x528] sm:$0xff]
                  %837 = vst [vmem:[%s775 + $0x3c0] sm:$0xff] %v836
                  %v838 = vld [vmem:[%s774 + $0x530] sm:$0xff]
                  %839 = vst [vmem:[%s775 + $0x3c8] sm:$0xff] %v838
                  %v840 = vld [vmem:[%s774 + $0x580] sm:$0xff]
                  %841 = vst [vmem:[%s775 + $0x400] sm:$0xff] %v840
                  %v842 = vld [vmem:[%s774 + $0x588] sm:$0xff]
                  %843 = vst [vmem:[%s775 + $0x408] sm:$0xff] %v842
                  %v844 = vld [vmem:[%s774 + $0x5d8] sm:$0xff]
                  %845 = vst [vmem:[%s775 + $0x440] sm:$0xff] %v844
                  %v846 = vld [vmem:[%s774 + $0x5e0] sm:$0xff]
                  %847 = vst [vmem:[%s775 + $0x448] sm:$0xff] %v846
                  %v848 = vld [vmem:[%s774 + $0x630] sm:$0xff]
                  %849 = vst [vmem:[%s775 + $0x480] sm:$0xff] %v848
                  %v850 = vld [vmem:[%s774 + $0x638] sm:$0xff]
                  %851 = vst [vmem:[%s775 + $0x488] sm:$0xff] %v850
                  %v852 = vld [vmem:[%s774 + $0x688] sm:$0xff]
                  %853 = vst [vmem:[%s775 + $0x4c0] sm:$0xff] %v852
                  %v854 = vld [vmem:[%s774 + $0x690] sm:$0xff]
                  %855 = vst [vmem:[%s775 + $0x4c8] sm:$0xff] %v854
                  %v856 = vld [vmem:[%s774 + $0x6e0] sm:$0xff]
                  %857 = vst [vmem:[%s775 + $0x500] sm:$0xff] %v856
                  %v858 = vld [vmem:[%s774 + $0x6e8] sm:$0xff]
                  %859 = vst [vmem:[%s775 + $0x508] sm:$0xff] %v858
                  %v860 = vld [vmem:[%s774 + $0x738] sm:$0xff]
                  %861 = vst [vmem:[%s775 + $0x540] sm:$0xff] %v860
                  %v862 = vld [vmem:[%s774 + $0x740] sm:$0xff]
                  %863 = vst [vmem:[%s775 + $0x548] sm:$0xff] %v862
                  %v864 = vld [vmem:[%s774 + $0x790] sm:$0xff]
                  %865 = vst [vmem:[%s775 + $0x580] sm:$0xff] %v864
                  %v866 = vld [vmem:[%s774 + $0x798] sm:$0xff]
                  %867 = vst [vmem:[%s775 + $0x588] sm:$0xff] %v866
                  %v868 = vld [vmem:[%s774 + $0x7e8] sm:$0xff]
                  %869 = vst [vmem:[%s775 + $0x5c0] sm:$0xff] %v868
                  %v870 = vld [vmem:[%s774 + $0x7f0] sm:$0xff]
                  %871 = vst [vmem:[%s775 + $0x5c8] sm:$0xff] %v870
                  %v872 = vld [vmem:[%s774 + $0x840] sm:$0xff]
                  %873 = vst [vmem:[%s775 + $0x600] sm:$0xff] %v872
                  %v874 = vld [vmem:[%s774 + $0x848] sm:$0xff]
                  %875 = vst [vmem:[%s775 + $0x608] sm:$0xff] %v874
                  %v876 = vld [vmem:[%s774 + $0x898] sm:$0xff]
                  %877 = vst [vmem:[%s775 + $0x640] sm:$0xff] %v876
                  %v878 = vld [vmem:[%s774 + $0x8a0] sm:$0xff]
                  %879 = vst [vmem:[%s775 + $0x648] sm:$0xff] %v878
                  %v880 = vld [vmem:[%s774 + $0x8f0] sm:$0xff]
                  %881 = vst [vmem:[%s775 + $0x680] sm:$0xff] %v880
                  %v882 = vld [vmem:[%s774 + $0x8f8] sm:$0xff]
                  %883 = vst [vmem:[%s775 + $0x688] sm:$0xff] %v882
                  %v884 = vld [vmem:[%s774 + $0x948] sm:$0xff]
                  %885 = vst [vmem:[%s775 + $0x6c0] sm:$0xff] %v884
                  %v886 = vld [vmem:[%s774 + $0x950] sm:$0xff]
                  %887 = vst [vmem:[%s775 + $0x6c8] sm:$0xff] %v886
                  %v888 = vld [vmem:[%s774 + $0x9a0] sm:$0xff]
                  %889 = vst [vmem:[%s775 + $0x700] sm:$0xff] %v888
                  %v890 = vld [vmem:[%s774 + $0x9a8] sm:$0xff]
                  %891 = vst [vmem:[%s775 + $0x708] sm:$0xff] %v890
                  %v892 = vld [vmem:[%s774 + $0x9f8] sm:$0xff]
                  %893 = vst [vmem:[%s775 + $0x740] sm:$0xff] %v892
                  %v894 = vld [vmem:[%s774 + $0xa00] sm:$0xff]
                  %895 = vst [vmem:[%s775 + $0x748] sm:$0xff] %v894
                  %v896 = vld [vmem:[%s774 + $0xa50] sm:$0xff]
                  %897 = vst [vmem:[%s775 + $0x780] sm:$0xff] %v896
                  %v898 = vld [vmem:[%s774 + $0xa58] sm:$0xff]
                  %899 = vst [vmem:[%s775 + $0x788] sm:$0xff] %v898
                  %v900 = vld [vmem:[%s774 + $0xaa8] sm:$0xff]
                  %901 = vst [vmem:[%s775 + $0x7c0] sm:$0xff] %v900
                  %v902 = vld [vmem:[%s774 + $0xab0] sm:$0xff]
                  %903 = vst [vmem:[%s775 + $0x7c8] sm:$0xff] %v902
                  %s904 = sadd.s32 1, %s773
                  %p905 = scmp.ge.s32.totalorder %s904, %s764
                  %s906 = scalar_select %p905, 0, %s904
                  %s907 = smul.u32 %s906, 16
                  %s908 = smul.u32 %s906, 16
                  %s909 = scalar_lea.vmem %s425, %s907
                  %s910 = scalar_lea.vmem %s413, %s908 [#allocation3]
                $region98: #{tpu_custom_call.1} parent=92 // loop_footer
                  %s770 = sadd.s32 %s768, 1
                $region99: #{tpu_custom_call.1} parent=92 // loop_footer_branch
                  %767 = sbr.rel target = $region95
                $region100: #{tpu_custom_call.1} parent=92 // loop_exit
                  _
                %s911 = sshrl.u32 %s763, 1
                %s912 = sand.u32 %s763, 1
                %s913 = smul.u32 %s911, 2
                %s914 = smul.u32 128, %s913
                %s915 = sshra.s32 %s914, 4
                %s916 = scalar_lea.vmem %s425, %s915
                %s917 = smul.u32 128, %s913
                %s918 = sshra.s32 %s917, 4
                %s919 = scalar_lea.vmem %s413, %s918 [#allocation3]
                // While loop
                $region101: #{tpu_custom_call.1} parent=92 // loop_pre_header
                  _
                $region102: #{tpu_custom_call.1} parent=92 // loop_header
                  %s923 = sphi 0, %s925
                  %p924 = scmp.ge.s32.totalorder %s923, %s912
                  %s928 = sphi 0, %s997
                  %s929 = sphi %s916, %s1000
                  %s930 = sphi %s919, %s1001
                $region103: #{tpu_custom_call.1} parent=92 // loop_header_branch
                  %927 = sbr.rel (%p924) target = $region107
                $region104: #{tpu_custom_call.1} parent=92 // loop_body
                  %v931 = vld [vmem:[%s929] sm:$0xff]
                  %932 = vst [vmem:[%s930] sm:$0xff] %v931
                  %v933 = vld [vmem:[%s929 + $0x58] sm:$0xff]
                  %934 = vst [vmem:[%s930 + $0x40] sm:$0xff] %v933
                  %v935 = vld [vmem:[%s929 + $0xb0] sm:$0xff]
                  %936 = vst [vmem:[%s930 + $0x80] sm:$0xff] %v935
                  %v937 = vld [vmem:[%s929 + $0x108] sm:$0xff]
                  %938 = vst [vmem:[%s930 + $0xc0] sm:$0xff] %v937
                  %v939 = vld [vmem:[%s929 + $0x160] sm:$0xff]
                  %940 = vst [vmem:[%s930 + $0x100] sm:$0xff] %v939
                  %v941 = vld [vmem:[%s929 + $0x1b8] sm:$0xff]
                  %942 = vst [vmem:[%s930 + $0x140] sm:$0xff] %v941
                  %v943 = vld [vmem:[%s929 + $0x210] sm:$0xff]
                  %944 = vst [vmem:[%s930 + $0x180] sm:$0xff] %v943
                  %v945 = vld [vmem:[%s929 + $0x268] sm:$0xff]
                  %946 = vst [vmem:[%s930 + $0x1c0] sm:$0xff] %v945
                  %v947 = vld [vmem:[%s929 + $0x2c0] sm:$0xff]
                  %948 = vst [vmem:[%s930 + $0x200] sm:$0xff] %v947
                  %v949 = vld [vmem:[%s929 + $0x318] sm:$0xff]
                  %950 = vst [vmem:[%s930 + $0x240] sm:$0xff] %v949
                  %v951 = vld [vmem:[%s929 + $0x370] sm:$0xff]
                  %952 = vst [vmem:[%s930 + $0x280] sm:$0xff] %v951
                  %v953 = vld [vmem:[%s929 + $0x3c8] sm:$0xff]
                  %954 = vst [vmem:[%s930 + $0x2c0] sm:$0xff] %v953
                  %v955 = vld [vmem:[%s929 + $0x420] sm:$0xff]
                  %956 = vst [vmem:[%s930 + $0x300] sm:$0xff] %v955
                  %v957 = vld [vmem:[%s929 + $0x478] sm:$0xff]
                  %958 = vst [vmem:[%s930 + $0x340] sm:$0xff] %v957
                  %v959 = vld [vmem:[%s929 + $0x4d0] sm:$0xff]
                  %960 = vst [vmem:[%s930 + $0x380] sm:$0xff] %v959
                  %v961 = vld [vmem:[%s929 + $0x528] sm:$0xff]
                  %962 = vst [vmem:[%s930 + $0x3c0] sm:$0xff] %v961
                  %v963 = vld [vmem:[%s929 + $0x580] sm:$0xff]
                  %964 = vst [vmem:[%s930 + $0x400] sm:$0xff] %v963
                  %v965 = vld [vmem:[%s929 + $0x5d8] sm:$0xff]
                  %966 = vst [vmem:[%s930 + $0x440] sm:$0xff] %v965
                  %v967 = vld [vmem:[%s929 + $0x630] sm:$0xff]
                  %968 = vst [vmem:[%s930 + $0x480] sm:$0xff] %v967
                  %v969 = vld [vmem:[%s929 + $0x688] sm:$0xff]
                  %970 = vst [vmem:[%s930 + $0x4c0] sm:$0xff] %v969
                  %v971 = vld [vmem:[%s929 + $0x6e0] sm:$0xff]
                  %972 = vst [vmem:[%s930 + $0x500] sm:$0xff] %v971
                  %v973 = vld [vmem:[%s929 + $0x738] sm:$0xff]
                  %974 = vst [vmem:[%s930 + $0x540] sm:$0xff] %v973
                  %v975 = vld [vmem:[%s929 + $0x790] sm:$0xff]
                  %976 = vst [vmem:[%s930 + $0x580] sm:$0xff] %v975
                  %v977 = vld [vmem:[%s929 + $0x7e8] sm:$0xff]
                  %978 = vst [vmem:[%s930 + $0x5c0] sm:$0xff] %v977
                  %v979 = vld [vmem:[%s929 + $0x840] sm:$0xff]
                  %980 = vst [vmem:[%s930 + $0x600] sm:$0xff] %v979
                  %v981 = vld [vmem:[%s929 + $0x898] sm:$0xff]
                  %982 = vst [vmem:[%s930 + $0x640] sm:$0xff] %v981
                  %v983 = vld [vmem:[%s929 + $0x8f0] sm:$0xff]
                  %984 = vst [vmem:[%s930 + $0x680] sm:$0xff] %v983
                  %v985 = vld [vmem:[%s929 + $0x948] sm:$0xff]
                  %986 = vst [vmem:[%s930 + $0x6c0] sm:$0xff] %v985
                  %v987 = vld [vmem:[%s929 + $0x9a0] sm:$0xff]
                  %988 = vst [vmem:[%s930 + $0x700] sm:$0xff] %v987
                  %v989 = vld [vmem:[%s929 + $0x9f8] sm:$0xff]
                  %990 = vst [vmem:[%s930 + $0x740] sm:$0xff] %v989
                  %v991 = vld [vmem:[%s929 + $0xa50] sm:$0xff]
                  %992 = vst [vmem:[%s930 + $0x780] sm:$0xff] %v991
                  %v993 = vld [vmem:[%s929 + $0xaa8] sm:$0xff]
                  %994 = vst [vmem:[%s930 + $0x7c0] sm:$0xff] %v993
                  %s995 = sadd.s32 1, %s928
                  %p996 = scmp.ge.s32.totalorder %s995, %s912
                  %s997 = scalar_select %p996, 0, %s995
                  %s998 = smul.u32 %s997, 8
                  %s999 = smul.u32 %s997, 8
                  %s1000 = scalar_lea.vmem %s916, %s998
                  %s1001 = scalar_lea.vmem %s919, %s999 [#allocation3]
                $region105: #{tpu_custom_call.1} parent=92 // loop_footer
                  %s925 = sadd.s32 %s923, 1
                $region106: #{tpu_custom_call.1} parent=92 // loop_footer_branch
                  %922 = sbr.rel target = $region102
                $region107: #{tpu_custom_call.1} parent=92 // loop_exit
                  _
                %s1002 = sshll.u32 1, %s758
                %s1003 = ssub.s32 %s1002, 1
                loop: start=0, step=1, limit=1
                $region108: #{tpu_custom_call.1} parent=92 // loop_pre_header
                  _
                $region109: #{tpu_custom_call.1} parent=92 // loop_header
                  %s1005 = sphi 0, %s1009
                  %p1006 = scmp.ge.s32.totalorder %s1005, 1
                  %s1010 = sphi %s760, %s760
                  %s1011 = sphi %s762, %s762
                $region110: #{tpu_custom_call.1} parent=92 // loop_header_branch
                  %1008 = sbr.rel (%p1006) target = $region114
                $region111: #{tpu_custom_call.1} parent=92 // loop_body
                  %v1012 = vld [vmem:[%s1010] sm:%s1003]
                  %1013 = vst [vmem:[%s1011] sm:%s1003] %v1012
                  %v1014 = vld [vmem:[%s1010 + $0x58] sm:%s1003]
                  %1015 = vst [vmem:[%s1011 + $0x40] sm:%s1003] %v1014
                  %v1016 = vld [vmem:[%s1010 + $0xb0] sm:%s1003]
                  %1017 = vst [vmem:[%s1011 + $0x80] sm:%s1003] %v1016
                  %v1018 = vld [vmem:[%s1010 + $0x108] sm:%s1003]
                  %1019 = vst [vmem:[%s1011 + $0xc0] sm:%s1003] %v1018
                  %v1020 = vld [vmem:[%s1010 + $0x160] sm:%s1003]
                  %1021 = vst [vmem:[%s1011 + $0x100] sm:%s1003] %v1020
                  %v1022 = vld [vmem:[%s1010 + $0x1b8] sm:%s1003]
                  %1023 = vst [vmem:[%s1011 + $0x140] sm:%s1003] %v1022
                  %v1024 = vld [vmem:[%s1010 + $0x210] sm:%s1003]
                  %1025 = vst [vmem:[%s1011 + $0x180] sm:%s1003] %v1024
                  %v1026 = vld [vmem:[%s1010 + $0x268] sm:%s1003]
                  %1027 = vst [vmem:[%s1011 + $0x1c0] sm:%s1003] %v1026
                  %v1028 = vld [vmem:[%s1010 + $0x2c0] sm:%s1003]
                  %1029 = vst [vmem:[%s1011 + $0x200] sm:%s1003] %v1028
                  %v1030 = vld [vmem:[%s1010 + $0x318] sm:%s1003]
                  %1031 = vst [vmem:[%s1011 + $0x240] sm:%s1003] %v1030
                  %v1032 = vld [vmem:[%s1010 + $0x370] sm:%s1003]
                  %1033 = vst [vmem:[%s1011 + $0x280] sm:%s1003] %v1032
                  %v1034 = vld [vmem:[%s1010 + $0x3c8] sm:%s1003]
                  %1035 = vst [vmem:[%s1011 + $0x2c0] sm:%s1003] %v1034
                  %v1036 = vld [vmem:[%s1010 + $0x420] sm:%s1003]
                  %1037 = vst [vmem:[%s1011 + $0x300] sm:%s1003] %v1036
                  %v1038 = vld [vmem:[%s1010 + $0x478] sm:%s1003]
                  %1039 = vst [vmem:[%s1011 + $0x340] sm:%s1003] %v1038
                  %v1040 = vld [vmem:[%s1010 + $0x4d0] sm:%s1003]
                  %1041 = vst [vmem:[%s1011 + $0x380] sm:%s1003] %v1040
                  %v1042 = vld [vmem:[%s1010 + $0x528] sm:%s1003]
                  %1043 = vst [vmem:[%s1011 + $0x3c0] sm:%s1003] %v1042
                  %v1044 = vld [vmem:[%s1010 + $0x580] sm:%s1003]
                  %1045 = vst [vmem:[%s1011 + $0x400] sm:%s1003] %v1044
                  %v1046 = vld [vmem:[%s1010 + $0x5d8] sm:%s1003]
                  %1047 = vst [vmem:[%s1011 + $0x440] sm:%s1003] %v1046
                  %v1048 = vld [vmem:[%s1010 + $0x630] sm:%s1003]
                  %1049 = vst [vmem:[%s1011 + $0x480] sm:%s1003] %v1048
                  %v1050 = vld [vmem:[%s1010 + $0x688] sm:%s1003]
                  %1051 = vst [vmem:[%s1011 + $0x4c0] sm:%s1003] %v1050
                  %v1052 = vld [vmem:[%s1010 + $0x6e0] sm:%s1003]
                  %1053 = vst [vmem:[%s1011 + $0x500] sm:%s1003] %v1052
                  %v1054 = vld [vmem:[%s1010 + $0x738] sm:%s1003]
                  %1055 = vst [vmem:[%s1011 + $0x540] sm:%s1003] %v1054
                  %v1056 = vld [vmem:[%s1010 + $0x790] sm:%s1003]
                  %1057 = vst [vmem:[%s1011 + $0x580] sm:%s1003] %v1056
                  %v1058 = vld [vmem:[%s1010 + $0x7e8] sm:%s1003]
                  %1059 = vst [vmem:[%s1011 + $0x5c0] sm:%s1003] %v1058
                  %v1060 = vld [vmem:[%s1010 + $0x840] sm:%s1003]
                  %1061 = vst [vmem:[%s1011 + $0x600] sm:%s1003] %v1060
                  %v1062 = vld [vmem:[%s1010 + $0x898] sm:%s1003]
                  %1063 = vst [vmem:[%s1011 + $0x640] sm:%s1003] %v1062
                  %v1064 = vld [vmem:[%s1010 + $0x8f0] sm:%s1003]
                  %1065 = vst [vmem:[%s1011 + $0x680] sm:%s1003] %v1064
                  %v1066 = vld [vmem:[%s1010 + $0x948] sm:%s1003]
                  %1067 = vst [vmem:[%s1011 + $0x6c0] sm:%s1003] %v1066
                  %v1068 = vld [vmem:[%s1010 + $0x9a0] sm:%s1003]
                  %1069 = vst [vmem:[%s1011 + $0x700] sm:%s1003] %v1068
                  %v1070 = vld [vmem:[%s1010 + $0x9f8] sm:%s1003]
                  %1071 = vst [vmem:[%s1011 + $0x740] sm:%s1003] %v1070
                  %v1072 = vld [vmem:[%s1010 + $0xa50] sm:%s1003]
                  %1073 = vst [vmem:[%s1011 + $0x780] sm:%s1003] %v1072
                  %v1074 = vld [vmem:[%s1010 + $0xaa8] sm:%s1003]
                  %1075 = vst [vmem:[%s1011 + $0x7c0] sm:%s1003] %v1074
                $region112: #{tpu_custom_call.1} parent=92 // loop_footer
                  %s1009 = sadd.s32 1, %s1005
                $region113: #{tpu_custom_call.1} parent=92 // loop_footer_branch
                  %1004 = sbr.rel target = $region109
                $region114: #{tpu_custom_call.1} parent=92 // loop_exit
                  _
              $region93: #{tpu_custom_call.1} parent=59 // pred_fallthru
                _
            $region60: #{tpu_custom_call.1} parent=55 // pred_fallthru
              _
            // Predicated region
            $region61: #{tpu_custom_call.1} parent=55 // pred_check
              %p434 = pneg %p430
            $region62: #{tpu_custom_call.1} parent=55 // pred_check_branch
              %436 = sbr.rel (%p434) target = $region64
            $region63: #{tpu_custom_call.1} parent=55 // pred_region
              %s437 = sshll.u32 1, %s426
              %s438 = ssub.s32 %s437, 1
              loop: start=0, step=1, limit=1
              $region65: #{tpu_custom_call.1} parent=63 // loop_pre_header
                _
              $region66: #{tpu_custom_call.1} parent=63 // loop_header
                %s440 = sphi 0, %s444
                %p441 = scmp.ge.s32.totalorder %s440, 1
                %s445 = sphi %s425, %s425
                %s446 = sphi %s413, %s413
              $region67: #{tpu_custom_call.1} parent=63 // loop_header_branch
                %443 = sbr.rel (%p441) target = $region71
              $region68: #{tpu_custom_call.1} parent=63 // loop_body
                %v447 = vld [vmem:[%s445] sm:%s438]
                %448 = vst [vmem:[%s446] sm:%s438] %v447
                %v449 = vld [vmem:[%s445 + $0x58] sm:%s438]
                %450 = vst [vmem:[%s446 + $0x40] sm:%s438] %v449
                %v451 = vld [vmem:[%s445 + $0xb0] sm:%s438]
                %452 = vst [vmem:[%s446 + $0x80] sm:%s438] %v451
                %v453 = vld [vmem:[%s445 + $0x108] sm:%s438]
                %454 = vst [vmem:[%s446 + $0xc0] sm:%s438] %v453
                %v455 = vld [vmem:[%s445 + $0x160] sm:%s438]
                %456 = vst [vmem:[%s446 + $0x100] sm:%s438] %v455
                %v457 = vld [vmem:[%s445 + $0x1b8] sm:%s438]
                %458 = vst [vmem:[%s446 + $0x140] sm:%s438] %v457
                %v459 = vld [vmem:[%s445 + $0x210] sm:%s438]
                %460 = vst [vmem:[%s446 + $0x180] sm:%s438] %v459
                %v461 = vld [vmem:[%s445 + $0x268] sm:%s438]
                %462 = vst [vmem:[%s446 + $0x1c0] sm:%s438] %v461
                %v463 = vld [vmem:[%s445 + $0x2c0] sm:%s438]
                %464 = vst [vmem:[%s446 + $0x200] sm:%s438] %v463
                %v465 = vld [vmem:[%s445 + $0x318] sm:%s438]
                %466 = vst [vmem:[%s446 + $0x240] sm:%s438] %v465
                %v467 = vld [vmem:[%s445 + $0x370] sm:%s438]
                %468 = vst [vmem:[%s446 + $0x280] sm:%s438] %v467
                %v469 = vld [vmem:[%s445 + $0x3c8] sm:%s438]
                %470 = vst [vmem:[%s446 + $0x2c0] sm:%s438] %v469
                %v471 = vld [vmem:[%s445 + $0x420] sm:%s438]
                %472 = vst [vmem:[%s446 + $0x300] sm:%s438] %v471
                %v473 = vld [vmem:[%s445 + $0x478] sm:%s438]
                %474 = vst [vmem:[%s446 + $0x340] sm:%s438] %v473
                %v475 = vld [vmem:[%s445 + $0x4d0] sm:%s438]
                %476 = vst [vmem:[%s446 + $0x380] sm:%s438] %v475
                %v477 = vld [vmem:[%s445 + $0x528] sm:%s438]
                %478 = vst [vmem:[%s446 + $0x3c0] sm:%s438] %v477
                %v479 = vld [vmem:[%s445 + $0x580] sm:%s438]
                %480 = vst [vmem:[%s446 + $0x400] sm:%s438] %v479
                %v481 = vld [vmem:[%s445 + $0x5d8] sm:%s438]
                %482 = vst [vmem:[%s446 + $0x440] sm:%s438] %v481
                %v483 = vld [vmem:[%s445 + $0x630] sm:%s438]
                %484 = vst [vmem:[%s446 + $0x480] sm:%s438] %v483
                %v485 = vld [vmem:[%s445 + $0x688] sm:%s438]
                %486 = vst [vmem:[%s446 + $0x4c0] sm:%s438] %v485
                %v487 = vld [vmem:[%s445 + $0x6e0] sm:%s438]
                %488 = vst [vmem:[%s446 + $0x500] sm:%s438] %v487
                %v489 = vld [vmem:[%s445 + $0x738] sm:%s438]
                %490 = vst [vmem:[%s446 + $0x540] sm:%s438] %v489
                %v491 = vld [vmem:[%s445 + $0x790] sm:%s438]
                %492 = vst [vmem:[%s446 + $0x580] sm:%s438] %v491
                %v493 = vld [vmem:[%s445 + $0x7e8] sm:%s438]
                %494 = vst [vmem:[%s446 + $0x5c0] sm:%s438] %v493
                %v495 = vld [vmem:[%s445 + $0x840] sm:%s438]
                %496 = vst [vmem:[%s446 + $0x600] sm:%s438] %v495
                %v497 = vld [vmem:[%s445 + $0x898] sm:%s438]
                %498 = vst [vmem:[%s446 + $0x640] sm:%s438] %v497
                %v499 = vld [vmem:[%s445 + $0x8f0] sm:%s438]
                %500 = vst [vmem:[%s446 + $0x680] sm:%s438] %v499
                %v501 = vld [vmem:[%s445 + $0x948] sm:%s438]
                %502 = vst [vmem:[%s446 + $0x6c0] sm:%s438] %v501
                %v503 = vld [vmem:[%s445 + $0x9a0] sm:%s438]
                %504 = vst [vmem:[%s446 + $0x700] sm:%s438] %v503
                %v505 = vld [vmem:[%s445 + $0x9f8] sm:%s438]
                %506 = vst [vmem:[%s446 + $0x740] sm:%s438] %v505
                %v507 = vld [vmem:[%s445 + $0xa50] sm:%s438]
                %508 = vst [vmem:[%s446 + $0x780] sm:%s438] %v507
                %v509 = vld [vmem:[%s445 + $0xaa8] sm:%s438]
                %510 = vst [vmem:[%s446 + $0x7c0] sm:%s438] %v509
              $region69: #{tpu_custom_call.1} parent=63 // loop_footer
                %s444 = sadd.s32 1, %s440
              $region70: #{tpu_custom_call.1} parent=63 // loop_footer_branch
                %439 = sbr.rel target = $region66
              $region71: #{tpu_custom_call.1} parent=63 // loop_exit
                _
            $region64: #{tpu_custom_call.1} parent=55 // pred_fallthru
              _
          $region56: #{tpu_custom_call.1} parent=51 // pred_fallthru
            _
          %1076 = vnop
        $region52: #{tpu_custom_call.1} parent=47 // pred_fallthru
          _
        // Predicated region
        $region115: #{tpu_custom_call.1} parent=47 // pred_check
          %p1077 = pneg %p86
        $region116: #{tpu_custom_call.1} parent=47 // pred_check_branch
          %1079 = sbr.rel (%p1077) target = $region118
        $region117: #{tpu_custom_call.1} parent=47 // pred_region
          %p1080 = scmp.lt.s32.totalorder %s29, 1
          %s1081 = scalar_select %p1080, %s29, 1
          %s1082 = smul.addr %s1081, 64
          %s1083 = smul.addr %s1082, 8
          %s1084 = scalar_lea.vmem %s1, %s1083
        $region118: #{tpu_custom_call.1} parent=47 // pred_fallthru
          _
        // Predicated region
        $region119: #{tpu_custom_call.1} parent=47 // pred_check
          %p1085 = pneg %p112
        $region120: #{tpu_custom_call.1} parent=47 // pred_check_branch
          %1087 = sbr.rel (%p1085) target = $region122
        $region121: #{tpu_custom_call.1} parent=47 // pred_region
          %p1088 = scmp.lt.s32.totalorder %s29, 1
          %s1089 = scalar_select %p1088, %s29, 1
          %s1090 = smul.addr %s1089, 32
          %s1091 = smul.addr %s1090, 8
          %s1092 = scalar_lea.vmem %s2, %s1091
        $region122: #{tpu_custom_call.1} parent=47 // pred_fallthru
          _
        // Predicated region
        $region123: #{tpu_custom_call.1} parent=47 // pred_check
          %p1093 = pneg %p138
        $region124: #{tpu_custom_call.1} parent=47 // pred_check_branch
          %1095 = sbr.rel (%p1093) target = $region126
        $region125: #{tpu_custom_call.1} parent=47 // pred_region
          %p1096 = scmp.lt.s32.totalorder %s29, 1
          %s1097 = scalar_select %p1096, %s29, 1
          %s1098 = smul.addr %s1097, 32
          %s1099 = smul.addr %s1098, 8
          %s1100 = scalar_lea.vmem %s3, %s1099
        $region126: #{tpu_custom_call.1} parent=47 // pred_fallthru
          _
        // Predicated region
        $region127: #{tpu_custom_call.1} parent=47 // pred_check
          %p1101 = pneg %p164
        $region128: #{tpu_custom_call.1} parent=47 // pred_check_branch
          %1103 = sbr.rel (%p1101) target = $region130
        $region129: #{tpu_custom_call.1} parent=47 // pred_region
          %p1104 = scmp.lt.s32.totalorder %s29, 1
          %s1105 = scalar_select %p1104, %s29, 1
          %s1106 = scalar_lea.vmem %s4, %s1105
        $region130: #{tpu_custom_call.1} parent=47 // pred_fallthru
          _
      $region48: #{tpu_custom_call.1} parent=5 // pred_fallthru
        _
      %p1107 = scmp.le.s32.totalorder 1, %s22
      %p1108 = scmp.lt.s32.totalorder %s22, 5
      %p1109 = pnand %p1107, %p1108
      %p1110 = pneg %p1109
      // Predicated region
      $region131: #{tpu_custom_call.1} parent=5 // pred_check
        _
      $region132: #{tpu_custom_call.1} parent=5 // pred_check_branch
        %1112 = sbr.rel (%p1109) target = $region134
      $region133: #{tpu_custom_call.1} parent=5 // pred_region
        %s1113 = ssub.s32 %s22, 1
        %s1114 = sand.u32 %s53, 1
        %s1115 = sand.u32 %s53, 1
        %s1116 = smul.addr %s1115, 2048
        %s1117 = scalar_lea.vmem [#allocation3], %s1116
        // Predicated region
        $region135: #{tpu_custom_call.1} parent=133 // pred_check
          %p1118 = pneg %p66
        $region136: #{tpu_custom_call.1} parent=133 // pred_check_branch
          %1120 = sbr.rel (%p1118) target = $region138
        $region137: #{tpu_custom_call.1} parent=133 // pred_region
          _
        $region138: #{tpu_custom_call.1} parent=133 // pred_fallthru
          _
        %s1121 = sand.u32 %s53, 1
        %s1122 = sand.u32 %s53, 1
        %s1123 = smul.addr %s1122, 2048
        %s1124 = scalar_lea.vmem [#allocation3], %s1123
        %p1125 = pneg %p66
        %p1126 = pneg %p63
        %p1127 = scmp.lt.s32.totalorder %s31, 1
        %s1128 = scalar_select %p1127, %s31, 1
        %s1129 = smul.addr %s1128, 64
        %s1130 = smul.addr %s1129, 8
        %s1131 = scalar_lea.vmem %s1, %s1130
        %p1132 = pneg %p92
        %p1133 = pneg %p89
        %p1134 = scmp.lt.s32.totalorder %s31, 1
        %s1135 = scalar_select %p1134, %s31, 1
        %s1136 = smul.addr %s1135, 32
        %s1137 = smul.addr %s1136, 8
        %s1138 = scalar_lea.vmem %s2, %s1137
        %p1139 = pneg %p118
        %p1140 = pneg %p115
        %p1141 = scmp.lt.s32.totalorder %s31, 1
        %s1142 = scalar_select %p1141, %s31, 1
        %s1143 = smul.addr %s1142, 32
        %s1144 = smul.addr %s1143, 8
        %s1145 = scalar_lea.vmem %s3, %s1144
        %p1146 = pneg %p144
        %p1147 = pneg %p141
        %p1148 = scmp.lt.s32.totalorder %s31, 1
        %s1149 = scalar_select %p1148, %s31, 1
        %s1150 = scalar_lea.vmem %s4, %s1149
        %p1151 = pneg %p170
        %p1152 = pneg %p167
        %p1153 = pneg %p191
        %p1154 = pneg %p188
        %p1155 = pneg %p212
        %p1156 = pneg %p209
        %p1157 = pneg %p233
        %p1158 = pneg %p230
        %p1159 = pneg %p254
        %p1160 = pneg %p251
        %p1161 = pneg %p275
        %p1162 = pneg %p272
        %p1163 = pneg %p296
        %p1164 = pneg %p293
        %p1165 = pneg %p317
        %p1166 = pneg %p314
        %p1167 = pneg %p338
        %p1168 = pneg %p335
        %p1169 = pneg %p364
        %p1170 = pneg %p361
        %s1171 = sand.u32 %s351, 1
        %s1172 = scalar_lea.sflag [#allocation5], %s1171
        %s1173 = sand.u32 %s351, 1
        %s1174 = smul.addr %s1173, 2
        %s1175 = scalar_lea.vmem [#allocation4], %s1174
        %p1176 = scmp.lt.s32.totalorder %s32, 1
        %s1177 = scalar_select %p1176, %s32, 1
        %s1178 = smul.u32 8, %s1177
        %s1179 = ssub.s32 11, %s1178
        %p1180 = scmp.lt.s32.totalorder %s1179, 8
        %s1181 = scalar_select %p1180, %s1179, 8
        %s1182 = smul.u32 4096, %s1181
        %p1183 = scmp.lt.s32.totalorder %s31, 1
        %s1184 = scalar_select %p1183, %s31, 1
        %s1185 = smul.addr %s1184, 64
        %s1186 = smul.addr %s1185, 8
        %s1187 = scalar_lea.vmem %s1, %s1186
        %p1188 = scmp.lt.s32.totalorder %s31, 1
        %s1189 = scalar_select %p1188, %s31, 1
        %s1190 = smul.addr %s1189, 32
        %s1191 = smul.addr %s1190, 8
        %s1192 = scalar_lea.vmem %s2, %s1191
        %p1193 = scmp.lt.s32.totalorder %s31, 1
        %s1194 = scalar_select %p1193, %s31, 1
        %s1195 = smul.addr %s1194, 32
        %s1196 = smul.addr %s1195, 8
        %s1197 = scalar_lea.vmem %s3, %s1196
        %p1198 = scmp.lt.s32.totalorder %s31, 1
        %s1199 = scalar_select %p1198, %s31, 1
        %s1200 = scalar_lea.vmem %s4, %s1199
        %p1201 = scmp.eq.s32.totalorder %s32, 0
        // Predicated region
        $region139: #{tpu_custom_call.1} parent=133 // pred_check
          %p1202 = pneg %p1201
        $region140: #{tpu_custom_call.1} parent=133 // pred_check_branch
          %1204 = sbr.rel (%p1202) target = $region142
        $region141: #{tpu_custom_call.1} parent=133 // pred_region
          %1205 = vst [vmem:[#allocation2] sm:$0xff] 0.0
          %1206 = vst [vmem:[#allocation2 + $0x8] sm:$0xff] 0.0
          %1207 = vst [vmem:[#allocation2 + $0x10] sm:$0xff] 0.0
          %1208 = vst [vmem:[#allocation2 + $0x18] sm:$0xff] 0.0
          %1209 = vst [vmem:[#allocation2 + $0x20] sm:$0xff] 0.0
          %1210 = vst [vmem:[#allocation2 + $0x28] sm:$0xff] 0.0
          %1211 = vst [vmem:[#allocation2 + $0x30] sm:$0xff] 0.0
          %1212 = vst [vmem:[#allocation2 + $0x38] sm:$0xff] 0.0
          %1213 = vst [vmem:[#allocation2 + $0x40] sm:$0xff] 0.0
          %1214 = vst [vmem:[#allocation2 + $0x48] sm:$0xff] 0.0
          %1215 = vst [vmem:[#allocation2 + $0x50] sm:$0xff] 0.0
          %1216 = vst [vmem:[#allocation2 + $0x58] sm:$0xff] 0.0
          %1217 = vst [vmem:[#allocation2 + $0x60] sm:$0xff] 0.0
          %1218 = vst [vmem:[#allocation2 + $0x68] sm:$0xff] 0.0
          %1219 = vst [vmem:[#allocation2 + $0x70] sm:$0xff] 0.0
          %1220 = vst [vmem:[#allocation2 + $0x78] sm:$0xff] 0.0
          %1221 = vst [vmem:[#allocation2 + $0x80] sm:$0xff] 0.0
          %1222 = vst [vmem:[#allocation2 + $0x88] sm:$0xff] 0.0
          %1223 = vst [vmem:[#allocation2 + $0x90] sm:$0xff] 0.0
          %1224 = vst [vmem:[#allocation2 + $0x98] sm:$0xff] 0.0
          %1225 = vst [vmem:[#allocation2 + $0xa0] sm:$0xff] 0.0
          %1226 = vst [vmem:[#allocation2 + $0xa8] sm:$0xff] 0.0
          %1227 = vst [vmem:[#allocation2 + $0xb0] sm:$0xff] 0.0
          %1228 = vst [vmem:[#allocation2 + $0xb8] sm:$0xff] 0.0
          %1229 = vst [vmem:[#allocation2 + $0xc0] sm:$0xff] 0.0
          %1230 = vst [vmem:[#allocation2 + $0xc8] sm:$0xff] 0.0
          %1231 = vst [vmem:[#allocation2 + $0xd0] sm:$0xff] 0.0
          %1232 = vst [vmem:[#allocation2 + $0xd8] sm:$0xff] 0.0
          %1233 = vst [vmem:[#allocation2 + $0xe0] sm:$0xff] 0.0
          %1234 = vst [vmem:[#allocation2 + $0xe8] sm:$0xff] 0.0
          %1235 = vst [vmem:[#allocation2 + $0xf0] sm:$0xff] 0.0
          %1236 = vst [vmem:[#allocation2 + $0xf8] sm:$0xff] 0.0
        $region142: #{tpu_custom_call.1} parent=133 // pred_fallthru
          _
        %p1237 = scmp.lt.s32.totalorder %s32, 1
        // Predicated region
        $region143: #{tpu_custom_call.1} parent=133 // pred_check
          %p1238 = pneg %p1237
        $region144: #{tpu_custom_call.1} parent=133 // pred_check_branch
          %1240 = sbr.rel (%p1238) target = $region146
        $region145: #{tpu_custom_call.1} parent=133 // pred_region
          %v1241 = vld [vmem:[#allocation2] sm:$0xff]
          %v1242 = vld [vmem:[#allocation2 + $0x8] sm:$0xff]
          %v1243 = vld [vmem:[#allocation2 + $0x10] sm:$0xff]
          %v1244 = vld [vmem:[#allocation2 + $0x18] sm:$0xff]
          %v1245 = vld [vmem:[#allocation2 + $0x20] sm:$0xff]
          %v1246 = vld [vmem:[#allocation2 + $0x28] sm:$0xff]
          %v1247 = vld [vmem:[#allocation2 + $0x30] sm:$0xff]
          %v1248 = vld [vmem:[#allocation2 + $0x38] sm:$0xff]
          %v1249 = vld [vmem:[#allocation2 + $0x40] sm:$0xff]
          %v1250 = vld [vmem:[#allocation2 + $0x48] sm:$0xff]
          %v1251 = vld [vmem:[#allocation2 + $0x50] sm:$0xff]
          %v1252 = vld [vmem:[#allocation2 + $0x58] sm:$0xff]
          %v1253 = vld [vmem:[#allocation2 + $0x60] sm:$0xff]
          %v1254 = vld [vmem:[#allocation2 + $0x68] sm:$0xff]
          %v1255 = vld [vmem:[#allocation2 + $0x70] sm:$0xff]
          %v1256 = vld [vmem:[#allocation2 + $0x78] sm:$0xff]
          %v1257 = vld [vmem:[#allocation2 + $0x80] sm:$0xff]
          %v1258 = vld [vmem:[#allocation2 + $0x88] sm:$0xff]
          %v1259 = vld [vmem:[#allocation2 + $0x90] sm:$0xff]
          %v1260 = vld [vmem:[#allocation2 + $0x98] sm:$0xff]
          %v1261 = vld [vmem:[#allocation2 + $0xa0] sm:$0xff]
          %v1262 = vld [vmem:[#allocation2 + $0xa8] sm:$0xff]
          %v1263 = vld [vmem:[#allocation2 + $0xb0] sm:$0xff]
          %v1264 = vld [vmem:[#allocation2 + $0xb8] sm:$0xff]
          %v1265 = vld [vmem:[#allocation2 + $0xc0] sm:$0xff]
          %v1266 = vld [vmem:[#allocation2 + $0xc8] sm:$0xff]
          %v1267 = vld [vmem:[#allocation2 + $0xd0] sm:$0xff]
          %v1268 = vld [vmem:[#allocation2 + $0xd8] sm:$0xff]
          %v1269 = vld [vmem:[#allocation2 + $0xe0] sm:$0xff]
          %v1270 = vld [vmem:[#allocation2 + $0xe8] sm:$0xff]
          %v1271 = vld [vmem:[#allocation2 + $0xf0] sm:$0xff]
          %v1272 = vld [vmem:[#allocation2 + $0xf8] sm:$0xff]
          %v1273 = vld [vmem:[%s1117] sm:$0xff]
          %v1274 = vld [vmem:[%s1117 + $0x40] sm:$0xff]
          %v1275 = vld [vmem:[%s1117 + $0x80] sm:$0xff]
          %v1276 = vld [vmem:[%s1117 + $0xc0] sm:$0xff]
          %v1277 = vld [vmem:[%s1117 + $0x100] sm:$0xff]
          %v1278 = vld [vmem:[%s1117 + $0x140] sm:$0xff]
          %v1279 = vld [vmem:[%s1117 + $0x180] sm:$0xff]
          %v1280 = vld [vmem:[%s1117 + $0x1c0] sm:$0xff]
          %v1281 = vld [vmem:[%s1117 + $0x200] sm:$0xff]
          %v1282 = vld [vmem:[%s1117 + $0x240] sm:$0xff]
          %v1283 = vld [vmem:[%s1117 + $0x280] sm:$0xff]
          %v1284 = vld [vmem:[%s1117 + $0x2c0] sm:$0xff]
          %v1285 = vld [vmem:[%s1117 + $0x300] sm:$0xff]
          %v1286 = vld [vmem:[%s1117 + $0x340] sm:$0xff]
          %v1287 = vld [vmem:[%s1117 + $0x380] sm:$0xff]
          %v1288 = vld [vmem:[%s1117 + $0x3c0] sm:$0xff]
          %v1289 = vld [vmem:[%s1117 + $0x400] sm:$0xff]
          %v1290 = vld [vmem:[%s1117 + $0x440] sm:$0xff]
          %v1291 = vld [vmem:[%s1117 + $0x480] sm:$0xff]
          %v1292 = vld [vmem:[%s1117 + $0x4c0] sm:$0xff]
          %v1293 = vld [vmem:[%s1117 + $0x500] sm:$0xff]
          %v1294 = vld [vmem:[%s1117 + $0x540] sm:$0xff]
          %v1295 = vld [vmem:[%s1117 + $0x580] sm:$0xff]
          %v1296 = vld [vmem:[%s1117 + $0x5c0] sm:$0xff]
          %v1297 = vld [vmem:[%s1117 + $0x600] sm:$0xff]
          %v1298 = vld [vmem:[%s1117 + $0x640] sm:$0xff]
          %v1299 = vld [vmem:[%s1117 + $0x680] sm:$0xff]
          %v1300 = vld [vmem:[%s1117 + $0x6c0] sm:$0xff]
          %v1301 = vld [vmem:[%s1117 + $0x700] sm:$0xff]
          %v1302 = vld [vmem:[%s1117 + $0x740] sm:$0xff]
          %v1303 = vld [vmem:[%s1117 + $0x780] sm:$0xff]
          %v1304 = vld [vmem:[%s1117 + $0x7c0] sm:$0xff]
          %v1305 = vadd.f32 %v1241, %v1273
          %v1306 = vadd.f32 %v1242, %v1274
          %v1307 = vadd.f32 %v1243, %v1275
          %v1308 = vadd.f32 %v1244, %v1276
          %v1309 = vadd.f32 %v1245, %v1277
          %v1310 = vadd.f32 %v1246, %v1278
          %v1311 = vadd.f32 %v1247, %v1279
          %v1312 = vadd.f32 %v1248, %v1280
          %v1313 = vadd.f32 %v1249, %v1281
          %v1314 = vadd.f32 %v1250, %v1282
          %v1315 = vadd.f32 %v1251, %v1283
          %v1316 = vadd.f32 %v1252, %v1284
          %v1317 = vadd.f32 %v1253, %v1285
          %v1318 = vadd.f32 %v1254, %v1286
          %v1319 = vadd.f32 %v1255, %v1287
          %v1320 = vadd.f32 %v1256, %v1288
          %v1321 = vadd.f32 %v1257, %v1289
          %v1322 = vadd.f32 %v1258, %v1290
          %v1323 = vadd.f32 %v1259, %v1291
          %v1324 = vadd.f32 %v1260, %v1292
          %v1325 = vadd.f32 %v1261, %v1293
          %v1326 = vadd.f32 %v1262, %v1294
          %v1327 = vadd.f32 %v1263, %v1295
          %v1328 = vadd.f32 %v1264, %v1296
          %v1329 = vadd.f32 %v1265, %v1297
          %v1330 = vadd.f32 %v1266, %v1298
          %v1331 = vadd.f32 %v1267, %v1299
          %v1332 = vadd.f32 %v1268, %v1300
          %v1333 = vadd.f32 %v1269, %v1301
          %v1334 = vadd.f32 %v1270, %v1302
          %v1335 = vadd.f32 %v1271, %v1303
          %v1336 = vadd.f32 %v1272, %v1304
          %1337 = vst [vmem:[#allocation2] sm:$0xff] %v1305
          %1338 = vst [vmem:[#allocation2 + $0x8] sm:$0xff] %v1306
          %1339 = vst [vmem:[#allocation2 + $0x10] sm:$0xff] %v1307
          %1340 = vst [vmem:[#allocation2 + $0x18] sm:$0xff] %v1308
          %1341 = vst [vmem:[#allocation2 + $0x20] sm:$0xff] %v1309
          %1342 = vst [vmem:[#allocation2 + $0x28] sm:$0xff] %v1310
          %1343 = vst [vmem:[#allocation2 + $0x30] sm:$0xff] %v1311
          %1344 = vst [vmem:[#allocation2 + $0x38] sm:$0xff] %v1312
          %1345 = vst [vmem:[#allocation2 + $0x40] sm:$0xff] %v1313
          %1346 = vst [vmem:[#allocation2 + $0x48] sm:$0xff] %v1314
          %1347 = vst [vmem:[#allocation2 + $0x50] sm:$0xff] %v1315
          %1348 = vst [vmem:[#allocation2 + $0x58] sm:$0xff] %v1316
          %1349 = vst [vmem:[#allocation2 + $0x60] sm:$0xff] %v1317
          %1350 = vst [vmem:[#allocation2 + $0x68] sm:$0xff] %v1318
          %1351 = vst [vmem:[#allocation2 + $0x70] sm:$0xff] %v1319
          %1352 = vst [vmem:[#allocation2 + $0x78] sm:$0xff] %v1320
          %1353 = vst [vmem:[#allocation2 + $0x80] sm:$0xff] %v1321
          %1354 = vst [vmem:[#allocation2 + $0x88] sm:$0xff] %v1322
          %1355 = vst [vmem:[#allocation2 + $0x90] sm:$0xff] %v1323
          %1356 = vst [vmem:[#allocation2 + $0x98] sm:$0xff] %v1324
          %1357 = vst [vmem:[#allocation2 + $0xa0] sm:$0xff] %v1325
          %1358 = vst [vmem:[#allocation2 + $0xa8] sm:$0xff] %v1326
          %1359 = vst [vmem:[#allocation2 + $0xb0] sm:$0xff] %v1327
          %1360 = vst [vmem:[#allocation2 + $0xb8] sm:$0xff] %v1328
          %1361 = vst [vmem:[#allocation2 + $0xc0] sm:$0xff] %v1329
          %1362 = vst [vmem:[#allocation2 + $0xc8] sm:$0xff] %v1330
          %1363 = vst [vmem:[#allocation2 + $0xd0] sm:$0xff] %v1331
          %1364 = vst [vmem:[#allocation2 + $0xd8] sm:$0xff] %v1332
          %1365 = vst [vmem:[#allocation2 + $0xe0] sm:$0xff] %v1333
          %1366 = vst [vmem:[#allocation2 + $0xe8] sm:$0xff] %v1334
          %1367 = vst [vmem:[#allocation2 + $0xf0] sm:$0xff] %v1335
          %1368 = vst [vmem:[#allocation2 + $0xf8] sm:$0xff] %v1336
          %v1369 = vld [vmem:[#allocation2] sm:$0xff]
          %v1370 = vld [vmem:[#allocation2 + $0x8] sm:$0xff]
          %v1371 = vld [vmem:[#allocation2 + $0x10] sm:$0xff]
          %v1372 = vld [vmem:[#allocation2 + $0x18] sm:$0xff]
          %v1373 = vld [vmem:[#allocation2 + $0x20] sm:$0xff]
          %v1374 = vld [vmem:[#allocation2 + $0x28] sm:$0xff]
          %v1375 = vld [vmem:[#allocation2 + $0x30] sm:$0xff]
          %v1376 = vld [vmem:[#allocation2 + $0x38] sm:$0xff]
          %v1377 = vld [vmem:[#allocation2 + $0x40] sm:$0xff]
          %v1378 = vld [vmem:[#allocation2 + $0x48] sm:$0xff]
          %v1379 = vld [vmem:[#allocation2 + $0x50] sm:$0xff]
          %v1380 = vld [vmem:[#allocation2 + $0x58] sm:$0xff]
          %v1381 = vld [vmem:[#allocation2 + $0x60] sm:$0xff]
          %v1382 = vld [vmem:[#allocation2 + $0x68] sm:$0xff]
          %v1383 = vld [vmem:[#allocation2 + $0x70] sm:$0xff]
          %v1384 = vld [vmem:[#allocation2 + $0x78] sm:$0xff]
          %v1385 = vld [vmem:[#allocation2 + $0x80] sm:$0xff]
          %v1386 = vld [vmem:[#allocation2 + $0x88] sm:$0xff]
          %v1387 = vld [vmem:[#allocation2 + $0x90] sm:$0xff]
          %v1388 = vld [vmem:[#allocation2 + $0x98] sm:$0xff]
          %v1389 = vld [vmem:[#allocation2 + $0xa0] sm:$0xff]
          %v1390 = vld [vmem:[#allocation2 + $0xa8] sm:$0xff]
          %v1391 = vld [vmem:[#allocation2 + $0xb0] sm:$0xff]
          %v1392 = vld [vmem:[#allocation2 + $0xb8] sm:$0xff]
          %v1393 = vld [vmem:[#allocation2 + $0xc0] sm:$0xff]
          %v1394 = vld [vmem:[#allocation2 + $0xc8] sm:$0xff]
          %v1395 = vld [vmem:[#allocation2 + $0xd0] sm:$0xff]
          %v1396 = vld [vmem:[#allocation2 + $0xd8] sm:$0xff]
          %v1397 = vld [vmem:[#allocation2 + $0xe0] sm:$0xff]
          %v1398 = vld [vmem:[#allocation2 + $0xe8] sm:$0xff]
          %v1399 = vld [vmem:[#allocation2 + $0xf0] sm:$0xff]
          %v1400 = vld [vmem:[#allocation2 + $0xf8] sm:$0xff]
          %v1401 = vld [vmem:[%s1117 + $0x8] sm:$0xff]
          %v1402 = vld [vmem:[%s1117 + $0x48] sm:$0xff]
          %v1403 = vld [vmem:[%s1117 + $0x88] sm:$0xff]
          %v1404 = vld [vmem:[%s1117 + $0xc8] sm:$0xff]
          %v1405 = vld [vmem:[%s1117 + $0x108] sm:$0xff]
          %v1406 = vld [vmem:[%s1117 + $0x148] sm:$0xff]
          %v1407 = vld [vmem:[%s1117 + $0x188] sm:$0xff]
          %v1408 = vld [vmem:[%s1117 + $0x1c8] sm:$0xff]
          %v1409 = vld [vmem:[%s1117 + $0x208] sm:$0xff]
          %v1410 = vld [vmem:[%s1117 + $0x248] sm:$0xff]
          %v1411 = vld [vmem:[%s1117 + $0x288] sm:$0xff]
          %v1412 = vld [vmem:[%s1117 + $0x2c8] sm:$0xff]
          %v1413 = vld [vmem:[%s1117 + $0x308] sm:$0xff]
          %v1414 = vld [vmem:[%s1117 + $0x348] sm:$0xff]
          %v1415 = vld [vmem:[%s1117 + $0x388] sm:$0xff]
          %v1416 = vld [vmem:[%s1117 + $0x3c8] sm:$0xff]
          %v1417 = vld [vmem:[%s1117 + $0x408] sm:$0xff]
          %v1418 = vld [vmem:[%s1117 + $0x448] sm:$0xff]
          %v1419 = vld [vmem:[%s1117 + $0x488] sm:$0xff]
          %v1420 = vld [vmem:[%s1117 + $0x4c8] sm:$0xff]
          %v1421 = vld [vmem:[%s1117 + $0x508] sm:$0xff]
          %v1422 = vld [vmem:[%s1117 + $0x548] sm:$0xff]
          %v1423 = vld [vmem:[%s1117 + $0x588] sm:$0xff]
          %v1424 = vld [vmem:[%s1117 + $0x5c8] sm:$0xff]
          %v1425 = vld [vmem:[%s1117 + $0x608] sm:$0xff]
          %v1426 = vld [vmem:[%s1117 + $0x648] sm:$0xff]
          %v1427 = vld [vmem:[%s1117 + $0x688] sm:$0xff]
          %v1428 = vld [vmem:[%s1117 + $0x6c8] sm:$0xff]
          %v1429 = vld [vmem:[%s1117 + $0x708] sm:$0xff]
          %v1430 = vld [vmem:[%s1117 + $0x748] sm:$0xff]
          %v1431 = vld [vmem:[%s1117 + $0x788] sm:$0xff]
          %v1432 = vld [vmem:[%s1117 + $0x7c8] sm:$0xff]
          %v1433 = vadd.f32 %v1369, %v1401
          %v1434 = vadd.f32 %v1370, %v1402
          %v1435 = vadd.f32 %v1371, %v1403
          %v1436 = vadd.f32 %v1372, %v1404
          %v1437 = vadd.f32 %v1373, %v1405
          %v1438 = vadd.f32 %v1374, %v1406
          %v1439 = vadd.f32 %v1375, %v1407
          %v1440 = vadd.f32 %v1376, %v1408
          %v1441 = vadd.f32 %v1377, %v1409
          %v1442 = vadd.f32 %v1378, %v1410
          %v1443 = vadd.f32 %v1379, %v1411
          %v1444 = vadd.f32 %v1380, %v1412
          %v1445 = vadd.f32 %v1381, %v1413
          %v1446 = vadd.f32 %v1382, %v1414
          %v1447 = vadd.f32 %v1383, %v1415
          %v1448 = vadd.f32 %v1384, %v1416
          %v1449 = vadd.f32 %v1385, %v1417
          %v1450 = vadd.f32 %v1386, %v1418
          %v1451 = vadd.f32 %v1387, %v1419
          %v1452 = vadd.f32 %v1388, %v1420
          %v1453 = vadd.f32 %v1389, %v1421
          %v1454 = vadd.f32 %v1390, %v1422
          %v1455 = vadd.f32 %v1391, %v1423
          %v1456 = vadd.f32 %v1392, %v1424
          %v1457 = vadd.f32 %v1393, %v1425
          %v1458 = vadd.f32 %v1394, %v1426
          %v1459 = vadd.f32 %v1395, %v1427
          %v1460 = vadd.f32 %v1396, %v1428
          %v1461 = vadd.f32 %v1397, %v1429
          %v1462 = vadd.f32 %v1398, %v1430
          %v1463 = vadd.f32 %v1399, %v1431
          %v1464 = vadd.f32 %v1400, %v1432
          %1465 = vst [vmem:[#allocation2] sm:$0xff] %v1433
          %1466 = vst [vmem:[#allocation2 + $0x8] sm:$0xff] %v1434
          %1467 = vst [vmem:[#allocation2 + $0x10] sm:$0xff] %v1435
          %1468 = vst [vmem:[#allocation2 + $0x18] sm:$0xff] %v1436
          %1469 = vst [vmem:[#allocation2 + $0x20] sm:$0xff] %v1437
          %1470 = vst [vmem:[#allocation2 + $0x28] sm:$0xff] %v1438
          %1471 = vst [vmem:[#allocation2 + $0x30] sm:$0xff] %v1439
          %1472 = vst [vmem:[#allocation2 + $0x38] sm:$0xff] %v1440
          %1473 = vst [vmem:[#allocation2 + $0x40] sm:$0xff] %v1441
          %1474 = vst [vmem:[#allocation2 + $0x48] sm:$0xff] %v1442
          %1475 = vst [vmem:[#allocation2 + $0x50] sm:$0xff] %v1443
          %1476 = vst [vmem:[#allocation2 + $0x58] sm:$0xff] %v1444
          %1477 = vst [vmem:[#allocation2 + $0x60] sm:$0xff] %v1445
          %1478 = vst [vmem:[#allocation2 + $0x68] sm:$0xff] %v1446
          %1479 = vst [vmem:[#allocation2 + $0x70] sm:$0xff] %v1447
          %1480 = vst [vmem:[#allocation2 + $0x78] sm:$0xff] %v1448
          %1481 = vst [vmem:[#allocation2 + $0x80] sm:$0xff] %v1449
          %1482 = vst [vmem:[#allocation2 + $0x88] sm:$0xff] %v1450
          %1483 = vst [vmem:[#allocation2 + $0x90] sm:$0xff] %v1451
          %1484 = vst [vmem:[#allocation2 + $0x98] sm:$0xff] %v1452
          %1485 = vst [vmem:[#allocation2 + $0xa0] sm:$0xff] %v1453
          %1486 = vst [vmem:[#allocation2 + $0xa8] sm:$0xff] %v1454
          %1487 = vst [vmem:[#allocation2 + $0xb0] sm:$0xff] %v1455
          %1488 = vst [vmem:[#allocation2 + $0xb8] sm:$0xff] %v1456
          %1489 = vst [vmem:[#allocation2 + $0xc0] sm:$0xff] %v1457
          %1490 = vst [vmem:[#allocation2 + $0xc8] sm:$0xff] %v1458
          %1491 = vst [vmem:[#allocation2 + $0xd0] sm:$0xff] %v1459
          %1492 = vst [vmem:[#allocation2 + $0xd8] sm:$0xff] %v1460
          %1493 = vst [vmem:[#allocation2 + $0xe0] sm:$0xff] %v1461
          %1494 = vst [vmem:[#allocation2 + $0xe8] sm:$0xff] %v1462
          %1495 = vst [vmem:[#allocation2 + $0xf0] sm:$0xff] %v1463
          %1496 = vst [vmem:[#allocation2 + $0xf8] sm:$0xff] %v1464
          %v1497 = vld [vmem:[#allocation2] sm:$0xff]
          %v1498 = vld [vmem:[#allocation2 + $0x8] sm:$0xff]
          %v1499 = vld [vmem:[#allocation2 + $0x10] sm:$0xff]
          %v1500 = vld [vmem:[#allocation2 + $0x18] sm:$0xff]
          %v1501 = vld [vmem:[#allocation2 + $0x20] sm:$0xff]
          %v1502 = vld [vmem:[#allocation2 + $0x28] sm:$0xff]
          %v1503 = vld [vmem:[#allocation2 + $0x30] sm:$0xff]
          %v1504 = vld [vmem:[#allocation2 + $0x38] sm:$0xff]
          %v1505 = vld [vmem:[#allocation2 + $0x40] sm:$0xff]
          %v1506 = vld [vmem:[#allocation2 + $0x48] sm:$0xff]
          %v1507 = vld [vmem:[#allocation2 + $0x50] sm:$0xff]
          %v1508 = vld [vmem:[#allocation2 + $0x58] sm:$0xff]
          %v1509 = vld [vmem:[#allocation2 + $0x60] sm:$0xff]
          %v1510 = vld [vmem:[#allocation2 + $0x68] sm:$0xff]
          %v1511 = vld [vmem:[#allocation2 + $0x70] sm:$0xff]
          %v1512 = vld [vmem:[#allocation2 + $0x78] sm:$0xff]
          %v1513 = vld [vmem:[#allocation2 + $0x80] sm:$0xff]
          %v1514 = vld [vmem:[#allocation2 + $0x88] sm:$0xff]
          %v1515 = vld [vmem:[#allocation2 + $0x90] sm:$0xff]
          %v1516 = vld [vmem:[#allocation2 + $0x98] sm:$0xff]
          %v1517 = vld [vmem:[#allocation2 + $0xa0] sm:$0xff]
          %v1518 = vld [vmem:[#allocation2 + $0xa8] sm:$0xff]
          %v1519 = vld [vmem:[#allocation2 + $0xb0] sm:$0xff]
          %v1520 = vld [vmem:[#allocation2 + $0xb8] sm:$0xff]
          %v1521 = vld [vmem:[#allocation2 + $0xc0] sm:$0xff]
          %v1522 = vld [vmem:[#allocation2 + $0xc8] sm:$0xff]
          %v1523 = vld [vmem:[#allocation2 + $0xd0] sm:$0xff]
          %v1524 = vld [vmem:[#allocation2 + $0xd8] sm:$0xff]
          %v1525 = vld [vmem:[#allocation2 + $0xe0] sm:$0xff]
          %v1526 = vld [vmem:[#allocation2 + $0xe8] sm:$0xff]
          %v1527 = vld [vmem:[#allocation2 + $0xf0] sm:$0xff]
          %v1528 = vld [vmem:[#allocation2 + $0xf8] sm:$0xff]
          %v1529 = vld [vmem:[%s1117 + $0x10] sm:$0xff]
          %v1530 = vld [vmem:[%s1117 + $0x50] sm:$0xff]
          %v1531 = vld [vmem:[%s1117 + $0x90] sm:$0xff]
          %v1532 = vld [vmem:[%s1117 + $0xd0] sm:$0xff]
          %v1533 = vld [vmem:[%s1117 + $0x110] sm:$0xff]
          %v1534 = vld [vmem:[%s1117 + $0x150] sm:$0xff]
          %v1535 = vld [vmem:[%s1117 + $0x190] sm:$0xff]
          %v1536 = vld [vmem:[%s1117 + $0x1d0] sm:$0xff]
          %v1537 = vld [vmem:[%s1117 + $0x210] sm:$0xff]
          %v1538 = vld [vmem:[%s1117 + $0x250] sm:$0xff]
          %v1539 = vld [vmem:[%s1117 + $0x290] sm:$0xff]
          %v1540 = vld [vmem:[%s1117 + $0x2d0] sm:$0xff]
          %v1541 = vld [vmem:[%s1117 + $0x310] sm:$0xff]
          %v1542 = vld [vmem:[%s1117 + $0x350] sm:$0xff]
          %v1543 = vld [vmem:[%s1117 + $0x390] sm:$0xff]
          %v1544 = vld [vmem:[%s1117 + $0x3d0] sm:$0xff]
          %v1545 = vld [vmem:[%s1117 + $0x410] sm:$0xff]
          %v1546 = vld [vmem:[%s1117 + $0x450] sm:$0xff]
          %v1547 = vld [vmem:[%s1117 + $0x490] sm:$0xff]
          %v1548 = vld [vmem:[%s1117 + $0x4d0] sm:$0xff]
          %v1549 = vld [vmem:[%s1117 + $0x510] sm:$0xff]
          %v1550 = vld [vmem:[%s1117 + $0x550] sm:$0xff]
          %v1551 = vld [vmem:[%s1117 + $0x590] sm:$0xff]
          %v1552 = vld [vmem:[%s1117 + $0x5d0] sm:$0xff]
          %v1553 = vld [vmem:[%s1117 + $0x610] sm:$0xff]
          %v1554 = vld [vmem:[%s1117 + $0x650] sm:$0xff]
          %v1555 = vld [vmem:[%s1117 + $0x690] sm:$0xff]
          %v1556 = vld [vmem:[%s1117 + $0x6d0] sm:$0xff]
          %v1557 = vld [vmem:[%s1117 + $0x710] sm:$0xff]
          %v1558 = vld [vmem:[%s1117 + $0x750] sm:$0xff]
          %v1559 = vld [vmem:[%s1117 + $0x790] sm:$0xff]
          %v1560 = vld [vmem:[%s1117 + $0x7d0] sm:$0xff]
          %v1561 = vadd.f32 %v1497, %v1529
          %v1562 = vadd.f32 %v1498, %v1530
          %v1563 = vadd.f32 %v1499, %v1531
          %v1564 = vadd.f32 %v1500, %v1532
          %v1565 = vadd.f32 %v1501, %v1533
          %v1566 = vadd.f32 %v1502, %v1534
          %v1567 = vadd.f32 %v1503, %v1535
          %v1568 = vadd.f32 %v1504, %v1536
          %v1569 = vadd.f32 %v1505, %v1537
          %v1570 = vadd.f32 %v1506, %v1538
          %v1571 = vadd.f32 %v1507, %v1539
          %v1572 = vadd.f32 %v1508, %v1540
          %v1573 = vadd.f32 %v1509, %v1541
          %v1574 = vadd.f32 %v1510, %v1542
          %v1575 = vadd.f32 %v1511, %v1543
          %v1576 = vadd.f32 %v1512, %v1544
          %v1577 = vadd.f32 %v1513, %v1545
          %v1578 = vadd.f32 %v1514, %v1546
          %v1579 = vadd.f32 %v1515, %v1547
          %v1580 = vadd.f32 %v1516, %v1548
          %v1581 = vadd.f32 %v1517, %v1549
          %v1582 = vadd.f32 %v1518, %v1550
          %v1583 = vadd.f32 %v1519, %v1551
          %v1584 = vadd.f32 %v1520, %v1552
          %v1585 = vadd.f32 %v1521, %v1553
          %v1586 = vadd.f32 %v1522, %v1554
          %v1587 = vadd.f32 %v1523, %v1555
          %v1588 = vadd.f32 %v1524, %v1556
          %v1589 = vadd.f32 %v1525, %v1557
          %v1590 = vadd.f32 %v1526, %v1558
          %v1591 = vadd.f32 %v1527, %v1559
          %v1592 = vadd.f32 %v1528, %v1560
          %1593 = vst [vmem:[#allocation2] sm:$0xff] %v1561
          %1594 = vst [vmem:[#allocation2 + $0x8] sm:$0xff] %v1562
          %1595 = vst [vmem:[#allocation2 + $0x10] sm:$0xff] %v1563
          %1596 = vst [vmem:[#allocation2 + $0x18] sm:$0xff] %v1564
          %1597 = vst [vmem:[#allocation2 + $0x20] sm:$0xff] %v1565
          %1598 = vst [vmem:[#allocation2 + $0x28] sm:$0xff] %v1566
          %1599 = vst [vmem:[#allocation2 + $0x30] sm:$0xff] %v1567
          %1600 = vst [vmem:[#allocation2 + $0x38] sm:$0xff] %v1568
          %1601 = vst [vmem:[#allocation2 + $0x40] sm:$0xff] %v1569
          %1602 = vst [vmem:[#allocation2 + $0x48] sm:$0xff] %v1570
          %1603 = vst [vmem:[#allocation2 + $0x50] sm:$0xff] %v1571
          %1604 = vst [vmem:[#allocation2 + $0x58] sm:$0xff] %v1572
          %1605 = vst [vmem:[#allocation2 + $0x60] sm:$0xff] %v1573
          %1606 = vst [vmem:[#allocation2 + $0x68] sm:$0xff] %v1574
          %1607 = vst [vmem:[#allocation2 + $0x70] sm:$0xff] %v1575
          %1608 = vst [vmem:[#allocation2 + $0x78] sm:$0xff] %v1576
          %1609 = vst [vmem:[#allocation2 + $0x80] sm:$0xff] %v1577
          %1610 = vst [vmem:[#allocation2 + $0x88] sm:$0xff] %v1578
          %1611 = vst [vmem:[#allocation2 + $0x90] sm:$0xff] %v1579
          %1612 = vst [vmem:[#allocation2 + $0x98] sm:$0xff] %v1580
          %1613 = vst [vmem:[#allocation2 + $0xa0] sm:$0xff] %v1581
          %1614 = vst [vmem:[#allocation2 + $0xa8] sm:$0xff] %v1582
          %1615 = vst [vmem:[#allocation2 + $0xb0] sm:$0xff] %v1583
          %1616 = vst [vmem:[#allocation2 + $0xb8] sm:$0xff] %v1584
          %1617 = vst [vmem:[#allocation2 + $0xc0] sm:$0xff] %v1585
          %1618 = vst [vmem:[#allocation2 + $0xc8] sm:$0xff] %v1586
          %1619 = vst [vmem:[#allocation2 + $0xd0] sm:$0xff] %v1587
          %1620 = vst [vmem:[#allocation2 + $0xd8] sm:$0xff] %v1588
          %1621 = vst [vmem:[#allocation2 + $0xe0] sm:$0xff] %v1589
          %1622 = vst [vmem:[#allocation2 + $0xe8] sm:$0xff] %v1590
          %1623 = vst [vmem:[#allocation2 + $0xf0] sm:$0xff] %v1591
          %1624 = vst [vmem:[#allocation2 + $0xf8] sm:$0xff] %v1592
          %v1625 = vld [vmem:[#allocation2] sm:$0xff]
          %v1626 = vld [vmem:[#allocation2 + $0x8] sm:$0xff]
          %v1627 = vld [vmem:[#allocation2 + $0x10] sm:$0xff]
          %v1628 = vld [vmem:[#allocation2 + $0x18] sm:$0xff]
          %v1629 = vld [vmem:[#allocation2 + $0x20] sm:$0xff]
          %v1630 = vld [vmem:[#allocation2 + $0x28] sm:$0xff]
          %v1631 = vld [vmem:[#allocation2 + $0x30] sm:$0xff]
          %v1632 = vld [vmem:[#allocation2 + $0x38] sm:$0xff]
          %v1633 = vld [vmem:[#allocation2 + $0x40] sm:$0xff]
          %v1634 = vld [vmem:[#allocation2 + $0x48] sm:$0xff]
          %v1635 = vld [vmem:[#allocation2 + $0x50] sm:$0xff]
          %v1636 = vld [vmem:[#allocation2 + $0x58] sm:$0xff]
          %v1637 = vld [vmem:[#allocation2 + $0x60] sm:$0xff]
          %v1638 = vld [vmem:[#allocation2 + $0x68] sm:$0xff]
          %v1639 = vld [vmem:[#allocation2 + $0x70] sm:$0xff]
          %v1640 = vld [vmem:[#allocation2 + $0x78] sm:$0xff]
          %v1641 = vld [vmem:[#allocation2 + $0x80] sm:$0xff]
          %v1642 = vld [vmem:[#allocation2 + $0x88] sm:$0xff]
          %v1643 = vld [vmem:[#allocation2 + $0x90] sm:$0xff]
          %v1644 = vld [vmem:[#allocation2 + $0x98] sm:$0xff]
          %v1645 = vld [vmem:[#allocation2 + $0xa0] sm:$0xff]
          %v1646 = vld [vmem:[#allocation2 + $0xa8] sm:$0xff]
          %v1647 = vld [vmem:[#allocation2 + $0xb0] sm:$0xff]
          %v1648 = vld [vmem:[#allocation2 + $0xb8] sm:$0xff]
          %v1649 = vld [vmem:[#allocation2 + $0xc0] sm:$0xff]
          %v1650 = vld [vmem:[#allocation2 + $0xc8] sm:$0xff]
          %v1651 = vld [vmem:[#allocation2 + $0xd0] sm:$0xff]
          %v1652 = vld [vmem:[#allocation2 + $0xd8] sm:$0xff]
          %v1653 = vld [vmem:[#allocation2 + $0xe0] sm:$0xff]
          %v1654 = vld [vmem:[#allocation2 + $0xe8] sm:$0xff]
          %v1655 = vld [vmem:[#allocation2 + $0xf0] sm:$0xff]
          %v1656 = vld [vmem:[#allocation2 + $0xf8] sm:$0xff]
          %v1657 = vld [vmem:[%s1117 + $0x18] sm:$0xff]
          %v1658 = vld [vmem:[%s1117 + $0x58] sm:$0xff]
          %v1659 = vld [vmem:[%s1117 + $0x98] sm:$0xff]
          %v1660 = vld [vmem:[%s1117 + $0xd8] sm:$0xff]
          %v1661 = vld [vmem:[%s1117 + $0x118] sm:$0xff]
          %v1662 = vld [vmem:[%s1117 + $0x158] sm:$0xff]
          %v1663 = vld [vmem:[%s1117 + $0x198] sm:$0xff]
          %v1664 = vld [vmem:[%s1117 + $0x1d8] sm:$0xff]
          %v1665 = vld [vmem:[%s1117 + $0x218] sm:$0xff]
          %v1666 = vld [vmem:[%s1117 + $0x258] sm:$0xff]
          %v1667 = vld [vmem:[%s1117 + $0x298] sm:$0xff]
          %v1668 = vld [vmem:[%s1117 + $0x2d8] sm:$0xff]
          %v1669 = vld [vmem:[%s1117 + $0x318] sm:$0xff]
          %v1670 = vld [vmem:[%s1117 + $0x358] sm:$0xff]
          %v1671 = vld [vmem:[%s1117 + $0x398] sm:$0xff]
          %v1672 = vld [vmem:[%s1117 + $0x3d8] sm:$0xff]
          %v1673 = vld [vmem:[%s1117 + $0x418] sm:$0xff]
          %v1674 = vld [vmem:[%s1117 + $0x458] sm:$0xff]
          %v1675 = vld [vmem:[%s1117 + $0x498] sm:$0xff]
          %v1676 = vld [vmem:[%s1117 + $0x4d8] sm:$0xff]
          %v1677 = vld [vmem:[%s1117 + $0x518] sm:$0xff]
          %v1678 = vld [vmem:[%s1117 + $0x558] sm:$0xff]
          %v1679 = vld [vmem:[%s1117 + $0x598] sm:$0xff]
          %v1680 = vld [vmem:[%s1117 + $0x5d8] sm:$0xff]
          %v1681 = vld [vmem:[%s1117 + $0x618] sm:$0xff]
          %v1682 = vld [vmem:[%s1117 + $0x658] sm:$0xff]
          %v1683 = vld [vmem:[%s1117 + $0x698] sm:$0xff]
          %v1684 = vld [vmem:[%s1117 + $0x6d8] sm:$0xff]
          %v1685 = vld [vmem:[%s1117 + $0x718] sm:$0xff]
          %v1686 = vld [vmem:[%s1117 + $0x758] sm:$0xff]
          %v1687 = vld [vmem:[%s1117 + $0x798] sm:$0xff]
          %v1688 = vld [vmem:[%s1117 + $0x7d8] sm:$0xff]
          %v1689 = vadd.f32 %v1625, %v1657
          %v1690 = vadd.f32 %v1626, %v1658
          %v1691 = vadd.f32 %v1627, %v1659
          %v1692 = vadd.f32 %v1628, %v1660
          %v1693 = vadd.f32 %v1629, %v1661
          %v1694 = vadd.f32 %v1630, %v1662
          %v1695 = vadd.f32 %v1631, %v1663
          %v1696 = vadd.f32 %v1632, %v1664
          %v1697 = vadd.f32 %v1633, %v1665
          %v1698 = vadd.f32 %v1634, %v1666
          %v1699 = vadd.f32 %v1635, %v1667
          %v1700 = vadd.f32 %v1636, %v1668
          %v1701 = vadd.f32 %v1637, %v1669
          %v1702 = vadd.f32 %v1638, %v1670
          %v1703 = vadd.f32 %v1639, %v1671
          %v1704 = vadd.f32 %v1640, %v1672
          %v1705 = vadd.f32 %v1641, %v1673
          %v1706 = vadd.f32 %v1642, %v1674
          %v1707 = vadd.f32 %v1643, %v1675
          %v1708 = vadd.f32 %v1644, %v1676
          %v1709 = vadd.f32 %v1645, %v1677
          %v1710 = vadd.f32 %v1646, %v1678
          %v1711 = vadd.f32 %v1647, %v1679
          %v1712 = vadd.f32 %v1648, %v1680
          %v1713 = vadd.f32 %v1649, %v1681
          %v1714 = vadd.f32 %v1650, %v1682
          %v1715 = vadd.f32 %v1651, %v1683
          %v1716 = vadd.f32 %v1652, %v1684
          %v1717 = vadd.f32 %v1653, %v1685
          %v1718 = vadd.f32 %v1654, %v1686
          %v1719 = vadd.f32 %v1655, %v1687
          %v1720 = vadd.f32 %v1656, %v1688
          %1721 = vst [vmem:[#allocation2] sm:$0xff] %v1689
          %1722 = vst [vmem:[#allocation2 + $0x8] sm:$0xff] %v1690
          %1723 = vst [vmem:[#allocation2 + $0x10] sm:$0xff] %v1691
          %1724 = vst [vmem:[#allocation2 + $0x18] sm:$0xff] %v1692
          %1725 = vst [vmem:[#allocation2 + $0x20] sm:$0xff] %v1693
          %1726 = vst [vmem:[#allocation2 + $0x28] sm:$0xff] %v1694
          %1727 = vst [vmem:[#allocation2 + $0x30] sm:$0xff] %v1695
          %1728 = vst [vmem:[#allocation2 + $0x38] sm:$0xff] %v1696
          %1729 = vst [vmem:[#allocation2 + $0x40] sm:$0xff] %v1697
          %1730 = vst [vmem:[#allocation2 + $0x48] sm:$0xff] %v1698
          %1731 = vst [vmem:[#allocation2 + $0x50] sm:$0xff] %v1699
          %1732 = vst [vmem:[#allocation2 + $0x58] sm:$0xff] %v1700
          %1733 = vst [vmem:[#allocation2 + $0x60] sm:$0xff] %v1701
          %1734 = vst [vmem:[#allocation2 + $0x68] sm:$0xff] %v1702
          %1735 = vst [vmem:[#allocation2 + $0x70] sm:$0xff] %v1703
          %1736 = vst [vmem:[#allocation2 + $0x78] sm:$0xff] %v1704
          %1737 = vst [vmem:[#allocation2 + $0x80] sm:$0xff] %v1705
          %1738 = vst [vmem:[#allocation2 + $0x88] sm:$0xff] %v1706
          %1739 = vst [vmem:[#allocation2 + $0x90] sm:$0xff] %v1707
          %1740 = vst [vmem:[#allocation2 + $0x98] sm:$0xff] %v1708
          %1741 = vst [vmem:[#allocation2 + $0xa0] sm:$0xff] %v1709
          %1742 = vst [vmem:[#allocation2 + $0xa8] sm:$0xff] %v1710
          %1743 = vst [vmem:[#allocation2 + $0xb0] sm:$0xff] %v1711
          %1744 = vst [vmem:[#allocation2 + $0xb8] sm:$0xff] %v1712
          %1745 = vst [vmem:[#allocation2 + $0xc0] sm:$0xff] %v1713
          %1746 = vst [vmem:[#allocation2 + $0xc8] sm:$0xff] %v1714
          %1747 = vst [vmem:[#allocation2 + $0xd0] sm:$0xff] %v1715
          %1748 = vst [vmem:[#allocation2 + $0xd8] sm:$0xff] %v1716
          %1749 = vst [vmem:[#allocation2 + $0xe0] sm:$0xff] %v1717
          %1750 = vst [vmem:[#allocation2 + $0xe8] sm:$0xff] %v1718
          %1751 = vst [vmem:[#allocation2 + $0xf0] sm:$0xff] %v1719
          %1752 = vst [vmem:[#allocation2 + $0xf8] sm:$0xff] %v1720
          %v1753 = vld [vmem:[#allocation2] sm:$0xff]
          %v1754 = vld [vmem:[#allocation2 + $0x8] sm:$0xff]
          %v1755 = vld [vmem:[#allocation2 + $0x10] sm:$0xff]
          %v1756 = vld [vmem:[#allocation2 + $0x18] sm:$0xff]
          %v1757 = vld [vmem:[#allocation2 + $0x20] sm:$0xff]
          %v1758 = vld [vmem:[#allocation2 + $0x28] sm:$0xff]
          %v1759 = vld [vmem:[#allocation2 + $0x30] sm:$0xff]
          %v1760 = vld [vmem:[#allocation2 + $0x38] sm:$0xff]
          %v1761 = vld [vmem:[#allocation2 + $0x40] sm:$0xff]
          %v1762 = vld [vmem:[#allocation2 + $0x48] sm:$0xff]
          %v1763 = vld [vmem:[#allocation2 + $0x50] sm:$0xff]
          %v1764 = vld [vmem:[#allocation2 + $0x58] sm:$0xff]
          %v1765 = vld [vmem:[#allocation2 + $0x60] sm:$0xff]
          %v1766 = vld [vmem:[#allocation2 + $0x68] sm:$0xff]
          %v1767 = vld [vmem:[#allocation2 + $0x70] sm:$0xff]
          %v1768 = vld [vmem:[#allocation2 + $0x78] sm:$0xff]
          %v1769 = vld [vmem:[#allocation2 + $0x80] sm:$0xff]
          %v1770 = vld [vmem:[#allocation2 + $0x88] sm:$0xff]
          %v1771 = vld [vmem:[#allocation2 + $0x90] sm:$0xff]
          %v1772 = vld [vmem:[#allocation2 + $0x98] sm:$0xff]
          %v1773 = vld [vmem:[#allocation2 + $0xa0] sm:$0xff]
          %v1774 = vld [vmem:[#allocation2 + $0xa8] sm:$0xff]
          %v1775 = vld [vmem:[#allocation2 + $0xb0] sm:$0xff]
          %v1776 = vld [vmem:[#allocation2 + $0xb8] sm:$0xff]
          %v1777 = vld [vmem:[#allocation2 + $0xc0] sm:$0xff]
          %v1778 = vld [vmem:[#allocation2 + $0xc8] sm:$0xff]
          %v1779 = vld [vmem:[#allocation2 + $0xd0] sm:$0xff]
          %v1780 = vld [vmem:[#allocation2 + $0xd8] sm:$0xff]
          %v1781 = vld [vmem:[#allocation2 + $0xe0] sm:$0xff]
          %v1782 = vld [vmem:[#allocation2 + $0xe8] sm:$0xff]
          %v1783 = vld [vmem:[#allocation2 + $0xf0] sm:$0xff]
          %v1784 = vld [vmem:[#allocation2 + $0xf8] sm:$0xff]
          %v1785 = vld [vmem:[%s1117 + $0x20] sm:$0xff]
          %v1786 = vld [vmem:[%s1117 + $0x60] sm:$0xff]
          %v1787 = vld [vmem:[%s1117 + $0xa0] sm:$0xff]
          %v1788 = vld [vmem:[%s1117 + $0xe0] sm:$0xff]
          %v1789 = vld [vmem:[%s1117 + $0x120] sm:$0xff]
          %v1790 = vld [vmem:[%s1117 + $0x160] sm:$0xff]
          %v1791 = vld [vmem:[%s1117 + $0x1a0] sm:$0xff]
          %v1792 = vld [vmem:[%s1117 + $0x1e0] sm:$0xff]
          %v1793 = vld [vmem:[%s1117 + $0x220] sm:$0xff]
          %v1794 = vld [vmem:[%s1117 + $0x260] sm:$0xff]
          %v1795 = vld [vmem:[%s1117 + $0x2a0] sm:$0xff]
          %v1796 = vld [vmem:[%s1117 + $0x2e0] sm:$0xff]
          %v1797 = vld [vmem:[%s1117 + $0x320] sm:$0xff]
          %v1798 = vld [vmem:[%s1117 + $0x360] sm:$0xff]
          %v1799 = vld [vmem:[%s1117 + $0x3a0] sm:$0xff]
          %v1800 = vld [vmem:[%s1117 + $0x3e0] sm:$0xff]
          %v1801 = vld [vmem:[%s1117 + $0x420] sm:$0xff]
          %v1802 = vld [vmem:[%s1117 + $0x460] sm:$0xff]
          %v1803 = vld [vmem:[%s1117 + $0x4a0] sm:$0xff]
          %v1804 = vld [vmem:[%s1117 + $0x4e0] sm:$0xff]
          %v1805 = vld [vmem:[%s1117 + $0x520] sm:$0xff]
          %v1806 = vld [vmem:[%s1117 + $0x560] sm:$0xff]
          %v1807 = vld [vmem:[%s1117 + $0x5a0] sm:$0xff]
          %v1808 = vld [vmem:[%s1117 + $0x5e0] sm:$0xff]
          %v1809 = vld [vmem:[%s1117 + $0x620] sm:$0xff]
          %v1810 = vld [vmem:[%s1117 + $0x660] sm:$0xff]
          %v1811 = vld [vmem:[%s1117 + $0x6a0] sm:$0xff]
          %v1812 = vld [vmem:[%s1117 + $0x6e0] sm:$0xff]
          %v1813 = vld [vmem:[%s1117 + $0x720] sm:$0xff]
          %v1814 = vld [vmem:[%s1117 + $0x760] sm:$0xff]
          %v1815 = vld [vmem:[%s1117 + $0x7a0] sm:$0xff]
          %v1816 = vld [vmem:[%s1117 + $0x7e0] sm:$0xff]
          %v1817 = vadd.f32 %v1753, %v1785
          %v1818 = vadd.f32 %v1754, %v1786
          %v1819 = vadd.f32 %v1755, %v1787
          %v1820 = vadd.f32 %v1756, %v1788
          %v1821 = vadd.f32 %v1757, %v1789
          %v1822 = vadd.f32 %v1758, %v1790
          %v1823 = vadd.f32 %v1759, %v1791
          %v1824 = vadd.f32 %v1760, %v1792
          %v1825 = vadd.f32 %v1761, %v1793
          %v1826 = vadd.f32 %v1762, %v1794
          %v1827 = vadd.f32 %v1763, %v1795
          %v1828 = vadd.f32 %v1764, %v1796
          %v1829 = vadd.f32 %v1765, %v1797
          %v1830 = vadd.f32 %v1766, %v1798
          %v1831 = vadd.f32 %v1767, %v1799
          %v1832 = vadd.f32 %v1768, %v1800
          %v1833 = vadd.f32 %v1769, %v1801
          %v1834 = vadd.f32 %v1770, %v1802
          %v1835 = vadd.f32 %v1771, %v1803
          %v1836 = vadd.f32 %v1772, %v1804
          %v1837 = vadd.f32 %v1773, %v1805
          %v1838 = vadd.f32 %v1774, %v1806
          %v1839 = vadd.f32 %v1775, %v1807
          %v1840 = vadd.f32 %v1776, %v1808
          %v1841 = vadd.f32 %v1777, %v1809
          %v1842 = vadd.f32 %v1778, %v1810
          %v1843 = vadd.f32 %v1779, %v1811
          %v1844 = vadd.f32 %v1780, %v1812
          %v1845 = vadd.f32 %v1781, %v1813
          %v1846 = vadd.f32 %v1782, %v1814
          %v1847 = vadd.f32 %v1783, %v1815
          %v1848 = vadd.f32 %v1784, %v1816
          %1849 = vst [vmem:[#allocation2] sm:$0xff] %v1817
          %1850 = vst [vmem:[#allocation2 + $0x8] sm:$0xff] %v1818
          %1851 = vst [vmem:[#allocation2 + $0x10] sm:$0xff] %v1819
          %1852 = vst [vmem:[#allocation2 + $0x18] sm:$0xff] %v1820
          %1853 = vst [vmem:[#allocation2 + $0x20] sm:$0xff] %v1821
          %1854 = vst [vmem:[#allocation2 + $0x28] sm:$0xff] %v1822
          %1855 = vst [vmem:[#allocation2 + $0x30] sm:$0xff] %v1823
          %1856 = vst [vmem:[#allocation2 + $0x38] sm:$0xff] %v1824
          %1857 = vst [vmem:[#allocation2 + $0x40] sm:$0xff] %v1825
          %1858 = vst [vmem:[#allocation2 + $0x48] sm:$0xff] %v1826
          %1859 = vst [vmem:[#allocation2 + $0x50] sm:$0xff] %v1827
          %1860 = vst [vmem:[#allocation2 + $0x58] sm:$0xff] %v1828
          %1861 = vst [vmem:[#allocation2 + $0x60] sm:$0xff] %v1829
          %1862 = vst [vmem:[#allocation2 + $0x68] sm:$0xff] %v1830
          %1863 = vst [vmem:[#allocation2 + $0x70] sm:$0xff] %v1831
          %1864 = vst [vmem:[#allocation2 + $0x78] sm:$0xff] %v1832
          %1865 = vst [vmem:[#allocation2 + $0x80] sm:$0xff] %v1833
          %1866 = vst [vmem:[#allocation2 + $0x88] sm:$0xff] %v1834
          %1867 = vst [vmem:[#allocation2 + $0x90] sm:$0xff] %v1835
          %1868 = vst [vmem:[#allocation2 + $0x98] sm:$0xff] %v1836
          %1869 = vst [vmem:[#allocation2 + $0xa0] sm:$0xff] %v1837
          %1870 = vst [vmem:[#allocation2 + $0xa8] sm:$0xff] %v1838
          %1871 = vst [vmem:[#allocation2 + $0xb0] sm:$0xff] %v1839
          %1872 = vst [vmem:[#allocation2 + $0xb8] sm:$0xff] %v1840
          %1873 = vst [vmem:[#allocation2 + $0xc0] sm:$0xff] %v1841
          %1874 = vst [vmem:[#allocation2 + $0xc8] sm:$0xff] %v1842
          %1875 = vst [vmem:[#allocation2 + $0xd0] sm:$0xff] %v1843
          %1876 = vst [vmem:[#allocation2 + $0xd8] sm:$0xff] %v1844
          %1877 = vst [vmem:[#allocation2 + $0xe0] sm:$0xff] %v1845
          %1878 = vst [vmem:[#allocation2 + $0xe8] sm:$0xff] %v1846
          %1879 = vst [vmem:[#allocation2 + $0xf0] sm:$0xff] %v1847
          %1880 = vst [vmem:[#allocation2 + $0xf8] sm:$0xff] %v1848
          %v1881 = vld [vmem:[#allocation2] sm:$0xff]
          %v1882 = vld [vmem:[#allocation2 + $0x8] sm:$0xff]
          %v1883 = vld [vmem:[#allocation2 + $0x10] sm:$0xff]
          %v1884 = vld [vmem:[#allocation2 + $0x18] sm:$0xff]
          %v1885 = vld [vmem:[#allocation2 + $0x20] sm:$0xff]
          %v1886 = vld [vmem:[#allocation2 + $0x28] sm:$0xff]
          %v1887 = vld [vmem:[#allocation2 + $0x30] sm:$0xff]
          %v1888 = vld [vmem:[#allocation2 + $0x38] sm:$0xff]
          %v1889 = vld [vmem:[#allocation2 + $0x40] sm:$0xff]
          %v1890 = vld [vmem:[#allocation2 + $0x48] sm:$0xff]
          %v1891 = vld [vmem:[#allocation2 + $0x50] sm:$0xff]
          %v1892 = vld [vmem:[#allocation2 + $0x58] sm:$0xff]
          %v1893 = vld [vmem:[#allocation2 + $0x60] sm:$0xff]
          %v1894 = vld [vmem:[#allocation2 + $0x68] sm:$0xff]
          %v1895 = vld [vmem:[#allocation2 + $0x70] sm:$0xff]
          %v1896 = vld [vmem:[#allocation2 + $0x78] sm:$0xff]
          %v1897 = vld [vmem:[#allocation2 + $0x80] sm:$0xff]
          %v1898 = vld [vmem:[#allocation2 + $0x88] sm:$0xff]
          %v1899 = vld [vmem:[#allocation2 + $0x90] sm:$0xff]
          %v1900 = vld [vmem:[#allocation2 + $0x98] sm:$0xff]
          %v1901 = vld [vmem:[#allocation2 + $0xa0] sm:$0xff]
          %v1902 = vld [vmem:[#allocation2 + $0xa8] sm:$0xff]
          %v1903 = vld [vmem:[#allocation2 + $0xb0] sm:$0xff]
          %v1904 = vld [vmem:[#allocation2 + $0xb8] sm:$0xff]
          %v1905 = vld [vmem:[#allocation2 + $0xc0] sm:$0xff]
          %v1906 = vld [vmem:[#allocation2 + $0xc8] sm:$0xff]
          %v1907 = vld [vmem:[#allocation2 + $0xd0] sm:$0xff]
          %v1908 = vld [vmem:[#allocation2 + $0xd8] sm:$0xff]
          %v1909 = vld [vmem:[#allocation2 + $0xe0] sm:$0xff]
          %v1910 = vld [vmem:[#allocation2 + $0xe8] sm:$0xff]
          %v1911 = vld [vmem:[#allocation2 + $0xf0] sm:$0xff]
          %v1912 = vld [vmem:[#allocation2 + $0xf8] sm:$0xff]
          %v1913 = vld [vmem:[%s1117 + $0x28] sm:$0xff]
          %v1914 = vld [vmem:[%s1117 + $0x68] sm:$0xff]
          %v1915 = vld [vmem:[%s1117 + $0xa8] sm:$0xff]
          %v1916 = vld [vmem:[%s1117 + $0xe8] sm:$0xff]
          %v1917 = vld [vmem:[%s1117 + $0x128] sm:$0xff]
          %v1918 = vld [vmem:[%s1117 + $0x168] sm:$0xff]
          %v1919 = vld [vmem:[%s1117 + $0x1a8] sm:$0xff]
          %v1920 = vld [vmem:[%s1117 + $0x1e8] sm:$0xff]
          %v1921 = vld [vmem:[%s1117 + $0x228] sm:$0xff]
          %v1922 = vld [vmem:[%s1117 + $0x268] sm:$0xff]
          %v1923 = vld [vmem:[%s1117 + $0x2a8] sm:$0xff]
          %v1924 = vld [vmem:[%s1117 + $0x2e8] sm:$0xff]
          %v1925 = vld [vmem:[%s1117 + $0x328] sm:$0xff]
          %v1926 = vld [vmem:[%s1117 + $0x368] sm:$0xff]
          %v1927 = vld [vmem:[%s1117 + $0x3a8] sm:$0xff]
          %v1928 = vld [vmem:[%s1117 + $0x3e8] sm:$0xff]
          %v1929 = vld [vmem:[%s1117 + $0x428] sm:$0xff]
          %v1930 = vld [vmem:[%s1117 + $0x468] sm:$0xff]
          %v1931 = vld [vmem:[%s1117 + $0x4a8] sm:$0xff]
          %v1932 = vld [vmem:[%s1117 + $0x4e8] sm:$0xff]
          %v1933 = vld [vmem:[%s1117 + $0x528] sm:$0xff]
          %v1934 = vld [vmem:[%s1117 + $0x568] sm:$0xff]
          %v1935 = vld [vmem:[%s1117 + $0x5a8] sm:$0xff]
          %v1936 = vld [vmem:[%s1117 + $0x5e8] sm:$0xff]
          %v1937 = vld [vmem:[%s1117 + $0x628] sm:$0xff]
          %v1938 = vld [vmem:[%s1117 + $0x668] sm:$0xff]
          %v1939 = vld [vmem:[%s1117 + $0x6a8] sm:$0xff]
          %v1940 = vld [vmem:[%s1117 + $0x6e8] sm:$0xff]
          %v1941 = vld [vmem:[%s1117 + $0x728] sm:$0xff]
          %v1942 = vld [vmem:[%s1117 + $0x768] sm:$0xff]
          %v1943 = vld [vmem:[%s1117 + $0x7a8] sm:$0xff]
          %v1944 = vld [vmem:[%s1117 + $0x7e8] sm:$0xff]
          %v1945 = vadd.f32 %v1881, %v1913
          %v1946 = vadd.f32 %v1882, %v1914
          %v1947 = vadd.f32 %v1883, %v1915
          %v1948 = vadd.f32 %v1884, %v1916
          %v1949 = vadd.f32 %v1885, %v1917
          %v1950 = vadd.f32 %v1886, %v1918
          %v1951 = vadd.f32 %v1887, %v1919
          %v1952 = vadd.f32 %v1888, %v1920
          %v1953 = vadd.f32 %v1889, %v1921
          %v1954 = vadd.f32 %v1890, %v1922
          %v1955 = vadd.f32 %v1891, %v1923
          %v1956 = vadd.f32 %v1892, %v1924
          %v1957 = vadd.f32 %v1893, %v1925
          %v1958 = vadd.f32 %v1894, %v1926
          %v1959 = vadd.f32 %v1895, %v1927
          %v1960 = vadd.f32 %v1896, %v1928
          %v1961 = vadd.f32 %v1897, %v1929
          %v1962 = vadd.f32 %v1898, %v1930
          %v1963 = vadd.f32 %v1899, %v1931
          %v1964 = vadd.f32 %v1900, %v1932
          %v1965 = vadd.f32 %v1901, %v1933
          %v1966 = vadd.f32 %v1902, %v1934
          %v1967 = vadd.f32 %v1903, %v1935
          %v1968 = vadd.f32 %v1904, %v1936
          %v1969 = vadd.f32 %v1905, %v1937
          %v1970 = vadd.f32 %v1906, %v1938
          %v1971 = vadd.f32 %v1907, %v1939
          %v1972 = vadd.f32 %v1908, %v1940
          %v1973 = vadd.f32 %v1909, %v1941
          %v1974 = vadd.f32 %v1910, %v1942
          %v1975 = vadd.f32 %v1911, %v1943
          %v1976 = vadd.f32 %v1912, %v1944
          %1977 = vst [vmem:[#allocation2] sm:$0xff] %v1945
          %1978 = vst [vmem:[#allocation2 + $0x8] sm:$0xff] %v1946
          %1979 = vst [vmem:[#allocation2 + $0x10] sm:$0xff] %v1947
          %1980 = vst [vmem:[#allocation2 + $0x18] sm:$0xff] %v1948
          %1981 = vst [vmem:[#allocation2 + $0x20] sm:$0xff] %v1949
          %1982 = vst [vmem:[#allocation2 + $0x28] sm:$0xff] %v1950
          %1983 = vst [vmem:[#allocation2 + $0x30] sm:$0xff] %v1951
          %1984 = vst [vmem:[#allocation2 + $0x38] sm:$0xff] %v1952
          %1985 = vst [vmem:[#allocation2 + $0x40] sm:$0xff] %v1953
          %1986 = vst [vmem:[#allocation2 + $0x48] sm:$0xff] %v1954
          %1987 = vst [vmem:[#allocation2 + $0x50] sm:$0xff] %v1955
          %1988 = vst [vmem:[#allocation2 + $0x58] sm:$0xff] %v1956
          %1989 = vst [vmem:[#allocation2 + $0x60] sm:$0xff] %v1957
          %1990 = vst [vmem:[#allocation2 + $0x68] sm:$0xff] %v1958
          %1991 = vst [vmem:[#allocation2 + $0x70] sm:$0xff] %v1959
          %1992 = vst [vmem:[#allocation2 + $0x78] sm:$0xff] %v1960
          %1993 = vst [vmem:[#allocation2 + $0x80] sm:$0xff] %v1961
          %1994 = vst [vmem:[#allocation2 + $0x88] sm:$0xff] %v1962
          %1995 = vst [vmem:[#allocation2 + $0x90] sm:$0xff] %v1963
          %1996 = vst [vmem:[#allocation2 + $0x98] sm:$0xff] %v1964
          %1997 = vst [vmem:[#allocation2 + $0xa0] sm:$0xff] %v1965
          %1998 = vst [vmem:[#allocation2 + $0xa8] sm:$0xff] %v1966
          %1999 = vst [vmem:[#allocation2 + $0xb0] sm:$0xff] %v1967
          %2000 = vst [vmem:[#allocation2 + $0xb8] sm:$0xff] %v1968
          %2001 = vst [vmem:[#allocation2 + $0xc0] sm:$0xff] %v1969
          %2002 = vst [vmem:[#allocation2 + $0xc8] sm:$0xff] %v1970
          %2003 = vst [vmem:[#allocation2 + $0xd0] sm:$0xff] %v1971
          %2004 = vst [vmem:[#allocation2 + $0xd8] sm:$0xff] %v1972
          %2005 = vst [vmem:[#allocation2 + $0xe0] sm:$0xff] %v1973
          %2006 = vst [vmem:[#allocation2 + $0xe8] sm:$0xff] %v1974
          %2007 = vst [vmem:[#allocation2 + $0xf0] sm:$0xff] %v1975
          %2008 = vst [vmem:[#allocation2 + $0xf8] sm:$0xff] %v1976
          %v2009 = vld [vmem:[#allocation2] sm:$0xff]
          %v2010 = vld [vmem:[#allocation2 + $0x8] sm:$0xff]
          %v2011 = vld [vmem:[#allocation2 + $0x10] sm:$0xff]
          %v2012 = vld [vmem:[#allocation2 + $0x18] sm:$0xff]
          %v2013 = vld [vmem:[#allocation2 + $0x20] sm:$0xff]
          %v2014 = vld [vmem:[#allocation2 + $0x28] sm:$0xff]
          %v2015 = vld [vmem:[#allocation2 + $0x30] sm:$0xff]
          %v2016 = vld [vmem:[#allocation2 + $0x38] sm:$0xff]
          %v2017 = vld [vmem:[#allocation2 + $0x40] sm:$0xff]
          %v2018 = vld [vmem:[#allocation2 + $0x48] sm:$0xff]
          %v2019 = vld [vmem:[#allocation2 + $0x50] sm:$0xff]
          %v2020 = vld [vmem:[#allocation2 + $0x58] sm:$0xff]
          %v2021 = vld [vmem:[#allocation2 + $0x60] sm:$0xff]
          %v2022 = vld [vmem:[#allocation2 + $0x68] sm:$0xff]
          %v2023 = vld [vmem:[#allocation2 + $0x70] sm:$0xff]
          %v2024 = vld [vmem:[#allocation2 + $0x78] sm:$0xff]
          %v2025 = vld [vmem:[#allocation2 + $0x80] sm:$0xff]
          %v2026 = vld [vmem:[#allocation2 + $0x88] sm:$0xff]
          %v2027 = vld [vmem:[#allocation2 + $0x90] sm:$0xff]
          %v2028 = vld [vmem:[#allocation2 + $0x98] sm:$0xff]
          %v2029 = vld [vmem:[#allocation2 + $0xa0] sm:$0xff]
          %v2030 = vld [vmem:[#allocation2 + $0xa8] sm:$0xff]
          %v2031 = vld [vmem:[#allocation2 + $0xb0] sm:$0xff]
          %v2032 = vld [vmem:[#allocation2 + $0xb8] sm:$0xff]
          %v2033 = vld [vmem:[#allocation2 + $0xc0] sm:$0xff]
          %v2034 = vld [vmem:[#allocation2 + $0xc8] sm:$0xff]
          %v2035 = vld [vmem:[#allocation2 + $0xd0] sm:$0xff]
          %v2036 = vld [vmem:[#allocation2 + $0xd8] sm:$0xff]
          %v2037 = vld [vmem:[#allocation2 + $0xe0] sm:$0xff]
          %v2038 = vld [vmem:[#allocation2 + $0xe8] sm:$0xff]
          %v2039 = vld [vmem:[#allocation2 + $0xf0] sm:$0xff]
          %v2040 = vld [vmem:[#allocation2 + $0xf8] sm:$0xff]
          %v2041 = vld [vmem:[%s1117 + $0x30] sm:$0xff]
          %v2042 = vld [vmem:[%s1117 + $0x70] sm:$0xff]
          %v2043 = vld [vmem:[%s1117 + $0xb0] sm:$0xff]
          %v2044 = vld [vmem:[%s1117 + $0xf0] sm:$0xff]
          %v2045 = vld [vmem:[%s1117 + $0x130] sm:$0xff]
          %v2046 = vld [vmem:[%s1117 + $0x170] sm:$0xff]
          %v2047 = vld [vmem:[%s1117 + $0x1b0] sm:$0xff]
          %v2048 = vld [vmem:[%s1117 + $0x1f0] sm:$0xff]
          %v2049 = vld [vmem:[%s1117 + $0x230] sm:$0xff]
          %v2050 = vld [vmem:[%s1117 + $0x270] sm:$0xff]
          %v2051 = vld [vmem:[%s1117 + $0x2b0] sm:$0xff]
          %v2052 = vld [vmem:[%s1117 + $0x2f0] sm:$0xff]
          %v2053 = vld [vmem:[%s1117 + $0x330] sm:$0xff]
          %v2054 = vld [vmem:[%s1117 + $0x370] sm:$0xff]
          %v2055 = vld [vmem:[%s1117 + $0x3b0] sm:$0xff]
          %v2056 = vld [vmem:[%s1117 + $0x3f0] sm:$0xff]
          %v2057 = vld [vmem:[%s1117 + $0x430] sm:$0xff]
          %v2058 = vld [vmem:[%s1117 + $0x470] sm:$0xff]
          %v2059 = vld [vmem:[%s1117 + $0x4b0] sm:$0xff]
          %v2060 = vld [vmem:[%s1117 + $0x4f0] sm:$0xff]
          %v2061 = vld [vmem:[%s1117 + $0x530] sm:$0xff]
          %v2062 = vld [vmem:[%s1117 + $0x570] sm:$0xff]
          %v2063 = vld [vmem:[%s1117 + $0x5b0] sm:$0xff]
          %v2064 = vld [vmem:[%s1117 + $0x5f0] sm:$0xff]
          %v2065 = vld [vmem:[%s1117 + $0x630] sm:$0xff]
          %v2066 = vld [vmem:[%s1117 + $0x670] sm:$0xff]
          %v2067 = vld [vmem:[%s1117 + $0x6b0] sm:$0xff]
          %v2068 = vld [vmem:[%s1117 + $0x6f0] sm:$0xff]
          %v2069 = vld [vmem:[%s1117 + $0x730] sm:$0xff]
          %v2070 = vld [vmem:[%s1117 + $0x770] sm:$0xff]
          %v2071 = vld [vmem:[%s1117 + $0x7b0] sm:$0xff]
          %v2072 = vld [vmem:[%s1117 + $0x7f0] sm:$0xff]
          %v2073 = vadd.f32 %v2009, %v2041
          %v2074 = vadd.f32 %v2010, %v2042
          %v2075 = vadd.f32 %v2011, %v2043
          %v2076 = vadd.f32 %v2012, %v2044
          %v2077 = vadd.f32 %v2013, %v2045
          %v2078 = vadd.f32 %v2014, %v2046
          %v2079 = vadd.f32 %v2015, %v2047
          %v2080 = vadd.f32 %v2016, %v2048
          %v2081 = vadd.f32 %v2017, %v2049
          %v2082 = vadd.f32 %v2018, %v2050
          %v2083 = vadd.f32 %v2019, %v2051
          %v2084 = vadd.f32 %v2020, %v2052
          %v2085 = vadd.f32 %v2021, %v2053
          %v2086 = vadd.f32 %v2022, %v2054
          %v2087 = vadd.f32 %v2023, %v2055
          %v2088 = vadd.f32 %v2024, %v2056
          %v2089 = vadd.f32 %v2025, %v2057
          %v2090 = vadd.f32 %v2026, %v2058
          %v2091 = vadd.f32 %v2027, %v2059
          %v2092 = vadd.f32 %v2028, %v2060
          %v2093 = vadd.f32 %v2029, %v2061
          %v2094 = vadd.f32 %v2030, %v2062
          %v2095 = vadd.f32 %v2031, %v2063
          %v2096 = vadd.f32 %v2032, %v2064
          %v2097 = vadd.f32 %v2033, %v2065
          %v2098 = vadd.f32 %v2034, %v2066
          %v2099 = vadd.f32 %v2035, %v2067
          %v2100 = vadd.f32 %v2036, %v2068
          %v2101 = vadd.f32 %v2037, %v2069
          %v2102 = vadd.f32 %v2038, %v2070
          %v2103 = vadd.f32 %v2039, %v2071
          %v2104 = vadd.f32 %v2040, %v2072
          %2105 = vst [vmem:[#allocation2] sm:$0xff] %v2073
          %2106 = vst [vmem:[#allocation2 + $0x8] sm:$0xff] %v2074
          %2107 = vst [vmem:[#allocation2 + $0x10] sm:$0xff] %v2075
          %2108 = vst [vmem:[#allocation2 + $0x18] sm:$0xff] %v2076
          %2109 = vst [vmem:[#allocation2 + $0x20] sm:$0xff] %v2077
          %2110 = vst [vmem:[#allocation2 + $0x28] sm:$0xff] %v2078
          %2111 = vst [vmem:[#allocation2 + $0x30] sm:$0xff] %v2079
          %2112 = vst [vmem:[#allocation2 + $0x38] sm:$0xff] %v2080
          %2113 = vst [vmem:[#allocation2 + $0x40] sm:$0xff] %v2081
          %2114 = vst [vmem:[#allocation2 + $0x48] sm:$0xff] %v2082
          %2115 = vst [vmem:[#allocation2 + $0x50] sm:$0xff] %v2083
          %2116 = vst [vmem:[#allocation2 + $0x58] sm:$0xff] %v2084
          %2117 = vst [vmem:[#allocation2 + $0x60] sm:$0xff] %v2085
          %2118 = vst [vmem:[#allocation2 + $0x68] sm:$0xff] %v2086
          %2119 = vst [vmem:[#allocation2 + $0x70] sm:$0xff] %v2087
          %2120 = vst [vmem:[#allocation2 + $0x78] sm:$0xff] %v2088
          %2121 = vst [vmem:[#allocation2 + $0x80] sm:$0xff] %v2089
          %2122 = vst [vmem:[#allocation2 + $0x88] sm:$0xff] %v2090
          %2123 = vst [vmem:[#allocation2 + $0x90] sm:$0xff] %v2091
          %2124 = vst [vmem:[#allocation2 + $0x98] sm:$0xff] %v2092
          %2125 = vst [vmem:[#allocation2 + $0xa0] sm:$0xff] %v2093
          %2126 = vst [vmem:[#allocation2 + $0xa8] sm:$0xff] %v2094
          %2127 = vst [vmem:[#allocation2 + $0xb0] sm:$0xff] %v2095
          %2128 = vst [vmem:[#allocation2 + $0xb8] sm:$0xff] %v2096
          %2129 = vst [vmem:[#allocation2 + $0xc0] sm:$0xff] %v2097
          %2130 = vst [vmem:[#allocation2 + $0xc8] sm:$0xff] %v2098
          %2131 = vst [vmem:[#allocation2 + $0xd0] sm:$0xff] %v2099
          %2132 = vst [vmem:[#allocation2 + $0xd8] sm:$0xff] %v2100
          %2133 = vst [vmem:[#allocation2 + $0xe0] sm:$0xff] %v2101
          %2134 = vst [vmem:[#allocation2 + $0xe8] sm:$0xff] %v2102
          %2135 = vst [vmem:[#allocation2 + $0xf0] sm:$0xff] %v2103
          %2136 = vst [vmem:[#allocation2 + $0xf8] sm:$0xff] %v2104
          %v2137 = vld [vmem:[#allocation2] sm:$0xff]
          %v2138 = vld [vmem:[#allocation2 + $0x8] sm:$0xff]
          %v2139 = vld [vmem:[#allocation2 + $0x10] sm:$0xff]
          %v2140 = vld [vmem:[#allocation2 + $0x18] sm:$0xff]
          %v2141 = vld [vmem:[#allocation2 + $0x20] sm:$0xff]
          %v2142 = vld [vmem:[#allocation2 + $0x28] sm:$0xff]
          %v2143 = vld [vmem:[#allocation2 + $0x30] sm:$0xff]
          %v2144 = vld [vmem:[#allocation2 + $0x38] sm:$0xff]
          %v2145 = vld [vmem:[#allocation2 + $0x40] sm:$0xff]
          %v2146 = vld [vmem:[#allocation2 + $0x48] sm:$0xff]
          %v2147 = vld [vmem:[#allocation2 + $0x50] sm:$0xff]
          %v2148 = vld [vmem:[#allocation2 + $0x58] sm:$0xff]
          %v2149 = vld [vmem:[#allocation2 + $0x60] sm:$0xff]
          %v2150 = vld [vmem:[#allocation2 + $0x68] sm:$0xff]
          %v2151 = vld [vmem:[#allocation2 + $0x70] sm:$0xff]
          %v2152 = vld [vmem:[#allocation2 + $0x78] sm:$0xff]
          %v2153 = vld [vmem:[#allocation2 + $0x80] sm:$0xff]
          %v2154 = vld [vmem:[#allocation2 + $0x88] sm:$0xff]
          %v2155 = vld [vmem:[#allocation2 + $0x90] sm:$0xff]
          %v2156 = vld [vmem:[#allocation2 + $0x98] sm:$0xff]
          %v2157 = vld [vmem:[#allocation2 + $0xa0] sm:$0xff]
          %v2158 = vld [vmem:[#allocation2 + $0xa8] sm:$0xff]
          %v2159 = vld [vmem:[#allocation2 + $0xb0] sm:$0xff]
          %v2160 = vld [vmem:[#allocation2 + $0xb8] sm:$0xff]
          %v2161 = vld [vmem:[#allocation2 + $0xc0] sm:$0xff]
          %v2162 = vld [vmem:[#allocation2 + $0xc8] sm:$0xff]
          %v2163 = vld [vmem:[#allocation2 + $0xd0] sm:$0xff]
          %v2164 = vld [vmem:[#allocation2 + $0xd8] sm:$0xff]
          %v2165 = vld [vmem:[#allocation2 + $0xe0] sm:$0xff]
          %v2166 = vld [vmem:[#allocation2 + $0xe8] sm:$0xff]
          %v2167 = vld [vmem:[#allocation2 + $0xf0] sm:$0xff]
          %v2168 = vld [vmem:[#allocation2 + $0xf8] sm:$0xff]
          %v2169 = vld [vmem:[%s1117 + $0x38] sm:$0xff]
          %v2170 = vld [vmem:[%s1117 + $0x78] sm:$0xff]
          %v2171 = vld [vmem:[%s1117 + $0xb8] sm:$0xff]
          %v2172 = vld [vmem:[%s1117 + $0xf8] sm:$0xff]
          %v2173 = vld [vmem:[%s1117 + $0x138] sm:$0xff]
          %v2174 = vld [vmem:[%s1117 + $0x178] sm:$0xff]
          %v2175 = vld [vmem:[%s1117 + $0x1b8] sm:$0xff]
          %v2176 = vld [vmem:[%s1117 + $0x1f8] sm:$0xff]
          %v2177 = vld [vmem:[%s1117 + $0x238] sm:$0xff]
          %v2178 = vld [vmem:[%s1117 + $0x278] sm:$0xff]
          %v2179 = vld [vmem:[%s1117 + $0x2b8] sm:$0xff]
          %v2180 = vld [vmem:[%s1117 + $0x2f8] sm:$0xff]
          %v2181 = vld [vmem:[%s1117 + $0x338] sm:$0xff]
          %v2182 = vld [vmem:[%s1117 + $0x378] sm:$0xff]
          %v2183 = vld [vmem:[%s1117 + $0x3b8] sm:$0xff]
          %v2184 = vld [vmem:[%s1117 + $0x3f8] sm:$0xff]
          %v2185 = vld [vmem:[%s1117 + $0x438] sm:$0xff]
          %v2186 = vld [vmem:[%s1117 + $0x478] sm:$0xff]
          %v2187 = vld [vmem:[%s1117 + $0x4b8] sm:$0xff]
          %v2188 = vld [vmem:[%s1117 + $0x4f8] sm:$0xff]
          %v2189 = vld [vmem:[%s1117 + $0x538] sm:$0xff]
          %v2190 = vld [vmem:[%s1117 + $0x578] sm:$0xff]
          %v2191 = vld [vmem:[%s1117 + $0x5b8] sm:$0xff]
          %v2192 = vld [vmem:[%s1117 + $0x5f8] sm:$0xff]
          %v2193 = vld [vmem:[%s1117 + $0x638] sm:$0xff]
          %v2194 = vld [vmem:[%s1117 + $0x678] sm:$0xff]
          %v2195 = vld [vmem:[%s1117 + $0x6b8] sm:$0xff]
          %v2196 = vld [vmem:[%s1117 + $0x6f8] sm:$0xff]
          %v2197 = vld [vmem:[%s1117 + $0x738] sm:$0xff]
          %v2198 = vld [vmem:[%s1117 + $0x778] sm:$0xff]
          %v2199 = vld [vmem:[%s1117 + $0x7b8] sm:$0xff]
          %v2200 = vld [vmem:[%s1117 + $0x7f8] sm:$0xff]
          %v2201 = vadd.f32 %v2137, %v2169
          %v2202 = vadd.f32 %v2138, %v2170
          %v2203 = vadd.f32 %v2139, %v2171
          %v2204 = vadd.f32 %v2140, %v2172
          %v2205 = vadd.f32 %v2141, %v2173
          %v2206 = vadd.f32 %v2142, %v2174
          %v2207 = vadd.f32 %v2143, %v2175
          %v2208 = vadd.f32 %v2144, %v2176
          %v2209 = vadd.f32 %v2145, %v2177
          %v2210 = vadd.f32 %v2146, %v2178
          %v2211 = vadd.f32 %v2147, %v2179
          %v2212 = vadd.f32 %v2148, %v2180
          %v2213 = vadd.f32 %v2149, %v2181
          %v2214 = vadd.f32 %v2150, %v2182
          %v2215 = vadd.f32 %v2151, %v2183
          %v2216 = vadd.f32 %v2152, %v2184
          %v2217 = vadd.f32 %v2153, %v2185
          %v2218 = vadd.f32 %v2154, %v2186
          %v2219 = vadd.f32 %v2155, %v2187
          %v2220 = vadd.f32 %v2156, %v2188
          %v2221 = vadd.f32 %v2157, %v2189
          %v2222 = vadd.f32 %v2158, %v2190
          %v2223 = vadd.f32 %v2159, %v2191
          %v2224 = vadd.f32 %v2160, %v2192
          %v2225 = vadd.f32 %v2161, %v2193
          %v2226 = vadd.f32 %v2162, %v2194
          %v2227 = vadd.f32 %v2163, %v2195
          %v2228 = vadd.f32 %v2164, %v2196
          %v2229 = vadd.f32 %v2165, %v2197
          %v2230 = vadd.f32 %v2166, %v2198
          %v2231 = vadd.f32 %v2167, %v2199
          %v2232 = vadd.f32 %v2168, %v2200
          %2233 = vst [vmem:[#allocation2] sm:$0xff] %v2201
          %2234 = vst [vmem:[#allocation2 + $0x8] sm:$0xff] %v2202
          %2235 = vst [vmem:[#allocation2 + $0x10] sm:$0xff] %v2203
          %2236 = vst [vmem:[#allocation2 + $0x18] sm:$0xff] %v2204
          %2237 = vst [vmem:[#allocation2 + $0x20] sm:$0xff] %v2205
          %2238 = vst [vmem:[#allocation2 + $0x28] sm:$0xff] %v2206
          %2239 = vst [vmem:[#allocation2 + $0x30] sm:$0xff] %v2207
          %2240 = vst [vmem:[#allocation2 + $0x38] sm:$0xff] %v2208
          %2241 = vst [vmem:[#allocation2 + $0x40] sm:$0xff] %v2209
          %2242 = vst [vmem:[#allocation2 + $0x48] sm:$0xff] %v2210
          %2243 = vst [vmem:[#allocation2 + $0x50] sm:$0xff] %v2211
          %2244 = vst [vmem:[#allocation2 + $0x58] sm:$0xff] %v2212
          %2245 = vst [vmem:[#allocation2 + $0x60] sm:$0xff] %v2213
          %2246 = vst [vmem:[#allocation2 + $0x68] sm:$0xff] %v2214
          %2247 = vst [vmem:[#allocation2 + $0x70] sm:$0xff] %v2215
          %2248 = vst [vmem:[#allocation2 + $0x78] sm:$0xff] %v2216
          %2249 = vst [vmem:[#allocation2 + $0x80] sm:$0xff] %v2217
          %2250 = vst [vmem:[#allocation2 + $0x88] sm:$0xff] %v2218
          %2251 = vst [vmem:[#allocation2 + $0x90] sm:$0xff] %v2219
          %2252 = vst [vmem:[#allocation2 + $0x98] sm:$0xff] %v2220
          %2253 = vst [vmem:[#allocation2 + $0xa0] sm:$0xff] %v2221
          %2254 = vst [vmem:[#allocation2 + $0xa8] sm:$0xff] %v2222
          %2255 = vst [vmem:[#allocation2 + $0xb0] sm:$0xff] %v2223
          %2256 = vst [vmem:[#allocation2 + $0xb8] sm:$0xff] %v2224
          %2257 = vst [vmem:[#allocation2 + $0xc0] sm:$0xff] %v2225
          %2258 = vst [vmem:[#allocation2 + $0xc8] sm:$0xff] %v2226
          %2259 = vst [vmem:[#allocation2 + $0xd0] sm:$0xff] %v2227
          %2260 = vst [vmem:[#allocation2 + $0xd8] sm:$0xff] %v2228
          %2261 = vst [vmem:[#allocation2 + $0xe0] sm:$0xff] %v2229
          %2262 = vst [vmem:[#allocation2 + $0xe8] sm:$0xff] %v2230
          %2263 = vst [vmem:[#allocation2 + $0xf0] sm:$0xff] %v2231
          %2264 = vst [vmem:[#allocation2 + $0xf8] sm:$0xff] %v2232
        $region146: #{tpu_custom_call.1} parent=133 // pred_fallthru
          _
        %p2265 = scmp.eq.s32.totalorder %s32, 1
        // Predicated region
        $region147: #{tpu_custom_call.1} parent=133 // pred_check
          %p2266 = pneg %p2265
        $region148: #{tpu_custom_call.1} parent=133 // pred_check_branch
          %2268 = sbr.rel (%p2266) target = $region150
        $region149: #{tpu_custom_call.1} parent=133 // pred_region
          %v2269 = vld [vmem:[#allocation2] sm:$0xff]
          %v2270 = vld [vmem:[#allocation2 + $0x8] sm:$0xff]
          %v2271 = vld [vmem:[#allocation2 + $0x10] sm:$0xff]
          %v2272 = vld [vmem:[#allocation2 + $0x18] sm:$0xff]
          %v2273 = vld [vmem:[#allocation2 + $0x20] sm:$0xff]
          %v2274 = vld [vmem:[#allocation2 + $0x28] sm:$0xff]
          %v2275 = vld [vmem:[#allocation2 + $0x30] sm:$0xff]
          %v2276 = vld [vmem:[#allocation2 + $0x38] sm:$0xff]
          %v2277 = vld [vmem:[#allocation2 + $0x40] sm:$0xff]
          %v2278 = vld [vmem:[#allocation2 + $0x48] sm:$0xff]
          %v2279 = vld [vmem:[#allocation2 + $0x50] sm:$0xff]
          %v2280 = vld [vmem:[#allocation2 + $0x58] sm:$0xff]
          %v2281 = vld [vmem:[#allocation2 + $0x60] sm:$0xff]
          %v2282 = vld [vmem:[#allocation2 + $0x68] sm:$0xff]
          %v2283 = vld [vmem:[#allocation2 + $0x70] sm:$0xff]
          %v2284 = vld [vmem:[#allocation2 + $0x78] sm:$0xff]
          %v2285 = vld [vmem:[#allocation2 + $0x80] sm:$0xff]
          %v2286 = vld [vmem:[#allocation2 + $0x88] sm:$0xff]
          %v2287 = vld [vmem:[#allocation2 + $0x90] sm:$0xff]
          %v2288 = vld [vmem:[#allocation2 + $0x98] sm:$0xff]
          %v2289 = vld [vmem:[#allocation2 + $0xa0] sm:$0xff]
          %v2290 = vld [vmem:[#allocation2 + $0xa8] sm:$0xff]
          %v2291 = vld [vmem:[#allocation2 + $0xb0] sm:$0xff]
          %v2292 = vld [vmem:[#allocation2 + $0xb8] sm:$0xff]
          %v2293 = vld [vmem:[#allocation2 + $0xc0] sm:$0xff]
          %v2294 = vld [vmem:[#allocation2 + $0xc8] sm:$0xff]
          %v2295 = vld [vmem:[#allocation2 + $0xd0] sm:$0xff]
          %v2296 = vld [vmem:[#allocation2 + $0xd8] sm:$0xff]
          %v2297 = vld [vmem:[#allocation2 + $0xe0] sm:$0xff]
          %v2298 = vld [vmem:[#allocation2 + $0xe8] sm:$0xff]
          %v2299 = vld [vmem:[#allocation2 + $0xf0] sm:$0xff]
          %v2300 = vld [vmem:[#allocation2 + $0xf8] sm:$0xff]
          %v2301 = vld [vmem:[%s1117] sm:$0xff]
          %v2302 = vld [vmem:[%s1117 + $0x40] sm:$0xff]
          %v2303 = vld [vmem:[%s1117 + $0x80] sm:$0xff]
          %v2304 = vld [vmem:[%s1117 + $0xc0] sm:$0xff]
          %v2305 = vld [vmem:[%s1117 + $0x100] sm:$0xff]
          %v2306 = vld [vmem:[%s1117 + $0x140] sm:$0xff]
          %v2307 = vld [vmem:[%s1117 + $0x180] sm:$0xff]
          %v2308 = vld [vmem:[%s1117 + $0x1c0] sm:$0xff]
          %v2309 = vld [vmem:[%s1117 + $0x200] sm:$0xff]
          %v2310 = vld [vmem:[%s1117 + $0x240] sm:$0xff]
          %v2311 = vld [vmem:[%s1117 + $0x280] sm:$0xff]
          %v2312 = vld [vmem:[%s1117 + $0x2c0] sm:$0xff]
          %v2313 = vld [vmem:[%s1117 + $0x300] sm:$0xff]
          %v2314 = vld [vmem:[%s1117 + $0x340] sm:$0xff]
          %v2315 = vld [vmem:[%s1117 + $0x380] sm:$0xff]
          %v2316 = vld [vmem:[%s1117 + $0x3c0] sm:$0xff]
          %v2317 = vld [vmem:[%s1117 + $0x400] sm:$0xff]
          %v2318 = vld [vmem:[%s1117 + $0x440] sm:$0xff]
          %v2319 = vld [vmem:[%s1117 + $0x480] sm:$0xff]
          %v2320 = vld [vmem:[%s1117 + $0x4c0] sm:$0xff]
          %v2321 = vld [vmem:[%s1117 + $0x500] sm:$0xff]
          %v2322 = vld [vmem:[%s1117 + $0x540] sm:$0xff]
          %v2323 = vld [vmem:[%s1117 + $0x580] sm:$0xff]
          %v2324 = vld [vmem:[%s1117 + $0x5c0] sm:$0xff]
          %v2325 = vld [vmem:[%s1117 + $0x600] sm:$0xff]
          %v2326 = vld [vmem:[%s1117 + $0x640] sm:$0xff]
          %v2327 = vld [vmem:[%s1117 + $0x680] sm:$0xff]
          %v2328 = vld [vmem:[%s1117 + $0x6c0] sm:$0xff]
          %v2329 = vld [vmem:[%s1117 + $0x700] sm:$0xff]
          %v2330 = vld [vmem:[%s1117 + $0x740] sm:$0xff]
          %v2331 = vld [vmem:[%s1117 + $0x780] sm:$0xff]
          %v2332 = vld [vmem:[%s1117 + $0x7c0] sm:$0xff]
          %v2333 = vadd.f32 %v2269, %v2301
          %v2334 = vadd.f32 %v2270, %v2302
          %v2335 = vadd.f32 %v2271, %v2303
          %v2336 = vadd.f32 %v2272, %v2304
          %v2337 = vadd.f32 %v2273, %v2305
          %v2338 = vadd.f32 %v2274, %v2306
          %v2339 = vadd.f32 %v2275, %v2307
          %v2340 = vadd.f32 %v2276, %v2308
          %v2341 = vadd.f32 %v2277, %v2309
          %v2342 = vadd.f32 %v2278, %v2310
          %v2343 = vadd.f32 %v2279, %v2311
          %v2344 = vadd.f32 %v2280, %v2312
          %v2345 = vadd.f32 %v2281, %v2313
          %v2346 = vadd.f32 %v2282, %v2314
          %v2347 = vadd.f32 %v2283, %v2315
          %v2348 = vadd.f32 %v2284, %v2316
          %v2349 = vadd.f32 %v2285, %v2317
          %v2350 = vadd.f32 %v2286, %v2318
          %v2351 = vadd.f32 %v2287, %v2319
          %v2352 = vadd.f32 %v2288, %v2320
          %v2353 = vadd.f32 %v2289, %v2321
          %v2354 = vadd.f32 %v2290, %v2322
          %v2355 = vadd.f32 %v2291, %v2323
          %v2356 = vadd.f32 %v2292, %v2324
          %v2357 = vadd.f32 %v2293, %v2325
          %v2358 = vadd.f32 %v2294, %v2326
          %v2359 = vadd.f32 %v2295, %v2327
          %v2360 = vadd.f32 %v2296, %v2328
          %v2361 = vadd.f32 %v2297, %v2329
          %v2362 = vadd.f32 %v2298, %v2330
          %v2363 = vadd.f32 %v2299, %v2331
          %v2364 = vadd.f32 %v2300, %v2332
          %2365 = vst [vmem:[#allocation2] sm:$0xff] %v2333
          %2366 = vst [vmem:[#allocation2 + $0x8] sm:$0xff] %v2334
          %2367 = vst [vmem:[#allocation2 + $0x10] sm:$0xff] %v2335
          %2368 = vst [vmem:[#allocation2 + $0x18] sm:$0xff] %v2336
          %2369 = vst [vmem:[#allocation2 + $0x20] sm:$0xff] %v2337
          %2370 = vst [vmem:[#allocation2 + $0x28] sm:$0xff] %v2338
          %2371 = vst [vmem:[#allocation2 + $0x30] sm:$0xff] %v2339
          %2372 = vst [vmem:[#allocation2 + $0x38] sm:$0xff] %v2340
          %2373 = vst [vmem:[#allocation2 + $0x40] sm:$0xff] %v2341
          %2374 = vst [vmem:[#allocation2 + $0x48] sm:$0xff] %v2342
          %2375 = vst [vmem:[#allocation2 + $0x50] sm:$0xff] %v2343
          %2376 = vst [vmem:[#allocation2 + $0x58] sm:$0xff] %v2344
          %2377 = vst [vmem:[#allocation2 + $0x60] sm:$0xff] %v2345
          %2378 = vst [vmem:[#allocation2 + $0x68] sm:$0xff] %v2346
          %2379 = vst [vmem:[#allocation2 + $0x70] sm:$0xff] %v2347
          %2380 = vst [vmem:[#allocation2 + $0x78] sm:$0xff] %v2348
          %2381 = vst [vmem:[#allocation2 + $0x80] sm:$0xff] %v2349
          %2382 = vst [vmem:[#allocation2 + $0x88] sm:$0xff] %v2350
          %2383 = vst [vmem:[#allocation2 + $0x90] sm:$0xff] %v2351
          %2384 = vst [vmem:[#allocation2 + $0x98] sm:$0xff] %v2352
          %2385 = vst [vmem:[#allocation2 + $0xa0] sm:$0xff] %v2353
          %2386 = vst [vmem:[#allocation2 + $0xa8] sm:$0xff] %v2354
          %2387 = vst [vmem:[#allocation2 + $0xb0] sm:$0xff] %v2355
          %2388 = vst [vmem:[#allocation2 + $0xb8] sm:$0xff] %v2356
          %2389 = vst [vmem:[#allocation2 + $0xc0] sm:$0xff] %v2357
          %2390 = vst [vmem:[#allocation2 + $0xc8] sm:$0xff] %v2358
          %2391 = vst [vmem:[#allocation2 + $0xd0] sm:$0xff] %v2359
          %2392 = vst [vmem:[#allocation2 + $0xd8] sm:$0xff] %v2360
          %2393 = vst [vmem:[#allocation2 + $0xe0] sm:$0xff] %v2361
          %2394 = vst [vmem:[#allocation2 + $0xe8] sm:$0xff] %v2362
          %2395 = vst [vmem:[#allocation2 + $0xf0] sm:$0xff] %v2363
          %2396 = vst [vmem:[#allocation2 + $0xf8] sm:$0xff] %v2364
          %v2397 = vld [vmem:[#allocation2] sm:$0xff]
          %v2398 = vld [vmem:[#allocation2 + $0x8] sm:$0xff]
          %v2399 = vld [vmem:[#allocation2 + $0x10] sm:$0xff]
          %v2400 = vld [vmem:[#allocation2 + $0x18] sm:$0xff]
          %v2401 = vld [vmem:[#allocation2 + $0x20] sm:$0xff]
          %v2402 = vld [vmem:[#allocation2 + $0x28] sm:$0xff]
          %v2403 = vld [vmem:[#allocation2 + $0x30] sm:$0xff]
          %v2404 = vld [vmem:[#allocation2 + $0x38] sm:$0xff]
          %v2405 = vld [vmem:[#allocation2 + $0x40] sm:$0xff]
          %v2406 = vld [vmem:[#allocation2 + $0x48] sm:$0xff]
          %v2407 = vld [vmem:[#allocation2 + $0x50] sm:$0xff]
          %v2408 = vld [vmem:[#allocation2 + $0x58] sm:$0xff]
          %v2409 = vld [vmem:[#allocation2 + $0x60] sm:$0xff]
          %v2410 = vld [vmem:[#allocation2 + $0x68] sm:$0xff]
          %v2411 = vld [vmem:[#allocation2 + $0x70] sm:$0xff]
          %v2412 = vld [vmem:[#allocation2 + $0x78] sm:$0xff]
          %v2413 = vld [vmem:[#allocation2 + $0x80] sm:$0xff]
          %v2414 = vld [vmem:[#allocation2 + $0x88] sm:$0xff]
          %v2415 = vld [vmem:[#allocation2 + $0x90] sm:$0xff]
          %v2416 = vld [vmem:[#allocation2 + $0x98] sm:$0xff]
          %v2417 = vld [vmem:[#allocation2 + $0xa0] sm:$0xff]
          %v2418 = vld [vmem:[#allocation2 + $0xa8] sm:$0xff]
          %v2419 = vld [vmem:[#allocation2 + $0xb0] sm:$0xff]
          %v2420 = vld [vmem:[#allocation2 + $0xb8] sm:$0xff]
          %v2421 = vld [vmem:[#allocation2 + $0xc0] sm:$0xff]
          %v2422 = vld [vmem:[#allocation2 + $0xc8] sm:$0xff]
          %v2423 = vld [vmem:[#allocation2 + $0xd0] sm:$0xff]
          %v2424 = vld [vmem:[#allocation2 + $0xd8] sm:$0xff]
          %v2425 = vld [vmem:[#allocation2 + $0xe0] sm:$0xff]
          %v2426 = vld [vmem:[#allocation2 + $0xe8] sm:$0xff]
          %v2427 = vld [vmem:[#allocation2 + $0xf0] sm:$0xff]
          %v2428 = vld [vmem:[#allocation2 + $0xf8] sm:$0xff]
          %v2429 = vld [vmem:[%s1117 + $0x8] sm:$0xff]
          %v2430 = vld [vmem:[%s1117 + $0x48] sm:$0xff]
          %v2431 = vld [vmem:[%s1117 + $0x88] sm:$0xff]
          %v2432 = vld [vmem:[%s1117 + $0xc8] sm:$0xff]
          %v2433 = vld [vmem:[%s1117 + $0x108] sm:$0xff]
          %v2434 = vld [vmem:[%s1117 + $0x148] sm:$0xff]
          %v2435 = vld [vmem:[%s1117 + $0x188] sm:$0xff]
          %v2436 = vld [vmem:[%s1117 + $0x1c8] sm:$0xff]
          %v2437 = vld [vmem:[%s1117 + $0x208] sm:$0xff]
          %v2438 = vld [vmem:[%s1117 + $0x248] sm:$0xff]
          %v2439 = vld [vmem:[%s1117 + $0x288] sm:$0xff]
          %v2440 = vld [vmem:[%s1117 + $0x2c8] sm:$0xff]
          %v2441 = vld [vmem:[%s1117 + $0x308] sm:$0xff]
          %v2442 = vld [vmem:[%s1117 + $0x348] sm:$0xff]
          %v2443 = vld [vmem:[%s1117 + $0x388] sm:$0xff]
          %v2444 = vld [vmem:[%s1117 + $0x3c8] sm:$0xff]
          %v2445 = vld [vmem:[%s1117 + $0x408] sm:$0xff]
          %v2446 = vld [vmem:[%s1117 + $0x448] sm:$0xff]
          %v2447 = vld [vmem:[%s1117 + $0x488] sm:$0xff]
          %v2448 = vld [vmem:[%s1117 + $0x4c8] sm:$0xff]
          %v2449 = vld [vmem:[%s1117 + $0x508] sm:$0xff]
          %v2450 = vld [vmem:[%s1117 + $0x548] sm:$0xff]
          %v2451 = vld [vmem:[%s1117 + $0x588] sm:$0xff]
          %v2452 = vld [vmem:[%s1117 + $0x5c8] sm:$0xff]
          %v2453 = vld [vmem:[%s1117 + $0x608] sm:$0xff]
          %v2454 = vld [vmem:[%s1117 + $0x648] sm:$0xff]
          %v2455 = vld [vmem:[%s1117 + $0x688] sm:$0xff]
          %v2456 = vld [vmem:[%s1117 + $0x6c8] sm:$0xff]
          %v2457 = vld [vmem:[%s1117 + $0x708] sm:$0xff]
          %v2458 = vld [vmem:[%s1117 + $0x748] sm:$0xff]
          %v2459 = vld [vmem:[%s1117 + $0x788] sm:$0xff]
          %v2460 = vld [vmem:[%s1117 + $0x7c8] sm:$0xff]
          %v2461 = vadd.f32 %v2397, %v2429
          %v2462 = vadd.f32 %v2398, %v2430
          %v2463 = vadd.f32 %v2399, %v2431
          %v2464 = vadd.f32 %v2400, %v2432
          %v2465 = vadd.f32 %v2401, %v2433
          %v2466 = vadd.f32 %v2402, %v2434
          %v2467 = vadd.f32 %v2403, %v2435
          %v2468 = vadd.f32 %v2404, %v2436
          %v2469 = vadd.f32 %v2405, %v2437
          %v2470 = vadd.f32 %v2406, %v2438
          %v2471 = vadd.f32 %v2407, %v2439
          %v2472 = vadd.f32 %v2408, %v2440
          %v2473 = vadd.f32 %v2409, %v2441
          %v2474 = vadd.f32 %v2410, %v2442
          %v2475 = vadd.f32 %v2411, %v2443
          %v2476 = vadd.f32 %v2412, %v2444
          %v2477 = vadd.f32 %v2413, %v2445
          %v2478 = vadd.f32 %v2414, %v2446
          %v2479 = vadd.f32 %v2415, %v2447
          %v2480 = vadd.f32 %v2416, %v2448
          %v2481 = vadd.f32 %v2417, %v2449
          %v2482 = vadd.f32 %v2418, %v2450
          %v2483 = vadd.f32 %v2419, %v2451
          %v2484 = vadd.f32 %v2420, %v2452
          %v2485 = vadd.f32 %v2421, %v2453
          %v2486 = vadd.f32 %v2422, %v2454
          %v2487 = vadd.f32 %v2423, %v2455
          %v2488 = vadd.f32 %v2424, %v2456
          %v2489 = vadd.f32 %v2425, %v2457
          %v2490 = vadd.f32 %v2426, %v2458
          %v2491 = vadd.f32 %v2427, %v2459
          %v2492 = vadd.f32 %v2428, %v2460
          %2493 = vst [vmem:[#allocation2] sm:$0xff] %v2461
          %2494 = vst [vmem:[#allocation2 + $0x8] sm:$0xff] %v2462
          %2495 = vst [vmem:[#allocation2 + $0x10] sm:$0xff] %v2463
          %2496 = vst [vmem:[#allocation2 + $0x18] sm:$0xff] %v2464
          %2497 = vst [vmem:[#allocation2 + $0x20] sm:$0xff] %v2465
          %2498 = vst [vmem:[#allocation2 + $0x28] sm:$0xff] %v2466
          %2499 = vst [vmem:[#allocation2 + $0x30] sm:$0xff] %v2467
          %2500 = vst [vmem:[#allocation2 + $0x38] sm:$0xff] %v2468
          %2501 = vst [vmem:[#allocation2 + $0x40] sm:$0xff] %v2469
          %2502 = vst [vmem:[#allocation2 + $0x48] sm:$0xff] %v2470
          %2503 = vst [vmem:[#allocation2 + $0x50] sm:$0xff] %v2471
          %2504 = vst [vmem:[#allocation2 + $0x58] sm:$0xff] %v2472
          %2505 = vst [vmem:[#allocation2 + $0x60] sm:$0xff] %v2473
          %2506 = vst [vmem:[#allocation2 + $0x68] sm:$0xff] %v2474
          %2507 = vst [vmem:[#allocation2 + $0x70] sm:$0xff] %v2475
          %2508 = vst [vmem:[#allocation2 + $0x78] sm:$0xff] %v2476
          %2509 = vst [vmem:[#allocation2 + $0x80] sm:$0xff] %v2477
          %2510 = vst [vmem:[#allocation2 + $0x88] sm:$0xff] %v2478
          %2511 = vst [vmem:[#allocation2 + $0x90] sm:$0xff] %v2479
          %2512 = vst [vmem:[#allocation2 + $0x98] sm:$0xff] %v2480
          %2513 = vst [vmem:[#allocation2 + $0xa0] sm:$0xff] %v2481
          %2514 = vst [vmem:[#allocation2 + $0xa8] sm:$0xff] %v2482
          %2515 = vst [vmem:[#allocation2 + $0xb0] sm:$0xff] %v2483
          %2516 = vst [vmem:[#allocation2 + $0xb8] sm:$0xff] %v2484
          %2517 = vst [vmem:[#allocation2 + $0xc0] sm:$0xff] %v2485
          %2518 = vst [vmem:[#allocation2 + $0xc8] sm:$0xff] %v2486
          %2519 = vst [vmem:[#allocation2 + $0xd0] sm:$0xff] %v2487
          %2520 = vst [vmem:[#allocation2 + $0xd8] sm:$0xff] %v2488
          %2521 = vst [vmem:[#allocation2 + $0xe0] sm:$0xff] %v2489
          %2522 = vst [vmem:[#allocation2 + $0xe8] sm:$0xff] %v2490
          %2523 = vst [vmem:[#allocation2 + $0xf0] sm:$0xff] %v2491
          %2524 = vst [vmem:[#allocation2 + $0xf8] sm:$0xff] %v2492
          %v2525 = vlaneseq
          %v2526 = vand.u32 %v2525, 127
          %v2527 = vld [vmem:[%s1117 + $0x10] sm:$0xff]
          %v2528 = vld [vmem:[%s1117 + $0x50] sm:$0xff]
          %v2529 = vld [vmem:[%s1117 + $0x90] sm:$0xff]
          %v2530 = vld [vmem:[%s1117 + $0xd0] sm:$0xff]
          %v2531 = vld [vmem:[%s1117 + $0x110] sm:$0xff]
          %v2532 = vld [vmem:[%s1117 + $0x150] sm:$0xff]
          %v2533 = vld [vmem:[%s1117 + $0x190] sm:$0xff]
          %v2534 = vld [vmem:[%s1117 + $0x1d0] sm:$0xff]
          %v2535 = vld [vmem:[%s1117 + $0x210] sm:$0xff]
          %v2536 = vld [vmem:[%s1117 + $0x250] sm:$0xff]
          %v2537 = vld [vmem:[%s1117 + $0x290] sm:$0xff]
          %v2538 = vld [vmem:[%s1117 + $0x2d0] sm:$0xff]
          %v2539 = vld [vmem:[%s1117 + $0x310] sm:$0xff]
          %v2540 = vld [vmem:[%s1117 + $0x350] sm:$0xff]
          %v2541 = vld [vmem:[%s1117 + $0x390] sm:$0xff]
          %v2542 = vld [vmem:[%s1117 + $0x3d0] sm:$0xff]
          %v2543 = vld [vmem:[%s1117 + $0x410] sm:$0xff]
          %v2544 = vld [vmem:[%s1117 + $0x450] sm:$0xff]
          %v2545 = vld [vmem:[%s1117 + $0x490] sm:$0xff]
          %v2546 = vld [vmem:[%s1117 + $0x4d0] sm:$0xff]
          %v2547 = vld [vmem:[%s1117 + $0x510] sm:$0xff]
          %v2548 = vld [vmem:[%s1117 + $0x550] sm:$0xff]
          %v2549 = vld [vmem:[%s1117 + $0x590] sm:$0xff]
          %v2550 = vld [vmem:[%s1117 + $0x5d0] sm:$0xff]
          %v2551 = vld [vmem:[%s1117 + $0x610] sm:$0xff]
          %v2552 = vld [vmem:[%s1117 + $0x650] sm:$0xff]
          %v2553 = vld [vmem:[%s1117 + $0x690] sm:$0xff]
          %v2554 = vld [vmem:[%s1117 + $0x6d0] sm:$0xff]
          %v2555 = vld [vmem:[%s1117 + $0x710] sm:$0xff]
          %v2556 = vld [vmem:[%s1117 + $0x750] sm:$0xff]
          %v2557 = vld [vmem:[%s1117 + $0x790] sm:$0xff]
          %v2558 = vld [vmem:[%s1117 + $0x7d0] sm:$0xff]
          %v2559 = vld [vmem:[#allocation2] sm:$0xff]
          %v2560 = vld [vmem:[#allocation2 + $0x8] sm:$0xff]
          %v2561 = vld [vmem:[#allocation2 + $0x10] sm:$0xff]
          %v2562 = vld [vmem:[#allocation2 + $0x18] sm:$0xff]
          %v2563 = vld [vmem:[#allocation2 + $0x20] sm:$0xff]
          %v2564 = vld [vmem:[#allocation2 + $0x28] sm:$0xff]
          %v2565 = vld [vmem:[#allocation2 + $0x30] sm:$0xff]
          %v2566 = vld [vmem:[#allocation2 + $0x38] sm:$0xff]
          %v2567 = vld [vmem:[#allocation2 + $0x40] sm:$0xff]
          %v2568 = vld [vmem:[#allocation2 + $0x48] sm:$0xff]
          %v2569 = vld [vmem:[#allocation2 + $0x50] sm:$0xff]
          %v2570 = vld [vmem:[#allocation2 + $0x58] sm:$0xff]
          %v2571 = vld [vmem:[#allocation2 + $0x60] sm:$0xff]
          %v2572 = vld [vmem:[#allocation2 + $0x68] sm:$0xff]
          %v2573 = vld [vmem:[#allocation2 + $0x70] sm:$0xff]
          %v2574 = vld [vmem:[#allocation2 + $0x78] sm:$0xff]
          %v2575 = vld [vmem:[#allocation2 + $0x80] sm:$0xff]
          %v2576 = vld [vmem:[#allocation2 + $0x88] sm:$0xff]
          %v2577 = vld [vmem:[#allocation2 + $0x90] sm:$0xff]
          %v2578 = vld [vmem:[#allocation2 + $0x98] sm:$0xff]
          %v2579 = vld [vmem:[#allocation2 + $0xa0] sm:$0xff]
          %v2580 = vld [vmem:[#allocation2 + $0xa8] sm:$0xff]
          %v2581 = vld [vmem:[#allocation2 + $0xb0] sm:$0xff]
          %v2582 = vld [vmem:[#allocation2 + $0xb8] sm:$0xff]
          %v2583 = vld [vmem:[#allocation2 + $0xc0] sm:$0xff]
          %v2584 = vld [vmem:[#allocation2 + $0xc8] sm:$0xff]
          %v2585 = vld [vmem:[#allocation2 + $0xd0] sm:$0xff]
          %v2586 = vld [vmem:[#allocation2 + $0xd8] sm:$0xff]
          %v2587 = vld [vmem:[#allocation2 + $0xe0] sm:$0xff]
          %v2588 = vld [vmem:[#allocation2 + $0xe8] sm:$0xff]
          %v2589 = vld [vmem:[#allocation2 + $0xf0] sm:$0xff]
          %v2590 = vld [vmem:[#allocation2 + $0xf8] sm:$0xff]
          %vm2591 = vcmp.lt.s32.totalorder %v2526, 64
          %v2592 = vsel %vm2591, 1, 0
          %vm2593 = vcmp.eq.s32.totalorder %v2592, 1
          %v2594 = vsel %vm2593, %v2527, 0.0
          %v2595 = vsel %vm2593, %v2528, 0.0
          %v2596 = vsel %vm2593, %v2529, 0.0
          %v2597 = vsel %vm2593, %v2530, 0.0
          %v2598 = vsel %vm2593, %v2531, 0.0
          %v2599 = vsel %vm2593, %v2532, 0.0
          %v2600 = vsel %vm2593, %v2533, 0.0
          %v2601 = vsel %vm2593, %v2534, 0.0
          %v2602 = vsel %vm2593, %v2535, 0.0
          %v2603 = vsel %vm2593, %v2536, 0.0
          %v2604 = vsel %vm2593, %v2537, 0.0
          %v2605 = vsel %vm2593, %v2538, 0.0
          %v2606 = vsel %vm2593, %v2539, 0.0
          %v2607 = vsel %vm2593, %v2540, 0.0
          %v2608 = vsel %vm2593, %v2541, 0.0
          %v2609 = vsel %vm2593, %v2542, 0.0
          %v2610 = vsel %vm2593, %v2543, 0.0
          %v2611 = vsel %vm2593, %v2544, 0.0
          %v2612 = vsel %vm2593, %v2545, 0.0
          %v2613 = vsel %vm2593, %v2546, 0.0
          %v2614 = vsel %vm2593, %v2547, 0.0
          %v2615 = vsel %vm2593, %v2548, 0.0
          %v2616 = vsel %vm2593, %v2549, 0.0
          %v2617 = vsel %vm2593, %v2550, 0.0
          %v2618 = vsel %vm2593, %v2551, 0.0
          %v2619 = vsel %vm2593, %v2552, 0.0
          %v2620 = vsel %vm2593, %v2553, 0.0
          %v2621 = vsel %vm2593, %v2554, 0.0
          %v2622 = vsel %vm2593, %v2555, 0.0
          %v2623 = vsel %vm2593, %v2556, 0.0
          %v2624 = vsel %vm2593, %v2557, 0.0
          %v2625 = vsel %vm2593, %v2558, 0.0
          %v2626 = vadd.f32 %v2559, %v2594
          %v2627 = vadd.f32 %v2560, %v2595
          %v2628 = vadd.f32 %v2561, %v2596
          %v2629 = vadd.f32 %v2562, %v2597
          %v2630 = vadd.f32 %v2563, %v2598
          %v2631 = vadd.f32 %v2564, %v2599
          %v2632 = vadd.f32 %v2565, %v2600
          %v2633 = vadd.f32 %v2566, %v2601
          %v2634 = vadd.f32 %v2567, %v2602
          %v2635 = vadd.f32 %v2568, %v2603
          %v2636 = vadd.f32 %v2569, %v2604
          %v2637 = vadd.f32 %v2570, %v2605
          %v2638 = vadd.f32 %v2571, %v2606
          %v2639 = vadd.f32 %v2572, %v2607
          %v2640 = vadd.f32 %v2573, %v2608
          %v2641 = vadd.f32 %v2574, %v2609
          %v2642 = vadd.f32 %v2575, %v2610
          %v2643 = vadd.f32 %v2576, %v2611
          %v2644 = vadd.f32 %v2577, %v2612
          %v2645 = vadd.f32 %v2578, %v2613
          %v2646 = vadd.f32 %v2579, %v2614
          %v2647 = vadd.f32 %v2580, %v2615
          %v2648 = vadd.f32 %v2581, %v2616
          %v2649 = vadd.f32 %v2582, %v2617
          %v2650 = vadd.f32 %v2583, %v2618
          %v2651 = vadd.f32 %v2584, %v2619
          %v2652 = vadd.f32 %v2585, %v2620
          %v2653 = vadd.f32 %v2586, %v2621
          %v2654 = vadd.f32 %v2587, %v2622
          %v2655 = vadd.f32 %v2588, %v2623
          %v2656 = vadd.f32 %v2589, %v2624
          %v2657 = vadd.f32 %v2590, %v2625
          %2658 = vst [vmem:[#allocation2] sm:$0xff] %v2626
          %2659 = vst [vmem:[#allocation2 + $0x8] sm:$0xff] %v2627
          %2660 = vst [vmem:[#allocation2 + $0x10] sm:$0xff] %v2628
          %2661 = vst [vmem:[#allocation2 + $0x18] sm:$0xff] %v2629
          %2662 = vst [vmem:[#allocation2 + $0x20] sm:$0xff] %v2630
          %2663 = vst [vmem:[#allocation2 + $0x28] sm:$0xff] %v2631
          %2664 = vst [vmem:[#allocation2 + $0x30] sm:$0xff] %v2632
          %2665 = vst [vmem:[#allocation2 + $0x38] sm:$0xff] %v2633
          %2666 = vst [vmem:[#allocation2 + $0x40] sm:$0xff] %v2634
          %2667 = vst [vmem:[#allocation2 + $0x48] sm:$0xff] %v2635
          %2668 = vst [vmem:[#allocation2 + $0x50] sm:$0xff] %v2636
          %2669 = vst [vmem:[#allocation2 + $0x58] sm:$0xff] %v2637
          %2670 = vst [vmem:[#allocation2 + $0x60] sm:$0xff] %v2638
          %2671 = vst [vmem:[#allocation2 + $0x68] sm:$0xff] %v2639
          %2672 = vst [vmem:[#allocation2 + $0x70] sm:$0xff] %v2640
          %2673 = vst [vmem:[#allocation2 + $0x78] sm:$0xff] %v2641
          %2674 = vst [vmem:[#allocation2 + $0x80] sm:$0xff] %v2642
          %2675 = vst [vmem:[#allocation2 + $0x88] sm:$0xff] %v2643
          %2676 = vst [vmem:[#allocation2 + $0x90] sm:$0xff] %v2644
          %2677 = vst [vmem:[#allocation2 + $0x98] sm:$0xff] %v2645
          %2678 = vst [vmem:[#allocation2 + $0xa0] sm:$0xff] %v2646
          %2679 = vst [vmem:[#allocation2 + $0xa8] sm:$0xff] %v2647
          %2680 = vst [vmem:[#allocation2 + $0xb0] sm:$0xff] %v2648
          %2681 = vst [vmem:[#allocation2 + $0xb8] sm:$0xff] %v2649
          %2682 = vst [vmem:[#allocation2 + $0xc0] sm:$0xff] %v2650
          %2683 = vst [vmem:[#allocation2 + $0xc8] sm:$0xff] %v2651
          %2684 = vst [vmem:[#allocation2 + $0xd0] sm:$0xff] %v2652
          %2685 = vst [vmem:[#allocation2 + $0xd8] sm:$0xff] %v2653
          %2686 = vst [vmem:[#allocation2 + $0xe0] sm:$0xff] %v2654
          %2687 = vst [vmem:[#allocation2 + $0xe8] sm:$0xff] %v2655
          %2688 = vst [vmem:[#allocation2 + $0xf0] sm:$0xff] %v2656
          %2689 = vst [vmem:[#allocation2 + $0xf8] sm:$0xff] %v2657
          %v2690 = vld [vmem:[#allocation2] sm:$0xff]
          %v2691 = vld [vmem:[#allocation2 + $0x8] sm:$0xff]
          %v2692 = vld [vmem:[#allocation2 + $0x10] sm:$0xff]
          %v2693 = vld [vmem:[#allocation2 + $0x18] sm:$0xff]
          %v2694 = vld [vmem:[#allocation2 + $0x20] sm:$0xff]
          %v2695 = vld [vmem:[#allocation2 + $0x28] sm:$0xff]
          %v2696 = vld [vmem:[#allocation2 + $0x30] sm:$0xff]
          %v2697 = vld [vmem:[#allocation2 + $0x38] sm:$0xff]
          %v2698 = vld [vmem:[#allocation2 + $0x40] sm:$0xff]
          %v2699 = vld [vmem:[#allocation2 + $0x48] sm:$0xff]
          %v2700 = vld [vmem:[#allocation2 + $0x50] sm:$0xff]
          %v2701 = vld [vmem:[#allocation2 + $0x58] sm:$0xff]
          %v2702 = vld [vmem:[#allocation2 + $0x60] sm:$0xff]
          %v2703 = vld [vmem:[#allocation2 + $0x68] sm:$0xff]
          %v2704 = vld [vmem:[#allocation2 + $0x70] sm:$0xff]
          %v2705 = vld [vmem:[#allocation2 + $0x78] sm:$0xff]
          %v2706 = vld [vmem:[#allocation2 + $0x80] sm:$0xff]
          %v2707 = vld [vmem:[#allocation2 + $0x88] sm:$0xff]
          %v2708 = vld [vmem:[#allocation2 + $0x90] sm:$0xff]
          %v2709 = vld [vmem:[#allocation2 + $0x98] sm:$0xff]
          %v2710 = vld [vmem:[#allocation2 + $0xa0] sm:$0xff]
          %v2711 = vld [vmem:[#allocation2 + $0xa8] sm:$0xff]
          %v2712 = vld [vmem:[#allocation2 + $0xb0] sm:$0xff]
          %v2713 = vld [vmem:[#allocation2 + $0xb8] sm:$0xff]
          %v2714 = vld [vmem:[#allocation2 + $0xc0] sm:$0xff]
          %v2715 = vld [vmem:[#allocation2 + $0xc8] sm:$0xff]
          %v2716 = vld [vmem:[#allocation2 + $0xd0] sm:$0xff]
          %v2717 = vld [vmem:[#allocation2 + $0xd8] sm:$0xff]
          %v2718 = vld [vmem:[#allocation2 + $0xe0] sm:$0xff]
          %v2719 = vld [vmem:[#allocation2 + $0xe8] sm:$0xff]
          %v2720 = vld [vmem:[#allocation2 + $0xf0] sm:$0xff]
          %v2721 = vld [vmem:[#allocation2 + $0xf8] sm:$0xff]
          %2722 = vadd.xlane.f32.xlu0 %v2690
          %v2723 = vpop.xlane.xlu0 %2722
          %2724 = vadd.xlane.f32.xlu0 %v2691
          %v2725 = vpop.xlane.xlu0 %2724
          %2726 = vadd.xlane.f32.xlu0 %v2692
          %v2727 = vpop.xlane.xlu0 %2726
          %2728 = vadd.xlane.f32.xlu0 %v2693
          %v2729 = vpop.xlane.xlu0 %2728
          %2730 = vadd.xlane.f32.xlu0 %v2694
          %v2731 = vpop.xlane.xlu0 %2730
          %2732 = vadd.xlane.f32.xlu0 %v2695
          %v2733 = vpop.xlane.xlu0 %2732
          %2734 = vadd.xlane.f32.xlu0 %v2696
          %v2735 = vpop.xlane.xlu0 %2734
          %2736 = vadd.xlane.f32.xlu0 %v2697
          %v2737 = vpop.xlane.xlu0 %2736
          %2738 = vadd.xlane.f32.xlu0 %v2698
          %v2739 = vpop.xlane.xlu0 %2738
          %2740 = vadd.xlane.f32.xlu0 %v2699
          %v2741 = vpop.xlane.xlu0 %2740
          %2742 = vadd.xlane.f32.xlu0 %v2700
          %v2743 = vpop.xlane.xlu0 %2742
          %2744 = vadd.xlane.f32.xlu0 %v2701
          %v2745 = vpop.xlane.xlu0 %2744
          %2746 = vadd.xlane.f32.xlu0 %v2702
          %v2747 = vpop.xlane.xlu0 %2746
          %2748 = vadd.xlane.f32.xlu0 %v2703
          %v2749 = vpop.xlane.xlu0 %2748
          %2750 = vadd.xlane.f32.xlu0 %v2704
          %v2751 = vpop.xlane.xlu0 %2750
          %2752 = vadd.xlane.f32.xlu0 %v2705
          %v2753 = vpop.xlane.xlu0 %2752
          %2754 = vadd.xlane.f32.xlu0 %v2706
          %v2755 = vpop.xlane.xlu0 %2754
          %2756 = vadd.xlane.f32.xlu0 %v2707
          %v2757 = vpop.xlane.xlu0 %2756
          %2758 = vadd.xlane.f32.xlu0 %v2708
          %v2759 = vpop.xlane.xlu0 %2758
          %2760 = vadd.xlane.f32.xlu0 %v2709
          %v2761 = vpop.xlane.xlu0 %2760
          %2762 = vadd.xlane.f32.xlu0 %v2710
          %v2763 = vpop.xlane.xlu0 %2762
          %2764 = vadd.xlane.f32.xlu0 %v2711
          %v2765 = vpop.xlane.xlu0 %2764
          %2766 = vadd.xlane.f32.xlu0 %v2712
          %v2767 = vpop.xlane.xlu0 %2766
          %2768 = vadd.xlane.f32.xlu0 %v2713
          %v2769 = vpop.xlane.xlu0 %2768
          %2770 = vadd.xlane.f32.xlu0 %v2714
          %v2771 = vpop.xlane.xlu0 %2770
          %2772 = vadd.xlane.f32.xlu0 %v2715
          %v2773 = vpop.xlane.xlu0 %2772
          %2774 = vadd.xlane.f32.xlu0 %v2716
          %v2775 = vpop.xlane.xlu0 %2774
          %2776 = vadd.xlane.f32.xlu0 %v2717
          %v2777 = vpop.xlane.xlu0 %2776
          %2778 = vadd.xlane.f32.xlu0 %v2718
          %v2779 = vpop.xlane.xlu0 %2778
          %2780 = vadd.xlane.f32.xlu0 %v2719
          %v2781 = vpop.xlane.xlu0 %2780
          %2782 = vadd.xlane.f32.xlu0 %v2720
          %v2783 = vpop.xlane.xlu0 %2782
          %2784 = vadd.xlane.f32.xlu0 %v2721
          %v2785 = vpop.xlane.xlu0 %2784
          %v2786 = vmul.f32 %v2723, 0.00074404763
          %v2787 = vmul.f32 %v2725, 0.00074404763
          %v2788 = vmul.f32 %v2727, 0.00074404763
          %v2789 = vmul.f32 %v2729, 0.00074404763
          %v2790 = vmul.f32 %v2731, 0.00074404763
          %v2791 = vmul.f32 %v2733, 0.00074404763
          %v2792 = vmul.f32 %v2735, 0.00074404763
          %v2793 = vmul.f32 %v2737, 0.00074404763
          %v2794 = vmul.f32 %v2739, 0.00074404763
          %v2795 = vmul.f32 %v2741, 0.00074404763
          %v2796 = vmul.f32 %v2743, 0.00074404763
          %v2797 = vmul.f32 %v2745, 0.00074404763
          %v2798 = vmul.f32 %v2747, 0.00074404763
          %v2799 = vmul.f32 %v2749, 0.00074404763
          %v2800 = vmul.f32 %v2751, 0.00074404763
          %v2801 = vmul.f32 %v2753, 0.00074404763
          %v2802 = vmul.f32 %v2755, 0.00074404763
          %v2803 = vmul.f32 %v2757, 0.00074404763
          %v2804 = vmul.f32 %v2759, 0.00074404763
          %v2805 = vmul.f32 %v2761, 0.00074404763
          %v2806 = vmul.f32 %v2763, 0.00074404763
          %v2807 = vmul.f32 %v2765, 0.00074404763
          %v2808 = vmul.f32 %v2767, 0.00074404763
          %v2809 = vmul.f32 %v2769, 0.00074404763
          %v2810 = vmul.f32 %v2771, 0.00074404763
          %v2811 = vmul.f32 %v2773, 0.00074404763
          %v2812 = vmul.f32 %v2775, 0.00074404763
          %v2813 = vmul.f32 %v2777, 0.00074404763
          %v2814 = vmul.f32 %v2779, 0.00074404763
          %v2815 = vmul.f32 %v2781, 0.00074404763
          %v2816 = vmul.f32 %v2783, 0.00074404763
          %v2817 = vmul.f32 %v2785, 0.00074404763
          %v2818 = vld [vmem:[%s1187] sm:$0xff]
          %v2819 = vld [vmem:[%s1187 + $0x8] sm:$0xff]
          %v2820 = vld [vmem:[%s1187 + $0x10] sm:$0xff]
          %v2821 = vld [vmem:[%s1187 + $0x18] sm:$0xff]
          %v2822 = vld [vmem:[%s1187 + $0x20] sm:$0xff]
          %v2823 = vld [vmem:[%s1187 + $0x28] sm:$0xff]
          %v2824 = vld [vmem:[%s1187 + $0x30] sm:$0xff]
          %v2825 = vld [vmem:[%s1187 + $0x38] sm:$0xff]
          %v2826 = vld [vmem:[%s1187 + $0x40] sm:$0xff]
          %v2827 = vld [vmem:[%s1187 + $0x48] sm:$0xff]
          %v2828 = vld [vmem:[%s1187 + $0x50] sm:$0xff]
          %v2829 = vld [vmem:[%s1187 + $0x58] sm:$0xff]
          %v2830 = vld [vmem:[%s1187 + $0x60] sm:$0xff]
          %v2831 = vld [vmem:[%s1187 + $0x68] sm:$0xff]
          %v2832 = vld [vmem:[%s1187 + $0x70] sm:$0xff]
          %v2833 = vld [vmem:[%s1187 + $0x78] sm:$0xff]
          %v2834 = vld [vmem:[%s1187 + $0x80] sm:$0xff]
          %v2835 = vld [vmem:[%s1187 + $0x88] sm:$0xff]
          %v2836 = vld [vmem:[%s1187 + $0x90] sm:$0xff]
          %v2837 = vld [vmem:[%s1187 + $0x98] sm:$0xff]
          %v2838 = vld [vmem:[%s1187 + $0xa0] sm:$0xff]
          %v2839 = vld [vmem:[%s1187 + $0xa8] sm:$0xff]
          %v2840 = vld [vmem:[%s1187 + $0xb0] sm:$0xff]
          %v2841 = vld [vmem:[%s1187 + $0xb8] sm:$0xff]
          %v2842 = vld [vmem:[%s1187 + $0xc0] sm:$0xff]
          %v2843 = vld [vmem:[%s1187 + $0xc8] sm:$0xff]
          %v2844 = vld [vmem:[%s1187 + $0xd0] sm:$0xff]
          %v2845 = vld [vmem:[%s1187 + $0xd8] sm:$0xff]
          %v2846 = vld [vmem:[%s1187 + $0xe0] sm:$0xff]
          %v2847 = vld [vmem:[%s1187 + $0xe8] sm:$0xff]
          %v2848 = vld [vmem:[%s1187 + $0xf0] sm:$0xff]
          %v2849 = vld [vmem:[%s1187 + $0xf8] sm:$0xff]
          %v2850 = vld [vmem:[%s1187 + $0x100] sm:$0xff]
          %v2851 = vld [vmem:[%s1187 + $0x108] sm:$0xff]
          %v2852 = vld [vmem:[%s1187 + $0x110] sm:$0xff]
          %v2853 = vld [vmem:[%s1187 + $0x118] sm:$0xff]
          %v2854 = vld [vmem:[%s1187 + $0x120] sm:$0xff]
          %v2855 = vld [vmem:[%s1187 + $0x128] sm:$0xff]
          %v2856 = vld [vmem:[%s1187 + $0x130] sm:$0xff]
          %v2857 = vld [vmem:[%s1187 + $0x138] sm:$0xff]
          %v2858 = vld [vmem:[%s1187 + $0x140] sm:$0xff]
          %v2859 = vld [vmem:[%s1187 + $0x148] sm:$0xff]
          %v2860 = vld [vmem:[%s1187 + $0x150] sm:$0xff]
          %v2861 = vld [vmem:[%s1187 + $0x158] sm:$0xff]
          %v2862 = vld [vmem:[%s1187 + $0x160] sm:$0xff]
          %v2863 = vld [vmem:[%s1187 + $0x168] sm:$0xff]
          %v2864 = vld [vmem:[%s1187 + $0x170] sm:$0xff]
          %v2865 = vld [vmem:[%s1187 + $0x178] sm:$0xff]
          %v2866 = vld [vmem:[%s1187 + $0x180] sm:$0xff]
          %v2867 = vld [vmem:[%s1187 + $0x188] sm:$0xff]
          %v2868 = vld [vmem:[%s1187 + $0x190] sm:$0xff]
          %v2869 = vld [vmem:[%s1187 + $0x198] sm:$0xff]
          %v2870 = vld [vmem:[%s1187 + $0x1a0] sm:$0xff]
          %v2871 = vld [vmem:[%s1187 + $0x1a8] sm:$0xff]
          %v2872 = vld [vmem:[%s1187 + $0x1b0] sm:$0xff]
          %v2873 = vld [vmem:[%s1187 + $0x1b8] sm:$0xff]
          %v2874 = vld [vmem:[%s1187 + $0x1c0] sm:$0xff]
          %v2875 = vld [vmem:[%s1187 + $0x1c8] sm:$0xff]
          %v2876 = vld [vmem:[%s1187 + $0x1d0] sm:$0xff]
          %v2877 = vld [vmem:[%s1187 + $0x1d8] sm:$0xff]
          %v2878 = vld [vmem:[%s1187 + $0x1e0] sm:$0xff]
          %v2879 = vld [vmem:[%s1187 + $0x1e8] sm:$0xff]
          %v2880 = vld [vmem:[%s1187 + $0x1f0] sm:$0xff]
          %v2881 = vld [vmem:[%s1187 + $0x1f8] sm:$0xff]
          %v2882 = vadd.f32 %v2818, %v2819
          %2883 = vadd.xlane.f32.xlu0 %v2882
          %v2884 = vpop.xlane.xlu0 %2883
          %v2885 = vadd.f32 %v2820, %v2821
          %2886 = vadd.xlane.f32.xlu0 %v2885
          %v2887 = vpop.xlane.xlu0 %2886
          %v2888 = vadd.f32 %v2822, %v2823
          %2889 = vadd.xlane.f32.xlu0 %v2888
          %v2890 = vpop.xlane.xlu0 %2889
          %v2891 = vadd.f32 %v2824, %v2825
          %2892 = vadd.xlane.f32.xlu0 %v2891
          %v2893 = vpop.xlane.xlu0 %2892
          %v2894 = vadd.f32 %v2826, %v2827
          %2895 = vadd.xlane.f32.xlu0 %v2894
          %v2896 = vpop.xlane.xlu0 %2895
          %v2897 = vadd.f32 %v2828, %v2829
          %2898 = vadd.xlane.f32.xlu0 %v2897
          %v2899 = vpop.xlane.xlu0 %2898
          %v2900 = vadd.f32 %v2830, %v2831
          %2901 = vadd.xlane.f32.xlu0 %v2900
          %v2902 = vpop.xlane.xlu0 %2901
          %v2903 = vadd.f32 %v2832, %v2833
          %2904 = vadd.xlane.f32.xlu0 %v2903
          %v2905 = vpop.xlane.xlu0 %2904
          %v2906 = vadd.f32 %v2834, %v2835
          %2907 = vadd.xlane.f32.xlu0 %v2906
          %v2908 = vpop.xlane.xlu0 %2907
          %v2909 = vadd.f32 %v2836, %v2837
          %2910 = vadd.xlane.f32.xlu0 %v2909
          %v2911 = vpop.xlane.xlu0 %2910
          %v2912 = vadd.f32 %v2838, %v2839
          %2913 = vadd.xlane.f32.xlu0 %v2912
          %v2914 = vpop.xlane.xlu0 %2913
          %v2915 = vadd.f32 %v2840, %v2841
          %2916 = vadd.xlane.f32.xlu0 %v2915
          %v2917 = vpop.xlane.xlu0 %2916
          %v2918 = vadd.f32 %v2842, %v2843
          %2919 = vadd.xlane.f32.xlu0 %v2918
          %v2920 = vpop.xlane.xlu0 %2919
          %v2921 = vadd.f32 %v2844, %v2845
          %2922 = vadd.xlane.f32.xlu0 %v2921
          %v2923 = vpop.xlane.xlu0 %2922
          %v2924 = vadd.f32 %v2846, %v2847
          %2925 = vadd.xlane.f32.xlu0 %v2924
          %v2926 = vpop.xlane.xlu0 %2925
          %v2927 = vadd.f32 %v2848, %v2849
          %2928 = vadd.xlane.f32.xlu0 %v2927
          %v2929 = vpop.xlane.xlu0 %2928
          %v2930 = vadd.f32 %v2850, %v2851
          %2931 = vadd.xlane.f32.xlu0 %v2930
          %v2932 = vpop.xlane.xlu0 %2931
          %v2933 = vadd.f32 %v2852, %v2853
          %2934 = vadd.xlane.f32.xlu0 %v2933
          %v2935 = vpop.xlane.xlu0 %2934
          %v2936 = vadd.f32 %v2854, %v2855
          %2937 = vadd.xlane.f32.xlu0 %v2936
          %v2938 = vpop.xlane.xlu0 %2937
          %v2939 = vadd.f32 %v2856, %v2857
          %2940 = vadd.xlane.f32.xlu0 %v2939
          %v2941 = vpop.xlane.xlu0 %2940
          %v2942 = vadd.f32 %v2858, %v2859
          %2943 = vadd.xlane.f32.xlu0 %v2942
          %v2944 = vpop.xlane.xlu0 %2943
          %v2945 = vadd.f32 %v2860, %v2861
          %2946 = vadd.xlane.f32.xlu0 %v2945
          %v2947 = vpop.xlane.xlu0 %2946
          %v2948 = vadd.f32 %v2862, %v2863
          %2949 = vadd.xlane.f32.xlu0 %v2948
          %v2950 = vpop.xlane.xlu0 %2949
          %v2951 = vadd.f32 %v2864, %v2865
          %2952 = vadd.xlane.f32.xlu0 %v2951
          %v2953 = vpop.xlane.xlu0 %2952
          %v2954 = vadd.f32 %v2866, %v2867
          %2955 = vadd.xlane.f32.xlu0 %v2954
          %v2956 = vpop.xlane.xlu0 %2955
          %v2957 = vadd.f32 %v2868, %v2869
          %2958 = vadd.xlane.f32.xlu0 %v2957
          %v2959 = vpop.xlane.xlu0 %2958
          %v2960 = vadd.f32 %v2870, %v2871
          %2961 = vadd.xlane.f32.xlu0 %v2960
          %v2962 = vpop.xlane.xlu0 %2961
          %v2963 = vadd.f32 %v2872, %v2873
          %2964 = vadd.xlane.f32.xlu0 %v2963
          %v2965 = vpop.xlane.xlu0 %2964
          %v2966 = vadd.f32 %v2874, %v2875
          %2967 = vadd.xlane.f32.xlu0 %v2966
          %v2968 = vpop.xlane.xlu0 %2967
          %v2969 = vadd.f32 %v2876, %v2877
          %2970 = vadd.xlane.f32.xlu0 %v2969
          %v2971 = vpop.xlane.xlu0 %2970
          %v2972 = vadd.f32 %v2878, %v2879
          %2973 = vadd.xlane.f32.xlu0 %v2972
          %v2974 = vpop.xlane.xlu0 %2973
          %v2975 = vadd.f32 %v2880, %v2881
          %2976 = vadd.xlane.f32.xlu0 %v2975
          %v2977 = vpop.xlane.xlu0 %2976
          %v2978 = vmul.f32 %v2884, 0.00390625
          %v2979 = vmul.f32 %v2887, 0.00390625
          %v2980 = vmul.f32 %v2890, 0.00390625
          %v2981 = vmul.f32 %v2893, 0.00390625
          %v2982 = vmul.f32 %v2896, 0.00390625
          %v2983 = vmul.f32 %v2899, 0.00390625
          %v2984 = vmul.f32 %v2902, 0.00390625
          %v2985 = vmul.f32 %v2905, 0.00390625
          %v2986 = vmul.f32 %v2908, 0.00390625
          %v2987 = vmul.f32 %v2911, 0.00390625
          %v2988 = vmul.f32 %v2914, 0.00390625
          %v2989 = vmul.f32 %v2917, 0.00390625
          %v2990 = vmul.f32 %v2920, 0.00390625
          %v2991 = vmul.f32 %v2923, 0.00390625
          %v2992 = vmul.f32 %v2926, 0.00390625
          %v2993 = vmul.f32 %v2929, 0.00390625
          %v2994 = vmul.f32 %v2932, 0.00390625
          %v2995 = vmul.f32 %v2935, 0.00390625
          %v2996 = vmul.f32 %v2938, 0.00390625
          %v2997 = vmul.f32 %v2941, 0.00390625
          %v2998 = vmul.f32 %v2944, 0.00390625
          %v2999 = vmul.f32 %v2947, 0.00390625
          %v3000 = vmul.f32 %v2950, 0.00390625
          %v3001 = vmul.f32 %v2953, 0.00390625
          %v3002 = vmul.f32 %v2956, 0.00390625
          %v3003 = vmul.f32 %v2959, 0.00390625
          %v3004 = vmul.f32 %v2962, 0.00390625
          %v3005 = vmul.f32 %v2965, 0.00390625
          %v3006 = vmul.f32 %v2968, 0.00390625
          %v3007 = vmul.f32 %v2971, 0.00390625
          %v3008 = vmul.f32 %v2974, 0.00390625
          %v3009 = vmul.f32 %v2977, 0.00390625
          %v3010 = vld [vmem:[%s1192] sm:$0xff]
          %v3011 = vld [vmem:[%s1192 + $0x8] sm:$0xff]
          %v3012 = vld [vmem:[%s1192 + $0x10] sm:$0xff]
          %v3013 = vld [vmem:[%s1192 + $0x18] sm:$0xff]
          %v3014 = vld [vmem:[%s1192 + $0x20] sm:$0xff]
          %v3015 = vld [vmem:[%s1192 + $0x28] sm:$0xff]
          %v3016 = vld [vmem:[%s1192 + $0x30] sm:$0xff]
          %v3017 = vld [vmem:[%s1192 + $0x38] sm:$0xff]
          %v3018 = vld [vmem:[%s1192 + $0x40] sm:$0xff]
          %v3019 = vld [vmem:[%s1192 + $0x48] sm:$0xff]
          %v3020 = vld [vmem:[%s1192 + $0x50] sm:$0xff]
          %v3021 = vld [vmem:[%s1192 + $0x58] sm:$0xff]
          %v3022 = vld [vmem:[%s1192 + $0x60] sm:$0xff]
          %v3023 = vld [vmem:[%s1192 + $0x68] sm:$0xff]
          %v3024 = vld [vmem:[%s1192 + $0x70] sm:$0xff]
          %v3025 = vld [vmem:[%s1192 + $0x78] sm:$0xff]
          %v3026 = vld [vmem:[%s1192 + $0x80] sm:$0xff]
          %v3027 = vld [vmem:[%s1192 + $0x88] sm:$0xff]
          %v3028 = vld [vmem:[%s1192 + $0x90] sm:$0xff]
          %v3029 = vld [vmem:[%s1192 + $0x98] sm:$0xff]
          %v3030 = vld [vmem:[%s1192 + $0xa0] sm:$0xff]
          %v3031 = vld [vmem:[%s1192 + $0xa8] sm:$0xff]
          %v3032 = vld [vmem:[%s1192 + $0xb0] sm:$0xff]
          %v3033 = vld [vmem:[%s1192 + $0xb8] sm:$0xff]
          %v3034 = vld [vmem:[%s1192 + $0xc0] sm:$0xff]
          %v3035 = vld [vmem:[%s1192 + $0xc8] sm:$0xff]
          %v3036 = vld [vmem:[%s1192 + $0xd0] sm:$0xff]
          %v3037 = vld [vmem:[%s1192 + $0xd8] sm:$0xff]
          %v3038 = vld [vmem:[%s1192 + $0xe0] sm:$0xff]
          %v3039 = vld [vmem:[%s1192 + $0xe8] sm:$0xff]
          %v3040 = vld [vmem:[%s1192 + $0xf0] sm:$0xff]
          %v3041 = vld [vmem:[%s1192 + $0xf8] sm:$0xff]
          %vm3042 = vcmask 261120
          %v3043 = vsel %vm3042, %v3010, 0.0
          %3044 = vadd.xlane.f32.xlu0 %v3043
          %v3045 = vpop.xlane.xlu0 %3044
          %v3046 = vsel %vm3042, %v3011, 0.0
          %3047 = vadd.xlane.f32.xlu0 %v3046
          %v3048 = vpop.xlane.xlu0 %3047
          %v3049 = vsel %vm3042, %v3012, 0.0
          %3050 = vadd.xlane.f32.xlu0 %v3049
          %v3051 = vpop.xlane.xlu0 %3050
          %v3052 = vsel %vm3042, %v3013, 0.0
          %3053 = vadd.xlane.f32.xlu0 %v3052
          %v3054 = vpop.xlane.xlu0 %3053
          %v3055 = vsel %vm3042, %v3014, 0.0
          %3056 = vadd.xlane.f32.xlu0 %v3055
          %v3057 = vpop.xlane.xlu0 %3056
          %v3058 = vsel %vm3042, %v3015, 0.0
          %3059 = vadd.xlane.f32.xlu0 %v3058
          %v3060 = vpop.xlane.xlu0 %3059
          %v3061 = vsel %vm3042, %v3016, 0.0
          %3062 = vadd.xlane.f32.xlu0 %v3061
          %v3063 = vpop.xlane.xlu0 %3062
          %v3064 = vsel %vm3042, %v3017, 0.0
          %3065 = vadd.xlane.f32.xlu0 %v3064
          %v3066 = vpop.xlane.xlu0 %3065
          %v3067 = vsel %vm3042, %v3018, 0.0
          %3068 = vadd.xlane.f32.xlu0 %v3067
          %v3069 = vpop.xlane.xlu0 %3068
          %v3070 = vsel %vm3042, %v3019, 0.0
          %3071 = vadd.xlane.f32.xlu0 %v3070
          %v3072 = vpop.xlane.xlu0 %3071
          %v3073 = vsel %vm3042, %v3020, 0.0
          %3074 = vadd.xlane.f32.xlu0 %v3073
          %v3075 = vpop.xlane.xlu0 %3074
          %v3076 = vsel %vm3042, %v3021, 0.0
          %3077 = vadd.xlane.f32.xlu0 %v3076
          %v3078 = vpop.xlane.xlu0 %3077
          %v3079 = vsel %vm3042, %v3022, 0.0
          %3080 = vadd.xlane.f32.xlu0 %v3079
          %v3081 = vpop.xlane.xlu0 %3080
          %v3082 = vsel %vm3042, %v3023, 0.0
          %3083 = vadd.xlane.f32.xlu0 %v3082
          %v3084 = vpop.xlane.xlu0 %3083
          %v3085 = vsel %vm3042, %v3024, 0.0
          %3086 = vadd.xlane.f32.xlu0 %v3085
          %v3087 = vpop.xlane.xlu0 %3086
          %v3088 = vsel %vm3042, %v3025, 0.0
          %3089 = vadd.xlane.f32.xlu0 %v3088
          %v3090 = vpop.xlane.xlu0 %3089
          %v3091 = vsel %vm3042, %v3026, 0.0
          %3092 = vadd.xlane.f32.xlu0 %v3091
          %v3093 = vpop.xlane.xlu0 %3092
          %v3094 = vsel %vm3042, %v3027, 0.0
          %3095 = vadd.xlane.f32.xlu0 %v3094
          %v3096 = vpop.xlane.xlu0 %3095
          %v3097 = vsel %vm3042, %v3028, 0.0
          %3098 = vadd.xlane.f32.xlu0 %v3097
          %v3099 = vpop.xlane.xlu0 %3098
          %v3100 = vsel %vm3042, %v3029, 0.0
          %3101 = vadd.xlane.f32.xlu0 %v3100
          %v3102 = vpop.xlane.xlu0 %3101
          %v3103 = vsel %vm3042, %v3030, 0.0
          %3104 = vadd.xlane.f32.xlu0 %v3103
          %v3105 = vpop.xlane.xlu0 %3104
          %v3106 = vsel %vm3042, %v3031, 0.0
          %3107 = vadd.xlane.f32.xlu0 %v3106
          %v3108 = vpop.xlane.xlu0 %3107
          %v3109 = vsel %vm3042, %v3032, 0.0
          %3110 = vadd.xlane.f32.xlu0 %v3109
          %v3111 = vpop.xlane.xlu0 %3110
          %v3112 = vsel %vm3042, %v3033, 0.0
          %3113 = vadd.xlane.f32.xlu0 %v3112
          %v3114 = vpop.xlane.xlu0 %3113
          %v3115 = vsel %vm3042, %v3034, 0.0
          %3116 = vadd.xlane.f32.xlu0 %v3115
          %v3117 = vpop.xlane.xlu0 %3116
          %v3118 = vsel %vm3042, %v3035, 0.0
          %3119 = vadd.xlane.f32.xlu0 %v3118
          %v3120 = vpop.xlane.xlu0 %3119
          %v3121 = vsel %vm3042, %v3036, 0.0
          %3122 = vadd.xlane.f32.xlu0 %v3121
          %v3123 = vpop.xlane.xlu0 %3122
          %v3124 = vsel %vm3042, %v3037, 0.0
          %3125 = vadd.xlane.f32.xlu0 %v3124
          %v3126 = vpop.xlane.xlu0 %3125
          %v3127 = vsel %vm3042, %v3038, 0.0
          %3128 = vadd.xlane.f32.xlu0 %v3127
          %v3129 = vpop.xlane.xlu0 %3128
          %v3130 = vsel %vm3042, %v3039, 0.0
          %3131 = vadd.xlane.f32.xlu0 %v3130
          %v3132 = vpop.xlane.xlu0 %3131
          %v3133 = vsel %vm3042, %v3040, 0.0
          %3134 = vadd.xlane.f32.xlu0 %v3133
          %v3135 = vpop.xlane.xlu0 %3134
          %v3136 = vsel %vm3042, %v3041, 0.0
          %3137 = vadd.xlane.f32.xlu0 %v3136
          %v3138 = vpop.xlane.xlu0 %3137
          %v3139 = vmul.f32 %v3045, 0.03125
          %v3140 = vmul.f32 %v3048, 0.03125
          %v3141 = vmul.f32 %v3051, 0.03125
          %v3142 = vmul.f32 %v3054, 0.03125
          %v3143 = vmul.f32 %v3057, 0.03125
          %v3144 = vmul.f32 %v3060, 0.03125
          %v3145 = vmul.f32 %v3063, 0.03125
          %v3146 = vmul.f32 %v3066, 0.03125
          %v3147 = vmul.f32 %v3069, 0.03125
          %v3148 = vmul.f32 %v3072, 0.03125
          %v3149 = vmul.f32 %v3075, 0.03125
          %v3150 = vmul.f32 %v3078, 0.03125
          %v3151 = vmul.f32 %v3081, 0.03125
          %v3152 = vmul.f32 %v3084, 0.03125
          %v3153 = vmul.f32 %v3087, 0.03125
          %v3154 = vmul.f32 %v3090, 0.03125
          %v3155 = vmul.f32 %v3093, 0.03125
          %v3156 = vmul.f32 %v3096, 0.03125
          %v3157 = vmul.f32 %v3099, 0.03125
          %v3158 = vmul.f32 %v3102, 0.03125
          %v3159 = vmul.f32 %v3105, 0.03125
          %v3160 = vmul.f32 %v3108, 0.03125
          %v3161 = vmul.f32 %v3111, 0.03125
          %v3162 = vmul.f32 %v3114, 0.03125
          %v3163 = vmul.f32 %v3117, 0.03125
          %v3164 = vmul.f32 %v3120, 0.03125
          %v3165 = vmul.f32 %v3123, 0.03125
          %v3166 = vmul.f32 %v3126, 0.03125
          %v3167 = vmul.f32 %v3129, 0.03125
          %v3168 = vmul.f32 %v3132, 0.03125
          %v3169 = vmul.f32 %v3135, 0.03125
          %v3170 = vmul.f32 %v3138, 0.03125
          %v3171 = vld [vmem:[%s1197] sm:$0xff]
          %v3172 = vld [vmem:[%s1197 + $0x8] sm:$0xff]
          %v3173 = vld [vmem:[%s1197 + $0x10] sm:$0xff]
          %v3174 = vld [vmem:[%s1197 + $0x18] sm:$0xff]
          %v3175 = vld [vmem:[%s1197 + $0x20] sm:$0xff]
          %v3176 = vld [vmem:[%s1197 + $0x28] sm:$0xff]
          %v3177 = vld [vmem:[%s1197 + $0x30] sm:$0xff]
          %v3178 = vld [vmem:[%s1197 + $0x38] sm:$0xff]
          %v3179 = vld [vmem:[%s1197 + $0x40] sm:$0xff]
          %v3180 = vld [vmem:[%s1197 + $0x48] sm:$0xff]
          %v3181 = vld [vmem:[%s1197 + $0x50] sm:$0xff]
          %v3182 = vld [vmem:[%s1197 + $0x58] sm:$0xff]
          %v3183 = vld [vmem:[%s1197 + $0x60] sm:$0xff]
          %v3184 = vld [vmem:[%s1197 + $0x68] sm:$0xff]
          %v3185 = vld [vmem:[%s1197 + $0x70] sm:$0xff]
          %v3186 = vld [vmem:[%s1197 + $0x78] sm:$0xff]
          %v3187 = vld [vmem:[%s1197 + $0x80] sm:$0xff]
          %v3188 = vld [vmem:[%s1197 + $0x88] sm:$0xff]
          %v3189 = vld [vmem:[%s1197 + $0x90] sm:$0xff]
          %v3190 = vld [vmem:[%s1197 + $0x98] sm:$0xff]
          %v3191 = vld [vmem:[%s1197 + $0xa0] sm:$0xff]
          %v3192 = vld [vmem:[%s1197 + $0xa8] sm:$0xff]
          %v3193 = vld [vmem:[%s1197 + $0xb0] sm:$0xff]
          %v3194 = vld [vmem:[%s1197 + $0xb8] sm:$0xff]
          %v3195 = vld [vmem:[%s1197 + $0xc0] sm:$0xff]
          %v3196 = vld [vmem:[%s1197 + $0xc8] sm:$0xff]
          %v3197 = vld [vmem:[%s1197 + $0xd0] sm:$0xff]
          %v3198 = vld [vmem:[%s1197 + $0xd8] sm:$0xff]
          %v3199 = vld [vmem:[%s1197 + $0xe0] sm:$0xff]
          %v3200 = vld [vmem:[%s1197 + $0xe8] sm:$0xff]
          %v3201 = vld [vmem:[%s1197 + $0xf0] sm:$0xff]
          %v3202 = vld [vmem:[%s1197 + $0xf8] sm:$0xff]
          %vm3203 = vcmask 31744
          %v3204 = vsel %vm3203, %v3171, 0.0
          %3205 = vadd.xlane.f32.xlu0 %v3204
          %v3206 = vpop.xlane.xlu0 %3205
          %v3207 = vsel %vm3203, %v3172, 0.0
          %3208 = vadd.xlane.f32.xlu0 %v3207
          %v3209 = vpop.xlane.xlu0 %3208
          %v3210 = vsel %vm3203, %v3173, 0.0
          %3211 = vadd.xlane.f32.xlu0 %v3210
          %v3212 = vpop.xlane.xlu0 %3211
          %v3213 = vsel %vm3203, %v3174, 0.0
          %3214 = vadd.xlane.f32.xlu0 %v3213
          %v3215 = vpop.xlane.xlu0 %3214
          %v3216 = vsel %vm3203, %v3175, 0.0
          %3217 = vadd.xlane.f32.xlu0 %v3216
          %v3218 = vpop.xlane.xlu0 %3217
          %v3219 = vsel %vm3203, %v3176, 0.0
          %3220 = vadd.xlane.f32.xlu0 %v3219
          %v3221 = vpop.xlane.xlu0 %3220
          %v3222 = vsel %vm3203, %v3177, 0.0
          %3223 = vadd.xlane.f32.xlu0 %v3222
          %v3224 = vpop.xlane.xlu0 %3223
          %v3225 = vsel %vm3203, %v3178, 0.0
          %3226 = vadd.xlane.f32.xlu0 %v3225
          %v3227 = vpop.xlane.xlu0 %3226
          %v3228 = vsel %vm3203, %v3179, 0.0
          %3229 = vadd.xlane.f32.xlu0 %v3228
          %v3230 = vpop.xlane.xlu0 %3229
          %v3231 = vsel %vm3203, %v3180, 0.0
          %3232 = vadd.xlane.f32.xlu0 %v3231
          %v3233 = vpop.xlane.xlu0 %3232
          %v3234 = vsel %vm3203, %v3181, 0.0
          %3235 = vadd.xlane.f32.xlu0 %v3234
          %v3236 = vpop.xlane.xlu0 %3235
          %v3237 = vsel %vm3203, %v3182, 0.0
          %3238 = vadd.xlane.f32.xlu0 %v3237
          %v3239 = vpop.xlane.xlu0 %3238
          %v3240 = vsel %vm3203, %v3183, 0.0
          %3241 = vadd.xlane.f32.xlu0 %v3240
          %v3242 = vpop.xlane.xlu0 %3241
          %v3243 = vsel %vm3203, %v3184, 0.0
          %3244 = vadd.xlane.f32.xlu0 %v3243
          %v3245 = vpop.xlane.xlu0 %3244
          %v3246 = vsel %vm3203, %v3185, 0.0
          %3247 = vadd.xlane.f32.xlu0 %v3246
          %v3248 = vpop.xlane.xlu0 %3247
          %v3249 = vsel %vm3203, %v3186, 0.0
          %3250 = vadd.xlane.f32.xlu0 %v3249
          %v3251 = vpop.xlane.xlu0 %3250
          %v3252 = vsel %vm3203, %v3187, 0.0
          %3253 = vadd.xlane.f32.xlu0 %v3252
          %v3254 = vpop.xlane.xlu0 %3253
          %v3255 = vsel %vm3203, %v3188, 0.0
          %3256 = vadd.xlane.f32.xlu0 %v3255
          %v3257 = vpop.xlane.xlu0 %3256
          %v3258 = vsel %vm3203, %v3189, 0.0
          %3259 = vadd.xlane.f32.xlu0 %v3258
          %v3260 = vpop.xlane.xlu0 %3259
          %v3261 = vsel %vm3203, %v3190, 0.0
          %3262 = vadd.xlane.f32.xlu0 %v3261
          %v3263 = vpop.xlane.xlu0 %3262
          %v3264 = vsel %vm3203, %v3191, 0.0
          %3265 = vadd.xlane.f32.xlu0 %v3264
          %v3266 = vpop.xlane.xlu0 %3265
          %v3267 = vsel %vm3203, %v3192, 0.0
          %3268 = vadd.xlane.f32.xlu0 %v3267
          %v3269 = vpop.xlane.xlu0 %3268
          %v3270 = vsel %vm3203, %v3193, 0.0
          %3271 = vadd.xlane.f32.xlu0 %v3270
          %v3272 = vpop.xlane.xlu0 %3271
          %v3273 = vsel %vm3203, %v3194, 0.0
          %3274 = vadd.xlane.f32.xlu0 %v3273
          %v3275 = vpop.xlane.xlu0 %3274
          %v3276 = vsel %vm3203, %v3195, 0.0
          %3277 = vadd.xlane.f32.xlu0 %v3276
          %v3278 = vpop.xlane.xlu0 %3277
          %v3279 = vsel %vm3203, %v3196, 0.0
          %3280 = vadd.xlane.f32.xlu0 %v3279
          %v3281 = vpop.xlane.xlu0 %3280
          %v3282 = vsel %vm3203, %v3197, 0.0
          %3283 = vadd.xlane.f32.xlu0 %v3282
          %v3284 = vpop.xlane.xlu0 %3283
          %v3285 = vsel %vm3203, %v3198, 0.0
          %3286 = vadd.xlane.f32.xlu0 %v3285
          %v3287 = vpop.xlane.xlu0 %3286
          %v3288 = vsel %vm3203, %v3199, 0.0
          %3289 = vadd.xlane.f32.xlu0 %v3288
          %v3290 = vpop.xlane.xlu0 %3289
          %v3291 = vsel %vm3203, %v3200, 0.0
          %3292 = vadd.xlane.f32.xlu0 %v3291
          %v3293 = vpop.xlane.xlu0 %3292
          %v3294 = vsel %vm3203, %v3201, 0.0
          %3295 = vadd.xlane.f32.xlu0 %v3294
          %v3296 = vpop.xlane.xlu0 %3295
          %v3297 = vsel %vm3203, %v3202, 0.0
          %3298 = vadd.xlane.f32.xlu0 %v3297
          %v3299 = vpop.xlane.xlu0 %3298
          %v3300 = vmul.f32 %v3206, 0.25
          %v3301 = vmul.f32 %v3209, 0.25
          %v3302 = vmul.f32 %v3212, 0.25
          %v3303 = vmul.f32 %v3215, 0.25
          %v3304 = vmul.f32 %v3218, 0.25
          %v3305 = vmul.f32 %v3221, 0.25
          %v3306 = vmul.f32 %v3224, 0.25
          %v3307 = vmul.f32 %v3227, 0.25
          %v3308 = vmul.f32 %v3230, 0.25
          %v3309 = vmul.f32 %v3233, 0.25
          %v3310 = vmul.f32 %v3236, 0.25
          %v3311 = vmul.f32 %v3239, 0.25
          %v3312 = vmul.f32 %v3242, 0.25
          %v3313 = vmul.f32 %v3245, 0.25
          %v3314 = vmul.f32 %v3248, 0.25
          %v3315 = vmul.f32 %v3251, 0.25
          %v3316 = vmul.f32 %v3254, 0.25
          %v3317 = vmul.f32 %v3257, 0.25
          %v3318 = vmul.f32 %v3260, 0.25
          %v3319 = vmul.f32 %v3263, 0.25
          %v3320 = vmul.f32 %v3266, 0.25
          %v3321 = vmul.f32 %v3269, 0.25
          %v3322 = vmul.f32 %v3272, 0.25
          %v3323 = vmul.f32 %v3275, 0.25
          %v3324 = vmul.f32 %v3278, 0.25
          %v3325 = vmul.f32 %v3281, 0.25
          %v3326 = vmul.f32 %v3284, 0.25
          %v3327 = vmul.f32 %v3287, 0.25
          %v3328 = vmul.f32 %v3290, 0.25
          %v3329 = vmul.f32 %v3293, 0.25
          %v3330 = vmul.f32 %v3296, 0.25
          %v3331 = vmul.f32 %v3299, 0.25
          %v3332 = vld [vmem:[%s1200] sm:$0x1]
          %v3333 = vld [vmem:[%s5] sm:$0xff]
          %v3334 = vld [vmem:[%s5 + $0x8] sm:$0xff]
          %v3335 = vld [vmem:[%s5 + $0x10] sm:$0xff]
          %v3336 = vld [vmem:[%s5 + $0x18] sm:$0xff]
          %v3337 = vld [vmem:[%s5 + $0x20] sm:$0xff]
          %v3338 = vld [vmem:[%s5 + $0x28] sm:$0xff]
          %v3339 = vld [vmem:[%s5 + $0x30] sm:$0xff]
          %v3340 = vld [vmem:[%s5 + $0x38] sm:$0xff]
          %v3341 = vld [vmem:[%s5 + $0x40] sm:$0xff]
          %v3342 = vld [vmem:[%s5 + $0x48] sm:$0xff]
          %v3343 = vld [vmem:[%s5 + $0x50] sm:$0xff]
          %v3344 = vld [vmem:[%s5 + $0x58] sm:$0xff]
          %v3345 = vld [vmem:[%s5 + $0x60] sm:$0xff]
          %v3346 = vld [vmem:[%s5 + $0x68] sm:$0xff]
          %v3347 = vld [vmem:[%s5 + $0x70] sm:$0xff]
          %v3348 = vld [vmem:[%s5 + $0x78] sm:$0xff]
          %v3349 = vld [vmem:[%s5 + $0x80] sm:$0xff]
          %v3350 = vld [vmem:[%s5 + $0x88] sm:$0xff]
          %v3351 = vld [vmem:[%s5 + $0x90] sm:$0xff]
          %v3352 = vld [vmem:[%s5 + $0x98] sm:$0xff]
          %v3353 = vld [vmem:[%s5 + $0xa0] sm:$0xff]
          %v3354 = vld [vmem:[%s5 + $0xa8] sm:$0xff]
          %v3355 = vld [vmem:[%s5 + $0xb0] sm:$0xff]
          %v3356 = vld [vmem:[%s5 + $0xb8] sm:$0xff]
          %v3357 = vld [vmem:[%s5 + $0xc0] sm:$0xff]
          %v3358 = vld [vmem:[%s5 + $0xc8] sm:$0xff]
          %v3359 = vld [vmem:[%s5 + $0xd0] sm:$0xff]
          %v3360 = vld [vmem:[%s5 + $0xd8] sm:$0xff]
          %v3361 = vld [vmem:[%s5 + $0xe0] sm:$0xff]
          %v3362 = vld [vmem:[%s5 + $0xe8] sm:$0xff]
          %v3363 = vld [vmem:[%s5 + $0xf0] sm:$0xff]
          %v3364 = vld [vmem:[%s5 + $0xf8] sm:$0xff]
          %v3365 = vld [vmem:[%s5 + $0x100] sm:$0xff]
          %v3366 = vld [vmem:[%s5 + $0x108] sm:$0xff]
          %v3367 = vld [vmem:[%s5 + $0x110] sm:$0xff]
          %v3368 = vld [vmem:[%s5 + $0x118] sm:$0xff]
          %v3369 = vld [vmem:[%s5 + $0x120] sm:$0xff]
          %v3370 = vld [vmem:[%s5 + $0x128] sm:$0xff]
          %v3371 = vld [vmem:[%s5 + $0x130] sm:$0xff]
          %v3372 = vld [vmem:[%s5 + $0x138] sm:$0xff]
          %v3373 = vld [vmem:[%s5 + $0x140] sm:$0xff]
          %v3374 = vld [vmem:[%s5 + $0x148] sm:$0xff]
          %v3375 = vld [vmem:[%s5 + $0x150] sm:$0xff]
          %v3376 = vld [vmem:[%s5 + $0x158] sm:$0xff]
          %v3377 = vld [vmem:[%s5 + $0x160] sm:$0xff]
          %v3378 = vld [vmem:[%s5 + $0x168] sm:$0xff]
          %v3379 = vld [vmem:[%s5 + $0x170] sm:$0xff]
          %v3380 = vld [vmem:[%s5 + $0x178] sm:$0xff]
          %v3381 = vld [vmem:[%s5 + $0x180] sm:$0xff]
          %v3382 = vld [vmem:[%s5 + $0x188] sm:$0xff]
          %v3383 = vld [vmem:[%s5 + $0x190] sm:$0xff]
          %v3384 = vld [vmem:[%s5 + $0x198] sm:$0xff]
          %v3385 = vld [vmem:[%s5 + $0x1a0] sm:$0xff]
          %v3386 = vld [vmem:[%s5 + $0x1a8] sm:$0xff]
          %v3387 = vld [vmem:[%s5 + $0x1b0] sm:$0xff]
          %v3388 = vld [vmem:[%s5 + $0x1b8] sm:$0xff]
          %v3389 = vld [vmem:[%s5 + $0x1c0] sm:$0xff]
          %v3390 = vld [vmem:[%s5 + $0x1c8] sm:$0xff]
          %v3391 = vld [vmem:[%s5 + $0x1d0] sm:$0xff]
          %v3392 = vld [vmem:[%s5 + $0x1d8] sm:$0xff]
          %v3393 = vld [vmem:[%s5 + $0x1e0] sm:$0xff]
          %v3394 = vld [vmem:[%s5 + $0x1e8] sm:$0xff]
          %v3395 = vld [vmem:[%s5 + $0x1f0] sm:$0xff]
          %v3396 = vld [vmem:[%s5 + $0x1f8] sm:$0xff]
          %v3397 = vld [vmem:[%s6] sm:$0xf]
          %v3399 = vlaneseq
          %v3400 = vshrl.u32 %v3399, 7
          %v3401 = vsub.s32 0, %v3400
          %v3402 = vrot.slane %v3397, %v3401
          %v3403 = vlaneseq
          %v3404 = vshrl.u32 %v3403, 7
          %v3405 = vsub.s32 1, %v3404
          %v3406 = vrot.slane %v3397, %v3405
          %v3407 = vlaneseq
          %v3408 = vshrl.u32 %v3407, 7
          %v3409 = vsub.s32 2, %v3408
          %v3410 = vrot.slane %v3397, %v3409
          %v3411 = vlaneseq
          %v3412 = vshrl.u32 %v3411, 7
          %v3413 = vsub.s32 3, %v3412
          %v3414 = vrot.slane %v3397, %v3413
          %3419 = vmatprep.subr.mxu0 %v3394
          %3420 = vmatpush1.msra.mxu0 %v3393
          %3421 = vmatprep.subr.mxu0 %v3390
          %3422 = vmatpush1.msra.mxu0 %v3389
          %3423 = vmatprep.subr.mxu0 %v3386
          %3424 = vmatpush1.msra.mxu0 %v3385
          %3425 = vmatprep.subr.mxu0 %v3382
          %3426 = vmatpush1.msra.mxu0 %v3381
          %3427 = vmatprep.subr.mxu0 %v3378
          %3428 = vmatpush1.msra.mxu0 %v3377
          %3429 = vmatprep.subr.mxu0 %v3374
          %3430 = vmatpush1.msra.mxu0 %v3373
          %3431 = vmatprep.subr.mxu0 %v3370
          %3432 = vmatpush1.msra.mxu0 %v3369
          %3433 = vmatprep.subr.mxu0 %v3366
          %3434 = vmatpush1.msra.mxu0 %v3365
          %3435 = vmatprep.subr.mxu0 %v3362
          %3436 = vmatpush1.msra.mxu0 %v3361
          %3437 = vmatprep.subr.mxu0 %v3358
          %3438 = vmatpush1.msra.mxu0 %v3357
          %3439 = vmatprep.subr.mxu0 %v3354
          %3440 = vmatpush1.msra.mxu0 %v3353
          %3441 = vmatprep.subr.mxu0 %v3350
          %3442 = vmatpush1.msra.mxu0 %v3349
          %3443 = vmatprep.subr.mxu0 %v3346
          %3444 = vmatpush1.msra.mxu0 %v3345
          %3445 = vmatprep.subr.mxu0 %v3342
          %3446 = vmatpush1.msra.mxu0 %v3341
          %3447 = vmatprep.subr.mxu0 %v3338
          %3448 = vmatpush1.msra.mxu0 %v3337
          %3449 = vmatprep.subr.mxu0 %v3334
          %3450 = vmatpush1.msra.mxu0 %v3333
          %3451 = vmatprep.subr.mxu0 0.0
          %3452 = vmatpush2.msra.mxu0 0.0
          %3453 = vmatprep.subr.mxu0 0.0
          %3454 = vmatpush2.msra.mxu0 0.0
          %3455 = vmatprep.subr.mxu0 0.0
          %3456 = vmatpush2.msra.mxu0 0.0
          %3457 = vmatprep.subr.mxu0 0.0
          %3458 = vmatpush2.msra.mxu0 0.0
          %3459 = vmatprep.subr.mxu0 0.0
          %3460 = vmatpush2.msra.mxu0 0.0
          %3461 = vmatprep.subr.mxu0 0.0
          %3462 = vmatpush2.msra.mxu0 0.0
          %3463 = vmatprep.subr.mxu0 0.0
          %3464 = vmatpush2.msra.mxu0 0.0
          %3465 = vmatprep.subr.mxu0 0.0
          %3466 = vmatpush2.msra.mxu0 0.0
          %3467 = vmatprep.subr.mxu0 0.0
          %3468 = vmatpush2.msra.mxu0 0.0
          %3469 = vmatprep.subr.mxu0 0.0
          %3470 = vmatpush2.msra.mxu0 0.0
          %3471 = vmatprep.subr.mxu0 0.0
          %3472 = vmatpush2.msra.mxu0 0.0
          %3473 = vmatprep.subr.mxu0 0.0
          %3474 = vmatpush2.msra.mxu0 0.0
          %3475 = vmatprep.subr.mxu0 0.0
          %3476 = vmatpush2.msra.mxu0 0.0
          %3477 = vmatprep.subr.mxu0 0.0
          %3478 = vmatpush2.msra.mxu0 0.0
          %3479 = vmatprep.subr.mxu0 0.0
          %3480 = vmatpush2.msra.mxu0 0.0
          %3481 = vmatprep.subr.mxu0 0.0
          %3482 = vmatpush2.msra.mxu0 0.0
          %3483 = vmatprep.mubr.f32.mxu0 0.0
          %3484 = vmatmul.mubr.f32.gmra.mxu0 %v3332
          %v3485 = vpop.f32.mrf.mxu0
          %v3486 = vadd.f32 %v3402, %v3485
          %v3487 = vpop.f32.mrf.mxu0
          %v3488 = vadd.f32 %v3406, %v3487
          %3489 = vdwg.mxu0
          %3490 = vmatprep.subr.mxu0 %v3396
          %3491 = vmatpush1.msra.mxu0 %v3395
          %3492 = vmatprep.subr.mxu0 %v3392
          %3493 = vmatpush1.msra.mxu0 %v3391
          %3494 = vmatprep.subr.mxu0 %v3388
          %3495 = vmatpush1.msra.mxu0 %v3387
          %3496 = vmatprep.subr.mxu0 %v3384
          %3497 = vmatpush1.msra.mxu0 %v3383
          %3498 = vmatprep.subr.mxu0 %v3380
          %3499 = vmatpush1.msra.mxu0 %v3379
          %3500 = vmatprep.subr.mxu0 %v3376
          %3501 = vmatpush1.msra.mxu0 %v3375
          %3502 = vmatprep.subr.mxu0 %v3372
          %3503 = vmatpush1.msra.mxu0 %v3371
          %3504 = vmatprep.subr.mxu0 %v3368
          %3505 = vmatpush1.msra.mxu0 %v3367
          %3506 = vmatprep.subr.mxu0 %v3364
          %3507 = vmatpush1.msra.mxu0 %v3363
          %3508 = vmatprep.subr.mxu0 %v3360
          %3509 = vmatpush1.msra.mxu0 %v3359
          %3510 = vmatprep.subr.mxu0 %v3356
          %3511 = vmatpush1.msra.mxu0 %v3355
          %3512 = vmatprep.subr.mxu0 %v3352
          %3513 = vmatpush1.msra.mxu0 %v3351
          %3514 = vmatprep.subr.mxu0 %v3348
          %3515 = vmatpush1.msra.mxu0 %v3347
          %3516 = vmatprep.subr.mxu0 %v3344
          %3517 = vmatpush1.msra.mxu0 %v3343
          %3518 = vmatprep.subr.mxu0 %v3340
          %3519 = vmatpush1.msra.mxu0 %v3339
          %3520 = vmatprep.subr.mxu0 %v3336
          %3521 = vmatpush1.msra.mxu0 %v3335
          %3522 = vmatprep.subr.mxu0 0.0
          %3523 = vmatpush2.msra.mxu0 0.0
          %3524 = vmatprep.subr.mxu0 0.0
          %3525 = vmatpush2.msra.mxu0 0.0
          %3526 = vmatprep.subr.mxu0 0.0
          %3527 = vmatpush2.msra.mxu0 0.0
          %3528 = vmatprep.subr.mxu0 0.0
          %3529 = vmatpush2.msra.mxu0 0.0
          %3530 = vmatprep.subr.mxu0 0.0
          %3531 = vmatpush2.msra.mxu0 0.0
          %3532 = vmatprep.subr.mxu0 0.0
          %3533 = vmatpush2.msra.mxu0 0.0
          %3534 = vmatprep.subr.mxu0 0.0
          %3535 = vmatpush2.msra.mxu0 0.0
          %3536 = vmatprep.subr.mxu0 0.0
          %3537 = vmatpush2.msra.mxu0 0.0
          %3538 = vmatprep.subr.mxu0 0.0
          %3539 = vmatpush2.msra.mxu0 0.0
          %3540 = vmatprep.subr.mxu0 0.0
          %3541 = vmatpush2.msra.mxu0 0.0
          %3542 = vmatprep.subr.mxu0 0.0
          %3543 = vmatpush2.msra.mxu0 0.0
          %3544 = vmatprep.subr.mxu0 0.0
          %3545 = vmatpush2.msra.mxu0 0.0
          %3546 = vmatprep.subr.mxu0 0.0
          %3547 = vmatpush2.msra.mxu0 0.0
          %3548 = vmatprep.subr.mxu0 0.0
          %3549 = vmatpush2.msra.mxu0 0.0
          %3550 = vmatprep.subr.mxu0 0.0
          %3551 = vmatpush2.msra.mxu0 0.0
          %3552 = vmatprep.subr.mxu0 0.0
          %3553 = vmatpush2.msra.mxu0 0.0
          %3554 = vmatprep.mubr.f32.mxu0 0.0
          %3555 = vmatmul.mubr.f32.gmra.mxu0 %v3332
          %v3556 = vpop.f32.mrf.mxu0
          %v3557 = vadd.f32 %v3410, %v3556
          %v3558 = vpop.f32.mrf.mxu0
          %v3559 = vadd.f32 %v3414, %v3558
          %3560 = vdwg.mxu0
          %vm3561 = vcmask 1040384
          %v3562 = vsel %vm3561, %v3486, 0.0
          %v3563 = vsel %vm3561, %v3488, 0.0
          %v3564 = vadd.f32 %v3562, %v3563
          %v3565 = vsel %vm3561, %v3557, 0.0
          %v3566 = vadd.f32 %v3564, %v3565
          %v3567 = vsel %vm3561, %v3559, 0.0
          %v3568 = vadd.f32 %v3566, %v3567
          %3569 = vadd.xlane.f32.xlu0 %v3568
          %v3570 = vpop.xlane.xlu0 %3569
          %v3571 = vrcp.pop 512.0
          %v3572 = vmul.f32 %v3570, %v3571
          %v3573 = vsub.f32 %v3486, %v3572
          %v3574 = vsub.f32 %v3488, %v3572
          %v3575 = vsub.f32 %v3557, %v3572
          %v3576 = vsub.f32 %v3559, %v3572
          %v3577 = vmul.f32 %v3573, %v3573
          %v3578 = vmul.f32 %v3574, %v3574
          %v3579 = vmul.f32 %v3575, %v3575
          %v3580 = vmul.f32 %v3576, %v3576
          %v3581 = vsel %vm3561, %v3577, 0.0
          %v3582 = vsel %vm3561, %v3578, 0.0
          %v3583 = vadd.f32 %v3581, %v3582
          %v3584 = vsel %vm3561, %v3579, 0.0
          %v3585 = vadd.f32 %v3583, %v3584
          %v3586 = vsel %vm3561, %v3580, 0.0
          %v3587 = vadd.f32 %v3585, %v3586
          %3588 = vadd.xlane.f32.xlu0 %v3587
          %v3589 = vpop.xlane.xlu0 %3588
          %v3590 = vmul.f32 %v3589, %v3571
          %v3591 = vadd.f32 %v3590, 1e-05
          %v3592 = vrsqrt.pop %v3591
          %v3593 = vmul.f32 %v3573, %v3592
          %v3594 = vmul.f32 %v3574, %v3592
          %v3595 = vmul.f32 %v3575, %v3592
          %v3596 = vmul.f32 %v3576, %v3592
          %v3597 = vld [vmem:[%s7] sm:$0xf]
          %v3599 = vlaneseq
          %v3600 = vshrl.u32 %v3599, 7
          %v3601 = vsub.s32 0, %v3600
          %v3602 = vrot.slane %v3597, %v3601
          %v3603 = vlaneseq
          %v3604 = vshrl.u32 %v3603, 7
          %v3605 = vsub.s32 1, %v3604
          %v3606 = vrot.slane %v3597, %v3605
          %v3607 = vlaneseq
          %v3608 = vshrl.u32 %v3607, 7
          %v3609 = vsub.s32 2, %v3608
          %v3610 = vrot.slane %v3597, %v3609
          %v3611 = vlaneseq
          %v3612 = vshrl.u32 %v3611, 7
          %v3613 = vsub.s32 3, %v3612
          %v3614 = vrot.slane %v3597, %v3613
          %v3619 = vmul.f32 %v3593, %v3602
          %v3620 = vmul.f32 %v3594, %v3606
          %v3621 = vmul.f32 %v3595, %v3610
          %v3622 = vmul.f32 %v3596, %v3614
          %v3623 = vld [vmem:[%s8] sm:$0xf]
          %v3625 = vlaneseq
          %v3626 = vshrl.u32 %v3625, 7
          %v3627 = vsub.s32 0, %v3626
          %v3628 = vrot.slane %v3623, %v3627
          %v3629 = vlaneseq
          %v3630 = vshrl.u32 %v3629, 7
          %v3631 = vsub.s32 1, %v3630
          %v3632 = vrot.slane %v3623, %v3631
          %v3633 = vlaneseq
          %v3634 = vshrl.u32 %v3633, 7
          %v3635 = vsub.s32 2, %v3634
          %v3636 = vrot.slane %v3623, %v3635
          %v3637 = vlaneseq
          %v3638 = vshrl.u32 %v3637, 7
          %v3639 = vsub.s32 3, %v3638
          %v3640 = vrot.slane %v3623, %v3639
          %v3645 = vadd.f32 %v3619, %v3628
          %v3646 = vadd.f32 %v3620, %v3632
          %v3647 = vadd.f32 %v3621, %v3636
          %v3648 = vadd.f32 %v3622, %v3640
          %v3649 = vmax.f32 %v3645, 0.0
          %v3650 = vmax.f32 %v3646, 0.0
          %v3651 = vmax.f32 %v3647, 0.0
          %v3652 = vmax.f32 %v3648, 0.0
          %v3653 = vld [vmem:[%s9] sm:$0xff]
          %v3654 = vld [vmem:[%s9 + $0x8] sm:$0xff]
          %v3655 = vld [vmem:[%s9 + $0x10] sm:$0xff]
          %v3656 = vld [vmem:[%s9 + $0x18] sm:$0xff]
          %v3657 = vld [vmem:[%s9 + $0x20] sm:$0xff]
          %v3658 = vld [vmem:[%s9 + $0x28] sm:$0xff]
          %v3659 = vld [vmem:[%s9 + $0x30] sm:$0xff]
          %v3660 = vld [vmem:[%s9 + $0x38] sm:$0xff]
          %v3661 = vld [vmem:[%s9 + $0x40] sm:$0xff]
          %v3662 = vld [vmem:[%s9 + $0x48] sm:$0xff]
          %v3663 = vld [vmem:[%s9 + $0x50] sm:$0xff]
          %v3664 = vld [vmem:[%s9 + $0x58] sm:$0xff]
          %v3665 = vld [vmem:[%s9 + $0x60] sm:$0xff]
          %v3666 = vld [vmem:[%s9 + $0x68] sm:$0xff]
          %v3667 = vld [vmem:[%s9 + $0x70] sm:$0xff]
          %v3668 = vld [vmem:[%s9 + $0x78] sm:$0xff]
          %v3669 = vld [vmem:[%s9 + $0x80] sm:$0xff]
          %v3670 = vld [vmem:[%s9 + $0x88] sm:$0xff]
          %v3671 = vld [vmem:[%s9 + $0x90] sm:$0xff]
          %v3672 = vld [vmem:[%s9 + $0x98] sm:$0xff]
          %v3673 = vld [vmem:[%s9 + $0xa0] sm:$0xff]
          %v3674 = vld [vmem:[%s9 + $0xa8] sm:$0xff]
          %v3675 = vld [vmem:[%s9 + $0xb0] sm:$0xff]
          %v3676 = vld [vmem:[%s9 + $0xb8] sm:$0xff]
          %v3677 = vld [vmem:[%s9 + $0xc0] sm:$0xff]
          %v3678 = vld [vmem:[%s9 + $0xc8] sm:$0xff]
          %v3679 = vld [vmem:[%s9 + $0xd0] sm:$0xff]
          %v3680 = vld [vmem:[%s9 + $0xd8] sm:$0xff]
          %v3681 = vld [vmem:[%s9 + $0xe0] sm:$0xff]
          %v3682 = vld [vmem:[%s9 + $0xe8] sm:$0xff]
          %v3683 = vld [vmem:[%s9 + $0xf0] sm:$0xff]
          %v3684 = vld [vmem:[%s9 + $0xf8] sm:$0xff]
          %v3685 = vld [vmem:[%s9 + $0x100] sm:$0xff]
          %v3686 = vld [vmem:[%s9 + $0x108] sm:$0xff]
          %v3687 = vld [vmem:[%s9 + $0x110] sm:$0xff]
          %v3688 = vld [vmem:[%s9 + $0x118] sm:$0xff]
          %v3689 = vld [vmem:[%s9 + $0x120] sm:$0xff]
          %v3690 = vld [vmem:[%s9 + $0x128] sm:$0xff]
          %v3691 = vld [vmem:[%s9 + $0x130] sm:$0xff]
          %v3692 = vld [vmem:[%s9 + $0x138] sm:$0xff]
          %v3693 = vld [vmem:[%s9 + $0x140] sm:$0xff]
          %v3694 = vld [vmem:[%s9 + $0x148] sm:$0xff]
          %v3695 = vld [vmem:[%s9 + $0x150] sm:$0xff]
          %v3696 = vld [vmem:[%s9 + $0x158] sm:$0xff]
          %v3697 = vld [vmem:[%s9 + $0x160] sm:$0xff]
          %v3698 = vld [vmem:[%s9 + $0x168] sm:$0xff]
          %v3699 = vld [vmem:[%s9 + $0x170] sm:$0xff]
          %v3700 = vld [vmem:[%s9 + $0x178] sm:$0xff]
          %v3701 = vld [vmem:[%s9 + $0x180] sm:$0xff]
          %v3702 = vld [vmem:[%s9 + $0x188] sm:$0xff]
          %v3703 = vld [vmem:[%s9 + $0x190] sm:$0xff]
          %v3704 = vld [vmem:[%s9 + $0x198] sm:$0xff]
          %v3705 = vld [vmem:[%s9 + $0x1a0] sm:$0xff]
          %v3706 = vld [vmem:[%s9 + $0x1a8] sm:$0xff]
          %v3707 = vld [vmem:[%s9 + $0x1b0] sm:$0xff]
          %v3708 = vld [vmem:[%s9 + $0x1b8] sm:$0xff]
          %v3709 = vld [vmem:[%s9 + $0x1c0] sm:$0xff]
          %v3710 = vld [vmem:[%s9 + $0x1c8] sm:$0xff]
          %v3711 = vld [vmem:[%s9 + $0x1d0] sm:$0xff]
          %v3712 = vld [vmem:[%s9 + $0x1d8] sm:$0xff]
          %v3713 = vld [vmem:[%s9 + $0x1e0] sm:$0xff]
          %v3714 = vld [vmem:[%s9 + $0x1e8] sm:$0xff]
          %v3715 = vld [vmem:[%s9 + $0x1f0] sm:$0xff]
          %v3716 = vld [vmem:[%s9 + $0x1f8] sm:$0xff]
          %v3717 = vld [vmem:[%s9 + $0x200] sm:$0xff]
          %v3718 = vld [vmem:[%s9 + $0x208] sm:$0xff]
          %v3719 = vld [vmem:[%s9 + $0x210] sm:$0xff]
          %v3720 = vld [vmem:[%s9 + $0x218] sm:$0xff]
          %v3721 = vld [vmem:[%s9 + $0x220] sm:$0xff]
          %v3722 = vld [vmem:[%s9 + $0x228] sm:$0xff]
          %v3723 = vld [vmem:[%s9 + $0x230] sm:$0xff]
          %v3724 = vld [vmem:[%s9 + $0x238] sm:$0xff]
          %v3725 = vld [vmem:[%s9 + $0x240] sm:$0xff]
          %v3726 = vld [vmem:[%s9 + $0x248] sm:$0xff]
          %v3727 = vld [vmem:[%s9 + $0x250] sm:$0xff]
          %v3728 = vld [vmem:[%s9 + $0x258] sm:$0xff]
          %v3729 = vld [vmem:[%s9 + $0x260] sm:$0xff]
          %v3730 = vld [vmem:[%s9 + $0x268] sm:$0xff]
          %v3731 = vld [vmem:[%s9 + $0x270] sm:$0xff]
          %v3732 = vld [vmem:[%s9 + $0x278] sm:$0xff]
          %v3733 = vld [vmem:[%s9 + $0x280] sm:$0xff]
          %v3734 = vld [vmem:[%s9 + $0x288] sm:$0xff]
          %v3735 = vld [vmem:[%s9 + $0x290] sm:$0xff]
          %v3736 = vld [vmem:[%s9 + $0x298] sm:$0xff]
          %v3737 = vld [vmem:[%s9 + $0x2a0] sm:$0xff]
          %v3738 = vld [vmem:[%s9 + $0x2a8] sm:$0xff]
          %v3739 = vld [vmem:[%s9 + $0x2b0] sm:$0xff]
          %v3740 = vld [vmem:[%s9 + $0x2b8] sm:$0xff]
          %v3741 = vld [vmem:[%s9 + $0x2c0] sm:$0xff]
          %v3742 = vld [vmem:[%s9 + $0x2c8] sm:$0xff]
          %v3743 = vld [vmem:[%s9 + $0x2d0] sm:$0xff]
          %v3744 = vld [vmem:[%s9 + $0x2d8] sm:$0xff]
          %v3745 = vld [vmem:[%s9 + $0x2e0] sm:$0xff]
          %v3746 = vld [vmem:[%s9 + $0x2e8] sm:$0xff]
          %v3747 = vld [vmem:[%s9 + $0x2f0] sm:$0xff]
          %v3748 = vld [vmem:[%s9 + $0x2f8] sm:$0xff]
          %v3749 = vld [vmem:[%s9 + $0x300] sm:$0xff]
          %v3750 = vld [vmem:[%s9 + $0x308] sm:$0xff]
          %v3751 = vld [vmem:[%s9 + $0x310] sm:$0xff]
          %v3752 = vld [vmem:[%s9 + $0x318] sm:$0xff]
          %v3753 = vld [vmem:[%s9 + $0x320] sm:$0xff]
          %v3754 = vld [vmem:[%s9 + $0x328] sm:$0xff]
          %v3755 = vld [vmem:[%s9 + $0x330] sm:$0xff]
          %v3756 = vld [vmem:[%s9 + $0x338] sm:$0xff]
          %v3757 = vld [vmem:[%s9 + $0x340] sm:$0xff]
          %v3758 = vld [vmem:[%s9 + $0x348] sm:$0xff]
          %v3759 = vld [vmem:[%s9 + $0x350] sm:$0xff]
          %v3760 = vld [vmem:[%s9 + $0x358] sm:$0xff]
          %v3761 = vld [vmem:[%s9 + $0x360] sm:$0xff]
          %v3762 = vld [vmem:[%s9 + $0x368] sm:$0xff]
          %v3763 = vld [vmem:[%s9 + $0x370] sm:$0xff]
          %v3764 = vld [vmem:[%s9 + $0x378] sm:$0xff]
          %v3765 = vld [vmem:[%s9 + $0x380] sm:$0xff]
          %v3766 = vld [vmem:[%s9 + $0x388] sm:$0xff]
          %v3767 = vld [vmem:[%s9 + $0x390] sm:$0xff]
          %v3768 = vld [vmem:[%s9 + $0x398] sm:$0xff]
          %v3769 = vld [vmem:[%s9 + $0x3a0] sm:$0xff]
          %v3770 = vld [vmem:[%s9 + $0x3a8] sm:$0xff]
          %v3771 = vld [vmem:[%s9 + $0x3b0] sm:$0xff]
          %v3772 = vld [vmem:[%s9 + $0x3b8] sm:$0xff]
          %v3773 = vld [vmem:[%s9 + $0x3c0] sm:$0xff]
          %v3774 = vld [vmem:[%s9 + $0x3c8] sm:$0xff]
          %v3775 = vld [vmem:[%s9 + $0x3d0] sm:$0xff]
          %v3776 = vld [vmem:[%s9 + $0x3d8] sm:$0xff]
          %v3777 = vld [vmem:[%s9 + $0x3e0] sm:$0xff]
          %v3778 = vld [vmem:[%s9 + $0x3e8] sm:$0xff]
          %v3779 = vld [vmem:[%s9 + $0x3f0] sm:$0xff]
          %v3780 = vld [vmem:[%s9 + $0x3f8] sm:$0xff]
          %v3781 = vld [vmem:[%s10] sm:$0x3]
          %v3783 = vlaneseq
          %v3784 = vshrl.u32 %v3783, 7
          %v3785 = vsub.s32 0, %v3784
          %v3786 = vrot.slane %v3781, %v3785
          %v3787 = vlaneseq
          %v3788 = vshrl.u32 %v3787, 7
          %v3789 = vsub.s32 1, %v3788
          %v3790 = vrot.slane %v3781, %v3789
          %3793 = vmatprep.subr.mxu0 %v3684
          %3794 = vmatpush1.msra.mxu0 %v3683
          %3795 = vmatprep.subr.mxu0 %v3682
          %3796 = vmatpush1.msra.mxu0 %v3681
          %3797 = vmatprep.subr.mxu0 %v3680
          %3798 = vmatpush1.msra.mxu0 %v3679
          %3799 = vmatprep.subr.mxu0 %v3678
          %3800 = vmatpush1.msra.mxu0 %v3677
          %3801 = vmatprep.subr.mxu0 %v3676
          %3802 = vmatpush1.msra.mxu0 %v3675
          %3803 = vmatprep.subr.mxu0 %v3674
          %3804 = vmatpush1.msra.mxu0 %v3673
          %3805 = vmatprep.subr.mxu0 %v3672
          %3806 = vmatpush1.msra.mxu0 %v3671
          %3807 = vmatprep.subr.mxu0 %v3670
          %3808 = vmatpush1.msra.mxu0 %v3669
          %3809 = vmatprep.subr.mxu0 %v3668
          %3810 = vmatpush1.msra.mxu0 %v3667
          %3811 = vmatprep.subr.mxu0 %v3666
          %3812 = vmatpush1.msra.mxu0 %v3665
          %3813 = vmatprep.subr.mxu0 %v3664
          %3814 = vmatpush1.msra.mxu0 %v3663
          %3815 = vmatprep.subr.mxu0 %v3662
          %3816 = vmatpush1.msra.mxu0 %v3661
          %3817 = vmatprep.subr.mxu0 %v3660
          %3818 = vmatpush1.msra.mxu0 %v3659
          %3819 = vmatprep.subr.mxu0 %v3658
          %3820 = vmatpush1.msra.mxu0 %v3657
          %3821 = vmatprep.subr.mxu0 %v3656
          %3822 = vmatpush1.msra.mxu0 %v3655
          %3823 = vmatprep.subr.mxu0 %v3654
          %3824 = vmatpush1.msra.mxu0 %v3653
          %3825 = vmatprep.subr.mxu0 %v3716
          %3826 = vmatpush2.msra.mxu0 %v3715
          %3827 = vmatprep.subr.mxu0 %v3714
          %3828 = vmatpush2.msra.mxu0 %v3713
          %3829 = vmatprep.subr.mxu0 %v3712
          %3830 = vmatpush2.msra.mxu0 %v3711
          %3831 = vmatprep.subr.mxu0 %v3710
          %3832 = vmatpush2.msra.mxu0 %v3709
          %3833 = vmatprep.subr.mxu0 %v3708
          %3834 = vmatpush2.msra.mxu0 %v3707
          %3835 = vmatprep.subr.mxu0 %v3706
          %3836 = vmatpush2.msra.mxu0 %v3705
          %3837 = vmatprep.subr.mxu0 %v3704
          %3838 = vmatpush2.msra.mxu0 %v3703
          %3839 = vmatprep.subr.mxu0 %v3702
          %3840 = vmatpush2.msra.mxu0 %v3701
          %3841 = vmatprep.subr.mxu0 %v3700
          %3842 = vmatpush2.msra.mxu0 %v3699
          %3843 = vmatprep.subr.mxu0 %v3698
          %3844 = vmatpush2.msra.mxu0 %v3697
          %3845 = vmatprep.subr.mxu0 %v3696
          %3846 = vmatpush2.msra.mxu0 %v3695
          %3847 = vmatprep.subr.mxu0 %v3694
          %3848 = vmatpush2.msra.mxu0 %v3693
          %3849 = vmatprep.subr.mxu0 %v3692
          %3850 = vmatpush2.msra.mxu0 %v3691
          %3851 = vmatprep.subr.mxu0 %v3690
          %3852 = vmatpush2.msra.mxu0 %v3689
          %3853 = vmatprep.subr.mxu0 %v3688
          %3854 = vmatpush2.msra.mxu0 %v3687
          %3855 = vmatprep.subr.mxu0 %v3686
          %3856 = vmatpush2.msra.mxu0 %v3685
          %3857 = vmatprep.mubr.f32.mxu0 %v3650
          %3858 = vmatmul.mubr.f32.gmra.mxu0 %v3649
          %v3859 = vpop.f32.mrf.mxu0
          %v3860 = vadd.f32 %v3786, %v3859
          %v3861 = vpop.f32.mrf.mxu0
          %v3862 = vadd.f32 %v3790, %v3861
          %3863 = vdwg.mxu0
          %3864 = vmatprep.subr.mxu0 %v3748
          %3865 = vmatpush1.msra.mxu0 %v3747
          %3866 = vmatprep.subr.mxu0 %v3746
          %3867 = vmatpush1.msra.mxu0 %v3745
          %3868 = vmatprep.subr.mxu0 %v3744
          %3869 = vmatpush1.msra.mxu0 %v3743
          %3870 = vmatprep.subr.mxu0 %v3742
          %3871 = vmatpush1.msra.mxu0 %v3741
          %3872 = vmatprep.subr.mxu0 %v3740
          %3873 = vmatpush1.msra.mxu0 %v3739
          %3874 = vmatprep.subr.mxu0 %v3738
          %3875 = vmatpush1.msra.mxu0 %v3737
          %3876 = vmatprep.subr.mxu0 %v3736
          %3877 = vmatpush1.msra.mxu0 %v3735
          %3878 = vmatprep.subr.mxu0 %v3734
          %3879 = vmatpush1.msra.mxu0 %v3733
          %3880 = vmatprep.subr.mxu0 %v3732
          %3881 = vmatpush1.msra.mxu0 %v3731
          %3882 = vmatprep.subr.mxu0 %v3730
          %3883 = vmatpush1.msra.mxu0 %v3729
          %3884 = vmatprep.subr.mxu0 %v3728
          %3885 = vmatpush1.msra.mxu0 %v3727
          %3886 = vmatprep.subr.mxu0 %v3726
          %3887 = vmatpush1.msra.mxu0 %v3725
          %3888 = vmatprep.subr.mxu0 %v3724
          %3889 = vmatpush1.msra.mxu0 %v3723
          %3890 = vmatprep.subr.mxu0 %v3722
          %3891 = vmatpush1.msra.mxu0 %v3721
          %3892 = vmatprep.subr.mxu0 %v3720
          %3893 = vmatpush1.msra.mxu0 %v3719
          %3894 = vmatprep.subr.mxu0 %v3718
          %3895 = vmatpush1.msra.mxu0 %v3717
          %3896 = vmatprep.subr.mxu0 %v3780
          %3897 = vmatpush2.msra.mxu0 %v3779
          %3898 = vmatprep.subr.mxu0 %v3778
          %3899 = vmatpush2.msra.mxu0 %v3777
          %3900 = vmatprep.subr.mxu0 %v3776
          %3901 = vmatpush2.msra.mxu0 %v3775
          %3902 = vmatprep.subr.mxu0 %v3774
          %3903 = vmatpush2.msra.mxu0 %v3773
          %3904 = vmatprep.subr.mxu0 %v3772
          %3905 = vmatpush2.msra.mxu0 %v3771
          %3906 = vmatprep.subr.mxu0 %v3770
          %3907 = vmatpush2.msra.mxu0 %v3769
          %3908 = vmatprep.subr.mxu0 %v3768
          %3909 = vmatpush2.msra.mxu0 %v3767
          %3910 = vmatprep.subr.mxu0 %v3766
          %3911 = vmatpush2.msra.mxu0 %v3765
          %3912 = vmatprep.subr.mxu0 %v3764
          %3913 = vmatpush2.msra.mxu0 %v3763
          %3914 = vmatprep.subr.mxu0 %v3762
          %3915 = vmatpush2.msra.mxu0 %v3761
          %3916 = vmatprep.subr.mxu0 %v3760
          %3917 = vmatpush2.msra.mxu0 %v3759
          %3918 = vmatprep.subr.mxu0 %v3758
          %3919 = vmatpush2.msra.mxu0 %v3757
          %3920 = vmatprep.subr.mxu0 %v3756
          %3921 = vmatpush2.msra.mxu0 %v3755
          %3922 = vmatprep.subr.mxu0 %v3754
          %3923 = vmatpush2.msra.mxu0 %v3753
          %3924 = vmatprep.subr.mxu0 %v3752
          %3925 = vmatpush2.msra.mxu0 %v3751
          %3926 = vmatprep.subr.mxu0 %v3750
          %3927 = vmatpush2.msra.mxu0 %v3749
          %3928 = vmatprep.mubr.f32.mxu0 %v3652
          %3929 = vmatmul.mubr.f32.gmra.mxu0 %v3651
          %v3930 = vpop.f32.mrf.mxu0
          %v3931 = vadd.f32 %v3860, %v3930
          %v3932 = vpop.f32.mrf.mxu0
          %v3933 = vadd.f32 %v3862, %v3932
          %3934 = vdwg.mxu0
          %v3967 = vlaneseq
          %v3968 = vshrl.u32 %v3967, 7
          %v3969 = vsub.s32 %v2526, %v3968
          %v3970 = vrot.slane %v2786, %v3969
          %v3971 = vadd.s32 %v2526, 4294967288
          %v3972 = vlaneseq
          %v3973 = vshrl.u32 %v3972, 7
          %v3974 = vsub.s32 %v3971, %v3973
          %v3975 = vrot.slane %v2787, %v3974
          %vm3976 = vcmask 130112
          %v3977 = vsel %vm3976, %v3975, %v3970
          %v3978 = vadd.s32 %v2526, 4294967280
          %v3979 = vlaneseq
          %v3980 = vshrl.u32 %v3979, 7
          %v3981 = vsub.s32 %v3978, %v3980
          %v3982 = vrot.slane %v2788, %v3981
          %vm3983 = vcmask 195712
          %v3984 = vsel %vm3983, %v3982, %v3977
          %v3985 = vadd.s32 %v2526, 4294967272
          %v3986 = vlaneseq
          %v3987 = vshrl.u32 %v3986, 7
          %v3988 = vsub.s32 %v3985, %v3987
          %v3989 = vrot.slane %v2789, %v3988
          %vm3990 = vcmask 261312
          %v3991 = vsel %vm3990, %v3989, %v3984
          %v3992 = vadd.s32 %v2526, 4294967264
          %v3993 = vlaneseq
          %v3994 = vshrl.u32 %v3993, 7
          %v3995 = vsub.s32 %v3992, %v3994
          %v3996 = vrot.slane %v2790, %v3995
          %vm3997 = vcmask 326912
          %v3998 = vsel %vm3997, %v3996, %v3991
          %v3999 = vadd.s32 %v2526, 4294967256
          %v4000 = vlaneseq
          %v4001 = vshrl.u32 %v4000, 7
          %v4002 = vsub.s32 %v3999, %v4001
          %v4003 = vrot.slane %v2791, %v4002
          %vm4004 = vcmask 392512
          %v4005 = vsel %vm4004, %v4003, %v3998
          %v4006 = vadd.s32 %v2526, 4294967248
          %v4007 = vlaneseq
          %v4008 = vshrl.u32 %v4007, 7
          %v4009 = vsub.s32 %v4006, %v4008
          %v4010 = vrot.slane %v2792, %v4009
          %vm4011 = vcmask 458112
          %v4012 = vsel %vm4011, %v4010, %v4005
          %v4013 = vadd.s32 %v2526, 4294967240
          %v4014 = vlaneseq
          %v4015 = vshrl.u32 %v4014, 7
          %v4016 = vsub.s32 %v4013, %v4015
          %v4017 = vrot.slane %v2793, %v4016
          %vm4018 = vcmask 523712
          %v4019 = vsel %vm4018, %v4017, %v4012
          %v4020 = vadd.s32 %v2526, 4294967232
          %v4021 = vlaneseq
          %v4022 = vshrl.u32 %v4021, 7
          %v4023 = vsub.s32 %v4020, %v4022
          %v4024 = vrot.slane %v2794, %v4023
          %vm4025 = vcmask 589312
          %v4026 = vsel %vm4025, %v4024, %v4019
          %v4027 = vadd.s32 %v2526, 4294967224
          %v4028 = vlaneseq
          %v4029 = vshrl.u32 %v4028, 7
          %v4030 = vsub.s32 %v4027, %v4029
          %v4031 = vrot.slane %v2795, %v4030
          %vm4032 = vcmask 654912
          %v4033 = vsel %vm4032, %v4031, %v4026
          %v4034 = vadd.s32 %v2526, 4294967216
          %v4035 = vlaneseq
          %v4036 = vshrl.u32 %v4035, 7
          %v4037 = vsub.s32 %v4034, %v4036
          %v4038 = vrot.slane %v2796, %v4037
          %vm4039 = vcmask 720512
          %v4040 = vsel %vm4039, %v4038, %v4033
          %v4041 = vadd.s32 %v2526, 4294967208
          %v4042 = vlaneseq
          %v4043 = vshrl.u32 %v4042, 7
          %v4044 = vsub.s32 %v4041, %v4043
          %v4045 = vrot.slane %v2797, %v4044
          %vm4046 = vcmask 786112
          %v4047 = vsel %vm4046, %v4045, %v4040
          %v4048 = vadd.s32 %v2526, 4294967200
          %v4049 = vlaneseq
          %v4050 = vshrl.u32 %v4049, 7
          %v4051 = vsub.s32 %v4048, %v4050
          %v4052 = vrot.slane %v2798, %v4051
          %vm4053 = vcmask 851712
          %v4054 = vsel %vm4053, %v4052, %v4047
          %v4055 = vadd.s32 %v2526, 4294967192
          %v4056 = vlaneseq
          %v4057 = vshrl.u32 %v4056, 7
          %v4058 = vsub.s32 %v4055, %v4057
          %v4059 = vrot.slane %v2799, %v4058
          %vm4060 = vcmask 917312
          %v4061 = vsel %vm4060, %v4059, %v4054
          %v4062 = vadd.s32 %v2526, 4294967184
          %v4063 = vlaneseq
          %v4064 = vshrl.u32 %v4063, 7
          %v4065 = vsub.s32 %v4062, %v4064
          %v4066 = vrot.slane %v2800, %v4065
          %vm4067 = vcmask 982912
          %v4068 = vsel %vm4067, %v4066, %v4061
          %v4069 = vadd.s32 %v2526, 4294967176
          %v4070 = vlaneseq
          %v4071 = vshrl.u32 %v4070, 7
          %v4072 = vsub.s32 %v4069, %v4071
          %v4073 = vrot.slane %v2801, %v4072
          %vm4074 = vcmask 1048512
          %v4075 = vsel %vm4074, %v4073, %v4068
          %v4076 = vlaneseq
          %v4077 = vshrl.u32 %v4076, 7
          %v4078 = vsub.s32 %v2526, %v4077
          %v4079 = vrot.slane %v2802, %v4078
          %v4080 = vlaneseq
          %v4081 = vshrl.u32 %v4080, 7
          %v4082 = vsub.s32 %v3971, %v4081
          %v4083 = vrot.slane %v2803, %v4082
          %v4084 = vsel %vm3976, %v4083, %v4079
          %v4085 = vlaneseq
          %v4086 = vshrl.u32 %v4085, 7
          %v4087 = vsub.s32 %v3978, %v4086
          %v4088 = vrot.slane %v2804, %v4087
          %v4089 = vsel %vm3983, %v4088, %v4084
          %v4090 = vlaneseq
          %v4091 = vshrl.u32 %v4090, 7
          %v4092 = vsub.s32 %v3985, %v4091
          %v4093 = vrot.slane %v2805, %v4092
          %v4094 = vsel %vm3990, %v4093, %v4089
          %v4095 = vlaneseq
          %v4096 = vshrl.u32 %v4095, 7
          %v4097 = vsub.s32 %v3992, %v4096
          %v4098 = vrot.slane %v2806, %v4097
          %v4099 = vsel %vm3997, %v4098, %v4094
          %v4100 = vlaneseq
          %v4101 = vshrl.u32 %v4100, 7
          %v4102 = vsub.s32 %v3999, %v4101
          %v4103 = vrot.slane %v2807, %v4102
          %v4104 = vsel %vm4004, %v4103, %v4099
          %v4105 = vlaneseq
          %v4106 = vshrl.u32 %v4105, 7
          %v4107 = vsub.s32 %v4006, %v4106
          %v4108 = vrot.slane %v2808, %v4107
          %v4109 = vsel %vm4011, %v4108, %v4104
          %v4110 = vlaneseq
          %v4111 = vshrl.u32 %v4110, 7
          %v4112 = vsub.s32 %v4013, %v4111
          %v4113 = vrot.slane %v2809, %v4112
          %v4114 = vsel %vm4018, %v4113, %v4109
          %v4115 = vlaneseq
          %v4116 = vshrl.u32 %v4115, 7
          %v4117 = vsub.s32 %v4020, %v4116
          %v4118 = vrot.slane %v2810, %v4117
          %v4119 = vsel %vm4025, %v4118, %v4114
          %v4120 = vlaneseq
          %v4121 = vshrl.u32 %v4120, 7
          %v4122 = vsub.s32 %v4027, %v4121
          %v4123 = vrot.slane %v2811, %v4122
          %v4124 = vsel %vm4032, %v4123, %v4119
          %v4125 = vlaneseq
          %v4126 = vshrl.u32 %v4125, 7
          %v4127 = vsub.s32 %v4034, %v4126
          %v4128 = vrot.slane %v2812, %v4127
          %v4129 = vsel %vm4039, %v4128, %v4124
          %v4130 = vlaneseq
          %v4131 = vshrl.u32 %v4130, 7
          %v4132 = vsub.s32 %v4041, %v4131
          %v4133 = vrot.slane %v2813, %v4132
          %v4134 = vsel %vm4046, %v4133, %v4129
          %v4135 = vlaneseq
          %v4136 = vshrl.u32 %v4135, 7
          %v4137 = vsub.s32 %v4048, %v4136
          %v4138 = vrot.slane %v2814, %v4137
          %v4139 = vsel %vm4053, %v4138, %v4134
          %v4140 = vlaneseq
          %v4141 = vshrl.u32 %v4140, 7
          %v4142 = vsub.s32 %v4055, %v4141
          %v4143 = vrot.slane %v2815, %v4142
          %v4144 = vsel %vm4060, %v4143, %v4139
          %v4145 = vlaneseq
          %v4146 = vshrl.u32 %v4145, 7
          %v4147 = vsub.s32 %v4062, %v4146
          %v4148 = vrot.slane %v2816, %v4147
          %v4149 = vsel %vm4067, %v4148, %v4144
          %v4150 = vlaneseq
          %v4151 = vshrl.u32 %v4150, 7
          %v4152 = vsub.s32 %v4069, %v4151
          %v4153 = vrot.slane %v2817, %v4152
          %v4154 = vsel %vm4074, %v4153, %v4149
          %v4189 = vlaneseq
          %v4190 = vshrl.u32 %v4189, 7
          %v4191 = vsub.s32 %v2526, %v4190
          %v4192 = vrot.slane %v2978, %v4191
          %v4193 = vlaneseq
          %v4194 = vshrl.u32 %v4193, 7
          %v4195 = vsub.s32 %v3971, %v4194
          %v4196 = vrot.slane %v2979, %v4195
          %v4197 = vsel %vm3976, %v4196, %v4192
          %v4198 = vlaneseq
          %v4199 = vshrl.u32 %v4198, 7
          %v4200 = vsub.s32 %v3978, %v4199
          %v4201 = vrot.slane %v2980, %v4200
          %v4202 = vsel %vm3983, %v4201, %v4197
          %v4203 = vlaneseq
          %v4204 = vshrl.u32 %v4203, 7
          %v4205 = vsub.s32 %v3985, %v4204
          %v4206 = vrot.slane %v2981, %v4205
          %v4207 = vsel %vm3990, %v4206, %v4202
          %v4208 = vlaneseq
          %v4209 = vshrl.u32 %v4208, 7
          %v4210 = vsub.s32 %v3992, %v4209
          %v4211 = vrot.slane %v2982, %v4210
          %v4212 = vsel %vm3997, %v4211, %v4207
          %v4213 = vlaneseq
          %v4214 = vshrl.u32 %v4213, 7
          %v4215 = vsub.s32 %v3999, %v4214
          %v4216 = vrot.slane %v2983, %v4215
          %v4217 = vsel %vm4004, %v4216, %v4212
          %v4218 = vlaneseq
          %v4219 = vshrl.u32 %v4218, 7
          %v4220 = vsub.s32 %v4006, %v4219
          %v4221 = vrot.slane %v2984, %v4220
          %v4222 = vsel %vm4011, %v4221, %v4217
          %v4223 = vlaneseq
          %v4224 = vshrl.u32 %v4223, 7
          %v4225 = vsub.s32 %v4013, %v4224
          %v4226 = vrot.slane %v2985, %v4225
          %v4227 = vsel %vm4018, %v4226, %v4222
          %v4228 = vlaneseq
          %v4229 = vshrl.u32 %v4228, 7
          %v4230 = vsub.s32 %v4020, %v4229
          %v4231 = vrot.slane %v2986, %v4230
          %v4232 = vsel %vm4025, %v4231, %v4227
          %v4233 = vlaneseq
          %v4234 = vshrl.u32 %v4233, 7
          %v4235 = vsub.s32 %v4027, %v4234
          %v4236 = vrot.slane %v2987, %v4235
          %v4237 = vsel %vm4032, %v4236, %v4232
          %v4238 = vlaneseq
          %v4239 = vshrl.u32 %v4238, 7
          %v4240 = vsub.s32 %v4034, %v4239
          %v4241 = vrot.slane %v2988, %v4240
          %v4242 = vsel %vm4039, %v4241, %v4237
          %v4243 = vlaneseq
          %v4244 = vshrl.u32 %v4243, 7
          %v4245 = vsub.s32 %v4041, %v4244
          %v4246 = vrot.slane %v2989, %v4245
          %v4247 = vsel %vm4046, %v4246, %v4242
          %v4248 = vlaneseq
          %v4249 = vshrl.u32 %v4248, 7
          %v4250 = vsub.s32 %v4048, %v4249
          %v4251 = vrot.slane %v2990, %v4250
          %v4252 = vsel %vm4053, %v4251, %v4247
          %v4253 = vlaneseq
          %v4254 = vshrl.u32 %v4253, 7
          %v4255 = vsub.s32 %v4055, %v4254
          %v4256 = vrot.slane %v2991, %v4255
          %v4257 = vsel %vm4060, %v4256, %v4252
          %v4258 = vlaneseq
          %v4259 = vshrl.u32 %v4258, 7
          %v4260 = vsub.s32 %v4062, %v4259
          %v4261 = vrot.slane %v2992, %v4260
          %v4262 = vsel %vm4067, %v4261, %v4257
          %v4263 = vlaneseq
          %v4264 = vshrl.u32 %v4263, 7
          %v4265 = vsub.s32 %v4069, %v4264
          %v4266 = vrot.slane %v2993, %v4265
          %v4267 = vsel %vm4074, %v4266, %v4262
          %v4268 = vlaneseq
          %v4269 = vshrl.u32 %v4268, 7
          %v4270 = vsub.s32 %v2526, %v4269
          %v4271 = vrot.slane %v2994, %v4270
          %v4272 = vlaneseq
          %v4273 = vshrl.u32 %v4272, 7
          %v4274 = vsub.s32 %v3971, %v4273
          %v4275 = vrot.slane %v2995, %v4274
          %v4276 = vsel %vm3976, %v4275, %v4271
          %v4277 = vlaneseq
          %v4278 = vshrl.u32 %v4277, 7
          %v4279 = vsub.s32 %v3978, %v4278
          %v4280 = vrot.slane %v2996, %v4279
          %v4281 = vsel %vm3983, %v4280, %v4276
          %v4282 = vlaneseq
          %v4283 = vshrl.u32 %v4282, 7
          %v4284 = vsub.s32 %v3985, %v4283
          %v4285 = vrot.slane %v2997, %v4284
          %v4286 = vsel %vm3990, %v4285, %v4281
          %v4287 = vlaneseq
          %v4288 = vshrl.u32 %v4287, 7
          %v4289 = vsub.s32 %v3992, %v4288
          %v4290 = vrot.slane %v2998, %v4289
          %v4291 = vsel %vm3997, %v4290, %v4286
          %v4292 = vlaneseq
          %v4293 = vshrl.u32 %v4292, 7
          %v4294 = vsub.s32 %v3999, %v4293
          %v4295 = vrot.slane %v2999, %v4294
          %v4296 = vsel %vm4004, %v4295, %v4291
          %v4297 = vlaneseq
          %v4298 = vshrl.u32 %v4297, 7
          %v4299 = vsub.s32 %v4006, %v4298
          %v4300 = vrot.slane %v3000, %v4299
          %v4301 = vsel %vm4011, %v4300, %v4296
          %v4302 = vlaneseq
          %v4303 = vshrl.u32 %v4302, 7
          %v4304 = vsub.s32 %v4013, %v4303
          %v4305 = vrot.slane %v3001, %v4304
          %v4306 = vsel %vm4018, %v4305, %v4301
          %v4307 = vlaneseq
          %v4308 = vshrl.u32 %v4307, 7
          %v4309 = vsub.s32 %v4020, %v4308
          %v4310 = vrot.slane %v3002, %v4309
          %v4311 = vsel %vm4025, %v4310, %v4306
          %v4312 = vlaneseq
          %v4313 = vshrl.u32 %v4312, 7
          %v4314 = vsub.s32 %v4027, %v4313
          %v4315 = vrot.slane %v3003, %v4314
          %v4316 = vsel %vm4032, %v4315, %v4311
          %v4317 = vlaneseq
          %v4318 = vshrl.u32 %v4317, 7
          %v4319 = vsub.s32 %v4034, %v4318
          %v4320 = vrot.slane %v3004, %v4319
          %v4321 = vsel %vm4039, %v4320, %v4316
          %v4322 = vlaneseq
          %v4323 = vshrl.u32 %v4322, 7
          %v4324 = vsub.s32 %v4041, %v4323
          %v4325 = vrot.slane %v3005, %v4324
          %v4326 = vsel %vm4046, %v4325, %v4321
          %v4327 = vlaneseq
          %v4328 = vshrl.u32 %v4327, 7
          %v4329 = vsub.s32 %v4048, %v4328
          %v4330 = vrot.slane %v3006, %v4329
          %v4331 = vsel %vm4053, %v4330, %v4326
          %v4332 = vlaneseq
          %v4333 = vshrl.u32 %v4332, 7
          %v4334 = vsub.s32 %v4055, %v4333
          %v4335 = vrot.slane %v3007, %v4334
          %v4336 = vsel %vm4060, %v4335, %v4331
          %v4337 = vlaneseq
          %v4338 = vshrl.u32 %v4337, 7
          %v4339 = vsub.s32 %v4062, %v4338
          %v4340 = vrot.slane %v3008, %v4339
          %v4341 = vsel %vm4067, %v4340, %v4336
          %v4342 = vlaneseq
          %v4343 = vshrl.u32 %v4342, 7
          %v4344 = vsub.s32 %v4069, %v4343
          %v4345 = vrot.slane %v3009, %v4344
          %v4346 = vsel %vm4074, %v4345, %v4341
          %v4381 = vlaneseq
          %v4382 = vshrl.u32 %v4381, 7
          %v4383 = vsub.s32 %v2526, %v4382
          %v4384 = vrot.slane %v3139, %v4383
          %v4385 = vlaneseq
          %v4386 = vshrl.u32 %v4385, 7
          %v4387 = vsub.s32 %v3971, %v4386
          %v4388 = vrot.slane %v3140, %v4387
          %v4389 = vsel %vm3976, %v4388, %v4384
          %v4390 = vlaneseq
          %v4391 = vshrl.u32 %v4390, 7
          %v4392 = vsub.s32 %v3978, %v4391
          %v4393 = vrot.slane %v3141, %v4392
          %v4394 = vsel %vm3983, %v4393, %v4389
          %v4395 = vlaneseq
          %v4396 = vshrl.u32 %v4395, 7
          %v4397 = vsub.s32 %v3985, %v4396
          %v4398 = vrot.slane %v3142, %v4397
          %v4399 = vsel %vm3990, %v4398, %v4394
          %v4400 = vlaneseq
          %v4401 = vshrl.u32 %v4400, 7
          %v4402 = vsub.s32 %v3992, %v4401
          %v4403 = vrot.slane %v3143, %v4402
          %v4404 = vsel %vm3997, %v4403, %v4399
          %v4405 = vlaneseq
          %v4406 = vshrl.u32 %v4405, 7
          %v4407 = vsub.s32 %v3999, %v4406
          %v4408 = vrot.slane %v3144, %v4407
          %v4409 = vsel %vm4004, %v4408, %v4404
          %v4410 = vlaneseq
          %v4411 = vshrl.u32 %v4410, 7
          %v4412 = vsub.s32 %v4006, %v4411
          %v4413 = vrot.slane %v3145, %v4412
          %v4414 = vsel %vm4011, %v4413, %v4409
          %v4415 = vlaneseq
          %v4416 = vshrl.u32 %v4415, 7
          %v4417 = vsub.s32 %v4013, %v4416
          %v4418 = vrot.slane %v3146, %v4417
          %v4419 = vsel %vm4018, %v4418, %v4414
          %v4420 = vlaneseq
          %v4421 = vshrl.u32 %v4420, 7
          %v4422 = vsub.s32 %v4020, %v4421
          %v4423 = vrot.slane %v3147, %v4422
          %v4424 = vsel %vm4025, %v4423, %v4419
          %v4425 = vlaneseq
          %v4426 = vshrl.u32 %v4425, 7
          %v4427 = vsub.s32 %v4027, %v4426
          %v4428 = vrot.slane %v3148, %v4427
          %v4429 = vsel %vm4032, %v4428, %v4424
          %v4430 = vlaneseq
          %v4431 = vshrl.u32 %v4430, 7
          %v4432 = vsub.s32 %v4034, %v4431
          %v4433 = vrot.slane %v3149, %v4432
          %v4434 = vsel %vm4039, %v4433, %v4429
          %v4435 = vlaneseq
          %v4436 = vshrl.u32 %v4435, 7
          %v4437 = vsub.s32 %v4041, %v4436
          %v4438 = vrot.slane %v3150, %v4437
          %v4439 = vsel %vm4046, %v4438, %v4434
          %v4440 = vlaneseq
          %v4441 = vshrl.u32 %v4440, 7
          %v4442 = vsub.s32 %v4048, %v4441
          %v4443 = vrot.slane %v3151, %v4442
          %v4444 = vsel %vm4053, %v4443, %v4439
          %v4445 = vlaneseq
          %v4446 = vshrl.u32 %v4445, 7
          %v4447 = vsub.s32 %v4055, %v4446
          %v4448 = vrot.slane %v3152, %v4447
          %v4449 = vsel %vm4060, %v4448, %v4444
          %v4450 = vlaneseq
          %v4451 = vshrl.u32 %v4450, 7
          %v4452 = vsub.s32 %v4062, %v4451
          %v4453 = vrot.slane %v3153, %v4452
          %v4454 = vsel %vm4067, %v4453, %v4449
          %v4455 = vlaneseq
          %v4456 = vshrl.u32 %v4455, 7
          %v4457 = vsub.s32 %v4069, %v4456
          %v4458 = vrot.slane %v3154, %v4457
          %v4459 = vsel %vm4074, %v4458, %v4454
          %v4460 = vlaneseq
          %v4461 = vshrl.u32 %v4460, 7
          %v4462 = vsub.s32 %v2526, %v4461
          %v4463 = vrot.slane %v3155, %v4462
          %v4464 = vlaneseq
          %v4465 = vshrl.u32 %v4464, 7
          %v4466 = vsub.s32 %v3971, %v4465
          %v4467 = vrot.slane %v3156, %v4466
          %v4468 = vsel %vm3976, %v4467, %v4463
          %v4469 = vlaneseq
          %v4470 = vshrl.u32 %v4469, 7
          %v4471 = vsub.s32 %v3978, %v4470
          %v4472 = vrot.slane %v3157, %v4471
          %v4473 = vsel %vm3983, %v4472, %v4468
          %v4474 = vlaneseq
          %v4475 = vshrl.u32 %v4474, 7
          %v4476 = vsub.s32 %v3985, %v4475
          %v4477 = vrot.slane %v3158, %v4476
          %v4478 = vsel %vm3990, %v4477, %v4473
          %v4479 = vlaneseq
          %v4480 = vshrl.u32 %v4479, 7
          %v4481 = vsub.s32 %v3992, %v4480
          %v4482 = vrot.slane %v3159, %v4481
          %v4483 = vsel %vm3997, %v4482, %v4478
          %v4484 = vlaneseq
          %v4485 = vshrl.u32 %v4484, 7
          %v4486 = vsub.s32 %v3999, %v4485
          %v4487 = vrot.slane %v3160, %v4486
          %v4488 = vsel %vm4004, %v4487, %v4483
          %v4489 = vlaneseq
          %v4490 = vshrl.u32 %v4489, 7
          %v4491 = vsub.s32 %v4006, %v4490
          %v4492 = vrot.slane %v3161, %v4491
          %v4493 = vsel %vm4011, %v4492, %v4488
          %v4494 = vlaneseq
          %v4495 = vshrl.u32 %v4494, 7
          %v4496 = vsub.s32 %v4013, %v4495
          %v4497 = vrot.slane %v3162, %v4496
          %v4498 = vsel %vm4018, %v4497, %v4493
          %v4499 = vlaneseq
          %v4500 = vshrl.u32 %v4499, 7
          %v4501 = vsub.s32 %v4020, %v4500
          %v4502 = vrot.slane %v3163, %v4501
          %v4503 = vsel %vm4025, %v4502, %v4498
          %v4504 = vlaneseq
          %v4505 = vshrl.u32 %v4504, 7
          %v4506 = vsub.s32 %v4027, %v4505
          %v4507 = vrot.slane %v3164, %v4506
          %v4508 = vsel %vm4032, %v4507, %v4503
          %v4509 = vlaneseq
          %v4510 = vshrl.u32 %v4509, 7
          %v4511 = vsub.s32 %v4034, %v4510
          %v4512 = vrot.slane %v3165, %v4511
          %v4513 = vsel %vm4039, %v4512, %v4508
          %v4514 = vlaneseq
          %v4515 = vshrl.u32 %v4514, 7
          %v4516 = vsub.s32 %v4041, %v4515
          %v4517 = vrot.slane %v3166, %v4516
          %v4518 = vsel %vm4046, %v4517, %v4513
          %v4519 = vlaneseq
          %v4520 = vshrl.u32 %v4519, 7
          %v4521 = vsub.s32 %v4048, %v4520
          %v4522 = vrot.slane %v3167, %v4521
          %v4523 = vsel %vm4053, %v4522, %v4518
          %v4524 = vlaneseq
          %v4525 = vshrl.u32 %v4524, 7
          %v4526 = vsub.s32 %v4055, %v4525
          %v4527 = vrot.slane %v3168, %v4526
          %v4528 = vsel %vm4060, %v4527, %v4523
          %v4529 = vlaneseq
          %v4530 = vshrl.u32 %v4529, 7
          %v4531 = vsub.s32 %v4062, %v4530
          %v4532 = vrot.slane %v3169, %v4531
          %v4533 = vsel %vm4067, %v4532, %v4528
          %v4534 = vlaneseq
          %v4535 = vshrl.u32 %v4534, 7
          %v4536 = vsub.s32 %v4069, %v4535
          %v4537 = vrot.slane %v3170, %v4536
          %v4538 = vsel %vm4074, %v4537, %v4533
          %v4573 = vlaneseq
          %v4574 = vshrl.u32 %v4573, 7
          %v4575 = vsub.s32 %v2526, %v4574
          %v4576 = vrot.slane %v3300, %v4575
          %v4577 = vlaneseq
          %v4578 = vshrl.u32 %v4577, 7
          %v4579 = vsub.s32 %v3971, %v4578
          %v4580 = vrot.slane %v3301, %v4579
          %v4581 = vsel %vm3976, %v4580, %v4576
          %v4582 = vlaneseq
          %v4583 = vshrl.u32 %v4582, 7
          %v4584 = vsub.s32 %v3978, %v4583
          %v4585 = vrot.slane %v3302, %v4584
          %v4586 = vsel %vm3983, %v4585, %v4581
          %v4587 = vlaneseq
          %v4588 = vshrl.u32 %v4587, 7
          %v4589 = vsub.s32 %v3985, %v4588
          %v4590 = vrot.slane %v3303, %v4589
          %v4591 = vsel %vm3990, %v4590, %v4586
          %v4592 = vlaneseq
          %v4593 = vshrl.u32 %v4592, 7
          %v4594 = vsub.s32 %v3992, %v4593
          %v4595 = vrot.slane %v3304, %v4594
          %v4596 = vsel %vm3997, %v4595, %v4591
          %v4597 = vlaneseq
          %v4598 = vshrl.u32 %v4597, 7
          %v4599 = vsub.s32 %v3999, %v4598
          %v4600 = vrot.slane %v3305, %v4599
          %v4601 = vsel %vm4004, %v4600, %v4596
          %v4602 = vlaneseq
          %v4603 = vshrl.u32 %v4602, 7
          %v4604 = vsub.s32 %v4006, %v4603
          %v4605 = vrot.slane %v3306, %v4604
          %v4606 = vsel %vm4011, %v4605, %v4601
          %v4607 = vlaneseq
          %v4608 = vshrl.u32 %v4607, 7
          %v4609 = vsub.s32 %v4013, %v4608
          %v4610 = vrot.slane %v3307, %v4609
          %v4611 = vsel %vm4018, %v4610, %v4606
          %v4612 = vlaneseq
          %v4613 = vshrl.u32 %v4612, 7
          %v4614 = vsub.s32 %v4020, %v4613
          %v4615 = vrot.slane %v3308, %v4614
          %v4616 = vsel %vm4025, %v4615, %v4611
          %v4617 = vlaneseq
          %v4618 = vshrl.u32 %v4617, 7
          %v4619 = vsub.s32 %v4027, %v4618
          %v4620 = vrot.slane %v3309, %v4619
          %v4621 = vsel %vm4032, %v4620, %v4616
          %v4622 = vlaneseq
          %v4623 = vshrl.u32 %v4622, 7
          %v4624 = vsub.s32 %v4034, %v4623
          %v4625 = vrot.slane %v3310, %v4624
          %v4626 = vsel %vm4039, %v4625, %v4621
          %v4627 = vlaneseq
          %v4628 = vshrl.u32 %v4627, 7
          %v4629 = vsub.s32 %v4041, %v4628
          %v4630 = vrot.slane %v3311, %v4629
          %v4631 = vsel %vm4046, %v4630, %v4626
          %v4632 = vlaneseq
          %v4633 = vshrl.u32 %v4632, 7
          %v4634 = vsub.s32 %v4048, %v4633
          %v4635 = vrot.slane %v3312, %v4634
          %v4636 = vsel %vm4053, %v4635, %v4631
          %v4637 = vlaneseq
          %v4638 = vshrl.u32 %v4637, 7
          %v4639 = vsub.s32 %v4055, %v4638
          %v4640 = vrot.slane %v3313, %v4639
          %v4641 = vsel %vm4060, %v4640, %v4636
          %v4642 = vlaneseq
          %v4643 = vshrl.u32 %v4642, 7
          %v4644 = vsub.s32 %v4062, %v4643
          %v4645 = vrot.slane %v3314, %v4644
          %v4646 = vsel %vm4067, %v4645, %v4641
          %v4647 = vlaneseq
          %v4648 = vshrl.u32 %v4647, 7
          %v4649 = vsub.s32 %v4069, %v4648
          %v4650 = vrot.slane %v3315, %v4649
          %v4651 = vsel %vm4074, %v4650, %v4646
          %v4652 = vlaneseq
          %v4653 = vshrl.u32 %v4652, 7
          %v4654 = vsub.s32 %v2526, %v4653
          %v4655 = vrot.slane %v3316, %v4654
          %v4656 = vlaneseq
          %v4657 = vshrl.u32 %v4656, 7
          %v4658 = vsub.s32 %v3971, %v4657
          %v4659 = vrot.slane %v3317, %v4658
          %v4660 = vsel %vm3976, %v4659, %v4655
          %v4661 = vlaneseq
          %v4662 = vshrl.u32 %v4661, 7
          %v4663 = vsub.s32 %v3978, %v4662
          %v4664 = vrot.slane %v3318, %v4663
          %v4665 = vsel %vm3983, %v4664, %v4660
          %v4666 = vlaneseq
          %v4667 = vshrl.u32 %v4666, 7
          %v4668 = vsub.s32 %v3985, %v4667
          %v4669 = vrot.slane %v3319, %v4668
          %v4670 = vsel %vm3990, %v4669, %v4665
          %v4671 = vlaneseq
          %v4672 = vshrl.u32 %v4671, 7
          %v4673 = vsub.s32 %v3992, %v4672
          %v4674 = vrot.slane %v3320, %v4673
          %v4675 = vsel %vm3997, %v4674, %v4670
          %v4676 = vlaneseq
          %v4677 = vshrl.u32 %v4676, 7
          %v4678 = vsub.s32 %v3999, %v4677
          %v4679 = vrot.slane %v3321, %v4678
          %v4680 = vsel %vm4004, %v4679, %v4675
          %v4681 = vlaneseq
          %v4682 = vshrl.u32 %v4681, 7
          %v4683 = vsub.s32 %v4006, %v4682
          %v4684 = vrot.slane %v3322, %v4683
          %v4685 = vsel %vm4011, %v4684, %v4680
          %v4686 = vlaneseq
          %v4687 = vshrl.u32 %v4686, 7
          %v4688 = vsub.s32 %v4013, %v4687
          %v4689 = vrot.slane %v3323, %v4688
          %v4690 = vsel %vm4018, %v4689, %v4685
          %v4691 = vlaneseq
          %v4692 = vshrl.u32 %v4691, 7
          %v4693 = vsub.s32 %v4020, %v4692
          %v4694 = vrot.slane %v3324, %v4693
          %v4695 = vsel %vm4025, %v4694, %v4690
          %v4696 = vlaneseq
          %v4697 = vshrl.u32 %v4696, 7
          %v4698 = vsub.s32 %v4027, %v4697
          %v4699 = vrot.slane %v3325, %v4698
          %v4700 = vsel %vm4032, %v4699, %v4695
          %v4701 = vlaneseq
          %v4702 = vshrl.u32 %v4701, 7
          %v4703 = vsub.s32 %v4034, %v4702
          %v4704 = vrot.slane %v3326, %v4703
          %v4705 = vsel %vm4039, %v4704, %v4700
          %v4706 = vlaneseq
          %v4707 = vshrl.u32 %v4706, 7
          %v4708 = vsub.s32 %v4041, %v4707
          %v4709 = vrot.slane %v3327, %v4708
          %v4710 = vsel %vm4046, %v4709, %v4705
          %v4711 = vlaneseq
          %v4712 = vshrl.u32 %v4711, 7
          %v4713 = vsub.s32 %v4048, %v4712
          %v4714 = vrot.slane %v3328, %v4713
          %v4715 = vsel %vm4053, %v4714, %v4710
          %v4716 = vlaneseq
          %v4717 = vshrl.u32 %v4716, 7
          %v4718 = vsub.s32 %v4055, %v4717
          %v4719 = vrot.slane %v3329, %v4718
          %v4720 = vsel %vm4060, %v4719, %v4715
          %v4721 = vlaneseq
          %v4722 = vshrl.u32 %v4721, 7
          %v4723 = vsub.s32 %v4062, %v4722
          %v4724 = vrot.slane %v3330, %v4723
          %v4725 = vsel %vm4067, %v4724, %v4720
          %v4726 = vlaneseq
          %v4727 = vshrl.u32 %v4726, 7
          %v4728 = vsub.s32 %v4069, %v4727
          %v4729 = vrot.slane %v3331, %v4728
          %v4730 = vsel %vm4074, %v4729, %v4725
          %v4733 = vld [vmem:[%s11] sm:$0xff]
          %v4734 = vld [vmem:[%s11 + $0x8] sm:$0xff]
          %v4735 = vld [vmem:[%s11 + $0x10] sm:$0xff]
          %v4736 = vld [vmem:[%s11 + $0x18] sm:$0xff]
          %v4737 = vld [vmem:[%s11 + $0x20] sm:$0xff]
          %v4738 = vld [vmem:[%s11 + $0x28] sm:$0xff]
          %v4739 = vld [vmem:[%s11 + $0x30] sm:$0xff]
          %v4740 = vld [vmem:[%s11 + $0x38] sm:$0xff]
          %v4741 = vld [vmem:[%s11 + $0x40] sm:$0xff]
          %v4742 = vld [vmem:[%s11 + $0x48] sm:$0xff]
          %v4743 = vld [vmem:[%s11 + $0x50] sm:$0xff]
          %v4744 = vld [vmem:[%s11 + $0x58] sm:$0xff]
          %v4745 = vld [vmem:[%s11 + $0x60] sm:$0xff]
          %v4746 = vld [vmem:[%s11 + $0x68] sm:$0xff]
          %v4747 = vld [vmem:[%s11 + $0x70] sm:$0xff]
          %v4748 = vld [vmem:[%s11 + $0x78] sm:$0xff]
          %v4749 = vld [vmem:[%s11 + $0x80] sm:$0xff]
          %v4750 = vld [vmem:[%s11 + $0x88] sm:$0xff]
          %v4751 = vld [vmem:[%s11 + $0x90] sm:$0xff]
          %v4752 = vld [vmem:[%s11 + $0x98] sm:$0xff]
          %v4753 = vld [vmem:[%s11 + $0xa0] sm:$0xff]
          %v4754 = vld [vmem:[%s11 + $0xa8] sm:$0xff]
          %v4755 = vld [vmem:[%s11 + $0xb0] sm:$0xff]
          %v4756 = vld [vmem:[%s11 + $0xb8] sm:$0xff]
          %v4757 = vld [vmem:[%s11 + $0xc0] sm:$0xff]
          %v4758 = vld [vmem:[%s11 + $0xc8] sm:$0xff]
          %v4759 = vld [vmem:[%s11 + $0xd0] sm:$0xff]
          %v4760 = vld [vmem:[%s11 + $0xd8] sm:$0xff]
          %v4761 = vld [vmem:[%s11 + $0xe0] sm:$0xff]
          %v4762 = vld [vmem:[%s11 + $0xe8] sm:$0xff]
          %v4763 = vld [vmem:[%s11 + $0xf0] sm:$0xff]
          %v4764 = vld [vmem:[%s11 + $0xf8] sm:$0xff]
          %v4765 = vld [vmem:[%s11 + $0x100] sm:$0xff]
          %v4766 = vld [vmem:[%s11 + $0x108] sm:$0xff]
          %v4767 = vld [vmem:[%s11 + $0x110] sm:$0xff]
          %v4768 = vld [vmem:[%s11 + $0x118] sm:$0xff]
          %v4769 = vld [vmem:[%s11 + $0x120] sm:$0xff]
          %v4770 = vld [vmem:[%s11 + $0x128] sm:$0xff]
          %v4771 = vld [vmem:[%s11 + $0x130] sm:$0xff]
          %v4772 = vld [vmem:[%s11 + $0x138] sm:$0xff]
          %v4773 = vld [vmem:[%s11 + $0x140] sm:$0xff]
          %v4774 = vld [vmem:[%s11 + $0x148] sm:$0xff]
          %v4775 = vld [vmem:[%s11 + $0x150] sm:$0xff]
          %v4776 = vld [vmem:[%s11 + $0x158] sm:$0xff]
          %v4777 = vld [vmem:[%s11 + $0x160] sm:$0xff]
          %v4778 = vld [vmem:[%s11 + $0x168] sm:$0xff]
          %v4779 = vld [vmem:[%s11 + $0x170] sm:$0xff]
          %v4780 = vld [vmem:[%s11 + $0x178] sm:$0xff]
          %v4781 = vld [vmem:[%s11 + $0x180] sm:$0xff]
          %v4782 = vld [vmem:[%s11 + $0x188] sm:$0xff]
          %v4783 = vld [vmem:[%s11 + $0x190] sm:$0xff]
          %v4784 = vld [vmem:[%s11 + $0x198] sm:$0xff]
          %v4785 = vld [vmem:[%s11 + $0x1a0] sm:$0xff]
          %v4786 = vld [vmem:[%s11 + $0x1a8] sm:$0xff]
          %v4787 = vld [vmem:[%s11 + $0x1b0] sm:$0xff]
          %v4788 = vld [vmem:[%s11 + $0x1b8] sm:$0xff]
          %v4789 = vld [vmem:[%s11 + $0x1c0] sm:$0xff]
          %v4790 = vld [vmem:[%s11 + $0x1c8] sm:$0xff]
          %v4791 = vld [vmem:[%s11 + $0x1d0] sm:$0xff]
          %v4792 = vld [vmem:[%s11 + $0x1d8] sm:$0xff]
          %v4793 = vld [vmem:[%s11 + $0x1e0] sm:$0xff]
          %v4794 = vld [vmem:[%s11 + $0x1e8] sm:$0xff]
          %v4795 = vld [vmem:[%s11 + $0x1f0] sm:$0xff]
          %v4796 = vld [vmem:[%s11 + $0x1f8] sm:$0xff]
          %v4797 = vld [vmem:[%s11 + $0x200] sm:$0xff]
          %v4798 = vld [vmem:[%s11 + $0x208] sm:$0xff]
          %v4799 = vld [vmem:[%s11 + $0x210] sm:$0xff]
          %v4800 = vld [vmem:[%s11 + $0x218] sm:$0xff]
          %v4801 = vld [vmem:[%s11 + $0x220] sm:$0xff]
          %v4802 = vld [vmem:[%s11 + $0x228] sm:$0xff]
          %v4803 = vld [vmem:[%s11 + $0x230] sm:$0xff]
          %v4804 = vld [vmem:[%s11 + $0x238] sm:$0xff]
          %v4805 = vld [vmem:[%s11 + $0x240] sm:$0xff]
          %v4806 = vld [vmem:[%s11 + $0x248] sm:$0xff]
          %v4807 = vld [vmem:[%s11 + $0x250] sm:$0xff]
          %v4808 = vld [vmem:[%s11 + $0x258] sm:$0xff]
          %v4809 = vld [vmem:[%s11 + $0x260] sm:$0xff]
          %v4810 = vld [vmem:[%s11 + $0x268] sm:$0xff]
          %v4811 = vld [vmem:[%s11 + $0x270] sm:$0xff]
          %v4812 = vld [vmem:[%s11 + $0x278] sm:$0xff]
          %v4813 = vld [vmem:[%s11 + $0x280] sm:$0xff]
          %v4814 = vld [vmem:[%s11 + $0x288] sm:$0xff]
          %v4815 = vld [vmem:[%s11 + $0x290] sm:$0xff]
          %v4816 = vld [vmem:[%s11 + $0x298] sm:$0xff]
          %v4817 = vld [vmem:[%s11 + $0x2a0] sm:$0xff]
          %v4818 = vld [vmem:[%s11 + $0x2a8] sm:$0xff]
          %v4819 = vld [vmem:[%s11 + $0x2b0] sm:$0xff]
          %v4820 = vld [vmem:[%s11 + $0x2b8] sm:$0xff]
          %v4821 = vld [vmem:[%s11 + $0x2c0] sm:$0xff]
          %v4822 = vld [vmem:[%s11 + $0x2c8] sm:$0xff]
          %v4823 = vld [vmem:[%s11 + $0x2d0] sm:$0xff]
          %v4824 = vld [vmem:[%s11 + $0x2d8] sm:$0xff]
          %v4825 = vld [vmem:[%s11 + $0x2e0] sm:$0xff]
          %v4826 = vld [vmem:[%s11 + $0x2e8] sm:$0xff]
          %v4827 = vld [vmem:[%s11 + $0x2f0] sm:$0xff]
          %v4828 = vld [vmem:[%s11 + $0x2f8] sm:$0xff]
          %v4829 = vld [vmem:[%s11 + $0x300] sm:$0xff]
          %v4830 = vld [vmem:[%s11 + $0x308] sm:$0xff]
          %v4831 = vld [vmem:[%s11 + $0x310] sm:$0xff]
          %v4832 = vld [vmem:[%s11 + $0x318] sm:$0xff]
          %v4833 = vld [vmem:[%s11 + $0x320] sm:$0xff]
          %v4834 = vld [vmem:[%s11 + $0x328] sm:$0xff]
          %v4835 = vld [vmem:[%s11 + $0x330] sm:$0xff]
          %v4836 = vld [vmem:[%s11 + $0x338] sm:$0xff]
          %v4837 = vld [vmem:[%s11 + $0x340] sm:$0xff]
          %v4838 = vld [vmem:[%s11 + $0x348] sm:$0xff]
          %v4839 = vld [vmem:[%s11 + $0x350] sm:$0xff]
          %v4840 = vld [vmem:[%s11 + $0x358] sm:$0xff]
          %v4841 = vld [vmem:[%s11 + $0x360] sm:$0xff]
          %v4842 = vld [vmem:[%s11 + $0x368] sm:$0xff]
          %v4843 = vld [vmem:[%s11 + $0x370] sm:$0xff]
          %v4844 = vld [vmem:[%s11 + $0x378] sm:$0xff]
          %v4845 = vld [vmem:[%s11 + $0x380] sm:$0xff]
          %v4846 = vld [vmem:[%s11 + $0x388] sm:$0xff]
          %v4847 = vld [vmem:[%s11 + $0x390] sm:$0xff]
          %v4848 = vld [vmem:[%s11 + $0x398] sm:$0xff]
          %v4849 = vld [vmem:[%s11 + $0x3a0] sm:$0xff]
          %v4850 = vld [vmem:[%s11 + $0x3a8] sm:$0xff]
          %v4851 = vld [vmem:[%s11 + $0x3b0] sm:$0xff]
          %v4852 = vld [vmem:[%s11 + $0x3b8] sm:$0xff]
          %v4853 = vld [vmem:[%s11 + $0x3c0] sm:$0xff]
          %v4854 = vld [vmem:[%s11 + $0x3c8] sm:$0xff]
          %v4855 = vld [vmem:[%s11 + $0x3d0] sm:$0xff]
          %v4856 = vld [vmem:[%s11 + $0x3d8] sm:$0xff]
          %v4857 = vld [vmem:[%s11 + $0x3e0] sm:$0xff]
          %v4858 = vld [vmem:[%s11 + $0x3e8] sm:$0xff]
          %v4859 = vld [vmem:[%s11 + $0x3f0] sm:$0xff]
          %v4860 = vld [vmem:[%s11 + $0x3f8] sm:$0xff]
          %v4861 = vld [vmem:[%s11 + $0x400] sm:$0xff]
          %v4862 = vld [vmem:[%s11 + $0x408] sm:$0xff]
          %v4863 = vld [vmem:[%s11 + $0x410] sm:$0xff]
          %v4864 = vld [vmem:[%s11 + $0x418] sm:$0xff]
          %v4865 = vld [vmem:[%s11 + $0x420] sm:$0xff]
          %v4866 = vld [vmem:[%s11 + $0x428] sm:$0xff]
          %v4867 = vld [vmem:[%s11 + $0x430] sm:$0xff]
          %v4868 = vld [vmem:[%s11 + $0x438] sm:$0xff]
          %v4869 = vld [vmem:[%s11 + $0x440] sm:$0xff]
          %v4870 = vld [vmem:[%s11 + $0x448] sm:$0xff]
          %v4871 = vld [vmem:[%s11 + $0x450] sm:$0xff]
          %v4872 = vld [vmem:[%s11 + $0x458] sm:$0xff]
          %v4873 = vld [vmem:[%s11 + $0x460] sm:$0xff]
          %v4874 = vld [vmem:[%s11 + $0x468] sm:$0xff]
          %v4875 = vld [vmem:[%s11 + $0x470] sm:$0xff]
          %v4876 = vld [vmem:[%s11 + $0x478] sm:$0xff]
          %v4877 = vld [vmem:[%s11 + $0x480] sm:$0xff]
          %v4878 = vld [vmem:[%s11 + $0x488] sm:$0xff]
          %v4879 = vld [vmem:[%s11 + $0x490] sm:$0xff]
          %v4880 = vld [vmem:[%s11 + $0x498] sm:$0xff]
          %v4881 = vld [vmem:[%s11 + $0x4a0] sm:$0xff]
          %v4882 = vld [vmem:[%s11 + $0x4a8] sm:$0xff]
          %v4883 = vld [vmem:[%s11 + $0x4b0] sm:$0xff]
          %v4884 = vld [vmem:[%s11 + $0x4b8] sm:$0xff]
          %v4885 = vld [vmem:[%s11 + $0x4c0] sm:$0xff]
          %v4886 = vld [vmem:[%s11 + $0x4c8] sm:$0xff]
          %v4887 = vld [vmem:[%s11 + $0x4d0] sm:$0xff]
          %v4888 = vld [vmem:[%s11 + $0x4d8] sm:$0xff]
          %v4889 = vld [vmem:[%s11 + $0x4e0] sm:$0xff]
          %v4890 = vld [vmem:[%s11 + $0x4e8] sm:$0xff]
          %v4891 = vld [vmem:[%s11 + $0x4f0] sm:$0xff]
          %v4892 = vld [vmem:[%s11 + $0x4f8] sm:$0xff]
          %v4893 = vld [vmem:[%s11 + $0x500] sm:$0xff]
          %v4894 = vld [vmem:[%s11 + $0x508] sm:$0xff]
          %v4895 = vld [vmem:[%s11 + $0x510] sm:$0xff]
          %v4896 = vld [vmem:[%s11 + $0x518] sm:$0xff]
          %v4897 = vld [vmem:[%s11 + $0x520] sm:$0xff]
          %v4898 = vld [vmem:[%s11 + $0x528] sm:$0xff]
          %v4899 = vld [vmem:[%s11 + $0x530] sm:$0xff]
          %v4900 = vld [vmem:[%s11 + $0x538] sm:$0xff]
          %v4901 = vld [vmem:[%s11 + $0x540] sm:$0xff]
          %v4902 = vld [vmem:[%s11 + $0x548] sm:$0xff]
          %v4903 = vld [vmem:[%s11 + $0x550] sm:$0xff]
          %v4904 = vld [vmem:[%s11 + $0x558] sm:$0xff]
          %v4905 = vld [vmem:[%s11 + $0x560] sm:$0xff]
          %v4906 = vld [vmem:[%s11 + $0x568] sm:$0xff]
          %v4907 = vld [vmem:[%s11 + $0x570] sm:$0xff]
          %v4908 = vld [vmem:[%s11 + $0x578] sm:$0xff]
          %v4909 = vld [vmem:[%s11 + $0x580] sm:$0xff]
          %v4910 = vld [vmem:[%s11 + $0x588] sm:$0xff]
          %v4911 = vld [vmem:[%s11 + $0x590] sm:$0xff]
          %v4912 = vld [vmem:[%s11 + $0x598] sm:$0xff]
          %v4913 = vld [vmem:[%s11 + $0x5a0] sm:$0xff]
          %v4914 = vld [vmem:[%s11 + $0x5a8] sm:$0xff]
          %v4915 = vld [vmem:[%s11 + $0x5b0] sm:$0xff]
          %v4916 = vld [vmem:[%s11 + $0x5b8] sm:$0xff]
          %v4917 = vld [vmem:[%s11 + $0x5c0] sm:$0xff]
          %v4918 = vld [vmem:[%s11 + $0x5c8] sm:$0xff]
          %v4919 = vld [vmem:[%s11 + $0x5d0] sm:$0xff]
          %v4920 = vld [vmem:[%s11 + $0x5d8] sm:$0xff]
          %v4921 = vld [vmem:[%s11 + $0x5e0] sm:$0xff]
          %v4922 = vld [vmem:[%s11 + $0x5e8] sm:$0xff]
          %v4923 = vld [vmem:[%s11 + $0x5f0] sm:$0xff]
          %v4924 = vld [vmem:[%s11 + $0x5f8] sm:$0xff]
          %v4925 = vld [vmem:[%s11 + $0x600] sm:$0xff]
          %v4926 = vld [vmem:[%s11 + $0x608] sm:$0xff]
          %v4927 = vld [vmem:[%s11 + $0x610] sm:$0xff]
          %v4928 = vld [vmem:[%s11 + $0x618] sm:$0xff]
          %v4929 = vld [vmem:[%s11 + $0x620] sm:$0xff]
          %v4930 = vld [vmem:[%s11 + $0x628] sm:$0xff]
          %v4931 = vld [vmem:[%s11 + $0x630] sm:$0xff]
          %v4932 = vld [vmem:[%s11 + $0x638] sm:$0xff]
          %v4933 = vld [vmem:[%s11 + $0x640] sm:$0xff]
          %v4934 = vld [vmem:[%s11 + $0x648] sm:$0xff]
          %v4935 = vld [vmem:[%s11 + $0x650] sm:$0xff]
          %v4936 = vld [vmem:[%s11 + $0x658] sm:$0xff]
          %v4937 = vld [vmem:[%s11 + $0x660] sm:$0xff]
          %v4938 = vld [vmem:[%s11 + $0x668] sm:$0xff]
          %v4939 = vld [vmem:[%s11 + $0x670] sm:$0xff]
          %v4940 = vld [vmem:[%s11 + $0x678] sm:$0xff]
          %v4941 = vld [vmem:[%s11 + $0x680] sm:$0xff]
          %v4942 = vld [vmem:[%s11 + $0x688] sm:$0xff]
          %v4943 = vld [vmem:[%s11 + $0x690] sm:$0xff]
          %v4944 = vld [vmem:[%s11 + $0x698] sm:$0xff]
          %v4945 = vld [vmem:[%s11 + $0x6a0] sm:$0xff]
          %v4946 = vld [vmem:[%s11 + $0x6a8] sm:$0xff]
          %v4947 = vld [vmem:[%s11 + $0x6b0] sm:$0xff]
          %v4948 = vld [vmem:[%s11 + $0x6b8] sm:$0xff]
          %v4949 = vld [vmem:[%s11 + $0x6c0] sm:$0xff]
          %v4950 = vld [vmem:[%s11 + $0x6c8] sm:$0xff]
          %v4951 = vld [vmem:[%s11 + $0x6d0] sm:$0xff]
          %v4952 = vld [vmem:[%s11 + $0x6d8] sm:$0xff]
          %v4953 = vld [vmem:[%s11 + $0x6e0] sm:$0xff]
          %v4954 = vld [vmem:[%s11 + $0x6e8] sm:$0xff]
          %v4955 = vld [vmem:[%s11 + $0x6f0] sm:$0xff]
          %v4956 = vld [vmem:[%s11 + $0x6f8] sm:$0xff]
          %v4957 = vld [vmem:[%s11 + $0x700] sm:$0xff]
          %v4958 = vld [vmem:[%s11 + $0x708] sm:$0xff]
          %v4959 = vld [vmem:[%s11 + $0x710] sm:$0xff]
          %v4960 = vld [vmem:[%s11 + $0x718] sm:$0xff]
          %v4961 = vld [vmem:[%s11 + $0x720] sm:$0xff]
          %v4962 = vld [vmem:[%s11 + $0x728] sm:$0xff]
          %v4963 = vld [vmem:[%s11 + $0x730] sm:$0xff]
          %v4964 = vld [vmem:[%s11 + $0x738] sm:$0xff]
          %v4965 = vld [vmem:[%s11 + $0x740] sm:$0xff]
          %v4966 = vld [vmem:[%s11 + $0x748] sm:$0xff]
          %v4967 = vld [vmem:[%s11 + $0x750] sm:$0xff]
          %v4968 = vld [vmem:[%s11 + $0x758] sm:$0xff]
          %v4969 = vld [vmem:[%s11 + $0x760] sm:$0xff]
          %v4970 = vld [vmem:[%s11 + $0x768] sm:$0xff]
          %v4971 = vld [vmem:[%s11 + $0x770] sm:$0xff]
          %v4972 = vld [vmem:[%s11 + $0x778] sm:$0xff]
          %v4973 = vld [vmem:[%s11 + $0x780] sm:$0xff]
          %v4974 = vld [vmem:[%s11 + $0x788] sm:$0xff]
          %v4975 = vld [vmem:[%s11 + $0x790] sm:$0xff]
          %v4976 = vld [vmem:[%s11 + $0x798] sm:$0xff]
          %v4977 = vld [vmem:[%s11 + $0x7a0] sm:$0xff]
          %v4978 = vld [vmem:[%s11 + $0x7a8] sm:$0xff]
          %v4979 = vld [vmem:[%s11 + $0x7b0] sm:$0xff]
          %v4980 = vld [vmem:[%s11 + $0x7b8] sm:$0xff]
          %v4981 = vld [vmem:[%s11 + $0x7c0] sm:$0xff]
          %v4982 = vld [vmem:[%s11 + $0x7c8] sm:$0xff]
          %v4983 = vld [vmem:[%s11 + $0x7d0] sm:$0xff]
          %v4984 = vld [vmem:[%s11 + $0x7d8] sm:$0xff]
          %v4985 = vld [vmem:[%s11 + $0x7e0] sm:$0xff]
          %v4986 = vld [vmem:[%s11 + $0x7e8] sm:$0xff]
          %v4987 = vld [vmem:[%s11 + $0x7f0] sm:$0xff]
          %v4988 = vld [vmem:[%s11 + $0x7f8] sm:$0xff]
          %v4989 = vld [vmem:[%s11 + $0x800] sm:$0xff]
          %v4990 = vld [vmem:[%s11 + $0x808] sm:$0xff]
          %v4991 = vld [vmem:[%s11 + $0x810] sm:$0xff]
          %v4992 = vld [vmem:[%s11 + $0x818] sm:$0xff]
          %v4993 = vld [vmem:[%s11 + $0x820] sm:$0xff]
          %v4994 = vld [vmem:[%s11 + $0x828] sm:$0xff]
          %v4995 = vld [vmem:[%s11 + $0x830] sm:$0xff]
          %v4996 = vld [vmem:[%s11 + $0x838] sm:$0xff]
          %v4997 = vld [vmem:[%s11 + $0x840] sm:$0xff]
          %v4998 = vld [vmem:[%s11 + $0x848] sm:$0xff]
          %v4999 = vld [vmem:[%s11 + $0x850] sm:$0xff]
          %v5000 = vld [vmem:[%s11 + $0x858] sm:$0xff]
          %v5001 = vld [vmem:[%s11 + $0x860] sm:$0xff]
          %v5002 = vld [vmem:[%s11 + $0x868] sm:$0xff]
          %v5003 = vld [vmem:[%s11 + $0x870] sm:$0xff]
          %v5004 = vld [vmem:[%s11 + $0x878] sm:$0xff]
          %v5005 = vld [vmem:[%s11 + $0x880] sm:$0xff]
          %v5006 = vld [vmem:[%s11 + $0x888] sm:$0xff]
          %v5007 = vld [vmem:[%s11 + $0x890] sm:$0xff]
          %v5008 = vld [vmem:[%s11 + $0x898] sm:$0xff]
          %v5009 = vld [vmem:[%s11 + $0x8a0] sm:$0xff]
          %v5010 = vld [vmem:[%s11 + $0x8a8] sm:$0xff]
          %v5011 = vld [vmem:[%s11 + $0x8b0] sm:$0xff]
          %v5012 = vld [vmem:[%s11 + $0x8b8] sm:$0xff]
          %v5013 = vld [vmem:[%s11 + $0x8c0] sm:$0xff]
          %v5014 = vld [vmem:[%s11 + $0x8c8] sm:$0xff]
          %v5015 = vld [vmem:[%s11 + $0x8d0] sm:$0xff]
          %v5016 = vld [vmem:[%s11 + $0x8d8] sm:$0xff]
          %v5017 = vld [vmem:[%s11 + $0x8e0] sm:$0xff]
          %v5018 = vld [vmem:[%s11 + $0x8e8] sm:$0xff]
          %v5019 = vld [vmem:[%s11 + $0x8f0] sm:$0xff]
          %v5020 = vld [vmem:[%s11 + $0x8f8] sm:$0xff]
          %v5021 = vld [vmem:[%s11 + $0x900] sm:$0xff]
          %v5022 = vld [vmem:[%s11 + $0x908] sm:$0xff]
          %v5023 = vld [vmem:[%s11 + $0x910] sm:$0xff]
          %v5024 = vld [vmem:[%s11 + $0x918] sm:$0xff]
          %v5025 = vld [vmem:[%s11 + $0x920] sm:$0xff]
          %v5026 = vld [vmem:[%s11 + $0x928] sm:$0xff]
          %v5027 = vld [vmem:[%s11 + $0x930] sm:$0xff]
          %v5028 = vld [vmem:[%s11 + $0x938] sm:$0xff]
          %v5029 = vld [vmem:[%s11 + $0x940] sm:$0xff]
          %v5030 = vld [vmem:[%s11 + $0x948] sm:$0xff]
          %v5031 = vld [vmem:[%s11 + $0x950] sm:$0xff]
          %v5032 = vld [vmem:[%s11 + $0x958] sm:$0xff]
          %v5033 = vld [vmem:[%s11 + $0x960] sm:$0xff]
          %v5034 = vld [vmem:[%s11 + $0x968] sm:$0xff]
          %v5035 = vld [vmem:[%s11 + $0x970] sm:$0xff]
          %v5036 = vld [vmem:[%s11 + $0x978] sm:$0xff]
          %v5037 = vld [vmem:[%s11 + $0x980] sm:$0xff]
          %v5038 = vld [vmem:[%s11 + $0x988] sm:$0xff]
          %v5039 = vld [vmem:[%s11 + $0x990] sm:$0xff]
          %v5040 = vld [vmem:[%s11 + $0x998] sm:$0xff]
          %v5041 = vld [vmem:[%s11 + $0x9a0] sm:$0xff]
          %v5042 = vld [vmem:[%s11 + $0x9a8] sm:$0xff]
          %v5043 = vld [vmem:[%s11 + $0x9b0] sm:$0xff]
          %v5044 = vld [vmem:[%s11 + $0x9b8] sm:$0xff]
          %v5045 = vld [vmem:[%s11 + $0x9c0] sm:$0xff]
          %v5046 = vld [vmem:[%s11 + $0x9c8] sm:$0xff]
          %v5047 = vld [vmem:[%s11 + $0x9d0] sm:$0xff]
          %v5048 = vld [vmem:[%s11 + $0x9d8] sm:$0xff]
          %v5049 = vld [vmem:[%s11 + $0x9e0] sm:$0xff]
          %v5050 = vld [vmem:[%s11 + $0x9e8] sm:$0xff]
          %v5051 = vld [vmem:[%s11 + $0x9f0] sm:$0xff]
          %v5052 = vld [vmem:[%s11 + $0x9f8] sm:$0xff]
          %v5053 = vld [vmem:[%s12] sm:$0x3]
          %v5055 = vlaneseq
          %v5056 = vshrl.u32 %v5055, 7
          %v5057 = vsub.s32 0, %v5056
          %v5058 = vrot.slane %v5053, %v5057
          %v5059 = vlaneseq
          %v5060 = vshrl.u32 %v5059, 7
          %v5061 = vsub.s32 1, %v5060
          %v5062 = vrot.slane %v5053, %v5061
          %5065 = vmatprep.subr.mxu0 %v4764
          %5066 = vmatpush1.msra.mxu0 %v4763
          %5067 = vmatprep.subr.mxu0 %v4762
          %5068 = vmatpush1.msra.mxu0 %v4761
          %5069 = vmatprep.subr.mxu0 %v4760
          %5070 = vmatpush1.msra.mxu0 %v4759
          %5071 = vmatprep.subr.mxu0 %v4758
          %5072 = vmatpush1.msra.mxu0 %v4757
          %5073 = vmatprep.subr.mxu0 %v4756
          %5074 = vmatpush1.msra.mxu0 %v4755
          %5075 = vmatprep.subr.mxu0 %v4754
          %5076 = vmatpush1.msra.mxu0 %v4753
          %5077 = vmatprep.subr.mxu0 %v4752
          %5078 = vmatpush1.msra.mxu0 %v4751
          %5079 = vmatprep.subr.mxu0 %v4750
          %5080 = vmatpush1.msra.mxu0 %v4749
          %5081 = vmatprep.subr.mxu0 %v4748
          %5082 = vmatpush1.msra.mxu0 %v4747
          %5083 = vmatprep.subr.mxu0 %v4746
          %5084 = vmatpush1.msra.mxu0 %v4745
          %5085 = vmatprep.subr.mxu0 %v4744
          %5086 = vmatpush1.msra.mxu0 %v4743
          %5087 = vmatprep.subr.mxu0 %v4742
          %5088 = vmatpush1.msra.mxu0 %v4741
          %5089 = vmatprep.subr.mxu0 %v4740
          %5090 = vmatpush1.msra.mxu0 %v4739
          %5091 = vmatprep.subr.mxu0 %v4738
          %5092 = vmatpush1.msra.mxu0 %v4737
          %5093 = vmatprep.subr.mxu0 %v4736
          %5094 = vmatpush1.msra.mxu0 %v4735
          %5095 = vmatprep.subr.mxu0 %v4734
          %5096 = vmatpush1.msra.mxu0 %v4733
          %5097 = vmatprep.subr.mxu0 %v4796
          %5098 = vmatpush2.msra.mxu0 %v4795
          %5099 = vmatprep.subr.mxu0 %v4794
          %5100 = vmatpush2.msra.mxu0 %v4793
          %5101 = vmatprep.subr.mxu0 %v4792
          %5102 = vmatpush2.msra.mxu0 %v4791
          %5103 = vmatprep.subr.mxu0 %v4790
          %5104 = vmatpush2.msra.mxu0 %v4789
          %5105 = vmatprep.subr.mxu0 %v4788
          %5106 = vmatpush2.msra.mxu0 %v4787
          %5107 = vmatprep.subr.mxu0 %v4786
          %5108 = vmatpush2.msra.mxu0 %v4785
          %5109 = vmatprep.subr.mxu0 %v4784
          %5110 = vmatpush2.msra.mxu0 %v4783
          %5111 = vmatprep.subr.mxu0 %v4782
          %5112 = vmatpush2.msra.mxu0 %v4781
          %5113 = vmatprep.subr.mxu0 %v4780
          %5114 = vmatpush2.msra.mxu0 %v4779
          %5115 = vmatprep.subr.mxu0 %v4778
          %5116 = vmatpush2.msra.mxu0 %v4777
          %5117 = vmatprep.subr.mxu0 %v4776
          %5118 = vmatpush2.msra.mxu0 %v4775
          %5119 = vmatprep.subr.mxu0 %v4774
          %5120 = vmatpush2.msra.mxu0 %v4773
          %5121 = vmatprep.subr.mxu0 %v4772
          %5122 = vmatpush2.msra.mxu0 %v4771
          %5123 = vmatprep.subr.mxu0 %v4770
          %5124 = vmatpush2.msra.mxu0 %v4769
          %5125 = vmatprep.subr.mxu0 %v4768
          %5126 = vmatpush2.msra.mxu0 %v4767
          %5127 = vmatprep.subr.mxu0 %v4766
          %5128 = vmatpush2.msra.mxu0 %v4765
          %5129 = vmatprep.mubr.f32.mxu0 %v4154
          %5130 = vmatmul.mubr.f32.gmra.mxu0 %v4075
          %v5131 = vpop.f32.mrf.mxu0
          %v5132 = vadd.f32 %v5058, %v5131
          %v5133 = vpop.f32.mrf.mxu0
          %v5134 = vadd.f32 %v5062, %v5133
          %5135 = vdwg.mxu0
          %5136 = vmatprep.subr.mxu0 %v4828
          %5137 = vmatpush1.msra.mxu0 %v4827
          %5138 = vmatprep.subr.mxu0 %v4826
          %5139 = vmatpush1.msra.mxu0 %v4825
          %5140 = vmatprep.subr.mxu0 %v4824
          %5141 = vmatpush1.msra.mxu0 %v4823
          %5142 = vmatprep.subr.mxu0 %v4822
          %5143 = vmatpush1.msra.mxu0 %v4821
          %5144 = vmatprep.subr.mxu0 %v4820
          %5145 = vmatpush1.msra.mxu0 %v4819
          %5146 = vmatprep.subr.mxu0 %v4818
          %5147 = vmatpush1.msra.mxu0 %v4817
          %5148 = vmatprep.subr.mxu0 %v4816
          %5149 = vmatpush1.msra.mxu0 %v4815
          %5150 = vmatprep.subr.mxu0 %v4814
          %5151 = vmatpush1.msra.mxu0 %v4813
          %5152 = vmatprep.subr.mxu0 %v4812
          %5153 = vmatpush1.msra.mxu0 %v4811
          %5154 = vmatprep.subr.mxu0 %v4810
          %5155 = vmatpush1.msra.mxu0 %v4809
          %5156 = vmatprep.subr.mxu0 %v4808
          %5157 = vmatpush1.msra.mxu0 %v4807
          %5158 = vmatprep.subr.mxu0 %v4806
          %5159 = vmatpush1.msra.mxu0 %v4805
          %5160 = vmatprep.subr.mxu0 %v4804
          %5161 = vmatpush1.msra.mxu0 %v4803
          %5162 = vmatprep.subr.mxu0 %v4802
          %5163 = vmatpush1.msra.mxu0 %v4801
          %5164 = vmatprep.subr.mxu0 %v4800
          %5165 = vmatpush1.msra.mxu0 %v4799
          %5166 = vmatprep.subr.mxu0 %v4798
          %5167 = vmatpush1.msra.mxu0 %v4797
          %5168 = vmatprep.subr.mxu0 %v4860
          %5169 = vmatpush2.msra.mxu0 %v4859
          %5170 = vmatprep.subr.mxu0 %v4858
          %5171 = vmatpush2.msra.mxu0 %v4857
          %5172 = vmatprep.subr.mxu0 %v4856
          %5173 = vmatpush2.msra.mxu0 %v4855
          %5174 = vmatprep.subr.mxu0 %v4854
          %5175 = vmatpush2.msra.mxu0 %v4853
          %5176 = vmatprep.subr.mxu0 %v4852
          %5177 = vmatpush2.msra.mxu0 %v4851
          %5178 = vmatprep.subr.mxu0 %v4850
          %5179 = vmatpush2.msra.mxu0 %v4849
          %5180 = vmatprep.subr.mxu0 %v4848
          %5181 = vmatpush2.msra.mxu0 %v4847
          %5182 = vmatprep.subr.mxu0 %v4846
          %5183 = vmatpush2.msra.mxu0 %v4845
          %5184 = vmatprep.subr.mxu0 %v4844
          %5185 = vmatpush2.msra.mxu0 %v4843
          %5186 = vmatprep.subr.mxu0 %v4842
          %5187 = vmatpush2.msra.mxu0 %v4841
          %5188 = vmatprep.subr.mxu0 %v4840
          %5189 = vmatpush2.msra.mxu0 %v4839
          %5190 = vmatprep.subr.mxu0 %v4838
          %5191 = vmatpush2.msra.mxu0 %v4837
          %5192 = vmatprep.subr.mxu0 %v4836
          %5193 = vmatpush2.msra.mxu0 %v4835
          %5194 = vmatprep.subr.mxu0 %v4834
          %5195 = vmatpush2.msra.mxu0 %v4833
          %5196 = vmatprep.subr.mxu0 %v4832
          %5197 = vmatpush2.msra.mxu0 %v4831
          %5198 = vmatprep.subr.mxu0 %v4830
          %5199 = vmatpush2.msra.mxu0 %v4829
          %5200 = vmatprep.mubr.f32.mxu0 %v4346
          %5201 = vmatmul.mubr.f32.gmra.mxu0 %v4267
          %v5202 = vpop.f32.mrf.mxu0
          %v5203 = vadd.f32 %v5132, %v5202
          %v5204 = vpop.f32.mrf.mxu0
          %v5205 = vadd.f32 %v5134, %v5204
          %5206 = vdwg.mxu0
          %5207 = vmatprep.subr.mxu0 %v4892
          %5208 = vmatpush1.msra.mxu0 %v4891
          %5209 = vmatprep.subr.mxu0 %v4890
          %5210 = vmatpush1.msra.mxu0 %v4889
          %5211 = vmatprep.subr.mxu0 %v4888
          %5212 = vmatpush1.msra.mxu0 %v4887
          %5213 = vmatprep.subr.mxu0 %v4886
          %5214 = vmatpush1.msra.mxu0 %v4885
          %5215 = vmatprep.subr.mxu0 %v4884
          %5216 = vmatpush1.msra.mxu0 %v4883
          %5217 = vmatprep.subr.mxu0 %v4882
          %5218 = vmatpush1.msra.mxu0 %v4881
          %5219 = vmatprep.subr.mxu0 %v4880
          %5220 = vmatpush1.msra.mxu0 %v4879
          %5221 = vmatprep.subr.mxu0 %v4878
          %5222 = vmatpush1.msra.mxu0 %v4877
          %5223 = vmatprep.subr.mxu0 %v4876
          %5224 = vmatpush1.msra.mxu0 %v4875
          %5225 = vmatprep.subr.mxu0 %v4874
          %5226 = vmatpush1.msra.mxu0 %v4873
          %5227 = vmatprep.subr.mxu0 %v4872
          %5228 = vmatpush1.msra.mxu0 %v4871
          %5229 = vmatprep.subr.mxu0 %v4870
          %5230 = vmatpush1.msra.mxu0 %v4869
          %5231 = vmatprep.subr.mxu0 %v4868
          %5232 = vmatpush1.msra.mxu0 %v4867
          %5233 = vmatprep.subr.mxu0 %v4866
          %5234 = vmatpush1.msra.mxu0 %v4865
          %5235 = vmatprep.subr.mxu0 %v4864
          %5236 = vmatpush1.msra.mxu0 %v4863
          %5237 = vmatprep.subr.mxu0 %v4862
          %5238 = vmatpush1.msra.mxu0 %v4861
          %5239 = vmatprep.subr.mxu0 %v4924
          %5240 = vmatpush2.msra.mxu0 %v4923
          %5241 = vmatprep.subr.mxu0 %v4922
          %5242 = vmatpush2.msra.mxu0 %v4921
          %5243 = vmatprep.subr.mxu0 %v4920
          %5244 = vmatpush2.msra.mxu0 %v4919
          %5245 = vmatprep.subr.mxu0 %v4918
          %5246 = vmatpush2.msra.mxu0 %v4917
          %5247 = vmatprep.subr.mxu0 %v4916
          %5248 = vmatpush2.msra.mxu0 %v4915
          %5249 = vmatprep.subr.mxu0 %v4914
          %5250 = vmatpush2.msra.mxu0 %v4913
          %5251 = vmatprep.subr.mxu0 %v4912
          %5252 = vmatpush2.msra.mxu0 %v4911
          %5253 = vmatprep.subr.mxu0 %v4910
          %5254 = vmatpush2.msra.mxu0 %v4909
          %5255 = vmatprep.subr.mxu0 %v4908
          %5256 = vmatpush2.msra.mxu0 %v4907
          %5257 = vmatprep.subr.mxu0 %v4906
          %5258 = vmatpush2.msra.mxu0 %v4905
          %5259 = vmatprep.subr.mxu0 %v4904
          %5260 = vmatpush2.msra.mxu0 %v4903
          %5261 = vmatprep.subr.mxu0 %v4902
          %5262 = vmatpush2.msra.mxu0 %v4901
          %5263 = vmatprep.subr.mxu0 %v4900
          %5264 = vmatpush2.msra.mxu0 %v4899
          %5265 = vmatprep.subr.mxu0 %v4898
          %5266 = vmatpush2.msra.mxu0 %v4897
          %5267 = vmatprep.subr.mxu0 %v4896
          %5268 = vmatpush2.msra.mxu0 %v4895
          %5269 = vmatprep.subr.mxu0 %v4894
          %5270 = vmatpush2.msra.mxu0 %v4893
          %5271 = vmatprep.mubr.f32.mxu0 %v4538
          %5272 = vmatmul.mubr.f32.gmra.mxu0 %v4459
          %v5273 = vpop.f32.mrf.mxu0
          %v5274 = vadd.f32 %v5203, %v5273
          %v5275 = vpop.f32.mrf.mxu0
          %v5276 = vadd.f32 %v5205, %v5275
          %5277 = vdwg.mxu0
          %5278 = vmatprep.subr.mxu0 %v4956
          %5279 = vmatpush1.msra.mxu0 %v4955
          %5280 = vmatprep.subr.mxu0 %v4954
          %5281 = vmatpush1.msra.mxu0 %v4953
          %5282 = vmatprep.subr.mxu0 %v4952
          %5283 = vmatpush1.msra.mxu0 %v4951
          %5284 = vmatprep.subr.mxu0 %v4950
          %5285 = vmatpush1.msra.mxu0 %v4949
          %5286 = vmatprep.subr.mxu0 %v4948
          %5287 = vmatpush1.msra.mxu0 %v4947
          %5288 = vmatprep.subr.mxu0 %v4946
          %5289 = vmatpush1.msra.mxu0 %v4945
          %5290 = vmatprep.subr.mxu0 %v4944
          %5291 = vmatpush1.msra.mxu0 %v4943
          %5292 = vmatprep.subr.mxu0 %v4942
          %5293 = vmatpush1.msra.mxu0 %v4941
          %5294 = vmatprep.subr.mxu0 %v4940
          %5295 = vmatpush1.msra.mxu0 %v4939
          %5296 = vmatprep.subr.mxu0 %v4938
          %5297 = vmatpush1.msra.mxu0 %v4937
          %5298 = vmatprep.subr.mxu0 %v4936
          %5299 = vmatpush1.msra.mxu0 %v4935
          %5300 = vmatprep.subr.mxu0 %v4934
          %5301 = vmatpush1.msra.mxu0 %v4933
          %5302 = vmatprep.subr.mxu0 %v4932
          %5303 = vmatpush1.msra.mxu0 %v4931
          %5304 = vmatprep.subr.mxu0 %v4930
          %5305 = vmatpush1.msra.mxu0 %v4929
          %5306 = vmatprep.subr.mxu0 %v4928
          %5307 = vmatpush1.msra.mxu0 %v4927
          %5308 = vmatprep.subr.mxu0 %v4926
          %5309 = vmatpush1.msra.mxu0 %v4925
          %5310 = vmatprep.subr.mxu0 %v4988
          %5311 = vmatpush2.msra.mxu0 %v4987
          %5312 = vmatprep.subr.mxu0 %v4986
          %5313 = vmatpush2.msra.mxu0 %v4985
          %5314 = vmatprep.subr.mxu0 %v4984
          %5315 = vmatpush2.msra.mxu0 %v4983
          %5316 = vmatprep.subr.mxu0 %v4982
          %5317 = vmatpush2.msra.mxu0 %v4981
          %5318 = vmatprep.subr.mxu0 %v4980
          %5319 = vmatpush2.msra.mxu0 %v4979
          %5320 = vmatprep.subr.mxu0 %v4978
          %5321 = vmatpush2.msra.mxu0 %v4977
          %5322 = vmatprep.subr.mxu0 %v4976
          %5323 = vmatpush2.msra.mxu0 %v4975
          %5324 = vmatprep.subr.mxu0 %v4974
          %5325 = vmatpush2.msra.mxu0 %v4973
          %5326 = vmatprep.subr.mxu0 %v4972
          %5327 = vmatpush2.msra.mxu0 %v4971
          %5328 = vmatprep.subr.mxu0 %v4970
          %5329 = vmatpush2.msra.mxu0 %v4969
          %5330 = vmatprep.subr.mxu0 %v4968
          %5331 = vmatpush2.msra.mxu0 %v4967
          %5332 = vmatprep.subr.mxu0 %v4966
          %5333 = vmatpush2.msra.mxu0 %v4965
          %5334 = vmatprep.subr.mxu0 %v4964
          %5335 = vmatpush2.msra.mxu0 %v4963
          %5336 = vmatprep.subr.mxu0 %v4962
          %5337 = vmatpush2.msra.mxu0 %v4961
          %5338 = vmatprep.subr.mxu0 %v4960
          %5339 = vmatpush2.msra.mxu0 %v4959
          %5340 = vmatprep.subr.mxu0 %v4958
          %5341 = vmatpush2.msra.mxu0 %v4957
          %5342 = vmatprep.mubr.f32.mxu0 %v4730
          %5343 = vmatmul.mubr.f32.gmra.mxu0 %v4651
          %v5344 = vpop.f32.mrf.mxu0
          %v5345 = vadd.f32 %v5274, %v5344
          %v5346 = vpop.f32.mrf.mxu0
          %v5347 = vadd.f32 %v5276, %v5346
          %5348 = vdwg.mxu0
          %5349 = vmatprep.subr.mxu0 %v5020
          %5350 = vmatpush1.msra.mxu0 %v5019
          %5351 = vmatprep.subr.mxu0 %v5018
          %5352 = vmatpush1.msra.mxu0 %v5017
          %5353 = vmatprep.subr.mxu0 %v5016
          %5354 = vmatpush1.msra.mxu0 %v5015
          %5355 = vmatprep.subr.mxu0 %v5014
          %5356 = vmatpush1.msra.mxu0 %v5013
          %5357 = vmatprep.subr.mxu0 %v5012
          %5358 = vmatpush1.msra.mxu0 %v5011
          %5359 = vmatprep.subr.mxu0 %v5010
          %5360 = vmatpush1.msra.mxu0 %v5009
          %5361 = vmatprep.subr.mxu0 %v5008
          %5362 = vmatpush1.msra.mxu0 %v5007
          %5363 = vmatprep.subr.mxu0 %v5006
          %5364 = vmatpush1.msra.mxu0 %v5005
          %5365 = vmatprep.subr.mxu0 %v5004
          %5366 = vmatpush1.msra.mxu0 %v5003
          %5367 = vmatprep.subr.mxu0 %v5002
          %5368 = vmatpush1.msra.mxu0 %v5001
          %5369 = vmatprep.subr.mxu0 %v5000
          %5370 = vmatpush1.msra.mxu0 %v4999
          %5371 = vmatprep.subr.mxu0 %v4998
          %5372 = vmatpush1.msra.mxu0 %v4997
          %5373 = vmatprep.subr.mxu0 %v4996
          %5374 = vmatpush1.msra.mxu0 %v4995
          %5375 = vmatprep.subr.mxu0 %v4994
          %5376 = vmatpush1.msra.mxu0 %v4993
          %5377 = vmatprep.subr.mxu0 %v4992
          %5378 = vmatpush1.msra.mxu0 %v4991
          %5379 = vmatprep.subr.mxu0 %v4990
          %5380 = vmatpush1.msra.mxu0 %v4989
          %5381 = vmatprep.subr.mxu0 %v5052
          %5382 = vmatpush2.msra.mxu0 %v5051
          %5383 = vmatprep.subr.mxu0 %v5050
          %5384 = vmatpush2.msra.mxu0 %v5049
          %5385 = vmatprep.subr.mxu0 %v5048
          %5386 = vmatpush2.msra.mxu0 %v5047
          %5387 = vmatprep.subr.mxu0 %v5046
          %5388 = vmatpush2.msra.mxu0 %v5045
          %5389 = vmatprep.subr.mxu0 %v5044
          %5390 = vmatpush2.msra.mxu0 %v5043
          %5391 = vmatprep.subr.mxu0 %v5042
          %5392 = vmatpush2.msra.mxu0 %v5041
          %5393 = vmatprep.subr.mxu0 %v5040
          %5394 = vmatpush2.msra.mxu0 %v5039
          %5395 = vmatprep.subr.mxu0 %v5038
          %5396 = vmatpush2.msra.mxu0 %v5037
          %5397 = vmatprep.subr.mxu0 %v5036
          %5398 = vmatpush2.msra.mxu0 %v5035
          %5399 = vmatprep.subr.mxu0 %v5034
          %5400 = vmatpush2.msra.mxu0 %v5033
          %5401 = vmatprep.subr.mxu0 %v5032
          %5402 = vmatpush2.msra.mxu0 %v5031
          %5403 = vmatprep.subr.mxu0 %v5030
          %5404 = vmatpush2.msra.mxu0 %v5029
          %5405 = vmatprep.subr.mxu0 %v5028
          %5406 = vmatpush2.msra.mxu0 %v5027
          %5407 = vmatprep.subr.mxu0 %v5026
          %5408 = vmatpush2.msra.mxu0 %v5025
          %5409 = vmatprep.subr.mxu0 %v5024
          %5410 = vmatpush2.msra.mxu0 %v5023
          %5411 = vmatprep.subr.mxu0 %v5022
          %5412 = vmatpush2.msra.mxu0 %v5021
          %5413 = vmatprep.mubr.f32.mxu0 %v3933
          %5414 = vmatmul.mubr.f32.gmra.mxu0 %v3931
          %v5415 = vpop.f32.mrf.mxu0
          %v5416 = vadd.f32 %v5345, %v5415
          %v5417 = vpop.f32.mrf.mxu0
          %v5418 = vadd.f32 %v5347, %v5417
          %5419 = vdwg.mxu0
          %v5422 = vcombine.low %v5416, %v5418
          %v5424 = vunpack.c.l.s4 1966171168
          %v5425 = vunpack.c.0.s8 %v5424
          %v5426 = vlaneseq
          %v5427 = vshrl.u32 %v5426, 7
          %v5428 = vsub.s32 %v5425, %v5427
          %v5429 = vrot.slane %v5422, %v5428
          %v5431 = vunpack.c.l.s4 1966171168
          %v5432 = vunpack.c.0.s8 %v5431
          %v5433 = vlaneseq
          %v5434 = vshrl.u32 %v5433, 7
          %v5435 = vsub.s32 %v5432, %v5434
          %v5436 = vrot.slane %v5429, %v5435
          %v5438 = vlaneseq
          %vm5439 = vcmp.ge.s32.totalorder %v5438, 0
          %vm5440 = vcmp.lt.s32.totalorder %v5438, 256
          %vm5441 = vmand %vm5439, %vm5440
          %5442 = vst.msk [vmem:[%s1175] sm:$0x3] %vm5441, %v5436
        $region150: #{tpu_custom_call.1} parent=133 // pred_fallthru
          _
        %s5443 = sand.u32 %s351, 1
        %s5444 = scalar_lea.sflag [#allocation5], %s5443
        %s5445 = sand.u32 %s351, 1
        %s5446 = smul.addr %s5445, 2
        %s5447 = scalar_lea.vmem [#allocation4], %s5446
        // Predicated region
        $region151: #{tpu_custom_call.1} parent=133 // pred_check
          %p5448 = pneg %p361
        $region152: #{tpu_custom_call.1} parent=133 // pred_check_branch
          %5450 = sbr.rel (%p5448) target = $region154
        $region153: #{tpu_custom_call.1} parent=133 // pred_region
          %s5452 = ssub.s32 32, 32
          %5453 = vsyncadd %s5444, %s5452
          %s5454 = smul.addr %s31, 2
          %s5455 = smul.addr %s5454, 16
          %s5456 = scalar_lea.hbm %s13, %s5455
          %s5458 = sshll.u32 %s5447, 4
          %s5459 = int_to_ptr.vmem [resolvable:$true] %s5458
          %5461 = dma.vmem_to_hbm [thread:$0]  %s5459, 32, %s5456, %s5444
        $region154: #{tpu_custom_call.1} parent=133 // pred_fallthru
          _
      $region134: #{tpu_custom_call.1} parent=5 // pred_fallthru
        _
      %p5462 = scmp.le.s32.totalorder 2, %s22
      // Predicated region
      $region155: #{tpu_custom_call.1} parent=5 // pred_check
        %p5463 = pneg %p5462
      $region156: #{tpu_custom_call.1} parent=5 // pred_check_branch
        %5465 = sbr.rel (%p5463) target = $region158
      $region157: #{tpu_custom_call.1} parent=5 // pred_region
        %s5466 = ssub.s32 %s22, 2
        // Predicated region
        $region159: #{tpu_custom_call.1} parent=157 // pred_check
          %p5467 = pneg %p367
        $region160: #{tpu_custom_call.1} parent=157 // pred_check_branch
          %5469 = sbr.rel (%p5467) target = $region162
        $region161: #{tpu_custom_call.1} parent=157 // pred_region
          %s5470 = sand.u32 %s352, 1
          %s5471 = scalar_lea.sflag [#allocation5], %s5470
          %s5472 = sand.u32 %s352, 1
          %s5473 = smul.addr %s5472, 2
          %s5474 = scalar_lea.vmem [#allocation4], %s5473
          %5475 = dma.done %s5471, 32
        $region162: #{tpu_custom_call.1} parent=157 // pred_fallthru
          _
      $region158: #{tpu_custom_call.1} parent=5 // pred_fallthru
        _
    $region6: #{tpu_custom_call.1} parent=1 // loop_footer
      %s26 = sadd.s32 1, %s22
    $region7: #{tpu_custom_call.1} parent=1 // loop_footer_branch
      %21 = sbr.rel target = $region3
    $region8: #{tpu_custom_call.1} parent=1 // loop_exit
      _
    %5476 = vsyncpa [#allocation5], 1
    %s5477 = scalar_lea.sflag [#allocation5], 1
    %5478 = vsyncpa %s5477, 1

</llo_original>
